<compile_context>
chip_gen: v6e
topology: v6e:2x2x1
jax: 0.10.0
libtpu: 0.0.40
codegen_flags: <defaults>
</compile_context>

<pallas_src>
import functools

import numpy as np

import jax
import jax.numpy as jnp
from jax.experimental import pallas as pl
from jax.experimental.pallas import tpu as pltpu


def _round_up(x, m):
    return (x + m - 1) // m * m


def _pad2d(a, rows, cols):
    out = jnp.zeros((rows, cols), a.dtype)
    return out.at[: a.shape[0], : a.shape[1]].set(a)


def _full_specs(arrays):
    # One full-array block per input (single-step grid).
    return [pl.BlockSpec(a.shape, lambda *_, nd=a.ndim: (0,) * nd) for a in arrays]


def _maybe_buffered_spec(block_shape, index_map, buffers):
    """BlockSpec with N-deep pipelining; falls back to default double-buffering."""
    try:
        return pl.BlockSpec(block_shape, index_map,
                            pipeline_mode=pl.Buffered(buffers))
    except (TypeError, AttributeError):
        return pl.BlockSpec(block_shape, index_map)


def _pick_tn():
    """Output-column tile width for the fc2 streaming kernel, per chip."""
    try:
        kind = jax.devices()[0].device_kind.lower()
    except Exception:
        return 512
    for old in ("v2", "v3", "v4", "v5"):
        if old in kind:
            return 512       # most HBM-bound: keep padding minimal
    return 1024              # v6e / v7x: halve per-step overhead


# ---------------------------------------------------------------------------
# Kernel 1 (prologue, grid=(1,)):
#   segment-max pool -> SiLU -> dist Linear (mu / sigma, pre-split weights)
#   -> softplus(sigma)+1e-7 -> fc1(+folded BN) + exact GELU for all 6 decoders.
# ---------------------------------------------------------------------------
def _prologue_kernel(h_ref, batch_ref, wmu_ref, bmu_ref, wsg_ref, bsg_ref,
                     w1_ref, s1_ref, mu_ref, sig_ref, hact_ref,
                     *, num_graphs, num_dec):
    h = h_ref[...]                           # (N, emb_pad) f32
    b = batch_ref[...]                       # (N, 1) int32 graph ids
    neg = jnp.full_like(h, -jnp.inf)
    rows = []
    for g in range(num_graphs):              # static, small
        masked = jnp.where(b == g, h, neg)
        rows.append(jnp.max(masked, axis=0, keepdims=True))
    hg = jnp.concatenate(rows, axis=0)       # (G, emb_pad) graph max-pool
    # TODO(synk): for large N / num_graphs use a segmented reduction with
    #             scalar-prefetched per-graph offsets instead of G full passes.

    # dist_net: SiLU -> Linear -> (mu, softplus(sigma)+1e-7)
    x = hg * jax.nn.sigmoid(hg)
    xb = x.astype(jnp.bfloat16)
    mu = jnp.dot(xb, wmu_ref[...], preferred_element_type=jnp.float32) + bmu_ref[...]
    sg = jnp.dot(xb, wsg_ref[...], preferred_element_type=jnp.float32) + bsg_ref[...]
    mu_ref[...] = mu.astype(mu_ref.dtype)
    sig_ref[...] = (jax.nn.softplus(sg) + 1e-7).astype(sig_ref.dtype)

    # fc1 (BN folded on host) -> exact GELU, once per decoder.
    mub = mu.astype(jnp.bfloat16)
    inv_sqrt2 = jnp.float32(0.7071067811865476)
    for d in range(num_dec):                 # static, 6 iterations
        hd = jnp.dot(mub, w1_ref[d], preferred_element_type=jnp.float32) + s1_ref[d]
        hd = 0.5 * hd * (1.0 + jax.lax.erf(hd * inv_sqrt2))
        hact_ref[d] = hd.astype(hact_ref.dtype)


def prologue_forward(h_pad, batch2d, w_mu, b_mu, w_sig, b_sig,
                     w1_stacked, s1_stacked, *, num_graphs, num_dec, hidden_pad):
    g = num_graphs
    emb_pad = h_pad.shape[1]
    args = (h_pad, batch2d, w_mu, b_mu, w_sig, b_sig, w1_stacked, s1_stacked)
    kernel = functools.partial(_prologue_kernel,
                               num_graphs=num_graphs, num_dec=num_dec)
    return pl.pallas_call(
        kernel,
        out_shape=(jax.ShapeDtypeStruct((g, emb_pad), jnp.float32),
                   jax.ShapeDtypeStruct((g, emb_pad), jnp.float32),
                   jax.ShapeDtypeStruct((num_dec, g, hidden_pad), jnp.bfloat16)),
        grid=(1,),
        in_specs=_full_specs(args),
        out_specs=(pl.BlockSpec((g, emb_pad), lambda i: (0, 0)),
                   pl.BlockSpec((g, emb_pad), lambda i: (0, 0)),
                   pl.BlockSpec((num_dec, g, hidden_pad), lambda i: (0, 0, 0))),
        compiler_params=pltpu.CompilerParams(vmem_limit_bytes=32 * 1024 * 1024),
    )(*args)


# ---------------------------------------------------------------------------
# Kernel 2 (streaming, grid=(n_tiles,)):
#   per output-column tile: y = gelu_act[dec(t)] @ w2_tile + b2_tile.
#   w2 is host-pre-tiled so each step's DMA is one contiguous HBM block.
# ---------------------------------------------------------------------------
def _fc2_kernel(dec_ids_ref, hact_ref, w2_ref, b2_ref, out_ref):
    del dec_ids_ref  # consumed by the index_maps only
    y = jnp.dot(hact_ref[0], w2_ref[0],
                preferred_element_type=jnp.float32) + b2_ref[0]
    out_ref[...] = y.astype(out_ref.dtype)


def decoders_fc2_forward(h_act, dec_ids, w2_tiled, b2_tiled, *, tn):
    num_dec, g, hidden_pad = h_act.shape
    n_tiles = w2_tiled.shape[0]
    total_out = n_tiles * tn

    grid_spec = pltpu.PrefetchScalarGridSpec(
        num_scalar_prefetch=1,
        grid=(n_tiles,),
        in_specs=[
            pl.BlockSpec((1, g, hidden_pad), lambda t, dec: (dec[t], 0, 0)),
            _maybe_buffered_spec((1, hidden_pad, tn),
                                 lambda t, dec: (t, 0, 0), buffers=3),
            pl.BlockSpec((1, 1, tn), lambda t, dec: (t, 0, 0)),
        ],
        out_specs=pl.BlockSpec((g, tn), lambda t, dec: (0, t)),
    )
    return pl.pallas_call(
        _fc2_kernel,
        out_shape=jax.ShapeDtypeStruct((g, total_out), jnp.float32),
        grid_spec=grid_spec,
        compiler_params=pltpu.CompilerParams(
            dimension_semantics=("parallel",)),
    )(dec_ids, h_act, w2_tiled, b2_tiled)


# ---------------------------------------------------------------------------
# Parameter construction (deterministic, PyTorch-like init)
# ---------------------------------------------------------------------------
def _linear_params(key, fan_in, fan_out):
    kw, kb = jax.random.split(key)
    bound = 1.0 / (fan_in ** 0.5)
    w = jax.random.uniform(kw, (fan_in, fan_out), jnp.float32, -bound, bound)
    b = jax.random.uniform(kb, (fan_out,), jnp.float32, -bound, bound)
    return w, b


class GNNPallas:
    """JAX/Pallas equivalent of the PyTorch GNN module's forward (eval mode)."""

    def __init__(self, key, emb_dim=300,
                 decoder_dims=(1024, 1111, 862, 1783, 966, 978), tn=None):
        self.emb_dim = emb_dim
        self.emb_pad = _round_up(emb_dim, 128)
        hidden = 4 * emb_dim
        self.hidden = hidden
        self.hidden_pad = _round_up(hidden, 128)
        self.out_dims = tuple(decoder_dims)
        self.tn = int(tn) if tn is not None else _pick_tn()
        tn = self.tn

        keys = jax.random.split(key, 1 + 2 * len(decoder_dims))

        # ---- dist_net: Linear(emb, 2*emb), pre-split into mu / sigma halves ----
        dw, db = _linear_params(keys[0], emb_dim, 2 * emb_dim)
        self._ref_dist_w, self._ref_dist_b = dw, db          # f32 reference copies
        self.w_mu = _pad2d(dw[:, :emb_dim], self.emb_pad, self.emb_pad).astype(jnp.bfloat16)
        self.w_sig = _pad2d(dw[:, emb_dim:], self.emb_pad, self.emb_pad).astype(jnp.bfloat16)
        self.b_mu = _pad2d(db[:emb_dim].reshape(1, -1), 1, self.emb_pad)
        self.b_sig = _pad2d(db[emb_dim:].reshape(1, -1), 1, self.emb_pad)

        # ---- decoders: fc1 (+BN folded) stacked; fc2 packed & host-pre-tiled ----
        bn_eps = 1e-5
        # BatchNorm1d default init (eval): gamma=1, beta=0, mean=0, var=1
        bn_scale = 1.0 / np.sqrt(1.0 + bn_eps)                # scalar
        out_pads = [_round_up(o, tn) for o in decoder_dims]
        total_out_pad = int(sum(out_pads))
        self.total_out_pad = total_out_pad
        self.n_tiles = total_out_pad // tn
        col_starts = np.concatenate([[0], np.cumsum(out_pads)[:-1]]).astype(np.int64)
        self.col_starts = [int(c) for c in col_starts]

        nd = len(decoder_dims)
        self.num_dec = nd
        w1_stk = np.zeros((nd, self.emb_pad, self.hidden_pad), np.float32)
        s1_stk = np.zeros((nd, 1, self.hidden_pad), np.float32)
        w2_pack = np.zeros((self.hidden_pad, total_out_pad), np.float32)
        b2_pack = np.zeros((1, total_out_pad), np.float32)
        self._ref_decs = []
        for i, out_dim in enumerate(decoder_dims):
            w1, b1 = _linear_params(keys[1 + 2 * i], emb_dim, hidden)
            w2, b2 = _linear_params(keys[2 + 2 * i], hidden, out_dim)
            w1f = w1 * bn_scale           # fold BN scale into fc1 weight
            s1 = b1 * bn_scale            # folded bias (BN shift == 0)
            cs = self.col_starts[i]
            w1_stk[i, :emb_dim, :hidden] = np.asarray(w1f)
            s1_stk[i, 0, :hidden] = np.asarray(s1)
            w2_pack[:hidden, cs:cs + out_dim] = np.asarray(w2)
            b2_pack[0, cs:cs + out_dim] = np.asarray(b2)
            self._ref_decs.append((w1f, s1, w2, b2))

        self.w1_stacked = jnp.asarray(w1_stk).astype(jnp.bfloat16)
        self.s1_stacked = jnp.asarray(s1_stk)

        # Host pre-tiling: each grid step's fc2 weight is one contiguous block.
        w2_tiled = np.ascontiguousarray(
            w2_pack.reshape(self.hidden_pad, self.n_tiles, tn).transpose(1, 0, 2))
        b2_tiled = np.ascontiguousarray(
            b2_pack.reshape(1, self.n_tiles, tn).transpose(1, 0, 2))
        self.w2_tiled = jnp.asarray(w2_tiled).astype(jnp.bfloat16)
        self.b2_tiled = jnp.asarray(b2_tiled)
        self.dec_ids = jnp.asarray(
            np.repeat(np.arange(nd, dtype=np.int32),
                      [p // tn for p in out_pads]))

    # ------------------------------------------------------------------ forward
    def __call__(self, h_node, batch, num_graphs):
        n, d = h_node.shape
        assert d == self.emb_dim
        # pad node features to a lane-dense width (zeros in padded columns)
        h_pad = jnp.zeros((n, self.emb_pad), h_node.dtype).at[:, :d].set(h_node)
        batch2d = batch.reshape(n, 1).astype(jnp.int32)

        # fused: max-pool -> dist_net -> fc1(+BN)+GELU for all decoders
        mu_p, sig_p, h_act = prologue_forward(
            h_pad, batch2d, self.w_mu, self.b_mu, self.w_sig, self.b_sig,
            self.w1_stacked, self.s1_stacked,
            num_graphs=num_graphs, num_dec=self.num_dec,
            hidden_pad=self.hidden_pad)

        mu = mu_p[:, :self.emb_dim]
        sigma = sig_p[:, :self.emb_dim]

        # fc2 of all 6 decoders in one pipelined weight-streaming kernel
        dec_out = decoders_fc2_forward(h_act, self.dec_ids, self.w2_tiled,
                                       self.b2_tiled, tn=self.tn)
        outs = [dec_out[:, s:s + o]
                for s, o in zip(self.col_starts, self.out_dims)]

        out_gene = jnp.concatenate((outs[1], outs[2]), axis=1)
        out_cell = jnp.concatenate((outs[3], outs[4]), axis=1)
        # (mu, sigma) stands in for Independent(Normal(mu, sigma), 1)
        return [(mu, sigma), outs[0], out_gene, out_cell, outs[5]]

    # ------------------------------------------------ pure-JAX f32 reference
    def reference(self, h_node, batch, num_graphs):
        neg = jnp.full_like(h_node, -jnp.inf)
        h_graph = jnp.stack([
            jnp.max(jnp.where((batch == g)[:, None], h_node, neg), axis=0)
            for g in range(num_graphs)])
        x = h_graph * jax.nn.sigmoid(h_graph)
        y = x @ self._ref_dist_w + self._ref_dist_b
        mu, sig = y[:, :self.emb_dim], y[:, self.emb_dim:]
        sigma = jax.nn.softplus(sig) + 1e-7
        outs = []
        for w1f, s1, w2, b2 in self._ref_decs:
            h = mu @ w1f + s1
            h = jax.nn.gelu(h, approximate=False)
            outs.append(h @ w2 + b2)
        out_gene = jnp.concatenate((outs[1], outs[2]), axis=1)
        out_cell = jnp.concatenate((outs[3], outs[4]), axis=1)
        return [(mu, sigma), outs[0], out_gene, out_cell, outs[5]]


if __name__ == "__main__":
    key = jax.random.PRNGKey(0)
    k_model, k_h = jax.random.split(key)

    emb_dim = 300
    num_graphs = 2
    nodes_per_graph = 8
    n_nodes = num_graphs * nodes_per_graph

    # Inputs: already-encoded node embeddings + graph assignment vector.
    h_node = jax.random.normal(k_h, (n_nodes, emb_dim), jnp.float32)
    batch = jnp.repeat(jnp.arange(num_graphs, dtype=jnp.int32), nodes_per_graph)

    model = GNNPallas(k_model, emb_dim=emb_dim)
    outputs = model(h_node, batch, num_graphs)
    jax.block_until_ready(outputs)

    (mu, sigma), out1, out_gene, out_cell, out6 = outputs
    assert mu.shape == (num_graphs, emb_dim)
    assert sigma.shape == (num_graphs, emb_dim)
    assert out1.shape == (num_graphs, 1024)
    assert out_gene.shape == (num_graphs, 1111 + 862)
    assert out_cell.shape == (num_graphs, 1783 + 966)
    assert out6.shape == (num_graphs, 978)

    # numeric check vs. pure-JAX f32 reference (tolerance for bf16 weights)
    (rmu, rsig), r1, rg, rc, r6 = model.reference(h_node, batch, num_graphs)
    for a, b in ((mu, rmu), (sigma, rsig), (out1, r1),
                 (out_gene, rg), (out_cell, rc), (out6, r6)):
        err = float(jnp.max(jnp.abs(a - b)))
        assert err < 5e-2, f"mismatch vs reference: max abs err {err}"

    print("KERNEL_OK")
</pallas_src>

<mosaic_0001>
module attributes {stable_mosaic.version = 11 : i64} {
  func.func @_prologue_kernel(%arg0: i32, %arg1: memref<16x384xf32, #tpu.memory_space<vmem>>, %arg2: memref<16x1xi32, #tpu.memory_space<vmem>>, %arg3: memref<384x384xbf16, #tpu.memory_space<vmem>>, %arg4: memref<1x384xf32, #tpu.memory_space<vmem>>, %arg5: memref<384x384xbf16, #tpu.memory_space<vmem>>, %arg6: memref<1x384xf32, #tpu.memory_space<vmem>>, %arg7: memref<6x384x1280xbf16, #tpu.memory_space<vmem>>, %arg8: memref<6x1x1280xf32, #tpu.memory_space<vmem>>, %arg9: memref<2x384xf32, #tpu.memory_space<vmem>>, %arg10: memref<2x384xf32, #tpu.memory_space<vmem>>, %arg11: memref<6x2x1280xbf16, #tpu.memory_space<vmem>>) attributes {dimension_semantics = [#tpu.dimension_semantics<arbitrary>], iteration_bounds = array<i64: 1>, scalar_prefetch = 0 : i64, scratch_operands = 0 : i64, tpu.core_type = #tpu.core_type<tc>, window_params = [{pipeline_mode = #tpu.pipeline_mode<synchronous>, transform_indices = @transform_0, window_bounds = array<i64: 16, 384>}, {pipeline_mode = #tpu.pipeline_mode<synchronous>, transform_indices = @transform_1, window_bounds = array<i64: 16, 1>}, {pipeline_mode = #tpu.pipeline_mode<synchronous>, transform_indices = @transform_2, window_bounds = array<i64: 384, 384>}, {pipeline_mode = #tpu.pipeline_mode<synchronous>, transform_indices = @transform_3, window_bounds = array<i64: 1, 384>}, {pipeline_mode = #tpu.pipeline_mode<synchronous>, transform_indices = @transform_4, window_bounds = array<i64: 384, 384>}, {pipeline_mode = #tpu.pipeline_mode<synchronous>, transform_indices = @transform_5, window_bounds = array<i64: 1, 384>}, {pipeline_mode = #tpu.pipeline_mode<synchronous>, transform_indices = @transform_6, window_bounds = array<i64: 6, 384, 1280>}, {pipeline_mode = #tpu.pipeline_mode<synchronous>, transform_indices = @transform_7, window_bounds = array<i64: 6, 1, 1280>}, {pipeline_mode = #tpu.pipeline_mode<synchronous>, transform_indices = @transform_8, window_bounds = array<i64: 2, 384>}, {pipeline_mode = #tpu.pipeline_mode<synchronous>, transform_indices = @transform_9, window_bounds = array<i64: 2, 384>}, {pipeline_mode = #tpu.pipeline_mode<synchronous>, transform_indices = @transform_10, window_bounds = array<i64: 6, 2, 1280>}]} {
    %c0 = arith.constant 0 : index
    %c0_0 = arith.constant 0 : index
    %0 = vector.load %arg1[%c0, %c0_0] : memref<16x384xf32, #tpu.memory_space<vmem>>, vector<16x384xf32>
    %c0_1 = arith.constant 0 : index
    %c0_2 = arith.constant 0 : index
    %1 = vector.load %arg2[%c0_1, %c0_2] : memref<16x1xi32, #tpu.memory_space<vmem>>, vector<16x1xi32>
    %cst = arith.constant 0xFF800000 : f32
    %2 = vector.broadcast %cst : f32 to vector<16x384xf32>
    %c0_i32 = arith.constant 0 : i32
    %3 = vector.broadcast %c0_i32 : i32 to vector<16x1xi32>
    %4 = arith.cmpi eq, %1, %3 : vector<16x1xi32>
    %5 = vector.shape_cast %4 : vector<16x1xi1> to vector<16x1xi1>
    %6 = vector.broadcast %5 : vector<16x1xi1> to vector<16x384xi1>
    %7 = arith.select %6, %0, %2 : vector<16x384xi1>, vector<16x384xf32>
    %cst_3 = arith.constant dense<0xFF800000> : vector<384xf32>
    %8 = vector.multi_reduction <maximumf>, %7, %cst_3 [0] : vector<16x384xf32> to vector<384xf32>
    %9 = vector.shape_cast %8 : vector<384xf32> to vector<1x384xf32>
    %c1_i32 = arith.constant 1 : i32
    %10 = vector.broadcast %c1_i32 : i32 to vector<16x1xi32>
    %11 = arith.cmpi eq, %1, %10 : vector<16x1xi32>
    %12 = vector.shape_cast %11 : vector<16x1xi1> to vector<16x1xi1>
    %13 = vector.broadcast %12 : vector<16x1xi1> to vector<16x384xi1>
    %14 = arith.select %13, %0, %2 : vector<16x384xi1>, vector<16x384xf32>
    %cst_4 = arith.constant dense<0xFF800000> : vector<384xf32>
    %15 = vector.multi_reduction <maximumf>, %14, %cst_4 [0] : vector<16x384xf32> to vector<384xf32>
    %16 = vector.shape_cast %15 : vector<384xf32> to vector<1x384xf32>
    %17 = tpu.concatenate %9, %16 in 0 : vector<1x384xf32>, vector<1x384xf32> -> vector<2x384xf32>
    %18 = arith.negf %17 : vector<2x384xf32>
    %19 = math.exp %18 : vector<2x384xf32>
    %cst_5 = arith.constant 1.000000e+00 : f32
    %20 = vector.broadcast %cst_5 : f32 to vector<2x384xf32>
    %21 = arith.addf %20, %19 : vector<2x384xf32>
    %22 = arith.divf %20, %21 : vector<2x384xf32>
    %23 = arith.mulf %17, %22 : vector<2x384xf32>
    %24 = arith.truncf %23 : vector<2x384xf32> to vector<2x384xbf16>
    %c0_6 = arith.constant 0 : index
    %c0_7 = arith.constant 0 : index
    %25 = vector.load %arg3[%c0_6, %c0_7] : memref<384x384xbf16, #tpu.memory_space<vmem>>, vector<384x384xbf16>
    %cst_8 = arith.constant dense<0.000000e+00> : vector<2x384xf32>
    %26 = tpu.matmul %24, %25, %cst_8 {dimension_numbers = #tpu.dot_dimension_numbers<[1], [0], [0], [1], [0, 0, 1, 1], [], []>} : vector<2x384xbf16>, vector<384x384xbf16>, vector<2x384xf32> -> vector<2x384xf32>
    %c0_9 = arith.constant 0 : index
    %c0_10 = arith.constant 0 : index
    %27 = vector.load %arg4[%c0_9, %c0_10] : memref<1x384xf32, #tpu.memory_space<vmem>>, vector<1x384xf32>
    %28 = vector.broadcast %27 : vector<1x384xf32> to vector<2x384xf32>
    %29 = arith.addf %26, %28 : vector<2x384xf32>
    %c0_11 = arith.constant 0 : index
    %c0_12 = arith.constant 0 : index
    %30 = vector.load %arg5[%c0_11, %c0_12] : memref<384x384xbf16, #tpu.memory_space<vmem>>, vector<384x384xbf16>
    %cst_13 = arith.constant dense<0.000000e+00> : vector<2x384xf32>
    %31 = tpu.matmul %24, %30, %cst_13 {dimension_numbers = #tpu.dot_dimension_numbers<[1], [0], [0], [1], [0, 0, 1, 1], [], []>} : vector<2x384xbf16>, vector<384x384xbf16>, vector<2x384xf32> -> vector<2x384xf32>
    %c0_14 = arith.constant 0 : index
    %c0_15 = arith.constant 0 : index
    %32 = vector.load %arg6[%c0_14, %c0_15] : memref<1x384xf32, #tpu.memory_space<vmem>>, vector<1x384xf32>
    %33 = vector.broadcast %32 : vector<1x384xf32> to vector<2x384xf32>
    %34 = arith.addf %31, %33 : vector<2x384xf32>
    %c0_16 = arith.constant 0 : index
    %c0_17 = arith.constant 0 : index
    %35 = vector.load %arg9[%c0_16, %c0_17] : memref<2x384xf32, #tpu.memory_space<vmem>>, vector<2x384xf32>
    tpu.vector_store %arg9[%c0_16, %c0_17], %29 {strides = array<i32>} : memref<2x384xf32, #tpu.memory_space<vmem>>, vector<2x384xf32>,
    %cst_18 = arith.constant 0.000000e+00 : f32
    %36 = vector.broadcast %cst_18 : f32 to vector<2x384xf32>
    %37 = arith.maximumf %34, %36 : vector<2x384xf32>
    %38 = vector.broadcast %cst_18 : f32 to vector<2x384xf32>
    %39 = arith.subf %34, %38 : vector<2x384xf32>
    %40 = arith.cmpf one, %39, %39 : vector<2x384xf32>
    %41 = vector.broadcast %cst_18 : f32 to vector<2x384xf32>
    %42 = arith.addf %34, %41 : vector<2x384xf32>
    %43 = math.absf %39 : vector<2x384xf32>
    %cst_19 = arith.constant 0.000000e+00 : f32
    %44 = vector.broadcast %cst_19 : f32 to vector<2x384xf32>
    %45 = arith.subf %44, %43 : vector<2x384xf32>
    %46 = math.exp %45 : vector<2x384xf32>
    %47 = math.log1p %46 : vector<2x384xf32>
    %48 = arith.addf %37, %47 : vector<2x384xf32>
    %49 = arith.select %40, %42, %48 : vector<2x384xi1>, vector<2x384xf32>
    %cst_20 = arith.constant 1.000000e-07 : f32
    %50 = vector.broadcast %cst_20 : f32 to vector<2x384xf32>
    %51 = arith.addf %49, %50 : vector<2x384xf32>
    %c0_21 = arith.constant 0 : index
    %c0_22 = arith.constant 0 : index
    %52 = vector.load %arg10[%c0_21, %c0_22] : memref<2x384xf32, #tpu.memory_space<vmem>>, vector<2x384xf32>
    tpu.vector_store %arg10[%c0_21, %c0_22], %51 {strides = array<i32>} : memref<2x384xf32, #tpu.memory_space<vmem>>, vector<2x384xf32>,
    %53 = arith.truncf %29 : vector<2x384xf32> to vector<2x384xbf16>
    %c0_23 = arith.constant 0 : index
    %c0_24 = arith.constant 0 : index
    %c0_25 = arith.constant 0 : index
    %54 = vector.load %arg7[%c0_23, %c0_24, %c0_25] : memref<6x384x1280xbf16, #tpu.memory_space<vmem>>, vector<1x384x1280xbf16>
    %55 = vector.shape_cast %54 : vector<1x384x1280xbf16> to vector<384x1280xbf16>
    %cst_26 = arith.constant dense<0.000000e+00> : vector<2x1280xf32>
    %56 = tpu.matmul %53, %55, %cst_26 {dimension_numbers = #tpu.dot_dimension_numbers<[1], [0], [0], [1], [0, 0, 1, 1], [], []>} : vector<2x384xbf16>, vector<384x1280xbf16>, vector<2x1280xf32> -> vector<2x1280xf32>
    %c0_27 = arith.constant 0 : index
    %c0_28 = arith.constant 0 : index
    %c0_29 = arith.constant 0 : index
    %57 = vector.load %arg8[%c0_27, %c0_28, %c0_29] : memref<6x1x1280xf32, #tpu.memory_space<vmem>>, vector<1x1x1280xf32>
    %58 = vector.shape_cast %57 : vector<1x1x1280xf32> to vector<1x1280xf32>
    %59 = vector.broadcast %58 : vector<1x1280xf32> to vector<2x1280xf32>
    %60 = arith.addf %56, %59 : vector<2x1280xf32>
    %cst_30 = arith.constant 5.000000e-01 : f32
    %61 = vector.broadcast %cst_30 : f32 to vector<2x1280xf32>
    %62 = arith.mulf %61, %60 : vector<2x1280xf32>
    %cst_31 = arith.constant 0.707106769 : f32
    %63 = vector.broadcast %cst_31 : f32 to vector<2x1280xf32>
    %64 = arith.mulf %60, %63 : vector<2x1280xf32>
    %65 = math.erf %64 : vector<2x1280xf32>
    %cst_32 = arith.constant 1.000000e+00 : f32
    %66 = vector.broadcast %cst_32 : f32 to vector<2x1280xf32>
    %67 = arith.addf %66, %65 : vector<2x1280xf32>
    %68 = arith.mulf %62, %67 : vector<2x1280xf32>
    %69 = arith.truncf %68 : vector<2x1280xf32> to vector<2x1280xbf16>
    %c0_33 = arith.constant 0 : index
    %c0_34 = arith.constant 0 : index
    %c0_35 = arith.constant 0 : index
    %70 = vector.load %arg11[%c0_33, %c0_34, %c0_35] : memref<6x2x1280xbf16, #tpu.memory_space<vmem>>, vector<1x2x1280xbf16>
    %71 = vector.shape_cast %70 : vector<1x2x1280xbf16> to vector<2x1280xbf16>
    %72 = vector.shape_cast %69 : vector<2x1280xbf16> to vector<1x2x1280xbf16>
    tpu.vector_store %arg11[%c0_33, %c0_34, %c0_35], %72 {strides = array<i32>} : memref<6x2x1280xbf16, #tpu.memory_space<vmem>>, vector<1x2x1280xbf16>,
    %c1 = arith.constant 1 : index
    %c0_36 = arith.constant 0 : index
    %c0_37 = arith.constant 0 : index
    %73 = vector.load %arg7[%c1, %c0_36, %c0_37] : memref<6x384x1280xbf16, #tpu.memory_space<vmem>>, vector<1x384x1280xbf16>
    %74 = vector.shape_cast %73 : vector<1x384x1280xbf16> to vector<384x1280xbf16>
    %cst_38 = arith.constant dense<0.000000e+00> : vector<2x1280xf32>
    %75 = tpu.matmul %53, %74, %cst_38 {dimension_numbers = #tpu.dot_dimension_numbers<[1], [0], [0], [1], [0, 0, 1, 1], [], []>} : vector<2x384xbf16>, vector<384x1280xbf16>, vector<2x1280xf32> -> vector<2x1280xf32>
    %c1_39 = arith.constant 1 : index
    %c0_40 = arith.constant 0 : index
    %c0_41 = arith.constant 0 : index
    %76 = vector.load %arg8[%c1_39, %c0_40, %c0_41] : memref<6x1x1280xf32, #tpu.memory_space<vmem>>, vector<1x1x1280xf32>
    %77 = vector.shape_cast %76 : vector<1x1x1280xf32> to vector<1x1280xf32>
    %78 = vector.broadcast %77 : vector<1x1280xf32> to vector<2x1280xf32>
    %79 = arith.addf %75, %78 : vector<2x1280xf32>
    %cst_42 = arith.constant 5.000000e-01 : f32
    %80 = vector.broadcast %cst_42 : f32 to vector<2x1280xf32>
    %81 = arith.mulf %80, %79 : vector<2x1280xf32>
    %cst_43 = arith.constant 0.707106769 : f32
    %82 = vector.broadcast %cst_43 : f32 to vector<2x1280xf32>
    %83 = arith.mulf %79, %82 : vector<2x1280xf32>
    %84 = math.erf %83 : vector<2x1280xf32>
    %cst_44 = arith.constant 1.000000e+00 : f32
    %85 = vector.broadcast %cst_44 : f32 to vector<2x1280xf32>
    %86 = arith.addf %85, %84 : vector<2x1280xf32>
    %87 = arith.mulf %81, %86 : vector<2x1280xf32>
    %88 = arith.truncf %87 : vector<2x1280xf32> to vector<2x1280xbf16>
    %c1_45 = arith.constant 1 : index
    %c0_46 = arith.constant 0 : index
    %c0_47 = arith.constant 0 : index
    %89 = vector.load %arg11[%c1_45, %c0_46, %c0_47] : memref<6x2x1280xbf16, #tpu.memory_space<vmem>>, vector<1x2x1280xbf16>
    %90 = vector.shape_cast %89 : vector<1x2x1280xbf16> to vector<2x1280xbf16>
    %91 = vector.shape_cast %88 : vector<2x1280xbf16> to vector<1x2x1280xbf16>
    tpu.vector_store %arg11[%c1_45, %c0_46, %c0_47], %91 {strides = array<i32>} : memref<6x2x1280xbf16, #tpu.memory_space<vmem>>, vector<1x2x1280xbf16>,
    %c2 = arith.constant 2 : index
    %c0_48 = arith.constant 0 : index
    %c0_49 = arith.constant 0 : index
    %92 = vector.load %arg7[%c2, %c0_48, %c0_49] : memref<6x384x1280xbf16, #tpu.memory_space<vmem>>, vector<1x384x1280xbf16>
    %93 = vector.shape_cast %92 : vector<1x384x1280xbf16> to vector<384x1280xbf16>
    %cst_50 = arith.constant dense<0.000000e+00> : vector<2x1280xf32>
    %94 = tpu.matmul %53, %93, %cst_50 {dimension_numbers = #tpu.dot_dimension_numbers<[1], [0], [0], [1], [0, 0, 1, 1], [], []>} : vector<2x384xbf16>, vector<384x1280xbf16>, vector<2x1280xf32> -> vector<2x1280xf32>
    %c2_51 = arith.constant 2 : index
    %c0_52 = arith.constant 0 : index
    %c0_53 = arith.constant 0 : index
    %95 = vector.load %arg8[%c2_51, %c0_52, %c0_53] : memref<6x1x1280xf32, #tpu.memory_space<vmem>>, vector<1x1x1280xf32>
    %96 = vector.shape_cast %95 : vector<1x1x1280xf32> to vector<1x1280xf32>
    %97 = vector.broadcast %96 : vector<1x1280xf32> to vector<2x1280xf32>
    %98 = arith.addf %94, %97 : vector<2x1280xf32>
    %cst_54 = arith.constant 5.000000e-01 : f32
    %99 = vector.broadcast %cst_54 : f32 to vector<2x1280xf32>
    %100 = arith.mulf %99, %98 : vector<2x1280xf32>
    %cst_55 = arith.constant 0.707106769 : f32
    %101 = vector.broadcast %cst_55 : f32 to vector<2x1280xf32>
    %102 = arith.mulf %98, %101 : vector<2x1280xf32>
    %103 = math.erf %102 : vector<2x1280xf32>
    %cst_56 = arith.constant 1.000000e+00 : f32
    %104 = vector.broadcast %cst_56 : f32 to vector<2x1280xf32>
    %105 = arith.addf %104, %103 : vector<2x1280xf32>
    %106 = arith.mulf %100, %105 : vector<2x1280xf32>
    %107 = arith.truncf %106 : vector<2x1280xf32> to vector<2x1280xbf16>
    %c2_57 = arith.constant 2 : index
    %c0_58 = arith.constant 0 : index
    %c0_59 = arith.constant 0 : index
    %108 = vector.load %arg11[%c2_57, %c0_58, %c0_59] : memref<6x2x1280xbf16, #tpu.memory_space<vmem>>, vector<1x2x1280xbf16>
    %109 = vector.shape_cast %108 : vector<1x2x1280xbf16> to vector<2x1280xbf16>
    %110 = vector.shape_cast %107 : vector<2x1280xbf16> to vector<1x2x1280xbf16>
    tpu.vector_store %arg11[%c2_57, %c0_58, %c0_59], %110 {strides = array<i32>} : memref<6x2x1280xbf16, #tpu.memory_space<vmem>>, vector<1x2x1280xbf16>,
    %c3 = arith.constant 3 : index
    %c0_60 = arith.constant 0 : index
    %c0_61 = arith.constant 0 : index
    %111 = vector.load %arg7[%c3, %c0_60, %c0_61] : memref<6x384x1280xbf16, #tpu.memory_space<vmem>>, vector<1x384x1280xbf16>
    %112 = vector.shape_cast %111 : vector<1x384x1280xbf16> to vector<384x1280xbf16>
    %cst_62 = arith.constant dense<0.000000e+00> : vector<2x1280xf32>
    %113 = tpu.matmul %53, %112, %cst_62 {dimension_numbers = #tpu.dot_dimension_numbers<[1], [0], [0], [1], [0, 0, 1, 1], [], []>} : vector<2x384xbf16>, vector<384x1280xbf16>, vector<2x1280xf32> -> vector<2x1280xf32>
    %c3_63 = arith.constant 3 : index
    %c0_64 = arith.constant 0 : index
    %c0_65 = arith.constant 0 : index
    %114 = vector.load %arg8[%c3_63, %c0_64, %c0_65] : memref<6x1x1280xf32, #tpu.memory_space<vmem>>, vector<1x1x1280xf32>
    %115 = vector.shape_cast %114 : vector<1x1x1280xf32> to vector<1x1280xf32>
    %116 = vector.broadcast %115 : vector<1x1280xf32> to vector<2x1280xf32>
    %117 = arith.addf %113, %116 : vector<2x1280xf32>
    %cst_66 = arith.constant 5.000000e-01 : f32
    %118 = vector.broadcast %cst_66 : f32 to vector<2x1280xf32>
    %119 = arith.mulf %118, %117 : vector<2x1280xf32>
    %cst_67 = arith.constant 0.707106769 : f32
    %120 = vector.broadcast %cst_67 : f32 to vector<2x1280xf32>
    %121 = arith.mulf %117, %120 : vector<2x1280xf32>
    %122 = math.erf %121 : vector<2x1280xf32>
    %cst_68 = arith.constant 1.000000e+00 : f32
    %123 = vector.broadcast %cst_68 : f32 to vector<2x1280xf32>
    %124 = arith.addf %123, %122 : vector<2x1280xf32>
    %125 = arith.mulf %119, %124 : vector<2x1280xf32>
    %126 = arith.truncf %125 : vector<2x1280xf32> to vector<2x1280xbf16>
    %c3_69 = arith.constant 3 : index
    %c0_70 = arith.constant 0 : index
    %c0_71 = arith.constant 0 : index
    %127 = vector.load %arg11[%c3_69, %c0_70, %c0_71] : memref<6x2x1280xbf16, #tpu.memory_space<vmem>>, vector<1x2x1280xbf16>
    %128 = vector.shape_cast %127 : vector<1x2x1280xbf16> to vector<2x1280xbf16>
    %129 = vector.shape_cast %126 : vector<2x1280xbf16> to vector<1x2x1280xbf16>
    tpu.vector_store %arg11[%c3_69, %c0_70, %c0_71], %129 {strides = array<i32>} : memref<6x2x1280xbf16, #tpu.memory_space<vmem>>, vector<1x2x1280xbf16>,
    %c4 = arith.constant 4 : index
    %c0_72 = arith.constant 0 : index
    %c0_73 = arith.constant 0 : index
    %130 = vector.load %arg7[%c4, %c0_72, %c0_73] : memref<6x384x1280xbf16, #tpu.memory_space<vmem>>, vector<1x384x1280xbf16>
    %131 = vector.shape_cast %130 : vector<1x384x1280xbf16> to vector<384x1280xbf16>
    %cst_74 = arith.constant dense<0.000000e+00> : vector<2x1280xf32>
    %132 = tpu.matmul %53, %131, %cst_74 {dimension_numbers = #tpu.dot_dimension_numbers<[1], [0], [0], [1], [0, 0, 1, 1], [], []>} : vector<2x384xbf16>, vector<384x1280xbf16>, vector<2x1280xf32> -> vector<2x1280xf32>
    %c4_75 = arith.constant 4 : index
    %c0_76 = arith.constant 0 : index
    %c0_77 = arith.constant 0 : index
    %133 = vector.load %arg8[%c4_75, %c0_76, %c0_77] : memref<6x1x1280xf32, #tpu.memory_space<vmem>>, vector<1x1x1280xf32>
    %134 = vector.shape_cast %133 : vector<1x1x1280xf32> to vector<1x1280xf32>
    %135 = vector.broadcast %134 : vector<1x1280xf32> to vector<2x1280xf32>
    %136 = arith.addf %132, %135 : vector<2x1280xf32>
    %cst_78 = arith.constant 5.000000e-01 : f32
    %137 = vector.broadcast %cst_78 : f32 to vector<2x1280xf32>
    %138 = arith.mulf %137, %136 : vector<2x1280xf32>
    %cst_79 = arith.constant 0.707106769 : f32
    %139 = vector.broadcast %cst_79 : f32 to vector<2x1280xf32>
    %140 = arith.mulf %136, %139 : vector<2x1280xf32>
    %141 = math.erf %140 : vector<2x1280xf32>
    %cst_80 = arith.constant 1.000000e+00 : f32
    %142 = vector.broadcast %cst_80 : f32 to vector<2x1280xf32>
    %143 = arith.addf %142, %141 : vector<2x1280xf32>
    %144 = arith.mulf %138, %143 : vector<2x1280xf32>
    %145 = arith.truncf %144 : vector<2x1280xf32> to vector<2x1280xbf16>
    %c4_81 = arith.constant 4 : index
    %c0_82 = arith.constant 0 : index
    %c0_83 = arith.constant 0 : index
    %146 = vector.load %arg11[%c4_81, %c0_82, %c0_83] : memref<6x2x1280xbf16, #tpu.memory_space<vmem>>, vector<1x2x1280xbf16>
    %147 = vector.shape_cast %146 : vector<1x2x1280xbf16> to vector<2x1280xbf16>
    %148 = vector.shape_cast %145 : vector<2x1280xbf16> to vector<1x2x1280xbf16>
    tpu.vector_store %arg11[%c4_81, %c0_82, %c0_83], %148 {strides = array<i32>} : memref<6x2x1280xbf16, #tpu.memory_space<vmem>>, vector<1x2x1280xbf16>,
    %c5 = arith.constant 5 : index
    %c0_84 = arith.constant 0 : index
    %c0_85 = arith.constant 0 : index
    %149 = vector.load %arg7[%c5, %c0_84, %c0_85] : memref<6x384x1280xbf16, #tpu.memory_space<vmem>>, vector<1x384x1280xbf16>
    %150 = vector.shape_cast %149 : vector<1x384x1280xbf16> to vector<384x1280xbf16>
    %cst_86 = arith.constant dense<0.000000e+00> : vector<2x1280xf32>
    %151 = tpu.matmul %53, %150, %cst_86 {dimension_numbers = #tpu.dot_dimension_numbers<[1], [0], [0], [1], [0, 0, 1, 1], [], []>} : vector<2x384xbf16>, vector<384x1280xbf16>, vector<2x1280xf32> -> vector<2x1280xf32>
    %c5_87 = arith.constant 5 : index
    %c0_88 = arith.constant 0 : index
    %c0_89 = arith.constant 0 : index
    %152 = vector.load %arg8[%c5_87, %c0_88, %c0_89] : memref<6x1x1280xf32, #tpu.memory_space<vmem>>, vector<1x1x1280xf32>
    %153 = vector.shape_cast %152 : vector<1x1x1280xf32> to vector<1x1280xf32>
    %154 = vector.broadcast %153 : vector<1x1280xf32> to vector<2x1280xf32>
    %155 = arith.addf %151, %154 : vector<2x1280xf32>
    %cst_90 = arith.constant 5.000000e-01 : f32
    %156 = vector.broadcast %cst_90 : f32 to vector<2x1280xf32>
    %157 = arith.mulf %156, %155 : vector<2x1280xf32>
    %cst_91 = arith.constant 0.707106769 : f32
    %158 = vector.broadcast %cst_91 : f32 to vector<2x1280xf32>
    %159 = arith.mulf %155, %158 : vector<2x1280xf32>
    %160 = math.erf %159 : vector<2x1280xf32>
    %cst_92 = arith.constant 1.000000e+00 : f32
    %161 = vector.broadcast %cst_92 : f32 to vector<2x1280xf32>
    %162 = arith.addf %161, %160 : vector<2x1280xf32>
    %163 = arith.mulf %157, %162 : vector<2x1280xf32>
    %164 = arith.truncf %163 : vector<2x1280xf32> to vector<2x1280xbf16>
    %c5_93 = arith.constant 5 : index
    %c0_94 = arith.constant 0 : index
    %c0_95 = arith.constant 0 : index
    %165 = vector.load %arg11[%c5_93, %c0_94, %c0_95] : memref<6x2x1280xbf16, #tpu.memory_space<vmem>>, vector<1x2x1280xbf16>
    %166 = vector.shape_cast %165 : vector<1x2x1280xbf16> to vector<2x1280xbf16>
    %167 = vector.shape_cast %164 : vector<2x1280xbf16> to vector<1x2x1280xbf16>
    tpu.vector_store %arg11[%c5_93, %c0_94, %c0_95], %167 {strides = array<i32>} : memref<6x2x1280xbf16, #tpu.memory_space<vmem>>, vector<1x2x1280xbf16>,
    return
  }
  func.func @transform_0(%arg0: i32) -> (i32, i32) {
    %c0_i32 = arith.constant 0 : i32
    %c0_i32_0 = arith.constant 0 : i32
    %c0_i32_1 = arith.constant 0 : i32
    return %c0_i32, %c0_i32_0 : i32, i32
  }
  func.func @transform_1(%arg0: i32) -> (i32, i32) {
    %c0_i32 = arith.constant 0 : i32
    %c0_i32_0 = arith.constant 0 : i32
    %c0_i32_1 = arith.constant 0 : i32
    return %c0_i32, %c0_i32_0 : i32, i32
  }
  func.func @transform_2(%arg0: i32) -> (i32, i32) {
    %c0_i32 = arith.constant 0 : i32
    %c0_i32_0 = arith.constant 0 : i32
    %c0_i32_1 = arith.constant 0 : i32
    return %c0_i32, %c0_i32_0 : i32, i32
  }
  func.func @transform_3(%arg0: i32) -> (i32, i32) {
    %c0_i32 = arith.constant 0 : i32
    %c0_i32_0 = arith.constant 0 : i32
    %c0_i32_1 = arith.constant 0 : i32
    return %c0_i32, %c0_i32_0 : i32, i32
  }
  func.func @transform_4(%arg0: i32) -> (i32, i32) {
    %c0_i32 = arith.constant 0 : i32
    %c0_i32_0 = arith.constant 0 : i32
    %c0_i32_1 = arith.constant 0 : i32
    return %c0_i32, %c0_i32_0 : i32, i32
  }
  func.func @transform_5(%arg0: i32) -> (i32, i32) {
    %c0_i32 = arith.constant 0 : i32
    %c0_i32_0 = arith.constant 0 : i32
    %c0_i32_1 = arith.constant 0 : i32
    return %c0_i32, %c0_i32_0 : i32, i32
  }
  func.func @transform_6(%arg0: i32) -> (i32, i32, i32) {
    %c0_i32 = arith.constant 0 : i32
    %c0_i32_0 = arith.constant 0 : i32
    %c0_i32_1 = arith.constant 0 : i32
    %c0_i32_2 = arith.constant 0 : i32
    return %c0_i32, %c0_i32_0, %c0_i32_1 : i32, i32, i32
  }
  func.func @transform_7(%arg0: i32) -> (i32, i32, i32) {
    %c0_i32 = arith.constant 0 : i32
    %c0_i32_0 = arith.constant 0 : i32
    %c0_i32_1 = arith.constant 0 : i32
    %c0_i32_2 = arith.constant 0 : i32
    return %c0_i32, %c0_i32_0, %c0_i32_1 : i32, i32, i32
  }
  func.func @transform_8(%arg0: i32) -> (i32, i32) {
    %c0_i32 = arith.constant 0 : i32
    %c0_i32_0 = arith.constant 0 : i32
    %c0_i32_1 = arith.constant 0 : i32
    return %c0_i32, %c0_i32_0 : i32, i32
  }
  func.func @transform_9(%arg0: i32) -> (i32, i32) {
    %c0_i32 = arith.constant 0 : i32
    %c0_i32_0 = arith.constant 0 : i32
    %c0_i32_1 = arith.constant 0 : i32
    return %c0_i32, %c0_i32_0 : i32, i32
  }
  func.func @transform_10(%arg0: i32) -> (i32, i32, i32) {
    %c0_i32 = arith.constant 0 : i32
    %c0_i32_0 = arith.constant 0 : i32
    %c0_i32_1 = arith.constant 0 : i32
    %c0_i32_2 = arith.constant 0 : i32
    return %c0_i32, %c0_i32_0, %c0_i32_1 : i32, i32, i32
  }
}

</mosaic_0001>

<llo_original>
// kernel: tpu_custom_call.1
$region0: #{tpu_custom_call.1}
  #allocation0 [shape = 'u32[]', space=smem, size = 0x4, offset = 0x4, fixed_abs, tag = 'smem constant byte address 0x4 - core index']
  #allocation1 [shape = 'u32[144,128]{1,0:T(1,128)}', space=vmem, size = 0x12000, scoped, tag = 'internal scratch']
  %s0 = inlined_call_operand.hbm [shape: f32[16,384], index: 0, kind: input, shape index: {}]
  %s1 = inlined_call_operand.vmem [shape: s32[16,1], index: 1, kind: input, shape index: {}]
  %s2 = inlined_call_operand.hbm [shape: bf16[384,384], index: 2, kind: input, shape index: {}]
  %s3 = inlined_call_operand.hbm [shape: f32[1,384], index: 3, kind: input, shape index: {}]
  %s4 = inlined_call_operand.hbm [shape: bf16[384,384], index: 4, kind: input, shape index: {}]
  %s5 = inlined_call_operand.hbm [shape: f32[1,384], index: 5, kind: input, shape index: {}]
  %s6 = inlined_call_operand.hbm [shape: bf16[6,384,1280], index: 6, kind: input, shape index: {}]
  %s7 = inlined_call_operand.hbm [shape: f32[6,1,1280], index: 7, kind: input, shape index: {}]
  %s8 = inlined_call_operand.hbm [shape: f32[2,384], index: 8, kind: output, shape index: {0}]
  %s9 = inlined_call_operand.hbm [shape: f32[2,384], index: 9, kind: output, shape index: {1}]
  %s10 = inlined_call_operand.hbm [shape: bf16[6,2,1280], index: 10, kind: output, shape index: {2}]
  %11 = xla_tuple %s8, %s9, %s10
  %s12 = sld [smem:[#allocation0]]
  $region86: #{tpu_custom_call.1} parent=0
    _
  %s14 = ssub.s32 1, %s12
  %s15 = scalar_select 0, %s14, %s12
  $region1: #{tpu_custom_call.1} parent=0
    #allocation2 [shape = 'u8[24576]{0}', space=vmem, size = 0x6000, scoped, tag = 'input window, operand 0, single buffered']
    #allocation3 [shape = 's32[1]{0}', space=sflag, size = 0x4, scoped, tag = 'scoped memory for tpu_custom_call.1']
    #allocation4 [shape = 's32[1]{0}', space=sflag, size = 0x4, scoped, tag = 'scoped memory for tpu_custom_call.1']
    #allocation5 [shape = 'u8[294912]{0}', space=vmem, size = 0x48000, scoped, tag = 'input window, operand 2, single buffered']
    #allocation6 [shape = 's32[1]{0}', space=sflag, size = 0x4, scoped, tag = 'scoped memory for tpu_custom_call.1']
    #allocation7 [shape = 'u8[1536]{0}', space=vmem, size = 0x800, scoped, tag = 'input window, operand 3, single buffered']
    #allocation8 [shape = 'u8[294912]{0}', space=vmem, size = 0x48000, scoped, tag = 'input window, operand 4, single buffered']
    #allocation9 [shape = 's32[1]{0}', space=sflag, size = 0x4, scoped, tag = 'scoped memory for tpu_custom_call.1']
    #allocation10 [shape = 'u8[1536]{0}', space=vmem, size = 0x800, scoped, tag = 'input window, operand 5, single buffered']
    #allocation11 [shape = 'u8[5898240]{0}', space=vmem, size = 0x5a0000, scoped, tag = 'input window, operand 6, single buffered']
    #allocation12 [shape = 's32[1]{0}', space=sflag, size = 0x4, scoped, tag = 'scoped memory for tpu_custom_call.1']
    #allocation13 [shape = 'u8[30720]{0}', space=vmem, size = 0x7800, scoped, tag = 'input window, operand 7, single buffered']
    #allocation14 [shape = 'u8[3072]{0}', space=vmem, size = 0xc00, scoped, tag = 'output window, operand 0, single buffered']
    #allocation15 [shape = 'u8[3072]{0}', space=vmem, size = 0xc00, scoped, tag = 'output window, operand 1, single buffered']
    #allocation16 [shape = 's32[1]{0}', space=sflag, size = 0x4, scoped, tag = 'scoped memory for tpu_custom_call.1']
    #allocation17 [shape = 'u8[30720]{0}', space=vmem, size = 0x7800, scoped, tag = 'output window, operand 2, single buffered']
    %16 = vsyncpa [#allocation3], 0
    %17 = vsyncpa [#allocation6], 0
    %18 = vsyncpa [#allocation9], 0
    %19 = vsyncpa [#allocation12], 0
    %20 = vsyncpa [#allocation4], 0
    %21 = vsyncpa [#allocation16], 0
    // Predicated region
    $region2: #{tpu_custom_call.1} parent=1 // pred_check
      _
    $region3: #{tpu_custom_call.1} parent=1 // pred_check_branch
      %23 = sbr.rel (0) target = $region5
    $region4: #{tpu_custom_call.1} parent=1 // pred_region
      %s25 = ssub.s32 768, 768
      %26 = vsyncadd [#allocation3], %s25
      %s27 = sshll.u32 [#allocation2], 4
      %s28 = int_to_ptr.vmem [resolvable:$true] %s27
      %33 = dma.hbm_to_vmem [thread:$0]  %s0, 768, %s28, [#allocation3], 384, 384, 24
    $region5: #{tpu_custom_call.1} parent=1 // pred_fallthru
      _
    // Predicated region
    $region6: #{tpu_custom_call.1} parent=1 // pred_check
      _
    $region7: #{tpu_custom_call.1} parent=1 // pred_check_branch
      %35 = sbr.rel (0) target = $region9
    $region8: #{tpu_custom_call.1} parent=1 // pred_region
      _
    $region9: #{tpu_custom_call.1} parent=1 // pred_fallthru
      _
    // Predicated region
    $region10: #{tpu_custom_call.1} parent=1 // pred_check
      _
    $region11: #{tpu_custom_call.1} parent=1 // pred_check_branch
      %37 = sbr.rel (0) target = $region13
    $region12: #{tpu_custom_call.1} parent=1 // pred_region
      %s39 = ssub.s32 9216, 9216
      %40 = vsyncadd [#allocation6], %s39
      %s41 = sshll.u32 [#allocation5], 4
      %s42 = int_to_ptr.vmem [resolvable:$true] %s41
      %47 = dma.hbm_to_vmem [thread:$0]  %s2, 9216, %s42, [#allocation6], 192, 192, 12
    $region13: #{tpu_custom_call.1} parent=1 // pred_fallthru
      _
    // Predicated region
    $region14: #{tpu_custom_call.1} parent=1 // pred_check
      _
    $region15: #{tpu_custom_call.1} parent=1 // pred_check_branch
      %49 = sbr.rel (0) target = $region17
    $region16: #{tpu_custom_call.1} parent=1 // pred_region
      %s51 = ssub.s32 48, 48
      %52 = vsyncadd [#allocation6], %s51
      %s54 = sshll.u32 [#allocation7], 4
      %s55 = int_to_ptr.vmem [resolvable:$true] %s54
      %57 = dma.hbm_to_vmem [thread:$0]  %s3, 48, %s55, [#allocation6]
    $region17: #{tpu_custom_call.1} parent=1 // pred_fallthru
      _
    // Predicated region
    $region18: #{tpu_custom_call.1} parent=1 // pred_check
      _
    $region19: #{tpu_custom_call.1} parent=1 // pred_check_branch
      %59 = sbr.rel (0) target = $region21
    $region20: #{tpu_custom_call.1} parent=1 // pred_region
      %s61 = ssub.s32 9216, 9216
      %62 = vsyncadd [#allocation9], %s61
      %s63 = sshll.u32 [#allocation8], 4
      %s64 = int_to_ptr.vmem [resolvable:$true] %s63
      %69 = dma.hbm_to_vmem [thread:$0]  %s4, 9216, %s64, [#allocation9], 192, 192, 12
    $region21: #{tpu_custom_call.1} parent=1 // pred_fallthru
      _
    // Predicated region
    $region22: #{tpu_custom_call.1} parent=1 // pred_check
      _
    $region23: #{tpu_custom_call.1} parent=1 // pred_check_branch
      %71 = sbr.rel (0) target = $region25
    $region24: #{tpu_custom_call.1} parent=1 // pred_region
      %s73 = ssub.s32 48, 48
      %74 = vsyncadd [#allocation9], %s73
      %s76 = sshll.u32 [#allocation10], 4
      %s77 = int_to_ptr.vmem [resolvable:$true] %s76
      %79 = dma.hbm_to_vmem [thread:$0]  %s5, 48, %s77, [#allocation9]
    $region25: #{tpu_custom_call.1} parent=1 // pred_fallthru
      _
    // Predicated region
    $region26: #{tpu_custom_call.1} parent=1 // pred_check
      _
    $region27: #{tpu_custom_call.1} parent=1 // pred_check_branch
      %81 = sbr.rel (0) target = $region29
    $region28: #{tpu_custom_call.1} parent=1 // pred_region
      %s83 = ssub.s32 184320, 184320
      %84 = vsyncadd [#allocation12], %s83
      %s85 = sshll.u32 [#allocation11], 4
      %s86 = int_to_ptr.vmem [resolvable:$true] %s85
      %91 = dma.hbm_to_vmem [thread:$0]  %s6, 184320, %s86, [#allocation12], 640, 640, 40
    $region29: #{tpu_custom_call.1} parent=1 // pred_fallthru
      _
    // Predicated region
    $region30: #{tpu_custom_call.1} parent=1 // pred_check
      _
    $region31: #{tpu_custom_call.1} parent=1 // pred_check_branch
      %93 = sbr.rel (0) target = $region33
    $region32: #{tpu_custom_call.1} parent=1 // pred_region
      %s95 = ssub.s32 960, 960
      %96 = vsyncadd [#allocation12], %s95
      %s97 = sshll.u32 [#allocation13], 4
      %s98 = int_to_ptr.vmem [resolvable:$true] %s97
      %103 = dma.hbm_to_vmem [thread:$0]  %s7, 960, %s98, [#allocation12], 160, 160, 10
    $region33: #{tpu_custom_call.1} parent=1 // pred_fallthru
      _
    // Predicated region
    $region34: #{tpu_custom_call.1} parent=1 // pred_check
      _
    $region35: #{tpu_custom_call.1} parent=1 // pred_check_branch
      %105 = sbr.rel (0) target = $region37
    $region36: #{tpu_custom_call.1} parent=1 // pred_region
      %106 = dma.done [#allocation3], 768
    $region37: #{tpu_custom_call.1} parent=1 // pred_fallthru
      _
    // Predicated region
    $region38: #{tpu_custom_call.1} parent=1 // pred_check
      _
    $region39: #{tpu_custom_call.1} parent=1 // pred_check_branch
      %108 = sbr.rel (0) target = $region41
    $region40: #{tpu_custom_call.1} parent=1 // pred_region
      %109 = dma.done [#allocation6], 9216
    $region41: #{tpu_custom_call.1} parent=1 // pred_fallthru
      _
    // Predicated region
    $region42: #{tpu_custom_call.1} parent=1 // pred_check
      _
    $region43: #{tpu_custom_call.1} parent=1 // pred_check_branch
      %111 = sbr.rel (0) target = $region45
    $region44: #{tpu_custom_call.1} parent=1 // pred_region
      %112 = dma.done [#allocation6], 48
    $region45: #{tpu_custom_call.1} parent=1 // pred_fallthru
      _
    // Predicated region
    $region46: #{tpu_custom_call.1} parent=1 // pred_check
      _
    $region47: #{tpu_custom_call.1} parent=1 // pred_check_branch
      %114 = sbr.rel (0) target = $region49
    $region48: #{tpu_custom_call.1} parent=1 // pred_region
      %115 = dma.done [#allocation9], 9216
    $region49: #{tpu_custom_call.1} parent=1 // pred_fallthru
      _
    // Predicated region
    $region50: #{tpu_custom_call.1} parent=1 // pred_check
      _
    $region51: #{tpu_custom_call.1} parent=1 // pred_check_branch
      %117 = sbr.rel (0) target = $region53
    $region52: #{tpu_custom_call.1} parent=1 // pred_region
      %118 = dma.done [#allocation9], 48
    $region53: #{tpu_custom_call.1} parent=1 // pred_fallthru
      _
    // Predicated region
    $region54: #{tpu_custom_call.1} parent=1 // pred_check
      _
    $region55: #{tpu_custom_call.1} parent=1 // pred_check_branch
      %120 = sbr.rel (0) target = $region57
    $region56: #{tpu_custom_call.1} parent=1 // pred_region
      %121 = dma.done [#allocation12], 184320
    $region57: #{tpu_custom_call.1} parent=1 // pred_fallthru
      _
    // Predicated region
    $region58: #{tpu_custom_call.1} parent=1 // pred_check
      _
    $region59: #{tpu_custom_call.1} parent=1 // pred_check_branch
      %123 = sbr.rel (0) target = $region61
    $region60: #{tpu_custom_call.1} parent=1 // pred_region
      %124 = dma.done [#allocation12], 960
    $region61: #{tpu_custom_call.1} parent=1 // pred_fallthru
      _
    %v126 = vld [vmem:[#allocation2] sm:$0xff]
    %v127 = vld [vmem:[#allocation2 + $0x8] sm:$0xff]
    %v128 = vld [vmem:[#allocation2 + $0x10] sm:$0xff]
    %v129 = vld [vmem:[#allocation2 + $0x18] sm:$0xff]
    %v130 = vld [vmem:[#allocation2 + $0x20] sm:$0xff]
    %v131 = vld [vmem:[#allocation2 + $0x28] sm:$0xff]
    %v132 = vld [vmem:[%s1] sm:$0xff]
    %v133 = vld [vmem:[%s1 + $0x8] sm:$0xff]
    %vm134 = vcmp.eq.s32.totalorder %v132, 0
    %vm135 = vcmp.eq.s32.totalorder %v133, 0
    %v136 = vsel %vm134, 1, 0
    %v137 = vsel %vm135, 1, 0
    %138 = vset.pattern.permute.xlu0 0
    %139 = vperm.xlu0 %138, %v136
    %v140 = vpop.permute.xlu0 %139
    %141 = vset.pattern.permute.xlu0 0
    %142 = vperm.xlu0 %141, %v137
    %v143 = vpop.permute.xlu0 %142
    %vm144 = vcmp.eq.s32.totalorder %v140, 1
    %vm145 = vcmp.eq.s32.totalorder %v143, 1
    %v146 = vsel %vm144, %v126, -inf
    %v147 = vsel %vm144, %v127, -inf
    %v148 = vsel %vm144, %v128, -inf
    %v149 = vsel %vm145, %v129, -inf
    %v150 = vsel %vm145, %v130, -inf
    %v151 = vsel %vm145, %v131, -inf
    %v152 = vmax.f32 %v146, %v149
    %v153 = vrot.slane %v152, 4
    %v154 = vmax.f32 %v152, %v153
    %v155 = vrot.slane %v154, 2
    %v156 = vmax.f32 %v154, %v155
    %v157 = vrot.slane %v156, 1
    %v158 = vmax.f32 %v156, %v157
    %v159 = vmax.f32 %v147, %v150
    %v160 = vrot.slane %v159, 4
    %v161 = vmax.f32 %v159, %v160
    %v162 = vrot.slane %v161, 2
    %v163 = vmax.f32 %v161, %v162
    %v164 = vrot.slane %v163, 1
    %v165 = vmax.f32 %v163, %v164
    %v166 = vmax.f32 %v148, %v151
    %v167 = vrot.slane %v166, 4
    %v168 = vmax.f32 %v166, %v167
    %v169 = vrot.slane %v168, 2
    %v170 = vmax.f32 %v168, %v169
    %v171 = vrot.slane %v170, 1
    %v172 = vmax.f32 %v170, %v171
    %vm173 = vcmp.eq.s32.totalorder %v132, 1
    %vm174 = vcmp.eq.s32.totalorder %v133, 1
    %v175 = vsel %vm173, 1, 0
    %v176 = vsel %vm174, 1, 0
    %177 = vset.pattern.permute.xlu0 0
    %178 = vperm.xlu0 %177, %v175
    %v179 = vpop.permute.xlu0 %178
    %180 = vset.pattern.permute.xlu0 0
    %181 = vperm.xlu0 %180, %v176
    %v182 = vpop.permute.xlu0 %181
    %vm183 = vcmp.eq.s32.totalorder %v179, 1
    %vm184 = vcmp.eq.s32.totalorder %v182, 1
    %v185 = vsel %vm183, %v126, -inf
    %v186 = vsel %vm183, %v127, -inf
    %v187 = vsel %vm183, %v128, -inf
    %v188 = vsel %vm184, %v129, -inf
    %v189 = vsel %vm184, %v130, -inf
    %v190 = vsel %vm184, %v131, -inf
    %v191 = vmax.f32 %v185, %v188
    %v192 = vrot.slane %v191, 4
    %v193 = vmax.f32 %v191, %v192
    %v194 = vrot.slane %v193, 2
    %v195 = vmax.f32 %v193, %v194
    %v196 = vrot.slane %v195, 1
    %v197 = vmax.f32 %v195, %v196
    %v198 = vmax.f32 %v186, %v189
    %v199 = vrot.slane %v198, 4
    %v200 = vmax.f32 %v198, %v199
    %v201 = vrot.slane %v200, 2
    %v202 = vmax.f32 %v200, %v201
    %v203 = vrot.slane %v202, 1
    %v204 = vmax.f32 %v202, %v203
    %v205 = vmax.f32 %v187, %v190
    %v206 = vrot.slane %v205, 4
    %v207 = vmax.f32 %v205, %v206
    %v208 = vrot.slane %v207, 2
    %v209 = vmax.f32 %v207, %v208
    %v210 = vrot.slane %v209, 1
    %v211 = vmax.f32 %v209, %v210
    %vm212 = vcmask 1040384
    %v213 = vsel %vm212, %v158, %v197
    %v214 = vsel %vm212, %v165, %v204
    %v215 = vsel %vm212, %v172, %v211
    %v216 = vxor.u32 %v213, 2147483648
    %v217 = vxor.u32 %v214, 2147483648
    %v218 = vxor.u32 %v215, 2147483648
    %v219 = vmul.f32 %v216, 1.442695
    %v220 = vpow.pop %v219
    %v221 = vmul.f32 %v217, 1.442695
    %v222 = vpow.pop %v221
    %v223 = vmul.f32 %v218, 1.442695
    %v224 = vpow.pop %v223
    %v225 = vadd.f32 %v220, 1.0
    %v226 = vadd.f32 %v222, 1.0
    %v227 = vadd.f32 %v224, 1.0
    %v228 = vrcp.pop %v225
    %v229 = vmul.f32 1.0, %v228
    %v230 = vrcp.pop %v226
    %v231 = vmul.f32 1.0, %v230
    %v232 = vrcp.pop %v227
    %v233 = vmul.f32 1.0, %v232
    %v234 = vmul.f32 %v213, %v229
    %v235 = vmul.f32 %v214, %v231
    %v236 = vmul.f32 %v215, %v233
    %v237 = vpack.c.bf16 %v234, %v234
    %v238 = vpack.c.bf16 %v235, %v235
    %v239 = vpack.c.bf16 %v236, %v236
    %v240 = vld [vmem:[#allocation5] sm:$0xff]
    %v241 = vld [vmem:[#allocation5 + $0x8] sm:$0xf]
    %v242 = vld [vmem:[#allocation5 + $0xc] sm:$0xff]
    %v243 = vld [vmem:[#allocation5 + $0x14] sm:$0xf]
    %v244 = vld [vmem:[#allocation5 + $0x18] sm:$0xff]
    %v245 = vld [vmem:[#allocation5 + $0x20] sm:$0xf]
    %v246 = vld [vmem:[#allocation5 + $0x24] sm:$0xff]
    %v247 = vld [vmem:[#allocation5 + $0x2c] sm:$0xf]
    %v248 = vld [vmem:[#allocation5 + $0x30] sm:$0xff]
    %v249 = vld [vmem:[#allocation5 + $0x38] sm:$0xf]
    %v250 = vld [vmem:[#allocation5 + $0x3c] sm:$0xff]
    %v251 = vld [vmem:[#allocation5 + $0x44] sm:$0xf]
    %v252 = vld [vmem:[#allocation5 + $0x48] sm:$0xff]
    %v253 = vld [vmem:[#allocation5 + $0x50] sm:$0xf]
    %v254 = vld [vmem:[#allocation5 + $0x54] sm:$0xff]
    %v255 = vld [vmem:[#allocation5 + $0x5c] sm:$0xf]
    %v256 = vld [vmem:[#allocation5 + $0x60] sm:$0xff]
    %v257 = vld [vmem:[#allocation5 + $0x68] sm:$0xf]
    %v258 = vld [vmem:[#allocation5 + $0x6c] sm:$0xff]
    %v259 = vld [vmem:[#allocation5 + $0x74] sm:$0xf]
    %v260 = vld [vmem:[#allocation5 + $0x78] sm:$0xff]
    %v261 = vld [vmem:[#allocation5 + $0x80] sm:$0xf]
    %v262 = vld [vmem:[#allocation5 + $0x84] sm:$0xff]
    %v263 = vld [vmem:[#allocation5 + $0x8c] sm:$0xf]
    %v264 = vld [vmem:[#allocation5 + $0x90] sm:$0xff]
    %v265 = vld [vmem:[#allocation5 + $0x98] sm:$0xf]
    %v266 = vld [vmem:[#allocation5 + $0x9c] sm:$0xff]
    %v267 = vld [vmem:[#allocation5 + $0xa4] sm:$0xf]
    %v268 = vld [vmem:[#allocation5 + $0xa8] sm:$0xff]
    %v269 = vld [vmem:[#allocation5 + $0xb0] sm:$0xf]
    %v270 = vld [vmem:[#allocation5 + $0xb4] sm:$0xff]
    %v271 = vld [vmem:[#allocation5 + $0xbc] sm:$0xf]
    %v272 = vld [vmem:[#allocation5 + $0xc0] sm:$0xff]
    %v273 = vld [vmem:[#allocation5 + $0xc8] sm:$0xf]
    %v274 = vld [vmem:[#allocation5 + $0xcc] sm:$0xff]
    %v275 = vld [vmem:[#allocation5 + $0xd4] sm:$0xf]
    %v276 = vld [vmem:[#allocation5 + $0xd8] sm:$0xff]
    %v277 = vld [vmem:[#allocation5 + $0xe0] sm:$0xf]
    %v278 = vld [vmem:[#allocation5 + $0xe4] sm:$0xff]
    %v279 = vld [vmem:[#allocation5 + $0xec] sm:$0xf]
    %v280 = vld [vmem:[#allocation5 + $0xf0] sm:$0xff]
    %v281 = vld [vmem:[#allocation5 + $0xf8] sm:$0xf]
    %v282 = vld [vmem:[#allocation5 + $0xfc] sm:$0xff]
    %v283 = vld [vmem:[#allocation5 + $0x104] sm:$0xf]
    %v284 = vld [vmem:[#allocation5 + $0x108] sm:$0xff]
    %v285 = vld [vmem:[#allocation5 + $0x110] sm:$0xf]
    %v286 = vld [vmem:[#allocation5 + $0x114] sm:$0xff]
    %v287 = vld [vmem:[#allocation5 + $0x11c] sm:$0xf]
    %v288 = vld [vmem:[#allocation5 + $0x120] sm:$0xff]
    %v289 = vld [vmem:[#allocation5 + $0x128] sm:$0xf]
    %v290 = vld [vmem:[#allocation5 + $0x12c] sm:$0xff]
    %v291 = vld [vmem:[#allocation5 + $0x134] sm:$0xf]
    %v292 = vld [vmem:[#allocation5 + $0x138] sm:$0xff]
    %v293 = vld [vmem:[#allocation5 + $0x140] sm:$0xf]
    %v294 = vld [vmem:[#allocation5 + $0x144] sm:$0xff]
    %v295 = vld [vmem:[#allocation5 + $0x14c] sm:$0xf]
    %v296 = vld [vmem:[#allocation5 + $0x150] sm:$0xff]
    %v297 = vld [vmem:[#allocation5 + $0x158] sm:$0xf]
    %v298 = vld [vmem:[#allocation5 + $0x15c] sm:$0xff]
    %v299 = vld [vmem:[#allocation5 + $0x164] sm:$0xf]
    %v300 = vld [vmem:[#allocation5 + $0x168] sm:$0xff]
    %v301 = vld [vmem:[#allocation5 + $0x170] sm:$0xf]
    %v302 = vld [vmem:[#allocation5 + $0x174] sm:$0xff]
    %v303 = vld [vmem:[#allocation5 + $0x17c] sm:$0xf]
    %v304 = vld [vmem:[#allocation5 + $0x180] sm:$0xff]
    %v305 = vld [vmem:[#allocation5 + $0x188] sm:$0xf]
    %v306 = vld [vmem:[#allocation5 + $0x18c] sm:$0xff]
    %v307 = vld [vmem:[#allocation5 + $0x194] sm:$0xf]
    %v308 = vld [vmem:[#allocation5 + $0x198] sm:$0xff]
    %v309 = vld [vmem:[#allocation5 + $0x1a0] sm:$0xf]
    %v310 = vld [vmem:[#allocation5 + $0x1a4] sm:$0xff]
    %v311 = vld [vmem:[#allocation5 + $0x1ac] sm:$0xf]
    %v312 = vld [vmem:[#allocation5 + $0x1b0] sm:$0xff]
    %v313 = vld [vmem:[#allocation5 + $0x1b8] sm:$0xf]
    %v314 = vld [vmem:[#allocation5 + $0x1bc] sm:$0xff]
    %v315 = vld [vmem:[#allocation5 + $0x1c4] sm:$0xf]
    %v316 = vld [vmem:[#allocation5 + $0x1c8] sm:$0xff]
    %v317 = vld [vmem:[#allocation5 + $0x1d0] sm:$0xf]
    %v318 = vld [vmem:[#allocation5 + $0x1d4] sm:$0xff]
    %v319 = vld [vmem:[#allocation5 + $0x1dc] sm:$0xf]
    %v320 = vld [vmem:[#allocation5 + $0x1e0] sm:$0xff]
    %v321 = vld [vmem:[#allocation5 + $0x1e8] sm:$0xf]
    %v322 = vld [vmem:[#allocation5 + $0x1ec] sm:$0xff]
    %v323 = vld [vmem:[#allocation5 + $0x1f4] sm:$0xf]
    %v324 = vld [vmem:[#allocation5 + $0x1f8] sm:$0xff]
    %v325 = vld [vmem:[#allocation5 + $0x200] sm:$0xf]
    %v326 = vld [vmem:[#allocation5 + $0x204] sm:$0xff]
    %v327 = vld [vmem:[#allocation5 + $0x20c] sm:$0xf]
    %v328 = vld [vmem:[#allocation5 + $0x210] sm:$0xff]
    %v329 = vld [vmem:[#allocation5 + $0x218] sm:$0xf]
    %v330 = vld [vmem:[#allocation5 + $0x21c] sm:$0xff]
    %v331 = vld [vmem:[#allocation5 + $0x224] sm:$0xf]
    %v332 = vld [vmem:[#allocation5 + $0x228] sm:$0xff]
    %v333 = vld [vmem:[#allocation5 + $0x230] sm:$0xf]
    %v334 = vld [vmem:[#allocation5 + $0x234] sm:$0xff]
    %v335 = vld [vmem:[#allocation5 + $0x23c] sm:$0xf]
    %v336 = vld [vmem:[#allocation7] sm:$0x7]
    %v338 = vlaneseq
    %v339 = vshrl.u32 %v338, 7
    %v340 = vsub.s32 0, %v339
    %v341 = vrot.slane %v336, %v340
    %v342 = vlaneseq
    %v343 = vshrl.u32 %v342, 7
    %v344 = vsub.s32 1, %v343
    %v345 = vrot.slane %v336, %v344
    %v346 = vlaneseq
    %v347 = vshrl.u32 %v346, 7
    %v348 = vsub.s32 2, %v347
    %v349 = vrot.slane %v336, %v348
    %v449 = vunpack.c.l.b16 %v240
    %v450 = vunpack.c.h.b16 %v240
    %v451 = vunpack.c.l.b16 %v241
    %v452 = vunpack.c.l.b16 %v242
    %v453 = vunpack.c.h.b16 %v242
    %v454 = vunpack.c.l.b16 %v243
    %v455 = vunpack.c.l.b16 %v244
    %v456 = vunpack.c.h.b16 %v244
    %v457 = vunpack.c.l.b16 %v245
    %v458 = vunpack.c.l.b16 %v246
    %v459 = vunpack.c.h.b16 %v246
    %v460 = vunpack.c.l.b16 %v247
    %v461 = vunpack.c.l.b16 %v248
    %v462 = vunpack.c.h.b16 %v248
    %v463 = vunpack.c.l.b16 %v249
    %v464 = vunpack.c.l.b16 %v250
    %v465 = vunpack.c.h.b16 %v250
    %v466 = vunpack.c.l.b16 %v251
    %v467 = vunpack.c.l.b16 %v252
    %v468 = vunpack.c.h.b16 %v252
    %v469 = vunpack.c.l.b16 %v253
    %v470 = vunpack.c.l.b16 %v254
    %v471 = vunpack.c.h.b16 %v254
    %v472 = vunpack.c.l.b16 %v255
    %v473 = vunpack.c.l.b16 %v256
    %v474 = vunpack.c.h.b16 %v256
    %v475 = vunpack.c.l.b16 %v257
    %v476 = vunpack.c.l.b16 %v258
    %v477 = vunpack.c.h.b16 %v258
    %v478 = vunpack.c.l.b16 %v259
    %v479 = vunpack.c.l.b16 %v260
    %v480 = vunpack.c.h.b16 %v260
    %v481 = vunpack.c.l.b16 %v261
    %v482 = vunpack.c.l.b16 %v262
    %v483 = vunpack.c.h.b16 %v262
    %v484 = vunpack.c.l.b16 %v263
    %v485 = vunpack.c.l.b16 %v264
    %v486 = vunpack.c.h.b16 %v264
    %v487 = vunpack.c.l.b16 %v265
    %v488 = vunpack.c.l.b16 %v266
    %v489 = vunpack.c.h.b16 %v266
    %v490 = vunpack.c.l.b16 %v267
    %v491 = vunpack.c.l.b16 %v268
    %v492 = vunpack.c.h.b16 %v268
    %v493 = vunpack.c.l.b16 %v269
    %v494 = vunpack.c.l.b16 %v270
    %v495 = vunpack.c.h.b16 %v270
    %v496 = vunpack.c.l.b16 %v271
    %v497 = vunpack.c.l.b16 %v272
    %v498 = vunpack.c.h.b16 %v272
    %v499 = vunpack.c.l.b16 %v273
    %v500 = vunpack.c.l.b16 %v274
    %v501 = vunpack.c.h.b16 %v274
    %v502 = vunpack.c.l.b16 %v275
    %v503 = vunpack.c.l.b16 %v276
    %v504 = vunpack.c.h.b16 %v276
    %v505 = vunpack.c.l.b16 %v277
    %v506 = vunpack.c.l.b16 %v278
    %v507 = vunpack.c.h.b16 %v278
    %v508 = vunpack.c.l.b16 %v279
    %v509 = vunpack.c.l.b16 %v280
    %v510 = vunpack.c.h.b16 %v280
    %v511 = vunpack.c.l.b16 %v281
    %v512 = vunpack.c.l.b16 %v282
    %v513 = vunpack.c.h.b16 %v282
    %v514 = vunpack.c.l.b16 %v283
    %v515 = vunpack.c.l.b16 %v284
    %v516 = vunpack.c.h.b16 %v284
    %v517 = vunpack.c.l.b16 %v285
    %v518 = vunpack.c.l.b16 %v286
    %v519 = vunpack.c.h.b16 %v286
    %v520 = vunpack.c.l.b16 %v287
    %v521 = vunpack.c.l.b16 %v288
    %v522 = vunpack.c.h.b16 %v288
    %v523 = vunpack.c.l.b16 %v289
    %v524 = vunpack.c.l.b16 %v290
    %v525 = vunpack.c.h.b16 %v290
    %v526 = vunpack.c.l.b16 %v291
    %v527 = vunpack.c.l.b16 %v292
    %v528 = vunpack.c.h.b16 %v292
    %v529 = vunpack.c.l.b16 %v293
    %v530 = vunpack.c.l.b16 %v294
    %v531 = vunpack.c.h.b16 %v294
    %v532 = vunpack.c.l.b16 %v295
    %v533 = vunpack.c.l.b16 %v296
    %v534 = vunpack.c.h.b16 %v296
    %v535 = vunpack.c.l.b16 %v297
    %v536 = vunpack.c.l.b16 %v298
    %v537 = vunpack.c.h.b16 %v298
    %v538 = vunpack.c.l.b16 %v299
    %v539 = vunpack.c.l.b16 %v300
    %v540 = vunpack.c.h.b16 %v300
    %v541 = vunpack.c.l.b16 %v301
    %v542 = vunpack.c.l.b16 %v302
    %v543 = vunpack.c.h.b16 %v302
    %v544 = vunpack.c.l.b16 %v303
    %v545 = vunpack.c.l.b16 %v304
    %v546 = vunpack.c.h.b16 %v304
    %v547 = vunpack.c.l.b16 %v305
    %v548 = vunpack.c.l.b16 %v306
    %v549 = vunpack.c.h.b16 %v306
    %v550 = vunpack.c.l.b16 %v307
    %v551 = vunpack.c.l.b16 %v308
    %v552 = vunpack.c.h.b16 %v308
    %v553 = vunpack.c.l.b16 %v309
    %v554 = vunpack.c.l.b16 %v310
    %v555 = vunpack.c.h.b16 %v310
    %v556 = vunpack.c.l.b16 %v311
    %v557 = vunpack.c.l.b16 %v312
    %v558 = vunpack.c.h.b16 %v312
    %v559 = vunpack.c.l.b16 %v313
    %v560 = vunpack.c.l.b16 %v314
    %v561 = vunpack.c.h.b16 %v314
    %v562 = vunpack.c.l.b16 %v315
    %v563 = vunpack.c.l.b16 %v316
    %v564 = vunpack.c.h.b16 %v316
    %v565 = vunpack.c.l.b16 %v317
    %v566 = vunpack.c.l.b16 %v318
    %v567 = vunpack.c.h.b16 %v318
    %v568 = vunpack.c.l.b16 %v319
    %v569 = vunpack.c.l.b16 %v320
    %v570 = vunpack.c.h.b16 %v320
    %v571 = vunpack.c.l.b16 %v321
    %v572 = vunpack.c.l.b16 %v322
    %v573 = vunpack.c.h.b16 %v322
    %v574 = vunpack.c.l.b16 %v323
    %v575 = vunpack.c.l.b16 %v324
    %v576 = vunpack.c.h.b16 %v324
    %v577 = vunpack.c.l.b16 %v325
    %v578 = vunpack.c.l.b16 %v326
    %v579 = vunpack.c.h.b16 %v326
    %v580 = vunpack.c.l.b16 %v327
    %v581 = vunpack.c.l.b16 %v328
    %v582 = vunpack.c.h.b16 %v328
    %v583 = vunpack.c.l.b16 %v329
    %v584 = vunpack.c.l.b16 %v330
    %v585 = vunpack.c.h.b16 %v330
    %v586 = vunpack.c.l.b16 %v331
    %v587 = vunpack.c.l.b16 %v332
    %v588 = vunpack.c.h.b16 %v332
    %v589 = vunpack.c.l.b16 %v333
    %v590 = vunpack.c.l.b16 %v334
    %v591 = vunpack.c.h.b16 %v334
    %v592 = vunpack.c.l.b16 %v335
    %v593 = vpack.c.b16 %v452, %v449
    %v594 = vpack.c.b16 %v453, %v450
    %v595 = vpack.c.b16 %v454, %v451
    %v596 = vpack.c.b16 %v458, %v455
    %v597 = vpack.c.b16 %v459, %v456
    %v598 = vpack.c.b16 %v460, %v457
    %v599 = vpack.c.b16 %v464, %v461
    %v600 = vpack.c.b16 %v465, %v462
    %v601 = vpack.c.b16 %v466, %v463
    %v602 = vpack.c.b16 %v470, %v467
    %v603 = vpack.c.b16 %v471, %v468
    %v604 = vpack.c.b16 %v472, %v469
    %v605 = vpack.c.b16 %v476, %v473
    %v606 = vpack.c.b16 %v477, %v474
    %v607 = vpack.c.b16 %v478, %v475
    %v608 = vpack.c.b16 %v482, %v479
    %v609 = vpack.c.b16 %v483, %v480
    %v610 = vpack.c.b16 %v484, %v481
    %v611 = vpack.c.b16 %v488, %v485
    %v612 = vpack.c.b16 %v489, %v486
    %v613 = vpack.c.b16 %v490, %v487
    %v614 = vpack.c.b16 %v494, %v491
    %v615 = vpack.c.b16 %v495, %v492
    %v616 = vpack.c.b16 %v496, %v493
    %v617 = vpack.c.b16 %v500, %v497
    %v618 = vpack.c.b16 %v501, %v498
    %v619 = vpack.c.b16 %v502, %v499
    %v620 = vpack.c.b16 %v506, %v503
    %v621 = vpack.c.b16 %v507, %v504
    %v622 = vpack.c.b16 %v508, %v505
    %v623 = vpack.c.b16 %v512, %v509
    %v624 = vpack.c.b16 %v513, %v510
    %v625 = vpack.c.b16 %v514, %v511
    %v626 = vpack.c.b16 %v518, %v515
    %v627 = vpack.c.b16 %v519, %v516
    %v628 = vpack.c.b16 %v520, %v517
    %v629 = vpack.c.b16 %v524, %v521
    %v630 = vpack.c.b16 %v525, %v522
    %v631 = vpack.c.b16 %v526, %v523
    %v632 = vpack.c.b16 %v530, %v527
    %v633 = vpack.c.b16 %v531, %v528
    %v634 = vpack.c.b16 %v532, %v529
    %v635 = vpack.c.b16 %v536, %v533
    %v636 = vpack.c.b16 %v537, %v534
    %v637 = vpack.c.b16 %v538, %v535
    %v638 = vpack.c.b16 %v542, %v539
    %v639 = vpack.c.b16 %v543, %v540
    %v640 = vpack.c.b16 %v544, %v541
    %v641 = vpack.c.b16 %v548, %v545
    %v642 = vpack.c.b16 %v549, %v546
    %v643 = vpack.c.b16 %v550, %v547
    %v644 = vpack.c.b16 %v554, %v551
    %v645 = vpack.c.b16 %v555, %v552
    %v646 = vpack.c.b16 %v556, %v553
    %v647 = vpack.c.b16 %v560, %v557
    %v648 = vpack.c.b16 %v561, %v558
    %v649 = vpack.c.b16 %v562, %v559
    %v650 = vpack.c.b16 %v566, %v563
    %v651 = vpack.c.b16 %v567, %v564
    %v652 = vpack.c.b16 %v568, %v565
    %v653 = vpack.c.b16 %v572, %v569
    %v654 = vpack.c.b16 %v573, %v570
    %v655 = vpack.c.b16 %v574, %v571
    %v656 = vpack.c.b16 %v578, %v575
    %v657 = vpack.c.b16 %v579, %v576
    %v658 = vpack.c.b16 %v580, %v577
    %v659 = vpack.c.b16 %v584, %v581
    %v660 = vpack.c.b16 %v585, %v582
    %v661 = vpack.c.b16 %v586, %v583
    %v662 = vpack.c.b16 %v590, %v587
    %v663 = vpack.c.b16 %v591, %v588
    %v664 = vpack.c.b16 %v592, %v589
    %737 = vmatprep.subr.bf16.mxu0 %v615
    %738 = vmatpush1.bf16.msra.mxu0 %v614
    %739 = vmatprep.subr.bf16.mxu0 %v612
    %740 = vmatpush1.bf16.msra.mxu0 %v611
    %741 = vmatprep.subr.bf16.mxu0 %v609
    %742 = vmatpush1.bf16.msra.mxu0 %v608
    %743 = vmatprep.subr.bf16.mxu0 %v606
    %744 = vmatpush1.bf16.msra.mxu0 %v605
    %745 = vmatprep.subr.bf16.mxu0 %v603
    %746 = vmatpush1.bf16.msra.mxu0 %v602
    %747 = vmatprep.subr.bf16.mxu0 %v600
    %748 = vmatpush1.bf16.msra.mxu0 %v599
    %749 = vmatprep.subr.bf16.mxu0 %v597
    %750 = vmatpush1.bf16.msra.mxu0 %v596
    %751 = vmatprep.subr.bf16.mxu0 %v594
    %752 = vmatpush1.bf16.msra.mxu0 %v593
    %753 = vmatprep.subr.bf16.mxu0 %v639
    %754 = vmatpush2.bf16.msra.mxu0 %v638
    %755 = vmatprep.subr.bf16.mxu0 %v636
    %756 = vmatpush2.bf16.msra.mxu0 %v635
    %757 = vmatprep.subr.bf16.mxu0 %v633
    %758 = vmatpush2.bf16.msra.mxu0 %v632
    %759 = vmatprep.subr.bf16.mxu0 %v630
    %760 = vmatpush2.bf16.msra.mxu0 %v629
    %761 = vmatprep.subr.bf16.mxu0 %v627
    %762 = vmatpush2.bf16.msra.mxu0 %v626
    %763 = vmatprep.subr.bf16.mxu0 %v624
    %764 = vmatpush2.bf16.msra.mxu0 %v623
    %765 = vmatprep.subr.bf16.mxu0 %v621
    %766 = vmatpush2.bf16.msra.mxu0 %v620
    %767 = vmatprep.subr.bf16.mxu0 %v618
    %768 = vmatpush2.bf16.msra.mxu0 %v617
    %769 = vmatprep.mubr.bf16.mxu0 %v238
    %770 = vmatmul.mubr.bf16.gmra.mxu0 %v237
    %v771 = vpop.f32.mrf.mxu0
    %v772 = vadd.f32 %v341, %v771
    %v773 = vpop.f32.mrf.mxu0
    %v774 = vadd.f32 %v345, %v773
    %v775 = vpop.f32.mrf.mxu0
    %v776 = vpop.f32.mrf.mxu0
    %777 = vdwg.mxu0
    %778 = vmatprep.subr.bf16.mxu0 %v663
    %779 = vmatpush1.bf16.msra.mxu0 %v662
    %780 = vmatprep.subr.bf16.mxu0 %v660
    %781 = vmatpush1.bf16.msra.mxu0 %v659
    %782 = vmatprep.subr.bf16.mxu0 %v657
    %783 = vmatpush1.bf16.msra.mxu0 %v656
    %784 = vmatprep.subr.bf16.mxu0 %v654
    %785 = vmatpush1.bf16.msra.mxu0 %v653
    %786 = vmatprep.subr.bf16.mxu0 %v651
    %787 = vmatpush1.bf16.msra.mxu0 %v650
    %788 = vmatprep.subr.bf16.mxu0 %v648
    %789 = vmatpush1.bf16.msra.mxu0 %v647
    %790 = vmatprep.subr.bf16.mxu0 %v645
    %791 = vmatpush1.bf16.msra.mxu0 %v644
    %792 = vmatprep.subr.bf16.mxu0 %v642
    %793 = vmatpush1.bf16.msra.mxu0 %v641
    %794 = vmatprep.subr.bf16.mxu0 0
    %795 = vmatpush2.bf16.msra.mxu0 0
    %796 = vmatprep.subr.bf16.mxu0 0
    %797 = vmatpush2.bf16.msra.mxu0 0
    %798 = vmatprep.subr.bf16.mxu0 0
    %799 = vmatpush2.bf16.msra.mxu0 0
    %800 = vmatprep.subr.bf16.mxu0 0
    %801 = vmatpush2.bf16.msra.mxu0 0
    %802 = vmatprep.subr.bf16.mxu0 0
    %803 = vmatpush2.bf16.msra.mxu0 0
    %804 = vmatprep.subr.bf16.mxu0 0
    %805 = vmatpush2.bf16.msra.mxu0 0
    %806 = vmatprep.subr.bf16.mxu0 0
    %807 = vmatpush2.bf16.msra.mxu0 0
    %808 = vmatprep.subr.bf16.mxu0 0
    %809 = vmatpush2.bf16.msra.mxu0 0
    %810 = vmatprep.mubr.bf16.mxu0 0
    %811 = vmatmul.mubr.bf16.gmra.mxu0 %v239
    %v812 = vpop.f32.mrf.mxu0
    %v813 = vadd.f32 %v772, %v812
    %v814 = vpop.f32.mrf.mxu0
    %v815 = vadd.f32 %v774, %v814
    %v816 = vpop.f32.mrf.mxu0
    %v817 = vpop.f32.mrf.mxu0
    %818 = vdwg.mxu0
    %819 = vmatprep.subr.bf16.mxu0 0
    %820 = vmatpush1.bf16.msra.mxu0 %v616
    %821 = vmatprep.subr.bf16.mxu0 0
    %822 = vmatpush1.bf16.msra.mxu0 %v613
    %823 = vmatprep.subr.bf16.mxu0 0
    %824 = vmatpush1.bf16.msra.mxu0 %v610
    %825 = vmatprep.subr.bf16.mxu0 0
    %826 = vmatpush1.bf16.msra.mxu0 %v607
    %827 = vmatprep.subr.bf16.mxu0 0
    %828 = vmatpush1.bf16.msra.mxu0 %v604
    %829 = vmatprep.subr.bf16.mxu0 0
    %830 = vmatpush1.bf16.msra.mxu0 %v601
    %831 = vmatprep.subr.bf16.mxu0 0
    %832 = vmatpush1.bf16.msra.mxu0 %v598
    %833 = vmatprep.subr.bf16.mxu0 0
    %834 = vmatpush1.bf16.msra.mxu0 %v595
    %835 = vmatprep.subr.bf16.mxu0 0
    %836 = vmatpush2.bf16.msra.mxu0 %v640
    %837 = vmatprep.subr.bf16.mxu0 0
    %838 = vmatpush2.bf16.msra.mxu0 %v637
    %839 = vmatprep.subr.bf16.mxu0 0
    %840 = vmatpush2.bf16.msra.mxu0 %v634
    %841 = vmatprep.subr.bf16.mxu0 0
    %842 = vmatpush2.bf16.msra.mxu0 %v631
    %843 = vmatprep.subr.bf16.mxu0 0
    %844 = vmatpush2.bf16.msra.mxu0 %v628
    %845 = vmatprep.subr.bf16.mxu0 0
    %846 = vmatpush2.bf16.msra.mxu0 %v625
    %847 = vmatprep.subr.bf16.mxu0 0
    %848 = vmatpush2.bf16.msra.mxu0 %v622
    %849 = vmatprep.subr.bf16.mxu0 0
    %850 = vmatpush2.bf16.msra.mxu0 %v619
    %851 = vmatprep.mubr.bf16.mxu0 %v238
    %852 = vmatmul.mubr.bf16.gmra.mxu0 %v237
    %v853 = vpop.f32.mrf.mxu0
    %v854 = vadd.f32 %v349, %v853
    %v855 = vpop.f32.mrf.mxu0
    %v856 = vpop.f32.mrf.mxu0
    %v857 = vpop.f32.mrf.mxu0
    %858 = vdwg.mxu0
    %859 = vmatprep.subr.bf16.mxu0 0
    %860 = vmatpush1.bf16.msra.mxu0 %v664
    %861 = vmatprep.subr.bf16.mxu0 0
    %862 = vmatpush1.bf16.msra.mxu0 %v661
    %863 = vmatprep.subr.bf16.mxu0 0
    %864 = vmatpush1.bf16.msra.mxu0 %v658
    %865 = vmatprep.subr.bf16.mxu0 0
    %866 = vmatpush1.bf16.msra.mxu0 %v655
    %867 = vmatprep.subr.bf16.mxu0 0
    %868 = vmatpush1.bf16.msra.mxu0 %v652
    %869 = vmatprep.subr.bf16.mxu0 0
    %870 = vmatpush1.bf16.msra.mxu0 %v649
    %871 = vmatprep.subr.bf16.mxu0 0
    %872 = vmatpush1.bf16.msra.mxu0 %v646
    %873 = vmatprep.subr.bf16.mxu0 0
    %874 = vmatpush1.bf16.msra.mxu0 %v643
    %875 = vmatprep.subr.bf16.mxu0 0
    %876 = vmatpush2.bf16.msra.mxu0 0
    %877 = vmatprep.subr.bf16.mxu0 0
    %878 = vmatpush2.bf16.msra.mxu0 0
    %879 = vmatprep.subr.bf16.mxu0 0
    %880 = vmatpush2.bf16.msra.mxu0 0
    %881 = vmatprep.subr.bf16.mxu0 0
    %882 = vmatpush2.bf16.msra.mxu0 0
    %883 = vmatprep.subr.bf16.mxu0 0
    %884 = vmatpush2.bf16.msra.mxu0 0
    %885 = vmatprep.subr.bf16.mxu0 0
    %886 = vmatpush2.bf16.msra.mxu0 0
    %887 = vmatprep.subr.bf16.mxu0 0
    %888 = vmatpush2.bf16.msra.mxu0 0
    %889 = vmatprep.subr.bf16.mxu0 0
    %890 = vmatpush2.bf16.msra.mxu0 0
    %891 = vmatprep.mubr.bf16.mxu0 0
    %892 = vmatmul.mubr.bf16.gmra.mxu0 %v239
    %v893 = vpop.f32.mrf.mxu0
    %v894 = vadd.f32 %v854, %v893
    %v895 = vpop.f32.mrf.mxu0
    %v896 = vpop.f32.mrf.mxu0
    %v897 = vpop.f32.mrf.mxu0
    %898 = vdwg.mxu0
    %v899 = vld [vmem:[#allocation8] sm:$0xff]
    %v900 = vld [vmem:[#allocation8 + $0x8] sm:$0xf]
    %v901 = vld [vmem:[#allocation8 + $0xc] sm:$0xff]
    %v902 = vld [vmem:[#allocation8 + $0x14] sm:$0xf]
    %v903 = vld [vmem:[#allocation8 + $0x18] sm:$0xff]
    %v904 = vld [vmem:[#allocation8 + $0x20] sm:$0xf]
    %v905 = vld [vmem:[#allocation8 + $0x24] sm:$0xff]
    %v906 = vld [vmem:[#allocation8 + $0x2c] sm:$0xf]
    %v907 = vld [vmem:[#allocation8 + $0x30] sm:$0xff]
    %v908 = vld [vmem:[#allocation8 + $0x38] sm:$0xf]
    %v909 = vld [vmem:[#allocation8 + $0x3c] sm:$0xff]
    %v910 = vld [vmem:[#allocation8 + $0x44] sm:$0xf]
    %v911 = vld [vmem:[#allocation8 + $0x48] sm:$0xff]
    %v912 = vld [vmem:[#allocation8 + $0x50] sm:$0xf]
    %v913 = vld [vmem:[#allocation8 + $0x54] sm:$0xff]
    %v914 = vld [vmem:[#allocation8 + $0x5c] sm:$0xf]
    %v915 = vld [vmem:[#allocation8 + $0x60] sm:$0xff]
    %v916 = vld [vmem:[#allocation8 + $0x68] sm:$0xf]
    %v917 = vld [vmem:[#allocation8 + $0x6c] sm:$0xff]
    %v918 = vld [vmem:[#allocation8 + $0x74] sm:$0xf]
    %v919 = vld [vmem:[#allocation8 + $0x78] sm:$0xff]
    %v920 = vld [vmem:[#allocation8 + $0x80] sm:$0xf]
    %v921 = vld [vmem:[#allocation8 + $0x84] sm:$0xff]
    %v922 = vld [vmem:[#allocation8 + $0x8c] sm:$0xf]
    %v923 = vld [vmem:[#allocation8 + $0x90] sm:$0xff]
    %v924 = vld [vmem:[#allocation8 + $0x98] sm:$0xf]
    %v925 = vld [vmem:[#allocation8 + $0x9c] sm:$0xff]
    %v926 = vld [vmem:[#allocation8 + $0xa4] sm:$0xf]
    %v927 = vld [vmem:[#allocation8 + $0xa8] sm:$0xff]
    %v928 = vld [vmem:[#allocation8 + $0xb0] sm:$0xf]
    %v929 = vld [vmem:[#allocation8 + $0xb4] sm:$0xff]
    %v930 = vld [vmem:[#allocation8 + $0xbc] sm:$0xf]
    %v931 = vld [vmem:[#allocation8 + $0xc0] sm:$0xff]
    %v932 = vld [vmem:[#allocation8 + $0xc8] sm:$0xf]
    %v933 = vld [vmem:[#allocation8 + $0xcc] sm:$0xff]
    %v934 = vld [vmem:[#allocation8 + $0xd4] sm:$0xf]
    %v935 = vld [vmem:[#allocation8 + $0xd8] sm:$0xff]
    %v936 = vld [vmem:[#allocation8 + $0xe0] sm:$0xf]
    %v937 = vld [vmem:[#allocation8 + $0xe4] sm:$0xff]
    %v938 = vld [vmem:[#allocation8 + $0xec] sm:$0xf]
    %v939 = vld [vmem:[#allocation8 + $0xf0] sm:$0xff]
    %v940 = vld [vmem:[#allocation8 + $0xf8] sm:$0xf]
    %v941 = vld [vmem:[#allocation8 + $0xfc] sm:$0xff]
    %v942 = vld [vmem:[#allocation8 + $0x104] sm:$0xf]
    %v943 = vld [vmem:[#allocation8 + $0x108] sm:$0xff]
    %v944 = vld [vmem:[#allocation8 + $0x110] sm:$0xf]
    %v945 = vld [vmem:[#allocation8 + $0x114] sm:$0xff]
    %v946 = vld [vmem:[#allocation8 + $0x11c] sm:$0xf]
    %v947 = vld [vmem:[#allocation8 + $0x120] sm:$0xff]
    %v948 = vld [vmem:[#allocation8 + $0x128] sm:$0xf]
    %v949 = vld [vmem:[#allocation8 + $0x12c] sm:$0xff]
    %v950 = vld [vmem:[#allocation8 + $0x134] sm:$0xf]
    %v951 = vld [vmem:[#allocation8 + $0x138] sm:$0xff]
    %v952 = vld [vmem:[#allocation8 + $0x140] sm:$0xf]
    %v953 = vld [vmem:[#allocation8 + $0x144] sm:$0xff]
    %v954 = vld [vmem:[#allocation8 + $0x14c] sm:$0xf]
    %v955 = vld [vmem:[#allocation8 + $0x150] sm:$0xff]
    %v956 = vld [vmem:[#allocation8 + $0x158] sm:$0xf]
    %v957 = vld [vmem:[#allocation8 + $0x15c] sm:$0xff]
    %v958 = vld [vmem:[#allocation8 + $0x164] sm:$0xf]
    %v959 = vld [vmem:[#allocation8 + $0x168] sm:$0xff]
    %v960 = vld [vmem:[#allocation8 + $0x170] sm:$0xf]
    %v961 = vld [vmem:[#allocation8 + $0x174] sm:$0xff]
    %v962 = vld [vmem:[#allocation8 + $0x17c] sm:$0xf]
    %v963 = vld [vmem:[#allocation8 + $0x180] sm:$0xff]
    %v964 = vld [vmem:[#allocation8 + $0x188] sm:$0xf]
    %v965 = vld [vmem:[#allocation8 + $0x18c] sm:$0xff]
    %v966 = vld [vmem:[#allocation8 + $0x194] sm:$0xf]
    %v967 = vld [vmem:[#allocation8 + $0x198] sm:$0xff]
    %v968 = vld [vmem:[#allocation8 + $0x1a0] sm:$0xf]
    %v969 = vld [vmem:[#allocation8 + $0x1a4] sm:$0xff]
    %v970 = vld [vmem:[#allocation8 + $0x1ac] sm:$0xf]
    %v971 = vld [vmem:[#allocation8 + $0x1b0] sm:$0xff]
    %v972 = vld [vmem:[#allocation8 + $0x1b8] sm:$0xf]
    %v973 = vld [vmem:[#allocation8 + $0x1bc] sm:$0xff]
    %v974 = vld [vmem:[#allocation8 + $0x1c4] sm:$0xf]
    %v975 = vld [vmem:[#allocation8 + $0x1c8] sm:$0xff]
    %v976 = vld [vmem:[#allocation8 + $0x1d0] sm:$0xf]
    %v977 = vld [vmem:[#allocation8 + $0x1d4] sm:$0xff]
    %v978 = vld [vmem:[#allocation8 + $0x1dc] sm:$0xf]
    %v979 = vld [vmem:[#allocation8 + $0x1e0] sm:$0xff]
    %v980 = vld [vmem:[#allocation8 + $0x1e8] sm:$0xf]
    %v981 = vld [vmem:[#allocation8 + $0x1ec] sm:$0xff]
    %v982 = vld [vmem:[#allocation8 + $0x1f4] sm:$0xf]
    %v983 = vld [vmem:[#allocation8 + $0x1f8] sm:$0xff]
    %v984 = vld [vmem:[#allocation8 + $0x200] sm:$0xf]
    %v985 = vld [vmem:[#allocation8 + $0x204] sm:$0xff]
    %v986 = vld [vmem:[#allocation8 + $0x20c] sm:$0xf]
    %v987 = vld [vmem:[#allocation8 + $0x210] sm:$0xff]
    %v988 = vld [vmem:[#allocation8 + $0x218] sm:$0xf]
    %v989 = vld [vmem:[#allocation8 + $0x21c] sm:$0xff]
    %v990 = vld [vmem:[#allocation8 + $0x224] sm:$0xf]
    %v991 = vld [vmem:[#allocation8 + $0x228] sm:$0xff]
    %v992 = vld [vmem:[#allocation8 + $0x230] sm:$0xf]
    %v993 = vld [vmem:[#allocation8 + $0x234] sm:$0xff]
    %v994 = vld [vmem:[#allocation8 + $0x23c] sm:$0xf]
    %v995 = vld [vmem:[#allocation10] sm:$0x7]
    %v997 = vlaneseq
    %v998 = vshrl.u32 %v997, 7
    %v999 = vsub.s32 0, %v998
    %v1000 = vrot.slane %v995, %v999
    %v1001 = vlaneseq
    %v1002 = vshrl.u32 %v1001, 7
    %v1003 = vsub.s32 1, %v1002
    %v1004 = vrot.slane %v995, %v1003
    %v1005 = vlaneseq
    %v1006 = vshrl.u32 %v1005, 7
    %v1007 = vsub.s32 2, %v1006
    %v1008 = vrot.slane %v995, %v1007
    %v1108 = vunpack.c.l.b16 %v899
    %v1109 = vunpack.c.h.b16 %v899
    %v1110 = vunpack.c.l.b16 %v900
    %v1111 = vunpack.c.l.b16 %v901
    %v1112 = vunpack.c.h.b16 %v901
    %v1113 = vunpack.c.l.b16 %v902
    %v1114 = vunpack.c.l.b16 %v903
    %v1115 = vunpack.c.h.b16 %v903
    %v1116 = vunpack.c.l.b16 %v904
    %v1117 = vunpack.c.l.b16 %v905
    %v1118 = vunpack.c.h.b16 %v905
    %v1119 = vunpack.c.l.b16 %v906
    %v1120 = vunpack.c.l.b16 %v907
    %v1121 = vunpack.c.h.b16 %v907
    %v1122 = vunpack.c.l.b16 %v908
    %v1123 = vunpack.c.l.b16 %v909
    %v1124 = vunpack.c.h.b16 %v909
    %v1125 = vunpack.c.l.b16 %v910
    %v1126 = vunpack.c.l.b16 %v911
    %v1127 = vunpack.c.h.b16 %v911
    %v1128 = vunpack.c.l.b16 %v912
    %v1129 = vunpack.c.l.b16 %v913
    %v1130 = vunpack.c.h.b16 %v913
    %v1131 = vunpack.c.l.b16 %v914
    %v1132 = vunpack.c.l.b16 %v915
    %v1133 = vunpack.c.h.b16 %v915
    %v1134 = vunpack.c.l.b16 %v916
    %v1135 = vunpack.c.l.b16 %v917
    %v1136 = vunpack.c.h.b16 %v917
    %v1137 = vunpack.c.l.b16 %v918
    %v1138 = vunpack.c.l.b16 %v919
    %v1139 = vunpack.c.h.b16 %v919
    %v1140 = vunpack.c.l.b16 %v920
    %v1141 = vunpack.c.l.b16 %v921
    %v1142 = vunpack.c.h.b16 %v921
    %v1143 = vunpack.c.l.b16 %v922
    %v1144 = vunpack.c.l.b16 %v923
    %v1145 = vunpack.c.h.b16 %v923
    %v1146 = vunpack.c.l.b16 %v924
    %v1147 = vunpack.c.l.b16 %v925
    %v1148 = vunpack.c.h.b16 %v925
    %v1149 = vunpack.c.l.b16 %v926
    %v1150 = vunpack.c.l.b16 %v927
    %v1151 = vunpack.c.h.b16 %v927
    %v1152 = vunpack.c.l.b16 %v928
    %v1153 = vunpack.c.l.b16 %v929
    %v1154 = vunpack.c.h.b16 %v929
    %v1155 = vunpack.c.l.b16 %v930
    %v1156 = vunpack.c.l.b16 %v931
    %v1157 = vunpack.c.h.b16 %v931
    %v1158 = vunpack.c.l.b16 %v932
    %v1159 = vunpack.c.l.b16 %v933
    %v1160 = vunpack.c.h.b16 %v933
    %v1161 = vunpack.c.l.b16 %v934
    %v1162 = vunpack.c.l.b16 %v935
    %v1163 = vunpack.c.h.b16 %v935
    %v1164 = vunpack.c.l.b16 %v936
    %v1165 = vunpack.c.l.b16 %v937
    %v1166 = vunpack.c.h.b16 %v937
    %v1167 = vunpack.c.l.b16 %v938
    %v1168 = vunpack.c.l.b16 %v939
    %v1169 = vunpack.c.h.b16 %v939
    %v1170 = vunpack.c.l.b16 %v940
    %v1171 = vunpack.c.l.b16 %v941
    %v1172 = vunpack.c.h.b16 %v941
    %v1173 = vunpack.c.l.b16 %v942
    %v1174 = vunpack.c.l.b16 %v943
    %v1175 = vunpack.c.h.b16 %v943
    %v1176 = vunpack.c.l.b16 %v944
    %v1177 = vunpack.c.l.b16 %v945
    %v1178 = vunpack.c.h.b16 %v945
    %v1179 = vunpack.c.l.b16 %v946
    %v1180 = vunpack.c.l.b16 %v947
    %v1181 = vunpack.c.h.b16 %v947
    %v1182 = vunpack.c.l.b16 %v948
    %v1183 = vunpack.c.l.b16 %v949
    %v1184 = vunpack.c.h.b16 %v949
    %v1185 = vunpack.c.l.b16 %v950
    %v1186 = vunpack.c.l.b16 %v951
    %v1187 = vunpack.c.h.b16 %v951
    %v1188 = vunpack.c.l.b16 %v952
    %v1189 = vunpack.c.l.b16 %v953
    %v1190 = vunpack.c.h.b16 %v953
    %v1191 = vunpack.c.l.b16 %v954
    %v1192 = vunpack.c.l.b16 %v955
    %v1193 = vunpack.c.h.b16 %v955
    %v1194 = vunpack.c.l.b16 %v956
    %v1195 = vunpack.c.l.b16 %v957
    %v1196 = vunpack.c.h.b16 %v957
    %v1197 = vunpack.c.l.b16 %v958
    %v1198 = vunpack.c.l.b16 %v959
    %v1199 = vunpack.c.h.b16 %v959
    %v1200 = vunpack.c.l.b16 %v960
    %v1201 = vunpack.c.l.b16 %v961
    %v1202 = vunpack.c.h.b16 %v961
    %v1203 = vunpack.c.l.b16 %v962
    %v1204 = vunpack.c.l.b16 %v963
    %v1205 = vunpack.c.h.b16 %v963
    %v1206 = vunpack.c.l.b16 %v964
    %v1207 = vunpack.c.l.b16 %v965
    %v1208 = vunpack.c.h.b16 %v965
    %v1209 = vunpack.c.l.b16 %v966
    %v1210 = vunpack.c.l.b16 %v967
    %v1211 = vunpack.c.h.b16 %v967
    %v1212 = vunpack.c.l.b16 %v968
    %v1213 = vunpack.c.l.b16 %v969
    %v1214 = vunpack.c.h.b16 %v969
    %v1215 = vunpack.c.l.b16 %v970
    %v1216 = vunpack.c.l.b16 %v971
    %v1217 = vunpack.c.h.b16 %v971
    %v1218 = vunpack.c.l.b16 %v972
    %v1219 = vunpack.c.l.b16 %v973
    %v1220 = vunpack.c.h.b16 %v973
    %v1221 = vunpack.c.l.b16 %v974
    %v1222 = vunpack.c.l.b16 %v975
    %v1223 = vunpack.c.h.b16 %v975
    %v1224 = vunpack.c.l.b16 %v976
    %v1225 = vunpack.c.l.b16 %v977
    %v1226 = vunpack.c.h.b16 %v977
    %v1227 = vunpack.c.l.b16 %v978
    %v1228 = vunpack.c.l.b16 %v979
    %v1229 = vunpack.c.h.b16 %v979
    %v1230 = vunpack.c.l.b16 %v980
    %v1231 = vunpack.c.l.b16 %v981
    %v1232 = vunpack.c.h.b16 %v981
    %v1233 = vunpack.c.l.b16 %v982
    %v1234 = vunpack.c.l.b16 %v983
    %v1235 = vunpack.c.h.b16 %v983
    %v1236 = vunpack.c.l.b16 %v984
    %v1237 = vunpack.c.l.b16 %v985
    %v1238 = vunpack.c.h.b16 %v985
    %v1239 = vunpack.c.l.b16 %v986
    %v1240 = vunpack.c.l.b16 %v987
    %v1241 = vunpack.c.h.b16 %v987
    %v1242 = vunpack.c.l.b16 %v988
    %v1243 = vunpack.c.l.b16 %v989
    %v1244 = vunpack.c.h.b16 %v989
    %v1245 = vunpack.c.l.b16 %v990
    %v1246 = vunpack.c.l.b16 %v991
    %v1247 = vunpack.c.h.b16 %v991
    %v1248 = vunpack.c.l.b16 %v992
    %v1249 = vunpack.c.l.b16 %v993
    %v1250 = vunpack.c.h.b16 %v993
    %v1251 = vunpack.c.l.b16 %v994
    %v1252 = vpack.c.b16 %v1111, %v1108
    %v1253 = vpack.c.b16 %v1112, %v1109
    %v1254 = vpack.c.b16 %v1113, %v1110
    %v1255 = vpack.c.b16 %v1117, %v1114
    %v1256 = vpack.c.b16 %v1118, %v1115
    %v1257 = vpack.c.b16 %v1119, %v1116
    %v1258 = vpack.c.b16 %v1123, %v1120
    %v1259 = vpack.c.b16 %v1124, %v1121
    %v1260 = vpack.c.b16 %v1125, %v1122
    %v1261 = vpack.c.b16 %v1129, %v1126
    %v1262 = vpack.c.b16 %v1130, %v1127
    %v1263 = vpack.c.b16 %v1131, %v1128
    %v1264 = vpack.c.b16 %v1135, %v1132
    %v1265 = vpack.c.b16 %v1136, %v1133
    %v1266 = vpack.c.b16 %v1137, %v1134
    %v1267 = vpack.c.b16 %v1141, %v1138
    %v1268 = vpack.c.b16 %v1142, %v1139
    %v1269 = vpack.c.b16 %v1143, %v1140
    %v1270 = vpack.c.b16 %v1147, %v1144
    %v1271 = vpack.c.b16 %v1148, %v1145
    %v1272 = vpack.c.b16 %v1149, %v1146
    %v1273 = vpack.c.b16 %v1153, %v1150
    %v1274 = vpack.c.b16 %v1154, %v1151
    %v1275 = vpack.c.b16 %v1155, %v1152
    %v1276 = vpack.c.b16 %v1159, %v1156
    %v1277 = vpack.c.b16 %v1160, %v1157
    %v1278 = vpack.c.b16 %v1161, %v1158
    %v1279 = vpack.c.b16 %v1165, %v1162
    %v1280 = vpack.c.b16 %v1166, %v1163
    %v1281 = vpack.c.b16 %v1167, %v1164
    %v1282 = vpack.c.b16 %v1171, %v1168
    %v1283 = vpack.c.b16 %v1172, %v1169
    %v1284 = vpack.c.b16 %v1173, %v1170
    %v1285 = vpack.c.b16 %v1177, %v1174
    %v1286 = vpack.c.b16 %v1178, %v1175
    %v1287 = vpack.c.b16 %v1179, %v1176
    %v1288 = vpack.c.b16 %v1183, %v1180
    %v1289 = vpack.c.b16 %v1184, %v1181
    %v1290 = vpack.c.b16 %v1185, %v1182
    %v1291 = vpack.c.b16 %v1189, %v1186
    %v1292 = vpack.c.b16 %v1190, %v1187
    %v1293 = vpack.c.b16 %v1191, %v1188
    %v1294 = vpack.c.b16 %v1195, %v1192
    %v1295 = vpack.c.b16 %v1196, %v1193
    %v1296 = vpack.c.b16 %v1197, %v1194
    %v1297 = vpack.c.b16 %v1201, %v1198
    %v1298 = vpack.c.b16 %v1202, %v1199
    %v1299 = vpack.c.b16 %v1203, %v1200
    %v1300 = vpack.c.b16 %v1207, %v1204
    %v1301 = vpack.c.b16 %v1208, %v1205
    %v1302 = vpack.c.b16 %v1209, %v1206
    %v1303 = vpack.c.b16 %v1213, %v1210
    %v1304 = vpack.c.b16 %v1214, %v1211
    %v1305 = vpack.c.b16 %v1215, %v1212
    %v1306 = vpack.c.b16 %v1219, %v1216
    %v1307 = vpack.c.b16 %v1220, %v1217
    %v1308 = vpack.c.b16 %v1221, %v1218
    %v1309 = vpack.c.b16 %v1225, %v1222
    %v1310 = vpack.c.b16 %v1226, %v1223
    %v1311 = vpack.c.b16 %v1227, %v1224
    %v1312 = vpack.c.b16 %v1231, %v1228
    %v1313 = vpack.c.b16 %v1232, %v1229
    %v1314 = vpack.c.b16 %v1233, %v1230
    %v1315 = vpack.c.b16 %v1237, %v1234
    %v1316 = vpack.c.b16 %v1238, %v1235
    %v1317 = vpack.c.b16 %v1239, %v1236
    %v1318 = vpack.c.b16 %v1243, %v1240
    %v1319 = vpack.c.b16 %v1244, %v1241
    %v1320 = vpack.c.b16 %v1245, %v1242
    %v1321 = vpack.c.b16 %v1249, %v1246
    %v1322 = vpack.c.b16 %v1250, %v1247
    %v1323 = vpack.c.b16 %v1251, %v1248
    %1396 = vmatprep.subr.bf16.mxu0 %v1274
    %1397 = vmatpush1.bf16.msra.mxu0 %v1273
    %1398 = vmatprep.subr.bf16.mxu0 %v1271
    %1399 = vmatpush1.bf16.msra.mxu0 %v1270
    %1400 = vmatprep.subr.bf16.mxu0 %v1268
    %1401 = vmatpush1.bf16.msra.mxu0 %v1267
    %1402 = vmatprep.subr.bf16.mxu0 %v1265
    %1403 = vmatpush1.bf16.msra.mxu0 %v1264
    %1404 = vmatprep.subr.bf16.mxu0 %v1262
    %1405 = vmatpush1.bf16.msra.mxu0 %v1261
    %1406 = vmatprep.subr.bf16.mxu0 %v1259
    %1407 = vmatpush1.bf16.msra.mxu0 %v1258
    %1408 = vmatprep.subr.bf16.mxu0 %v1256
    %1409 = vmatpush1.bf16.msra.mxu0 %v1255
    %1410 = vmatprep.subr.bf16.mxu0 %v1253
    %1411 = vmatpush1.bf16.msra.mxu0 %v1252
    %1412 = vmatprep.subr.bf16.mxu0 %v1298
    %1413 = vmatpush2.bf16.msra.mxu0 %v1297
    %1414 = vmatprep.subr.bf16.mxu0 %v1295
    %1415 = vmatpush2.bf16.msra.mxu0 %v1294
    %1416 = vmatprep.subr.bf16.mxu0 %v1292
    %1417 = vmatpush2.bf16.msra.mxu0 %v1291
    %1418 = vmatprep.subr.bf16.mxu0 %v1289
    %1419 = vmatpush2.bf16.msra.mxu0 %v1288
    %1420 = vmatprep.subr.bf16.mxu0 %v1286
    %1421 = vmatpush2.bf16.msra.mxu0 %v1285
    %1422 = vmatprep.subr.bf16.mxu0 %v1283
    %1423 = vmatpush2.bf16.msra.mxu0 %v1282
    %1424 = vmatprep.subr.bf16.mxu0 %v1280
    %1425 = vmatpush2.bf16.msra.mxu0 %v1279
    %1426 = vmatprep.subr.bf16.mxu0 %v1277
    %1427 = vmatpush2.bf16.msra.mxu0 %v1276
    %1428 = vmatprep.mubr.bf16.mxu0 %v238
    %1429 = vmatmul.mubr.bf16.gmra.mxu0 %v237
    %v1430 = vpop.f32.mrf.mxu0
    %v1431 = vadd.f32 %v1000, %v1430
    %v1432 = vpop.f32.mrf.mxu0
    %v1433 = vadd.f32 %v1004, %v1432
    %v1434 = vpop.f32.mrf.mxu0
    %v1435 = vpop.f32.mrf.mxu0
    %1436 = vdwg.mxu0
    %1437 = vmatprep.subr.bf16.mxu0 %v1322
    %1438 = vmatpush1.bf16.msra.mxu0 %v1321
    %1439 = vmatprep.subr.bf16.mxu0 %v1319
    %1440 = vmatpush1.bf16.msra.mxu0 %v1318
    %1441 = vmatprep.subr.bf16.mxu0 %v1316
    %1442 = vmatpush1.bf16.msra.mxu0 %v1315
    %1443 = vmatprep.subr.bf16.mxu0 %v1313
    %1444 = vmatpush1.bf16.msra.mxu0 %v1312
    %1445 = vmatprep.subr.bf16.mxu0 %v1310
    %1446 = vmatpush1.bf16.msra.mxu0 %v1309
    %1447 = vmatprep.subr.bf16.mxu0 %v1307
    %1448 = vmatpush1.bf16.msra.mxu0 %v1306
    %1449 = vmatprep.subr.bf16.mxu0 %v1304
    %1450 = vmatpush1.bf16.msra.mxu0 %v1303
    %1451 = vmatprep.subr.bf16.mxu0 %v1301
    %1452 = vmatpush1.bf16.msra.mxu0 %v1300
    %1453 = vmatprep.subr.bf16.mxu0 0
    %1454 = vmatpush2.bf16.msra.mxu0 0
    %1455 = vmatprep.subr.bf16.mxu0 0
    %1456 = vmatpush2.bf16.msra.mxu0 0
    %1457 = vmatprep.subr.bf16.mxu0 0
    %1458 = vmatpush2.bf16.msra.mxu0 0
    %1459 = vmatprep.subr.bf16.mxu0 0
    %1460 = vmatpush2.bf16.msra.mxu0 0
    %1461 = vmatprep.subr.bf16.mxu0 0
    %1462 = vmatpush2.bf16.msra.mxu0 0
    %1463 = vmatprep.subr.bf16.mxu0 0
    %1464 = vmatpush2.bf16.msra.mxu0 0
    %1465 = vmatprep.subr.bf16.mxu0 0
    %1466 = vmatpush2.bf16.msra.mxu0 0
    %1467 = vmatprep.subr.bf16.mxu0 0
    %1468 = vmatpush2.bf16.msra.mxu0 0
    %1469 = vmatprep.mubr.bf16.mxu0 0
    %1470 = vmatmul.mubr.bf16.gmra.mxu0 %v239
    %v1471 = vpop.f32.mrf.mxu0
    %v1472 = vadd.f32 %v1431, %v1471
    %v1473 = vpop.f32.mrf.mxu0
    %v1474 = vadd.f32 %v1433, %v1473
    %v1475 = vpop.f32.mrf.mxu0
    %v1476 = vpop.f32.mrf.mxu0
    %1477 = vdwg.mxu0
    %1478 = vmatprep.subr.bf16.mxu0 0
    %1479 = vmatpush1.bf16.msra.mxu0 %v1275
    %1480 = vmatprep.subr.bf16.mxu0 0
    %1481 = vmatpush1.bf16.msra.mxu0 %v1272
    %1482 = vmatprep.subr.bf16.mxu0 0
    %1483 = vmatpush1.bf16.msra.mxu0 %v1269
    %1484 = vmatprep.subr.bf16.mxu0 0
    %1485 = vmatpush1.bf16.msra.mxu0 %v1266
    %1486 = vmatprep.subr.bf16.mxu0 0
    %1487 = vmatpush1.bf16.msra.mxu0 %v1263
    %1488 = vmatprep.subr.bf16.mxu0 0
    %1489 = vmatpush1.bf16.msra.mxu0 %v1260
    %1490 = vmatprep.subr.bf16.mxu0 0
    %1491 = vmatpush1.bf16.msra.mxu0 %v1257
    %1492 = vmatprep.subr.bf16.mxu0 0
    %1493 = vmatpush1.bf16.msra.mxu0 %v1254
    %1494 = vmatprep.subr.bf16.mxu0 0
    %1495 = vmatpush2.bf16.msra.mxu0 %v1299
    %1496 = vmatprep.subr.bf16.mxu0 0
    %1497 = vmatpush2.bf16.msra.mxu0 %v1296
    %1498 = vmatprep.subr.bf16.mxu0 0
    %1499 = vmatpush2.bf16.msra.mxu0 %v1293
    %1500 = vmatprep.subr.bf16.mxu0 0
    %1501 = vmatpush2.bf16.msra.mxu0 %v1290
    %1502 = vmatprep.subr.bf16.mxu0 0
    %1503 = vmatpush2.bf16.msra.mxu0 %v1287
    %1504 = vmatprep.subr.bf16.mxu0 0
    %1505 = vmatpush2.bf16.msra.mxu0 %v1284
    %1506 = vmatprep.subr.bf16.mxu0 0
    %1507 = vmatpush2.bf16.msra.mxu0 %v1281
    %1508 = vmatprep.subr.bf16.mxu0 0
    %1509 = vmatpush2.bf16.msra.mxu0 %v1278
    %1510 = vmatprep.mubr.bf16.mxu0 %v238
    %1511 = vmatmul.mubr.bf16.gmra.mxu0 %v237
    %v1512 = vpop.f32.mrf.mxu0
    %v1513 = vadd.f32 %v1008, %v1512
    %v1514 = vpop.f32.mrf.mxu0
    %v1515 = vpop.f32.mrf.mxu0
    %v1516 = vpop.f32.mrf.mxu0
    %1517 = vdwg.mxu0
    %1518 = vmatprep.subr.bf16.mxu0 0
    %1519 = vmatpush1.bf16.msra.mxu0 %v1323
    %1520 = vmatprep.subr.bf16.mxu0 0
    %1521 = vmatpush1.bf16.msra.mxu0 %v1320
    %1522 = vmatprep.subr.bf16.mxu0 0
    %1523 = vmatpush1.bf16.msra.mxu0 %v1317
    %1524 = vmatprep.subr.bf16.mxu0 0
    %1525 = vmatpush1.bf16.msra.mxu0 %v1314
    %1526 = vmatprep.subr.bf16.mxu0 0
    %1527 = vmatpush1.bf16.msra.mxu0 %v1311
    %1528 = vmatprep.subr.bf16.mxu0 0
    %1529 = vmatpush1.bf16.msra.mxu0 %v1308
    %1530 = vmatprep.subr.bf16.mxu0 0
    %1531 = vmatpush1.bf16.msra.mxu0 %v1305
    %1532 = vmatprep.subr.bf16.mxu0 0
    %1533 = vmatpush1.bf16.msra.mxu0 %v1302
    %1534 = vmatprep.subr.bf16.mxu0 0
    %1535 = vmatpush2.bf16.msra.mxu0 0
    %1536 = vmatprep.subr.bf16.mxu0 0
    %1537 = vmatpush2.bf16.msra.mxu0 0
    %1538 = vmatprep.subr.bf16.mxu0 0
    %1539 = vmatpush2.bf16.msra.mxu0 0
    %1540 = vmatprep.subr.bf16.mxu0 0
    %1541 = vmatpush2.bf16.msra.mxu0 0
    %1542 = vmatprep.subr.bf16.mxu0 0
    %1543 = vmatpush2.bf16.msra.mxu0 0
    %1544 = vmatprep.subr.bf16.mxu0 0
    %1545 = vmatpush2.bf16.msra.mxu0 0
    %1546 = vmatprep.subr.bf16.mxu0 0
    %1547 = vmatpush2.bf16.msra.mxu0 0
    %1548 = vmatprep.subr.bf16.mxu0 0
    %1549 = vmatpush2.bf16.msra.mxu0 0
    %1550 = vmatprep.mubr.bf16.mxu0 0
    %1551 = vmatmul.mubr.bf16.gmra.mxu0 %v239
    %v1552 = vpop.f32.mrf.mxu0
    %v1553 = vadd.f32 %v1513, %v1552
    %v1554 = vpop.f32.mrf.mxu0
    %v1555 = vpop.f32.mrf.mxu0
    %v1556 = vpop.f32.mrf.mxu0
    %1557 = vdwg.mxu0
    %v1561 = vcombine.low %v813, %v815
    %v1563 = vunpack.c.l.s4 1983009808
    %v1564 = vunpack.c.0.s8 %v1563
    %v1565 = vlaneseq
    %v1566 = vshrl.u32 %v1565, 7
    %v1567 = vsub.s32 %v1564, %v1566
    %v1568 = vrot.slane %v1561, %v1567
    %v1570 = vunpack.c.l.s4 1983009808
    %v1571 = vunpack.c.0.s8 %v1570
    %v1572 = vlaneseq
    %v1573 = vshrl.u32 %v1572, 7
    %v1574 = vsub.s32 %v1571, %v1573
    %v1575 = vrot.slane %v894, %v1574
    %v1576 = vcombine.low %v1568, %v1575
    %1578 = vst [vmem:[#allocation14] sm:$0x3f] %v1576
    %v1579 = vmax.f32 %v1472, 0.0
    %v1580 = vmax.f32 %v1474, 0.0
    %v1581 = vmax.f32 %v1553, 0.0
    %vm1582 = vcmp.ne.f32.partialorder %v1472, %v1472
    %vm1583 = vcmp.ne.f32.partialorder %v1474, %v1474
    %vm1584 = vcmp.ne.f32.partialorder %v1553, %v1553
    %v1585 = vadd.f32 %v1472, 0.0
    %v1586 = vadd.f32 %v1474, 0.0
    %v1587 = vadd.f32 %v1553, 0.0
    %v1588 = vand.u32 2147483647, %v1472
    %v1589 = vand.u32 2147483647, %v1474
    %v1590 = vand.u32 2147483647, %v1553
    %v1591 = vsub.f32 0.0, %v1588
    %v1592 = vsub.f32 0.0, %v1589
    %v1593 = vsub.f32 0.0, %v1590
    %v1594 = vmul.f32 %v1591, 1.442695
    %v1595 = vpow.pop %v1594
    %v1596 = vmul.f32 %v1592, 1.442695
    %v1597 = vpow.pop %v1596
    %v1598 = vmul.f32 %v1593, 1.442695
    %v1599 = vpow.pop %v1598
    %v1600 = vadd.f32 %v1595, 1.0
    %v1601 = vlog2.pop %v1600
    %v1602 = vmul.f32 %v1601, 0.6931472
    %v1603 = vmul.f32 -0.5, %v1595
    %v1604 = vadd.f32 %v1603, 1.0
    %v1605 = vmul.f32 %v1604, %v1595
    %v1606 = vand.u32 2147483647, %v1595
    %vm1607 = vcmp.lt.f32.partialorder %v1606, 0.0004427343
    %v1608 = vsel %vm1607, %v1605, %v1602
    %v1609 = vadd.f32 %v1597, 1.0
    %v1610 = vlog2.pop %v1609
    %v1611 = vmul.f32 %v1610, 0.6931472
    %v1612 = vmul.f32 -0.5, %v1597
    %v1613 = vadd.f32 %v1612, 1.0
    %v1614 = vmul.f32 %v1613, %v1597
    %v1615 = vand.u32 2147483647, %v1597
    %vm1616 = vcmp.lt.f32.partialorder %v1615, 0.0004427343
    %v1617 = vsel %vm1616, %v1614, %v1611
    %v1618 = vadd.f32 %v1599, 1.0
    %v1619 = vlog2.pop %v1618
    %v1620 = vmul.f32 %v1619, 0.6931472
    %v1621 = vmul.f32 -0.5, %v1599
    %v1622 = vadd.f32 %v1621, 1.0
    %v1623 = vmul.f32 %v1622, %v1599
    %v1624 = vand.u32 2147483647, %v1599
    %vm1625 = vcmp.lt.f32.partialorder %v1624, 0.0004427343
    %v1626 = vsel %vm1625, %v1623, %v1620
    %v1627 = vadd.f32 %v1579, %v1608
    %v1628 = vadd.f32 %v1580, %v1617
    %v1629 = vadd.f32 %v1581, %v1626
    %v1630 = vsel %vm1582, %v1585, %v1627
    %v1631 = vsel %vm1583, %v1586, %v1628
    %v1632 = vsel %vm1584, %v1587, %v1629
    %v1633 = vadd.f32 %v1630, 1e-07
    %v1634 = vadd.f32 %v1631, 1e-07
    %v1635 = vadd.f32 %v1632, 1e-07
    %v1639 = vcombine.low %v1633, %v1634
    %v1641 = vunpack.c.l.s4 1983009808
    %v1642 = vunpack.c.0.s8 %v1641
    %v1643 = vlaneseq
    %v1644 = vshrl.u32 %v1643, 7
    %v1645 = vsub.s32 %v1642, %v1644
    %v1646 = vrot.slane %v1639, %v1645
    %v1648 = vunpack.c.l.s4 1983009808
    %v1649 = vunpack.c.0.s8 %v1648
    %v1650 = vlaneseq
    %v1651 = vshrl.u32 %v1650, 7
    %v1652 = vsub.s32 %v1649, %v1651
    %v1653 = vrot.slane %v1635, %v1652
    %v1654 = vcombine.low %v1646, %v1653
    %1656 = vst [vmem:[#allocation15] sm:$0x3f] %v1654
    %v1657 = vpack.c.bf16 %v813, %v813
    %v1658 = vpack.c.bf16 %v815, %v815
    %v1659 = vpack.c.bf16 %v894, %v894
    %v1660 = vld [vmem:[#allocation11] sm:$0xff]
    %v1661 = vld [vmem:[#allocation11 + $0x8] sm:$0xff]
    %v1662 = vld [vmem:[#allocation11 + $0x10] sm:$0xff]
    %v1663 = vld [vmem:[#allocation11 + $0x18] sm:$0xff]
    %v1664 = vld [vmem:[#allocation11 + $0x20] sm:$0xff]
    %v1665 = vld [vmem:[#allocation11 + $0x28] sm:$0xff]
    %v1666 = vld [vmem:[#allocation11 + $0x30] sm:$0xff]
    %v1667 = vld [vmem:[#allocation11 + $0x38] sm:$0xff]
    %v1668 = vld [vmem:[#allocation11 + $0x40] sm:$0xff]
    %v1669 = vld [vmem:[#allocation11 + $0x48] sm:$0xff]
    %v1670 = vld [vmem:[#allocation11 + $0x50] sm:$0xff]
    %v1671 = vld [vmem:[#allocation11 + $0x58] sm:$0xff]
    %v1672 = vld [vmem:[#allocation11 + $0x60] sm:$0xff]
    %v1673 = vld [vmem:[#allocation11 + $0x68] sm:$0xff]
    %v1674 = vld [vmem:[#allocation11 + $0x70] sm:$0xff]
    %v1675 = vld [vmem:[#allocation11 + $0x78] sm:$0xff]
    %v1676 = vld [vmem:[#allocation11 + $0x80] sm:$0xff]
    %v1677 = vld [vmem:[#allocation11 + $0x88] sm:$0xff]
    %v1678 = vld [vmem:[#allocation11 + $0x90] sm:$0xff]
    %v1679 = vld [vmem:[#allocation11 + $0x98] sm:$0xff]
    %v1680 = vld [vmem:[#allocation11 + $0xa0] sm:$0xff]
    %v1681 = vld [vmem:[#allocation11 + $0xa8] sm:$0xff]
    %v1682 = vld [vmem:[#allocation11 + $0xb0] sm:$0xff]
    %v1683 = vld [vmem:[#allocation11 + $0xb8] sm:$0xff]
    %v1684 = vld [vmem:[#allocation11 + $0xc0] sm:$0xff]
    %v1685 = vld [vmem:[#allocation11 + $0xc8] sm:$0xff]
    %v1686 = vld [vmem:[#allocation11 + $0xd0] sm:$0xff]
    %v1687 = vld [vmem:[#allocation11 + $0xd8] sm:$0xff]
    %v1688 = vld [vmem:[#allocation11 + $0xe0] sm:$0xff]
    %v1689 = vld [vmem:[#allocation11 + $0xe8] sm:$0xff]
    %v1690 = vld [vmem:[#allocation11 + $0xf0] sm:$0xff]
    %v1691 = vld [vmem:[#allocation11 + $0xf8] sm:$0xff]
    %v1692 = vld [vmem:[#allocation11 + $0x100] sm:$0xff]
    %v1693 = vld [vmem:[#allocation11 + $0x108] sm:$0xff]
    %v1694 = vld [vmem:[#allocation11 + $0x110] sm:$0xff]
    %v1695 = vld [vmem:[#allocation11 + $0x118] sm:$0xff]
    %v1696 = vld [vmem:[#allocation11 + $0x120] sm:$0xff]
    %v1697 = vld [vmem:[#allocation11 + $0x128] sm:$0xff]
    %v1698 = vld [vmem:[#allocation11 + $0x130] sm:$0xff]
    %v1699 = vld [vmem:[#allocation11 + $0x138] sm:$0xff]
    %v1700 = vld [vmem:[#allocation11 + $0x140] sm:$0xff]
    %v1701 = vld [vmem:[#allocation11 + $0x148] sm:$0xff]
    %v1702 = vld [vmem:[#allocation11 + $0x150] sm:$0xff]
    %v1703 = vld [vmem:[#allocation11 + $0x158] sm:$0xff]
    %v1704 = vld [vmem:[#allocation11 + $0x160] sm:$0xff]
    %v1705 = vld [vmem:[#allocation11 + $0x168] sm:$0xff]
    %v1706 = vld [vmem:[#allocation11 + $0x170] sm:$0xff]
    %v1707 = vld [vmem:[#allocation11 + $0x178] sm:$0xff]
    %v1708 = vld [vmem:[#allocation11 + $0x180] sm:$0xff]
    %v1709 = vld [vmem:[#allocation11 + $0x188] sm:$0xff]
    %v1710 = vld [vmem:[#allocation11 + $0x190] sm:$0xff]
    %v1711 = vld [vmem:[#allocation11 + $0x198] sm:$0xff]
    %v1712 = vld [vmem:[#allocation11 + $0x1a0] sm:$0xff]
    %v1713 = vld [vmem:[#allocation11 + $0x1a8] sm:$0xff]
    %v1714 = vld [vmem:[#allocation11 + $0x1b0] sm:$0xff]
    %v1715 = vld [vmem:[#allocation11 + $0x1b8] sm:$0xff]
    %v1716 = vld [vmem:[#allocation11 + $0x1c0] sm:$0xff]
    %v1717 = vld [vmem:[#allocation11 + $0x1c8] sm:$0xff]
    %v1718 = vld [vmem:[#allocation11 + $0x1d0] sm:$0xff]
    %v1719 = vld [vmem:[#allocation11 + $0x1d8] sm:$0xff]
    %v1720 = vld [vmem:[#allocation11 + $0x1e0] sm:$0xff]
    %v1721 = vld [vmem:[#allocation11 + $0x1e8] sm:$0xff]
    %v1722 = vld [vmem:[#allocation11 + $0x1f0] sm:$0xff]
    %v1723 = vld [vmem:[#allocation11 + $0x1f8] sm:$0xff]
    %v1724 = vld [vmem:[#allocation11 + $0x200] sm:$0xff]
    %v1725 = vld [vmem:[#allocation11 + $0x208] sm:$0xff]
    %v1726 = vld [vmem:[#allocation11 + $0x210] sm:$0xff]
    %v1727 = vld [vmem:[#allocation11 + $0x218] sm:$0xff]
    %v1728 = vld [vmem:[#allocation11 + $0x220] sm:$0xff]
    %v1729 = vld [vmem:[#allocation11 + $0x228] sm:$0xff]
    %v1730 = vld [vmem:[#allocation11 + $0x230] sm:$0xff]
    %v1731 = vld [vmem:[#allocation11 + $0x238] sm:$0xff]
    %v1732 = vld [vmem:[#allocation11 + $0x240] sm:$0xff]
    %v1733 = vld [vmem:[#allocation11 + $0x248] sm:$0xff]
    %v1734 = vld [vmem:[#allocation11 + $0x250] sm:$0xff]
    %v1735 = vld [vmem:[#allocation11 + $0x258] sm:$0xff]
    %v1736 = vld [vmem:[#allocation11 + $0x260] sm:$0xff]
    %v1737 = vld [vmem:[#allocation11 + $0x268] sm:$0xff]
    %v1738 = vld [vmem:[#allocation11 + $0x270] sm:$0xff]
    %v1739 = vld [vmem:[#allocation11 + $0x278] sm:$0xff]
    %v1740 = vld [vmem:[#allocation11 + $0x280] sm:$0xff]
    %v1741 = vld [vmem:[#allocation11 + $0x288] sm:$0xff]
    %v1742 = vld [vmem:[#allocation11 + $0x290] sm:$0xff]
    %v1743 = vld [vmem:[#allocation11 + $0x298] sm:$0xff]
    %v1744 = vld [vmem:[#allocation11 + $0x2a0] sm:$0xff]
    %v1745 = vld [vmem:[#allocation11 + $0x2a8] sm:$0xff]
    %v1746 = vld [vmem:[#allocation11 + $0x2b0] sm:$0xff]
    %v1747 = vld [vmem:[#allocation11 + $0x2b8] sm:$0xff]
    %v1748 = vld [vmem:[#allocation11 + $0x2c0] sm:$0xff]
    %v1749 = vld [vmem:[#allocation11 + $0x2c8] sm:$0xff]
    %v1750 = vld [vmem:[#allocation11 + $0x2d0] sm:$0xff]
    %v1751 = vld [vmem:[#allocation11 + $0x2d8] sm:$0xff]
    %v1752 = vld [vmem:[#allocation11 + $0x2e0] sm:$0xff]
    %v1753 = vld [vmem:[#allocation11 + $0x2e8] sm:$0xff]
    %v1754 = vld [vmem:[#allocation11 + $0x2f0] sm:$0xff]
    %v1755 = vld [vmem:[#allocation11 + $0x2f8] sm:$0xff]
    %v1756 = vld [vmem:[#allocation11 + $0x300] sm:$0xff]
    %v1757 = vld [vmem:[#allocation11 + $0x308] sm:$0xff]
    %v1758 = vld [vmem:[#allocation11 + $0x310] sm:$0xff]
    %v1759 = vld [vmem:[#allocation11 + $0x318] sm:$0xff]
    %v1760 = vld [vmem:[#allocation11 + $0x320] sm:$0xff]
    %v1761 = vld [vmem:[#allocation11 + $0x328] sm:$0xff]
    %v1762 = vld [vmem:[#allocation11 + $0x330] sm:$0xff]
    %v1763 = vld [vmem:[#allocation11 + $0x338] sm:$0xff]
    %v1764 = vld [vmem:[#allocation11 + $0x340] sm:$0xff]
    %v1765 = vld [vmem:[#allocation11 + $0x348] sm:$0xff]
    %v1766 = vld [vmem:[#allocation11 + $0x350] sm:$0xff]
    %v1767 = vld [vmem:[#allocation11 + $0x358] sm:$0xff]
    %v1768 = vld [vmem:[#allocation11 + $0x360] sm:$0xff]
    %v1769 = vld [vmem:[#allocation11 + $0x368] sm:$0xff]
    %v1770 = vld [vmem:[#allocation11 + $0x370] sm:$0xff]
    %v1771 = vld [vmem:[#allocation11 + $0x378] sm:$0xff]
    %v1772 = vld [vmem:[#allocation11 + $0x380] sm:$0xff]
    %v1773 = vld [vmem:[#allocation11 + $0x388] sm:$0xff]
    %v1774 = vld [vmem:[#allocation11 + $0x390] sm:$0xff]
    %v1775 = vld [vmem:[#allocation11 + $0x398] sm:$0xff]
    %v1776 = vld [vmem:[#allocation11 + $0x3a0] sm:$0xff]
    %v1777 = vld [vmem:[#allocation11 + $0x3a8] sm:$0xff]
    %v1778 = vld [vmem:[#allocation11 + $0x3b0] sm:$0xff]
    %v1779 = vld [vmem:[#allocation11 + $0x3b8] sm:$0xff]
    %v1780 = vld [vmem:[#allocation11 + $0x3c0] sm:$0xff]
    %v1781 = vld [vmem:[#allocation11 + $0x3c8] sm:$0xff]
    %v1782 = vld [vmem:[#allocation11 + $0x3d0] sm:$0xff]
    %v1783 = vld [vmem:[#allocation11 + $0x3d8] sm:$0xff]
    %v1784 = vld [vmem:[#allocation11 + $0x3e0] sm:$0xff]
    %v1785 = vld [vmem:[#allocation11 + $0x3e8] sm:$0xff]
    %v1786 = vld [vmem:[#allocation11 + $0x3f0] sm:$0xff]
    %v1787 = vld [vmem:[#allocation11 + $0x3f8] sm:$0xff]
    %v1788 = vld [vmem:[#allocation11 + $0x400] sm:$0xff]
    %v1789 = vld [vmem:[#allocation11 + $0x408] sm:$0xff]
    %v1790 = vld [vmem:[#allocation11 + $0x410] sm:$0xff]
    %v1791 = vld [vmem:[#allocation11 + $0x418] sm:$0xff]
    %v1792 = vld [vmem:[#allocation11 + $0x420] sm:$0xff]
    %v1793 = vld [vmem:[#allocation11 + $0x428] sm:$0xff]
    %v1794 = vld [vmem:[#allocation11 + $0x430] sm:$0xff]
    %v1795 = vld [vmem:[#allocation11 + $0x438] sm:$0xff]
    %v1796 = vld [vmem:[#allocation11 + $0x440] sm:$0xff]
    %v1797 = vld [vmem:[#allocation11 + $0x448] sm:$0xff]
    %v1798 = vld [vmem:[#allocation11 + $0x450] sm:$0xff]
    %v1799 = vld [vmem:[#allocation11 + $0x458] sm:$0xff]
    %v1800 = vld [vmem:[#allocation11 + $0x460] sm:$0xff]
    %v1801 = vld [vmem:[#allocation11 + $0x468] sm:$0xff]
    %v1802 = vld [vmem:[#allocation11 + $0x470] sm:$0xff]
    %v1803 = vld [vmem:[#allocation11 + $0x478] sm:$0xff]
    %v1804 = vld [vmem:[#allocation11 + $0x480] sm:$0xff]
    %v1805 = vld [vmem:[#allocation11 + $0x488] sm:$0xff]
    %v1806 = vld [vmem:[#allocation11 + $0x490] sm:$0xff]
    %v1807 = vld [vmem:[#allocation11 + $0x498] sm:$0xff]
    %v1808 = vld [vmem:[#allocation11 + $0x4a0] sm:$0xff]
    %v1809 = vld [vmem:[#allocation11 + $0x4a8] sm:$0xff]
    %v1810 = vld [vmem:[#allocation11 + $0x4b0] sm:$0xff]
    %v1811 = vld [vmem:[#allocation11 + $0x4b8] sm:$0xff]
    %v1812 = vld [vmem:[#allocation11 + $0x4c0] sm:$0xff]
    %v1813 = vld [vmem:[#allocation11 + $0x4c8] sm:$0xff]
    %v1814 = vld [vmem:[#allocation11 + $0x4d0] sm:$0xff]
    %v1815 = vld [vmem:[#allocation11 + $0x4d8] sm:$0xff]
    %v1816 = vld [vmem:[#allocation11 + $0x4e0] sm:$0xff]
    %v1817 = vld [vmem:[#allocation11 + $0x4e8] sm:$0xff]
    %v1818 = vld [vmem:[#allocation11 + $0x4f0] sm:$0xff]
    %v1819 = vld [vmem:[#allocation11 + $0x4f8] sm:$0xff]
    %v1820 = vld [vmem:[#allocation11 + $0x500] sm:$0xff]
    %v1821 = vld [vmem:[#allocation11 + $0x508] sm:$0xff]
    %v1822 = vld [vmem:[#allocation11 + $0x510] sm:$0xff]
    %v1823 = vld [vmem:[#allocation11 + $0x518] sm:$0xff]
    %v1824 = vld [vmem:[#allocation11 + $0x520] sm:$0xff]
    %v1825 = vld [vmem:[#allocation11 + $0x528] sm:$0xff]
    %v1826 = vld [vmem:[#allocation11 + $0x530] sm:$0xff]
    %v1827 = vld [vmem:[#allocation11 + $0x538] sm:$0xff]
    %v1828 = vld [vmem:[#allocation11 + $0x540] sm:$0xff]
    %v1829 = vld [vmem:[#allocation11 + $0x548] sm:$0xff]
    %v1830 = vld [vmem:[#allocation11 + $0x550] sm:$0xff]
    %v1831 = vld [vmem:[#allocation11 + $0x558] sm:$0xff]
    %v1832 = vld [vmem:[#allocation11 + $0x560] sm:$0xff]
    %v1833 = vld [vmem:[#allocation11 + $0x568] sm:$0xff]
    %v1834 = vld [vmem:[#allocation11 + $0x570] sm:$0xff]
    %v1835 = vld [vmem:[#allocation11 + $0x578] sm:$0xff]
    %v1836 = vld [vmem:[#allocation11 + $0x580] sm:$0xff]
    %v1837 = vld [vmem:[#allocation11 + $0x588] sm:$0xff]
    %v1838 = vld [vmem:[#allocation11 + $0x590] sm:$0xff]
    %v1839 = vld [vmem:[#allocation11 + $0x598] sm:$0xff]
    %v1840 = vld [vmem:[#allocation11 + $0x5a0] sm:$0xff]
    %v1841 = vld [vmem:[#allocation11 + $0x5a8] sm:$0xff]
    %v1842 = vld [vmem:[#allocation11 + $0x5b0] sm:$0xff]
    %v1843 = vld [vmem:[#allocation11 + $0x5b8] sm:$0xff]
    %v1844 = vld [vmem:[#allocation11 + $0x5c0] sm:$0xff]
    %v1845 = vld [vmem:[#allocation11 + $0x5c8] sm:$0xff]
    %v1846 = vld [vmem:[#allocation11 + $0x5d0] sm:$0xff]
    %v1847 = vld [vmem:[#allocation11 + $0x5d8] sm:$0xff]
    %v1848 = vld [vmem:[#allocation11 + $0x5e0] sm:$0xff]
    %v1849 = vld [vmem:[#allocation11 + $0x5e8] sm:$0xff]
    %v1850 = vld [vmem:[#allocation11 + $0x5f0] sm:$0xff]
    %v1851 = vld [vmem:[#allocation11 + $0x5f8] sm:$0xff]
    %v1852 = vld [vmem:[#allocation11 + $0x600] sm:$0xff]
    %v1853 = vld [vmem:[#allocation11 + $0x608] sm:$0xff]
    %v1854 = vld [vmem:[#allocation11 + $0x610] sm:$0xff]
    %v1855 = vld [vmem:[#allocation11 + $0x618] sm:$0xff]
    %v1856 = vld [vmem:[#allocation11 + $0x620] sm:$0xff]
    %v1857 = vld [vmem:[#allocation11 + $0x628] sm:$0xff]
    %v1858 = vld [vmem:[#allocation11 + $0x630] sm:$0xff]
    %v1859 = vld [vmem:[#allocation11 + $0x638] sm:$0xff]
    %v1860 = vld [vmem:[#allocation11 + $0x640] sm:$0xff]
    %v1861 = vld [vmem:[#allocation11 + $0x648] sm:$0xff]
    %v1862 = vld [vmem:[#allocation11 + $0x650] sm:$0xff]
    %v1863 = vld [vmem:[#allocation11 + $0x658] sm:$0xff]
    %v1864 = vld [vmem:[#allocation11 + $0x660] sm:$0xff]
    %v1865 = vld [vmem:[#allocation11 + $0x668] sm:$0xff]
    %v1866 = vld [vmem:[#allocation11 + $0x670] sm:$0xff]
    %v1867 = vld [vmem:[#allocation11 + $0x678] sm:$0xff]
    %v1868 = vld [vmem:[#allocation11 + $0x680] sm:$0xff]
    %v1869 = vld [vmem:[#allocation11 + $0x688] sm:$0xff]
    %v1870 = vld [vmem:[#allocation11 + $0x690] sm:$0xff]
    %v1871 = vld [vmem:[#allocation11 + $0x698] sm:$0xff]
    %v1872 = vld [vmem:[#allocation11 + $0x6a0] sm:$0xff]
    %v1873 = vld [vmem:[#allocation11 + $0x6a8] sm:$0xff]
    %v1874 = vld [vmem:[#allocation11 + $0x6b0] sm:$0xff]
    %v1875 = vld [vmem:[#allocation11 + $0x6b8] sm:$0xff]
    %v1876 = vld [vmem:[#allocation11 + $0x6c0] sm:$0xff]
    %v1877 = vld [vmem:[#allocation11 + $0x6c8] sm:$0xff]
    %v1878 = vld [vmem:[#allocation11 + $0x6d0] sm:$0xff]
    %v1879 = vld [vmem:[#allocation11 + $0x6d8] sm:$0xff]
    %v1880 = vld [vmem:[#allocation11 + $0x6e0] sm:$0xff]
    %v1881 = vld [vmem:[#allocation11 + $0x6e8] sm:$0xff]
    %v1882 = vld [vmem:[#allocation11 + $0x6f0] sm:$0xff]
    %v1883 = vld [vmem:[#allocation11 + $0x6f8] sm:$0xff]
    %v1884 = vld [vmem:[#allocation11 + $0x700] sm:$0xff]
    %v1885 = vld [vmem:[#allocation11 + $0x708] sm:$0xff]
    %v1886 = vld [vmem:[#allocation11 + $0x710] sm:$0xff]
    %v1887 = vld [vmem:[#allocation11 + $0x718] sm:$0xff]
    %v1888 = vld [vmem:[#allocation11 + $0x720] sm:$0xff]
    %v1889 = vld [vmem:[#allocation11 + $0x728] sm:$0xff]
    %v1890 = vld [vmem:[#allocation11 + $0x730] sm:$0xff]
    %v1891 = vld [vmem:[#allocation11 + $0x738] sm:$0xff]
    %v1892 = vld [vmem:[#allocation11 + $0x740] sm:$0xff]
    %v1893 = vld [vmem:[#allocation11 + $0x748] sm:$0xff]
    %v1894 = vld [vmem:[#allocation11 + $0x750] sm:$0xff]
    %v1895 = vld [vmem:[#allocation11 + $0x758] sm:$0xff]
    %v1896 = vld [vmem:[#allocation11 + $0x760] sm:$0xff]
    %v1897 = vld [vmem:[#allocation11 + $0x768] sm:$0xff]
    %v1898 = vld [vmem:[#allocation11 + $0x770] sm:$0xff]
    %v1899 = vld [vmem:[#allocation11 + $0x778] sm:$0xff]
    %v1900 = vld [vmem:[#allocation13] sm:$0xff]
    %v1901 = vld [vmem:[#allocation13 + $0x8] sm:$0x3]
    %v1904 = vlaneseq
    %v1905 = vshrl.u32 %v1904, 7
    %v1906 = vsub.s32 0, %v1905
    %v1907 = vrot.slane %v1900, %v1906
    %v1908 = vlaneseq
    %v1909 = vshrl.u32 %v1908, 7
    %v1910 = vsub.s32 1, %v1909
    %v1911 = vrot.slane %v1900, %v1910
    %v1912 = vlaneseq
    %v1913 = vshrl.u32 %v1912, 7
    %v1914 = vsub.s32 2, %v1913
    %v1915 = vrot.slane %v1900, %v1914
    %v1916 = vlaneseq
    %v1917 = vshrl.u32 %v1916, 7
    %v1918 = vsub.s32 3, %v1917
    %v1919 = vrot.slane %v1900, %v1918
    %v1920 = vlaneseq
    %v1921 = vshrl.u32 %v1920, 7
    %v1922 = vsub.s32 4, %v1921
    %v1923 = vrot.slane %v1900, %v1922
    %v1924 = vlaneseq
    %v1925 = vshrl.u32 %v1924, 7
    %v1926 = vsub.s32 5, %v1925
    %v1927 = vrot.slane %v1900, %v1926
    %v1928 = vlaneseq
    %v1929 = vshrl.u32 %v1928, 7
    %v1930 = vsub.s32 6, %v1929
    %v1931 = vrot.slane %v1900, %v1930
    %v1932 = vlaneseq
    %v1933 = vshrl.u32 %v1932, 7
    %v1934 = vsub.s32 7, %v1933
    %v1935 = vrot.slane %v1900, %v1934
    %v1936 = vlaneseq
    %v1937 = vshrl.u32 %v1936, 7
    %v1938 = vsub.s32 0, %v1937
    %v1939 = vrot.slane %v1901, %v1938
    %v1940 = vlaneseq
    %v1941 = vshrl.u32 %v1940, 7
    %v1942 = vsub.s32 1, %v1941
    %v1943 = vrot.slane %v1901, %v1942
    %v2194 = vunpack.c.l.b16 %v1660
    %v2195 = vunpack.c.h.b16 %v1660
    %v2196 = vunpack.c.l.b16 %v1661
    %v2197 = vunpack.c.h.b16 %v1661
    %v2198 = vunpack.c.l.b16 %v1662
    %v2199 = vunpack.c.h.b16 %v1662
    %v2200 = vunpack.c.l.b16 %v1663
    %v2201 = vunpack.c.h.b16 %v1663
    %v2202 = vunpack.c.l.b16 %v1664
    %v2203 = vunpack.c.h.b16 %v1664
    %v2204 = vunpack.c.l.b16 %v1665
    %v2205 = vunpack.c.h.b16 %v1665
    %v2206 = vunpack.c.l.b16 %v1666
    %v2207 = vunpack.c.h.b16 %v1666
    %v2208 = vunpack.c.l.b16 %v1667
    %v2209 = vunpack.c.h.b16 %v1667
    %v2210 = vunpack.c.l.b16 %v1668
    %v2211 = vunpack.c.h.b16 %v1668
    %v2212 = vunpack.c.l.b16 %v1669
    %v2213 = vunpack.c.h.b16 %v1669
    %v2214 = vunpack.c.l.b16 %v1670
    %v2215 = vunpack.c.h.b16 %v1670
    %v2216 = vunpack.c.l.b16 %v1671
    %v2217 = vunpack.c.h.b16 %v1671
    %v2218 = vunpack.c.l.b16 %v1672
    %v2219 = vunpack.c.h.b16 %v1672
    %v2220 = vunpack.c.l.b16 %v1673
    %v2221 = vunpack.c.h.b16 %v1673
    %v2222 = vunpack.c.l.b16 %v1674
    %v2223 = vunpack.c.h.b16 %v1674
    %v2224 = vunpack.c.l.b16 %v1675
    %v2225 = vunpack.c.h.b16 %v1675
    %v2226 = vunpack.c.l.b16 %v1676
    %v2227 = vunpack.c.h.b16 %v1676
    %v2228 = vunpack.c.l.b16 %v1677
    %v2229 = vunpack.c.h.b16 %v1677
    %v2230 = vunpack.c.l.b16 %v1678
    %v2231 = vunpack.c.h.b16 %v1678
    %v2232 = vunpack.c.l.b16 %v1679
    %v2233 = vunpack.c.h.b16 %v1679
    %v2234 = vunpack.c.l.b16 %v1680
    %v2235 = vunpack.c.h.b16 %v1680
    %v2236 = vunpack.c.l.b16 %v1681
    %v2237 = vunpack.c.h.b16 %v1681
    %v2238 = vunpack.c.l.b16 %v1682
    %v2239 = vunpack.c.h.b16 %v1682
    %v2240 = vunpack.c.l.b16 %v1683
    %v2241 = vunpack.c.h.b16 %v1683
    %v2242 = vunpack.c.l.b16 %v1684
    %v2243 = vunpack.c.h.b16 %v1684
    %v2244 = vunpack.c.l.b16 %v1685
    %v2245 = vunpack.c.h.b16 %v1685
    %v2246 = vunpack.c.l.b16 %v1686
    %v2247 = vunpack.c.h.b16 %v1686
    %v2248 = vunpack.c.l.b16 %v1687
    %v2249 = vunpack.c.h.b16 %v1687
    %v2250 = vunpack.c.l.b16 %v1688
    %v2251 = vunpack.c.h.b16 %v1688
    %v2252 = vunpack.c.l.b16 %v1689
    %v2253 = vunpack.c.h.b16 %v1689
    %v2254 = vunpack.c.l.b16 %v1690
    %v2255 = vunpack.c.h.b16 %v1690
    %v2256 = vunpack.c.l.b16 %v1691
    %v2257 = vunpack.c.h.b16 %v1691
    %v2258 = vunpack.c.l.b16 %v1692
    %v2259 = vunpack.c.h.b16 %v1692
    %v2260 = vunpack.c.l.b16 %v1693
    %v2261 = vunpack.c.h.b16 %v1693
    %v2262 = vunpack.c.l.b16 %v1694
    %v2263 = vunpack.c.h.b16 %v1694
    %v2264 = vunpack.c.l.b16 %v1695
    %v2265 = vunpack.c.h.b16 %v1695
    %v2266 = vunpack.c.l.b16 %v1696
    %v2267 = vunpack.c.h.b16 %v1696
    %v2268 = vunpack.c.l.b16 %v1697
    %v2269 = vunpack.c.h.b16 %v1697
    %v2270 = vunpack.c.l.b16 %v1698
    %v2271 = vunpack.c.h.b16 %v1698
    %v2272 = vunpack.c.l.b16 %v1699
    %v2273 = vunpack.c.h.b16 %v1699
    %v2274 = vunpack.c.l.b16 %v1700
    %v2275 = vunpack.c.h.b16 %v1700
    %v2276 = vunpack.c.l.b16 %v1701
    %v2277 = vunpack.c.h.b16 %v1701
    %v2278 = vunpack.c.l.b16 %v1702
    %v2279 = vunpack.c.h.b16 %v1702
    %v2280 = vunpack.c.l.b16 %v1703
    %v2281 = vunpack.c.h.b16 %v1703
    %v2282 = vunpack.c.l.b16 %v1704
    %v2283 = vunpack.c.h.b16 %v1704
    %v2284 = vunpack.c.l.b16 %v1705
    %v2285 = vunpack.c.h.b16 %v1705
    %v2286 = vunpack.c.l.b16 %v1706
    %v2287 = vunpack.c.h.b16 %v1706
    %v2288 = vunpack.c.l.b16 %v1707
    %v2289 = vunpack.c.h.b16 %v1707
    %v2290 = vunpack.c.l.b16 %v1708
    %v2291 = vunpack.c.h.b16 %v1708
    %v2292 = vunpack.c.l.b16 %v1709
    %v2293 = vunpack.c.h.b16 %v1709
    %v2294 = vunpack.c.l.b16 %v1710
    %v2295 = vunpack.c.h.b16 %v1710
    %v2296 = vunpack.c.l.b16 %v1711
    %v2297 = vunpack.c.h.b16 %v1711
    %v2298 = vunpack.c.l.b16 %v1712
    %v2299 = vunpack.c.h.b16 %v1712
    %v2300 = vunpack.c.l.b16 %v1713
    %v2301 = vunpack.c.h.b16 %v1713
    %v2302 = vunpack.c.l.b16 %v1714
    %v2303 = vunpack.c.h.b16 %v1714
    %v2304 = vunpack.c.l.b16 %v1715
    %v2305 = vunpack.c.h.b16 %v1715
    %v2306 = vunpack.c.l.b16 %v1716
    %v2307 = vunpack.c.h.b16 %v1716
    %v2308 = vunpack.c.l.b16 %v1717
    %v2309 = vunpack.c.h.b16 %v1717
    %v2310 = vunpack.c.l.b16 %v1718
    %v2311 = vunpack.c.h.b16 %v1718
    %v2312 = vunpack.c.l.b16 %v1719
    %v2313 = vunpack.c.h.b16 %v1719
    %v2314 = vunpack.c.l.b16 %v1720
    %v2315 = vunpack.c.h.b16 %v1720
    %v2316 = vunpack.c.l.b16 %v1721
    %v2317 = vunpack.c.h.b16 %v1721
    %v2318 = vunpack.c.l.b16 %v1722
    %v2319 = vunpack.c.h.b16 %v1722
    %v2320 = vunpack.c.l.b16 %v1723
    %v2321 = vunpack.c.h.b16 %v1723
    %v2322 = vunpack.c.l.b16 %v1724
    %v2323 = vunpack.c.h.b16 %v1724
    %v2324 = vunpack.c.l.b16 %v1725
    %v2325 = vunpack.c.h.b16 %v1725
    %v2326 = vunpack.c.l.b16 %v1726
    %v2327 = vunpack.c.h.b16 %v1726
    %v2328 = vunpack.c.l.b16 %v1727
    %v2329 = vunpack.c.h.b16 %v1727
    %v2330 = vunpack.c.l.b16 %v1728
    %v2331 = vunpack.c.h.b16 %v1728
    %v2332 = vunpack.c.l.b16 %v1729
    %v2333 = vunpack.c.h.b16 %v1729
    %v2334 = vunpack.c.l.b16 %v1730
    %v2335 = vunpack.c.h.b16 %v1730
    %v2336 = vunpack.c.l.b16 %v1731
    %v2337 = vunpack.c.h.b16 %v1731
    %v2338 = vunpack.c.l.b16 %v1732
    %v2339 = vunpack.c.h.b16 %v1732
    %v2340 = vunpack.c.l.b16 %v1733
    %v2341 = vunpack.c.h.b16 %v1733
    %v2342 = vunpack.c.l.b16 %v1734
    %v2343 = vunpack.c.h.b16 %v1734
    %v2344 = vunpack.c.l.b16 %v1735
    %v2345 = vunpack.c.h.b16 %v1735
    %v2346 = vunpack.c.l.b16 %v1736
    %v2347 = vunpack.c.h.b16 %v1736
    %v2348 = vunpack.c.l.b16 %v1737
    %v2349 = vunpack.c.h.b16 %v1737
    %v2350 = vunpack.c.l.b16 %v1738
    %v2351 = vunpack.c.h.b16 %v1738
    %v2352 = vunpack.c.l.b16 %v1739
    %v2353 = vunpack.c.h.b16 %v1739
    %v2354 = vunpack.c.l.b16 %v1740
    %v2355 = vunpack.c.h.b16 %v1740
    %v2356 = vunpack.c.l.b16 %v1741
    %v2357 = vunpack.c.h.b16 %v1741
    %v2358 = vunpack.c.l.b16 %v1742
    %v2359 = vunpack.c.h.b16 %v1742
    %v2360 = vunpack.c.l.b16 %v1743
    %v2361 = vunpack.c.h.b16 %v1743
    %v2362 = vunpack.c.l.b16 %v1744
    %v2363 = vunpack.c.h.b16 %v1744
    %v2364 = vunpack.c.l.b16 %v1745
    %v2365 = vunpack.c.h.b16 %v1745
    %v2366 = vunpack.c.l.b16 %v1746
    %v2367 = vunpack.c.h.b16 %v1746
    %v2368 = vunpack.c.l.b16 %v1747
    %v2369 = vunpack.c.h.b16 %v1747
    %v2370 = vunpack.c.l.b16 %v1748
    %v2371 = vunpack.c.h.b16 %v1748
    %v2372 = vunpack.c.l.b16 %v1749
    %v2373 = vunpack.c.h.b16 %v1749
    %v2374 = vunpack.c.l.b16 %v1750
    %v2375 = vunpack.c.h.b16 %v1750
    %v2376 = vunpack.c.l.b16 %v1751
    %v2377 = vunpack.c.h.b16 %v1751
    %v2378 = vunpack.c.l.b16 %v1752
    %v2379 = vunpack.c.h.b16 %v1752
    %v2380 = vunpack.c.l.b16 %v1753
    %v2381 = vunpack.c.h.b16 %v1753
    %v2382 = vunpack.c.l.b16 %v1754
    %v2383 = vunpack.c.h.b16 %v1754
    %v2384 = vunpack.c.l.b16 %v1755
    %v2385 = vunpack.c.h.b16 %v1755
    %v2386 = vunpack.c.l.b16 %v1756
    %v2387 = vunpack.c.h.b16 %v1756
    %v2388 = vunpack.c.l.b16 %v1757
    %v2389 = vunpack.c.h.b16 %v1757
    %v2390 = vunpack.c.l.b16 %v1758
    %v2391 = vunpack.c.h.b16 %v1758
    %v2392 = vunpack.c.l.b16 %v1759
    %v2393 = vunpack.c.h.b16 %v1759
    %v2394 = vunpack.c.l.b16 %v1760
    %v2395 = vunpack.c.h.b16 %v1760
    %v2396 = vunpack.c.l.b16 %v1761
    %v2397 = vunpack.c.h.b16 %v1761
    %v2398 = vunpack.c.l.b16 %v1762
    %v2399 = vunpack.c.h.b16 %v1762
    %v2400 = vunpack.c.l.b16 %v1763
    %v2401 = vunpack.c.h.b16 %v1763
    %v2402 = vunpack.c.l.b16 %v1764
    %v2403 = vunpack.c.h.b16 %v1764
    %v2404 = vunpack.c.l.b16 %v1765
    %v2405 = vunpack.c.h.b16 %v1765
    %v2406 = vunpack.c.l.b16 %v1766
    %v2407 = vunpack.c.h.b16 %v1766
    %v2408 = vunpack.c.l.b16 %v1767
    %v2409 = vunpack.c.h.b16 %v1767
    %v2410 = vunpack.c.l.b16 %v1768
    %v2411 = vunpack.c.h.b16 %v1768
    %v2412 = vunpack.c.l.b16 %v1769
    %v2413 = vunpack.c.h.b16 %v1769
    %v2414 = vunpack.c.l.b16 %v1770
    %v2415 = vunpack.c.h.b16 %v1770
    %v2416 = vunpack.c.l.b16 %v1771
    %v2417 = vunpack.c.h.b16 %v1771
    %v2418 = vunpack.c.l.b16 %v1772
    %v2419 = vunpack.c.h.b16 %v1772
    %v2420 = vunpack.c.l.b16 %v1773
    %v2421 = vunpack.c.h.b16 %v1773
    %v2422 = vunpack.c.l.b16 %v1774
    %v2423 = vunpack.c.h.b16 %v1774
    %v2424 = vunpack.c.l.b16 %v1775
    %v2425 = vunpack.c.h.b16 %v1775
    %v2426 = vunpack.c.l.b16 %v1776
    %v2427 = vunpack.c.h.b16 %v1776
    %v2428 = vunpack.c.l.b16 %v1777
    %v2429 = vunpack.c.h.b16 %v1777
    %v2430 = vunpack.c.l.b16 %v1778
    %v2431 = vunpack.c.h.b16 %v1778
    %v2432 = vunpack.c.l.b16 %v1779
    %v2433 = vunpack.c.h.b16 %v1779
    %v2434 = vunpack.c.l.b16 %v1780
    %v2435 = vunpack.c.h.b16 %v1780
    %v2436 = vunpack.c.l.b16 %v1781
    %v2437 = vunpack.c.h.b16 %v1781
    %v2438 = vunpack.c.l.b16 %v1782
    %v2439 = vunpack.c.h.b16 %v1782
    %v2440 = vunpack.c.l.b16 %v1783
    %v2441 = vunpack.c.h.b16 %v1783
    %v2442 = vunpack.c.l.b16 %v1784
    %v2443 = vunpack.c.h.b16 %v1784
    %v2444 = vunpack.c.l.b16 %v1785
    %v2445 = vunpack.c.h.b16 %v1785
    %v2446 = vunpack.c.l.b16 %v1786
    %v2447 = vunpack.c.h.b16 %v1786
    %v2448 = vunpack.c.l.b16 %v1787
    %v2449 = vunpack.c.h.b16 %v1787
    %v2450 = vunpack.c.l.b16 %v1788
    %v2451 = vunpack.c.h.b16 %v1788
    %v2452 = vunpack.c.l.b16 %v1789
    %v2453 = vunpack.c.h.b16 %v1789
    %v2454 = vunpack.c.l.b16 %v1790
    %v2455 = vunpack.c.h.b16 %v1790
    %v2456 = vunpack.c.l.b16 %v1791
    %v2457 = vunpack.c.h.b16 %v1791
    %v2458 = vunpack.c.l.b16 %v1792
    %v2459 = vunpack.c.h.b16 %v1792
    %v2460 = vunpack.c.l.b16 %v1793
    %v2461 = vunpack.c.h.b16 %v1793
    %v2462 = vunpack.c.l.b16 %v1794
    %v2463 = vunpack.c.h.b16 %v1794
    %v2464 = vunpack.c.l.b16 %v1795
    %v2465 = vunpack.c.h.b16 %v1795
    %v2466 = vunpack.c.l.b16 %v1796
    %v2467 = vunpack.c.h.b16 %v1796
    %v2468 = vunpack.c.l.b16 %v1797
    %v2469 = vunpack.c.h.b16 %v1797
    %v2470 = vunpack.c.l.b16 %v1798
    %v2471 = vunpack.c.h.b16 %v1798
    %v2472 = vunpack.c.l.b16 %v1799
    %v2473 = vunpack.c.h.b16 %v1799
    %v2474 = vunpack.c.l.b16 %v1800
    %v2475 = vunpack.c.h.b16 %v1800
    %v2476 = vunpack.c.l.b16 %v1801
    %v2477 = vunpack.c.h.b16 %v1801
    %v2478 = vunpack.c.l.b16 %v1802
    %v2479 = vunpack.c.h.b16 %v1802
    %v2480 = vunpack.c.l.b16 %v1803
    %v2481 = vunpack.c.h.b16 %v1803
    %v2482 = vunpack.c.l.b16 %v1804
    %v2483 = vunpack.c.h.b16 %v1804
    %v2484 = vunpack.c.l.b16 %v1805
    %v2485 = vunpack.c.h.b16 %v1805
    %v2486 = vunpack.c.l.b16 %v1806
    %v2487 = vunpack.c.h.b16 %v1806
    %v2488 = vunpack.c.l.b16 %v1807
    %v2489 = vunpack.c.h.b16 %v1807
    %v2490 = vunpack.c.l.b16 %v1808
    %v2491 = vunpack.c.h.b16 %v1808
    %v2492 = vunpack.c.l.b16 %v1809
    %v2493 = vunpack.c.h.b16 %v1809
    %v2494 = vunpack.c.l.b16 %v1810
    %v2495 = vunpack.c.h.b16 %v1810
    %v2496 = vunpack.c.l.b16 %v1811
    %v2497 = vunpack.c.h.b16 %v1811
    %v2498 = vunpack.c.l.b16 %v1812
    %v2499 = vunpack.c.h.b16 %v1812
    %v2500 = vunpack.c.l.b16 %v1813
    %v2501 = vunpack.c.h.b16 %v1813
    %v2502 = vunpack.c.l.b16 %v1814
    %v2503 = vunpack.c.h.b16 %v1814
    %v2504 = vunpack.c.l.b16 %v1815
    %v2505 = vunpack.c.h.b16 %v1815
    %v2506 = vunpack.c.l.b16 %v1816
    %v2507 = vunpack.c.h.b16 %v1816
    %v2508 = vunpack.c.l.b16 %v1817
    %v2509 = vunpack.c.h.b16 %v1817
    %v2510 = vunpack.c.l.b16 %v1818
    %v2511 = vunpack.c.h.b16 %v1818
    %v2512 = vunpack.c.l.b16 %v1819
    %v2513 = vunpack.c.h.b16 %v1819
    %v2514 = vunpack.c.l.b16 %v1820
    %v2515 = vunpack.c.h.b16 %v1820
    %v2516 = vunpack.c.l.b16 %v1821
    %v2517 = vunpack.c.h.b16 %v1821
    %v2518 = vunpack.c.l.b16 %v1822
    %v2519 = vunpack.c.h.b16 %v1822
    %v2520 = vunpack.c.l.b16 %v1823
    %v2521 = vunpack.c.h.b16 %v1823
    %v2522 = vunpack.c.l.b16 %v1824
    %v2523 = vunpack.c.h.b16 %v1824
    %v2524 = vunpack.c.l.b16 %v1825
    %v2525 = vunpack.c.h.b16 %v1825
    %v2526 = vunpack.c.l.b16 %v1826
    %v2527 = vunpack.c.h.b16 %v1826
    %v2528 = vunpack.c.l.b16 %v1827
    %v2529 = vunpack.c.h.b16 %v1827
    %v2530 = vunpack.c.l.b16 %v1828
    %v2531 = vunpack.c.h.b16 %v1828
    %v2532 = vunpack.c.l.b16 %v1829
    %v2533 = vunpack.c.h.b16 %v1829
    %v2534 = vunpack.c.l.b16 %v1830
    %v2535 = vunpack.c.h.b16 %v1830
    %v2536 = vunpack.c.l.b16 %v1831
    %v2537 = vunpack.c.h.b16 %v1831
    %v2538 = vunpack.c.l.b16 %v1832
    %v2539 = vunpack.c.h.b16 %v1832
    %v2540 = vunpack.c.l.b16 %v1833
    %v2541 = vunpack.c.h.b16 %v1833
    %v2542 = vunpack.c.l.b16 %v1834
    %v2543 = vunpack.c.h.b16 %v1834
    %v2544 = vunpack.c.l.b16 %v1835
    %v2545 = vunpack.c.h.b16 %v1835
    %v2546 = vunpack.c.l.b16 %v1836
    %v2547 = vunpack.c.h.b16 %v1836
    %v2548 = vunpack.c.l.b16 %v1837
    %v2549 = vunpack.c.h.b16 %v1837
    %v2550 = vunpack.c.l.b16 %v1838
    %v2551 = vunpack.c.h.b16 %v1838
    %v2552 = vunpack.c.l.b16 %v1839
    %v2553 = vunpack.c.h.b16 %v1839
    %v2554 = vunpack.c.l.b16 %v1840
    %v2555 = vunpack.c.h.b16 %v1840
    %v2556 = vunpack.c.l.b16 %v1841
    %v2557 = vunpack.c.h.b16 %v1841
    %v2558 = vunpack.c.l.b16 %v1842
    %v2559 = vunpack.c.h.b16 %v1842
    %v2560 = vunpack.c.l.b16 %v1843
    %v2561 = vunpack.c.h.b16 %v1843
    %v2562 = vunpack.c.l.b16 %v1844
    %v2563 = vunpack.c.h.b16 %v1844
    %v2564 = vunpack.c.l.b16 %v1845
    %v2565 = vunpack.c.h.b16 %v1845
    %v2566 = vunpack.c.l.b16 %v1846
    %v2567 = vunpack.c.h.b16 %v1846
    %v2568 = vunpack.c.l.b16 %v1847
    %v2569 = vunpack.c.h.b16 %v1847
    %v2570 = vunpack.c.l.b16 %v1848
    %v2571 = vunpack.c.h.b16 %v1848
    %v2572 = vunpack.c.l.b16 %v1849
    %v2573 = vunpack.c.h.b16 %v1849
    %v2574 = vunpack.c.l.b16 %v1850
    %v2575 = vunpack.c.h.b16 %v1850
    %v2576 = vunpack.c.l.b16 %v1851
    %v2577 = vunpack.c.h.b16 %v1851
    %v2578 = vunpack.c.l.b16 %v1852
    %v2579 = vunpack.c.h.b16 %v1852
    %v2580 = vunpack.c.l.b16 %v1853
    %v2581 = vunpack.c.h.b16 %v1853
    %v2582 = vunpack.c.l.b16 %v1854
    %v2583 = vunpack.c.h.b16 %v1854
    %v2584 = vunpack.c.l.b16 %v1855
    %v2585 = vunpack.c.h.b16 %v1855
    %v2586 = vunpack.c.l.b16 %v1856
    %v2587 = vunpack.c.h.b16 %v1856
    %v2588 = vunpack.c.l.b16 %v1857
    %v2589 = vunpack.c.h.b16 %v1857
    %v2590 = vunpack.c.l.b16 %v1858
    %v2591 = vunpack.c.h.b16 %v1858
    %v2592 = vunpack.c.l.b16 %v1859
    %v2593 = vunpack.c.h.b16 %v1859
    %v2594 = vunpack.c.l.b16 %v1860
    %v2595 = vunpack.c.h.b16 %v1860
    %v2596 = vunpack.c.l.b16 %v1861
    %v2597 = vunpack.c.h.b16 %v1861
    %v2598 = vunpack.c.l.b16 %v1862
    %v2599 = vunpack.c.h.b16 %v1862
    %v2600 = vunpack.c.l.b16 %v1863
    %v2601 = vunpack.c.h.b16 %v1863
    %v2602 = vunpack.c.l.b16 %v1864
    %v2603 = vunpack.c.h.b16 %v1864
    %v2604 = vunpack.c.l.b16 %v1865
    %v2605 = vunpack.c.h.b16 %v1865
    %v2606 = vunpack.c.l.b16 %v1866
    %v2607 = vunpack.c.h.b16 %v1866
    %v2608 = vunpack.c.l.b16 %v1867
    %v2609 = vunpack.c.h.b16 %v1867
    %v2610 = vunpack.c.l.b16 %v1868
    %v2611 = vunpack.c.h.b16 %v1868
    %v2612 = vunpack.c.l.b16 %v1869
    %v2613 = vunpack.c.h.b16 %v1869
    %v2614 = vunpack.c.l.b16 %v1870
    %v2615 = vunpack.c.h.b16 %v1870
    %v2616 = vunpack.c.l.b16 %v1871
    %v2617 = vunpack.c.h.b16 %v1871
    %v2618 = vunpack.c.l.b16 %v1872
    %v2619 = vunpack.c.h.b16 %v1872
    %v2620 = vunpack.c.l.b16 %v1873
    %v2621 = vunpack.c.h.b16 %v1873
    %v2622 = vunpack.c.l.b16 %v1874
    %v2623 = vunpack.c.h.b16 %v1874
    %v2624 = vunpack.c.l.b16 %v1875
    %v2625 = vunpack.c.h.b16 %v1875
    %v2626 = vunpack.c.l.b16 %v1876
    %v2627 = vunpack.c.h.b16 %v1876
    %v2628 = vunpack.c.l.b16 %v1877
    %v2629 = vunpack.c.h.b16 %v1877
    %v2630 = vunpack.c.l.b16 %v1878
    %v2631 = vunpack.c.h.b16 %v1878
    %v2632 = vunpack.c.l.b16 %v1879
    %v2633 = vunpack.c.h.b16 %v1879
    %v2634 = vunpack.c.l.b16 %v1880
    %v2635 = vunpack.c.h.b16 %v1880
    %v2636 = vunpack.c.l.b16 %v1881
    %v2637 = vunpack.c.h.b16 %v1881
    %v2638 = vunpack.c.l.b16 %v1882
    %v2639 = vunpack.c.h.b16 %v1882
    %v2640 = vunpack.c.l.b16 %v1883
    %v2641 = vunpack.c.h.b16 %v1883
    %v2642 = vunpack.c.l.b16 %v1884
    %v2643 = vunpack.c.h.b16 %v1884
    %v2644 = vunpack.c.l.b16 %v1885
    %v2645 = vunpack.c.h.b16 %v1885
    %v2646 = vunpack.c.l.b16 %v1886
    %v2647 = vunpack.c.h.b16 %v1886
    %v2648 = vunpack.c.l.b16 %v1887
    %v2649 = vunpack.c.h.b16 %v1887
    %v2650 = vunpack.c.l.b16 %v1888
    %v2651 = vunpack.c.h.b16 %v1888
    %v2652 = vunpack.c.l.b16 %v1889
    %v2653 = vunpack.c.h.b16 %v1889
    %v2654 = vunpack.c.l.b16 %v1890
    %v2655 = vunpack.c.h.b16 %v1890
    %v2656 = vunpack.c.l.b16 %v1891
    %v2657 = vunpack.c.h.b16 %v1891
    %v2658 = vunpack.c.l.b16 %v1892
    %v2659 = vunpack.c.h.b16 %v1892
    %v2660 = vunpack.c.l.b16 %v1893
    %v2661 = vunpack.c.h.b16 %v1893
    %v2662 = vunpack.c.l.b16 %v1894
    %v2663 = vunpack.c.h.b16 %v1894
    %v2664 = vunpack.c.l.b16 %v1895
    %v2665 = vunpack.c.h.b16 %v1895
    %v2666 = vunpack.c.l.b16 %v1896
    %v2667 = vunpack.c.h.b16 %v1896
    %v2668 = vunpack.c.l.b16 %v1897
    %v2669 = vunpack.c.h.b16 %v1897
    %v2670 = vunpack.c.l.b16 %v1898
    %v2671 = vunpack.c.h.b16 %v1898
    %v2672 = vunpack.c.l.b16 %v1899
    %v2673 = vunpack.c.h.b16 %v1899
    %v2674 = vpack.c.b16 %v2204, %v2194
    %v2675 = vpack.c.b16 %v2205, %v2195
    %v2676 = vpack.c.b16 %v2206, %v2196
    %v2677 = vpack.c.b16 %v2207, %v2197
    %v2678 = vpack.c.b16 %v2208, %v2198
    %v2679 = vpack.c.b16 %v2209, %v2199
    %v2680 = vpack.c.b16 %v2210, %v2200
    %v2681 = vpack.c.b16 %v2211, %v2201
    %v2682 = vpack.c.b16 %v2212, %v2202
    %v2683 = vpack.c.b16 %v2213, %v2203
    %v2684 = vpack.c.b16 %v2224, %v2214
    %v2685 = vpack.c.b16 %v2225, %v2215
    %v2686 = vpack.c.b16 %v2226, %v2216
    %v2687 = vpack.c.b16 %v2227, %v2217
    %v2688 = vpack.c.b16 %v2228, %v2218
    %v2689 = vpack.c.b16 %v2229, %v2219
    %v2690 = vpack.c.b16 %v2230, %v2220
    %v2691 = vpack.c.b16 %v2231, %v2221
    %v2692 = vpack.c.b16 %v2232, %v2222
    %v2693 = vpack.c.b16 %v2233, %v2223
    %v2694 = vpack.c.b16 %v2244, %v2234
    %v2695 = vpack.c.b16 %v2245, %v2235
    %v2696 = vpack.c.b16 %v2246, %v2236
    %v2697 = vpack.c.b16 %v2247, %v2237
    %v2698 = vpack.c.b16 %v2248, %v2238
    %v2699 = vpack.c.b16 %v2249, %v2239
    %v2700 = vpack.c.b16 %v2250, %v2240
    %v2701 = vpack.c.b16 %v2251, %v2241
    %v2702 = vpack.c.b16 %v2252, %v2242
    %v2703 = vpack.c.b16 %v2253, %v2243
    %v2704 = vpack.c.b16 %v2264, %v2254
    %v2705 = vpack.c.b16 %v2265, %v2255
    %v2706 = vpack.c.b16 %v2266, %v2256
    %v2707 = vpack.c.b16 %v2267, %v2257
    %v2708 = vpack.c.b16 %v2268, %v2258
    %v2709 = vpack.c.b16 %v2269, %v2259
    %v2710 = vpack.c.b16 %v2270, %v2260
    %v2711 = vpack.c.b16 %v2271, %v2261
    %v2712 = vpack.c.b16 %v2272, %v2262
    %v2713 = vpack.c.b16 %v2273, %v2263
    %v2714 = vpack.c.b16 %v2284, %v2274
    %v2715 = vpack.c.b16 %v2285, %v2275
    %v2716 = vpack.c.b16 %v2286, %v2276
    %v2717 = vpack.c.b16 %v2287, %v2277
    %v2718 = vpack.c.b16 %v2288, %v2278
    %v2719 = vpack.c.b16 %v2289, %v2279
    %v2720 = vpack.c.b16 %v2290, %v2280
    %v2721 = vpack.c.b16 %v2291, %v2281
    %v2722 = vpack.c.b16 %v2292, %v2282
    %v2723 = vpack.c.b16 %v2293, %v2283
    %v2724 = vpack.c.b16 %v2304, %v2294
    %v2725 = vpack.c.b16 %v2305, %v2295
    %v2726 = vpack.c.b16 %v2306, %v2296
    %v2727 = vpack.c.b16 %v2307, %v2297
    %v2728 = vpack.c.b16 %v2308, %v2298
    %v2729 = vpack.c.b16 %v2309, %v2299
    %v2730 = vpack.c.b16 %v2310, %v2300
    %v2731 = vpack.c.b16 %v2311, %v2301
    %v2732 = vpack.c.b16 %v2312, %v2302
    %v2733 = vpack.c.b16 %v2313, %v2303
    %v2734 = vpack.c.b16 %v2324, %v2314
    %v2735 = vpack.c.b16 %v2325, %v2315
    %v2736 = vpack.c.b16 %v2326, %v2316
    %v2737 = vpack.c.b16 %v2327, %v2317
    %v2738 = vpack.c.b16 %v2328, %v2318
    %v2739 = vpack.c.b16 %v2329, %v2319
    %v2740 = vpack.c.b16 %v2330, %v2320
    %v2741 = vpack.c.b16 %v2331, %v2321
    %v2742 = vpack.c.b16 %v2332, %v2322
    %v2743 = vpack.c.b16 %v2333, %v2323
    %v2744 = vpack.c.b16 %v2344, %v2334
    %v2745 = vpack.c.b16 %v2345, %v2335
    %v2746 = vpack.c.b16 %v2346, %v2336
    %v2747 = vpack.c.b16 %v2347, %v2337
    %v2748 = vpack.c.b16 %v2348, %v2338
    %v2749 = vpack.c.b16 %v2349, %v2339
    %v2750 = vpack.c.b16 %v2350, %v2340
    %v2751 = vpack.c.b16 %v2351, %v2341
    %v2752 = vpack.c.b16 %v2352, %v2342
    %v2753 = vpack.c.b16 %v2353, %v2343
    %v2754 = vpack.c.b16 %v2364, %v2354
    %v2755 = vpack.c.b16 %v2365, %v2355
    %v2756 = vpack.c.b16 %v2366, %v2356
    %v2757 = vpack.c.b16 %v2367, %v2357
    %v2758 = vpack.c.b16 %v2368, %v2358
    %v2759 = vpack.c.b16 %v2369, %v2359
    %v2760 = vpack.c.b16 %v2370, %v2360
    %v2761 = vpack.c.b16 %v2371, %v2361
    %v2762 = vpack.c.b16 %v2372, %v2362
    %v2763 = vpack.c.b16 %v2373, %v2363
    %v2764 = vpack.c.b16 %v2384, %v2374
    %v2765 = vpack.c.b16 %v2385, %v2375
    %v2766 = vpack.c.b16 %v2386, %v2376
    %v2767 = vpack.c.b16 %v2387, %v2377
    %v2768 = vpack.c.b16 %v2388, %v2378
    %v2769 = vpack.c.b16 %v2389, %v2379
    %v2770 = vpack.c.b16 %v2390, %v2380
    %v2771 = vpack.c.b16 %v2391, %v2381
    %v2772 = vpack.c.b16 %v2392, %v2382
    %v2773 = vpack.c.b16 %v2393, %v2383
    %v2774 = vpack.c.b16 %v2404, %v2394
    %v2775 = vpack.c.b16 %v2405, %v2395
    %v2776 = vpack.c.b16 %v2406, %v2396
    %v2777 = vpack.c.b16 %v2407, %v2397
    %v2778 = vpack.c.b16 %v2408, %v2398
    %v2779 = vpack.c.b16 %v2409, %v2399
    %v2780 = vpack.c.b16 %v2410, %v2400
    %v2781 = vpack.c.b16 %v2411, %v2401
    %v2782 = vpack.c.b16 %v2412, %v2402
    %v2783 = vpack.c.b16 %v2413, %v2403
    %v2784 = vpack.c.b16 %v2424, %v2414
    %v2785 = vpack.c.b16 %v2425, %v2415
    %v2786 = vpack.c.b16 %v2426, %v2416
    %v2787 = vpack.c.b16 %v2427, %v2417
    %v2788 = vpack.c.b16 %v2428, %v2418
    %v2789 = vpack.c.b16 %v2429, %v2419
    %v2790 = vpack.c.b16 %v2430, %v2420
    %v2791 = vpack.c.b16 %v2431, %v2421
    %v2792 = vpack.c.b16 %v2432, %v2422
    %v2793 = vpack.c.b16 %v2433, %v2423
    %v2794 = vpack.c.b16 %v2444, %v2434
    %v2795 = vpack.c.b16 %v2445, %v2435
    %v2796 = vpack.c.b16 %v2446, %v2436
    %v2797 = vpack.c.b16 %v2447, %v2437
    %v2798 = vpack.c.b16 %v2448, %v2438
    %v2799 = vpack.c.b16 %v2449, %v2439
    %v2800 = vpack.c.b16 %v2450, %v2440
    %v2801 = vpack.c.b16 %v2451, %v2441
    %v2802 = vpack.c.b16 %v2452, %v2442
    %v2803 = vpack.c.b16 %v2453, %v2443
    %v2804 = vpack.c.b16 %v2464, %v2454
    %v2805 = vpack.c.b16 %v2465, %v2455
    %v2806 = vpack.c.b16 %v2466, %v2456
    %v2807 = vpack.c.b16 %v2467, %v2457
    %v2808 = vpack.c.b16 %v2468, %v2458
    %v2809 = vpack.c.b16 %v2469, %v2459
    %v2810 = vpack.c.b16 %v2470, %v2460
    %v2811 = vpack.c.b16 %v2471, %v2461
    %v2812 = vpack.c.b16 %v2472, %v2462
    %v2813 = vpack.c.b16 %v2473, %v2463
    %v2814 = vpack.c.b16 %v2484, %v2474
    %v2815 = vpack.c.b16 %v2485, %v2475
    %v2816 = vpack.c.b16 %v2486, %v2476
    %v2817 = vpack.c.b16 %v2487, %v2477
    %v2818 = vpack.c.b16 %v2488, %v2478
    %v2819 = vpack.c.b16 %v2489, %v2479
    %v2820 = vpack.c.b16 %v2490, %v2480
    %v2821 = vpack.c.b16 %v2491, %v2481
    %v2822 = vpack.c.b16 %v2492, %v2482
    %v2823 = vpack.c.b16 %v2493, %v2483
    %v2824 = vpack.c.b16 %v2504, %v2494
    %v2825 = vpack.c.b16 %v2505, %v2495
    %v2826 = vpack.c.b16 %v2506, %v2496
    %v2827 = vpack.c.b16 %v2507, %v2497
    %v2828 = vpack.c.b16 %v2508, %v2498
    %v2829 = vpack.c.b16 %v2509, %v2499
    %v2830 = vpack.c.b16 %v2510, %v2500
    %v2831 = vpack.c.b16 %v2511, %v2501
    %v2832 = vpack.c.b16 %v2512, %v2502
    %v2833 = vpack.c.b16 %v2513, %v2503
    %v2834 = vpack.c.b16 %v2524, %v2514
    %v2835 = vpack.c.b16 %v2525, %v2515
    %v2836 = vpack.c.b16 %v2526, %v2516
    %v2837 = vpack.c.b16 %v2527, %v2517
    %v2838 = vpack.c.b16 %v2528, %v2518
    %v2839 = vpack.c.b16 %v2529, %v2519
    %v2840 = vpack.c.b16 %v2530, %v2520
    %v2841 = vpack.c.b16 %v2531, %v2521
    %v2842 = vpack.c.b16 %v2532, %v2522
    %v2843 = vpack.c.b16 %v2533, %v2523
    %v2844 = vpack.c.b16 %v2544, %v2534
    %v2845 = vpack.c.b16 %v2545, %v2535
    %v2846 = vpack.c.b16 %v2546, %v2536
    %v2847 = vpack.c.b16 %v2547, %v2537
    %v2848 = vpack.c.b16 %v2548, %v2538
    %v2849 = vpack.c.b16 %v2549, %v2539
    %v2850 = vpack.c.b16 %v2550, %v2540
    %v2851 = vpack.c.b16 %v2551, %v2541
    %v2852 = vpack.c.b16 %v2552, %v2542
    %v2853 = vpack.c.b16 %v2553, %v2543
    %v2854 = vpack.c.b16 %v2564, %v2554
    %v2855 = vpack.c.b16 %v2565, %v2555
    %v2856 = vpack.c.b16 %v2566, %v2556
    %v2857 = vpack.c.b16 %v2567, %v2557
    %v2858 = vpack.c.b16 %v2568, %v2558
    %v2859 = vpack.c.b16 %v2569, %v2559
    %v2860 = vpack.c.b16 %v2570, %v2560
    %v2861 = vpack.c.b16 %v2571, %v2561
    %v2862 = vpack.c.b16 %v2572, %v2562
    %v2863 = vpack.c.b16 %v2573, %v2563
    %v2864 = vpack.c.b16 %v2584, %v2574
    %v2865 = vpack.c.b16 %v2585, %v2575
    %v2866 = vpack.c.b16 %v2586, %v2576
    %v2867 = vpack.c.b16 %v2587, %v2577
    %v2868 = vpack.c.b16 %v2588, %v2578
    %v2869 = vpack.c.b16 %v2589, %v2579
    %v2870 = vpack.c.b16 %v2590, %v2580
    %v2871 = vpack.c.b16 %v2591, %v2581
    %v2872 = vpack.c.b16 %v2592, %v2582
    %v2873 = vpack.c.b16 %v2593, %v2583
    %v2874 = vpack.c.b16 %v2604, %v2594
    %v2875 = vpack.c.b16 %v2605, %v2595
    %v2876 = vpack.c.b16 %v2606, %v2596
    %v2877 = vpack.c.b16 %v2607, %v2597
    %v2878 = vpack.c.b16 %v2608, %v2598
    %v2879 = vpack.c.b16 %v2609, %v2599
    %v2880 = vpack.c.b16 %v2610, %v2600
    %v2881 = vpack.c.b16 %v2611, %v2601
    %v2882 = vpack.c.b16 %v2612, %v2602
    %v2883 = vpack.c.b16 %v2613, %v2603
    %v2884 = vpack.c.b16 %v2624, %v2614
    %v2885 = vpack.c.b16 %v2625, %v2615
    %v2886 = vpack.c.b16 %v2626, %v2616
    %v2887 = vpack.c.b16 %v2627, %v2617
    %v2888 = vpack.c.b16 %v2628, %v2618
    %v2889 = vpack.c.b16 %v2629, %v2619
    %v2890 = vpack.c.b16 %v2630, %v2620
    %v2891 = vpack.c.b16 %v2631, %v2621
    %v2892 = vpack.c.b16 %v2632, %v2622
    %v2893 = vpack.c.b16 %v2633, %v2623
    %v2894 = vpack.c.b16 %v2644, %v2634
    %v2895 = vpack.c.b16 %v2645, %v2635
    %v2896 = vpack.c.b16 %v2646, %v2636
    %v2897 = vpack.c.b16 %v2647, %v2637
    %v2898 = vpack.c.b16 %v2648, %v2638
    %v2899 = vpack.c.b16 %v2649, %v2639
    %v2900 = vpack.c.b16 %v2650, %v2640
    %v2901 = vpack.c.b16 %v2651, %v2641
    %v2902 = vpack.c.b16 %v2652, %v2642
    %v2903 = vpack.c.b16 %v2653, %v2643
    %v2904 = vpack.c.b16 %v2664, %v2654
    %v2905 = vpack.c.b16 %v2665, %v2655
    %v2906 = vpack.c.b16 %v2666, %v2656
    %v2907 = vpack.c.b16 %v2667, %v2657
    %v2908 = vpack.c.b16 %v2668, %v2658
    %v2909 = vpack.c.b16 %v2669, %v2659
    %v2910 = vpack.c.b16 %v2670, %v2660
    %v2911 = vpack.c.b16 %v2671, %v2661
    %v2912 = vpack.c.b16 %v2672, %v2662
    %v2913 = vpack.c.b16 %v2673, %v2663
    %3154 = vmatprep.subr.bf16.mxu0 %v2745
    %3155 = vmatpush1.bf16.msra.mxu0 %v2744
    %3156 = vmatprep.subr.bf16.mxu0 %v2735
    %3157 = vmatpush1.bf16.msra.mxu0 %v2734
    %3158 = vmatprep.subr.bf16.mxu0 %v2725
    %3159 = vmatpush1.bf16.msra.mxu0 %v2724
    %3160 = vmatprep.subr.bf16.mxu0 %v2715
    %3161 = vmatpush1.bf16.msra.mxu0 %v2714
    %3162 = vmatprep.subr.bf16.mxu0 %v2705
    %3163 = vmatpush1.bf16.msra.mxu0 %v2704
    %3164 = vmatprep.subr.bf16.mxu0 %v2695
    %3165 = vmatpush1.bf16.msra.mxu0 %v2694
    %3166 = vmatprep.subr.bf16.mxu0 %v2685
    %3167 = vmatpush1.bf16.msra.mxu0 %v2684
    %3168 = vmatprep.subr.bf16.mxu0 %v2675
    %3169 = vmatpush1.bf16.msra.mxu0 %v2674
    %3170 = vmatprep.subr.bf16.mxu0 %v2825
    %3171 = vmatpush2.bf16.msra.mxu0 %v2824
    %3172 = vmatprep.subr.bf16.mxu0 %v2815
    %3173 = vmatpush2.bf16.msra.mxu0 %v2814
    %3174 = vmatprep.subr.bf16.mxu0 %v2805
    %3175 = vmatpush2.bf16.msra.mxu0 %v2804
    %3176 = vmatprep.subr.bf16.mxu0 %v2795
    %3177 = vmatpush2.bf16.msra.mxu0 %v2794
    %3178 = vmatprep.subr.bf16.mxu0 %v2785
    %3179 = vmatpush2.bf16.msra.mxu0 %v2784
    %3180 = vmatprep.subr.bf16.mxu0 %v2775
    %3181 = vmatpush2.bf16.msra.mxu0 %v2774
    %3182 = vmatprep.subr.bf16.mxu0 %v2765
    %3183 = vmatpush2.bf16.msra.mxu0 %v2764
    %3184 = vmatprep.subr.bf16.mxu0 %v2755
    %3185 = vmatpush2.bf16.msra.mxu0 %v2754
    %3186 = vmatprep.mubr.bf16.mxu0 %v1658
    %3187 = vmatmul.mubr.bf16.gmra.mxu0 %v1657
    %v3188 = vpop.f32.mrf.mxu0
    %v3189 = vadd.f32 %v1907, %v3188
    %v3190 = vpop.f32.mrf.mxu0
    %v3191 = vadd.f32 %v1911, %v3190
    %v3192 = vpop.f32.mrf.mxu0
    %v3193 = vpop.f32.mrf.mxu0
    %3194 = vdwg.mxu0
    %3195 = vmatprep.subr.bf16.mxu0 %v2905
    %3196 = vmatpush1.bf16.msra.mxu0 %v2904
    %3197 = vmatprep.subr.bf16.mxu0 %v2895
    %3198 = vmatpush1.bf16.msra.mxu0 %v2894
    %3199 = vmatprep.subr.bf16.mxu0 %v2885
    %3200 = vmatpush1.bf16.msra.mxu0 %v2884
    %3201 = vmatprep.subr.bf16.mxu0 %v2875
    %3202 = vmatpush1.bf16.msra.mxu0 %v2874
    %3203 = vmatprep.subr.bf16.mxu0 %v2865
    %3204 = vmatpush1.bf16.msra.mxu0 %v2864
    %3205 = vmatprep.subr.bf16.mxu0 %v2855
    %3206 = vmatpush1.bf16.msra.mxu0 %v2854
    %3207 = vmatprep.subr.bf16.mxu0 %v2845
    %3208 = vmatpush1.bf16.msra.mxu0 %v2844
    %3209 = vmatprep.subr.bf16.mxu0 %v2835
    %3210 = vmatpush1.bf16.msra.mxu0 %v2834
    %3211 = vmatprep.subr.bf16.mxu0 0
    %3212 = vmatpush2.bf16.msra.mxu0 0
    %3213 = vmatprep.subr.bf16.mxu0 0
    %3214 = vmatpush2.bf16.msra.mxu0 0
    %3215 = vmatprep.subr.bf16.mxu0 0
    %3216 = vmatpush2.bf16.msra.mxu0 0
    %3217 = vmatprep.subr.bf16.mxu0 0
    %3218 = vmatpush2.bf16.msra.mxu0 0
    %3219 = vmatprep.subr.bf16.mxu0 0
    %3220 = vmatpush2.bf16.msra.mxu0 0
    %3221 = vmatprep.subr.bf16.mxu0 0
    %3222 = vmatpush2.bf16.msra.mxu0 0
    %3223 = vmatprep.subr.bf16.mxu0 0
    %3224 = vmatpush2.bf16.msra.mxu0 0
    %3225 = vmatprep.subr.bf16.mxu0 0
    %3226 = vmatpush2.bf16.msra.mxu0 0
    %3227 = vmatprep.mubr.bf16.mxu0 0
    %3228 = vmatmul.mubr.bf16.gmra.mxu0 %v1659
    %v3229 = vpop.f32.mrf.mxu0
    %v3230 = vadd.f32 %v3189, %v3229
    %v3231 = vpop.f32.mrf.mxu0
    %v3232 = vadd.f32 %v3191, %v3231
    %v3233 = vpop.f32.mrf.mxu0
    %v3234 = vpop.f32.mrf.mxu0
    %3235 = vdwg.mxu0
    %3236 = vmatprep.subr.bf16.mxu0 %v2747
    %3237 = vmatpush1.bf16.msra.mxu0 %v2746
    %3238 = vmatprep.subr.bf16.mxu0 %v2737
    %3239 = vmatpush1.bf16.msra.mxu0 %v2736
    %3240 = vmatprep.subr.bf16.mxu0 %v2727
    %3241 = vmatpush1.bf16.msra.mxu0 %v2726
    %3242 = vmatprep.subr.bf16.mxu0 %v2717
    %3243 = vmatpush1.bf16.msra.mxu0 %v2716
    %3244 = vmatprep.subr.bf16.mxu0 %v2707
    %3245 = vmatpush1.bf16.msra.mxu0 %v2706
    %3246 = vmatprep.subr.bf16.mxu0 %v2697
    %3247 = vmatpush1.bf16.msra.mxu0 %v2696
    %3248 = vmatprep.subr.bf16.mxu0 %v2687
    %3249 = vmatpush1.bf16.msra.mxu0 %v2686
    %3250 = vmatprep.subr.bf16.mxu0 %v2677
    %3251 = vmatpush1.bf16.msra.mxu0 %v2676
    %3252 = vmatprep.subr.bf16.mxu0 %v2827
    %3253 = vmatpush2.bf16.msra.mxu0 %v2826
    %3254 = vmatprep.subr.bf16.mxu0 %v2817
    %3255 = vmatpush2.bf16.msra.mxu0 %v2816
    %3256 = vmatprep.subr.bf16.mxu0 %v2807
    %3257 = vmatpush2.bf16.msra.mxu0 %v2806
    %3258 = vmatprep.subr.bf16.mxu0 %v2797
    %3259 = vmatpush2.bf16.msra.mxu0 %v2796
    %3260 = vmatprep.subr.bf16.mxu0 %v2787
    %3261 = vmatpush2.bf16.msra.mxu0 %v2786
    %3262 = vmatprep.subr.bf16.mxu0 %v2777
    %3263 = vmatpush2.bf16.msra.mxu0 %v2776
    %3264 = vmatprep.subr.bf16.mxu0 %v2767
    %3265 = vmatpush2.bf16.msra.mxu0 %v2766
    %3266 = vmatprep.subr.bf16.mxu0 %v2757
    %3267 = vmatpush2.bf16.msra.mxu0 %v2756
    %3268 = vmatprep.mubr.bf16.mxu0 %v1658
    %3269 = vmatmul.mubr.bf16.gmra.mxu0 %v1657
    %v3270 = vpop.f32.mrf.mxu0
    %v3271 = vadd.f32 %v1915, %v3270
    %v3272 = vpop.f32.mrf.mxu0
    %v3273 = vadd.f32 %v1919, %v3272
    %v3274 = vpop.f32.mrf.mxu0
    %v3275 = vpop.f32.mrf.mxu0
    %3276 = vdwg.mxu0
    %3277 = vmatprep.subr.bf16.mxu0 %v2907
    %3278 = vmatpush1.bf16.msra.mxu0 %v2906
    %3279 = vmatprep.subr.bf16.mxu0 %v2897
    %3280 = vmatpush1.bf16.msra.mxu0 %v2896
    %3281 = vmatprep.subr.bf16.mxu0 %v2887
    %3282 = vmatpush1.bf16.msra.mxu0 %v2886
    %3283 = vmatprep.subr.bf16.mxu0 %v2877
    %3284 = vmatpush1.bf16.msra.mxu0 %v2876
    %3285 = vmatprep.subr.bf16.mxu0 %v2867
    %3286 = vmatpush1.bf16.msra.mxu0 %v2866
    %3287 = vmatprep.subr.bf16.mxu0 %v2857
    %3288 = vmatpush1.bf16.msra.mxu0 %v2856
    %3289 = vmatprep.subr.bf16.mxu0 %v2847
    %3290 = vmatpush1.bf16.msra.mxu0 %v2846
    %3291 = vmatprep.subr.bf16.mxu0 %v2837
    %3292 = vmatpush1.bf16.msra.mxu0 %v2836
    %3293 = vmatprep.subr.bf16.mxu0 0
    %3294 = vmatpush2.bf16.msra.mxu0 0
    %3295 = vmatprep.subr.bf16.mxu0 0
    %3296 = vmatpush2.bf16.msra.mxu0 0
    %3297 = vmatprep.subr.bf16.mxu0 0
    %3298 = vmatpush2.bf16.msra.mxu0 0
    %3299 = vmatprep.subr.bf16.mxu0 0
    %3300 = vmatpush2.bf16.msra.mxu0 0
    %3301 = vmatprep.subr.bf16.mxu0 0
    %3302 = vmatpush2.bf16.msra.mxu0 0
    %3303 = vmatprep.subr.bf16.mxu0 0
    %3304 = vmatpush2.bf16.msra.mxu0 0
    %3305 = vmatprep.subr.bf16.mxu0 0
    %3306 = vmatpush2.bf16.msra.mxu0 0
    %3307 = vmatprep.subr.bf16.mxu0 0
    %3308 = vmatpush2.bf16.msra.mxu0 0
    %3309 = vmatprep.mubr.bf16.mxu0 0
    %3310 = vmatmul.mubr.bf16.gmra.mxu0 %v1659
    %v3311 = vpop.f32.mrf.mxu0
    %v3312 = vadd.f32 %v3271, %v3311
    %v3313 = vpop.f32.mrf.mxu0
    %v3314 = vadd.f32 %v3273, %v3313
    %v3315 = vpop.f32.mrf.mxu0
    %v3316 = vpop.f32.mrf.mxu0
    %3317 = vdwg.mxu0
    %3318 = vmatprep.subr.bf16.mxu0 %v2749
    %3319 = vmatpush1.bf16.msra.mxu0 %v2748
    %3320 = vmatprep.subr.bf16.mxu0 %v2739
    %3321 = vmatpush1.bf16.msra.mxu0 %v2738
    %3322 = vmatprep.subr.bf16.mxu0 %v2729
    %3323 = vmatpush1.bf16.msra.mxu0 %v2728
    %3324 = vmatprep.subr.bf16.mxu0 %v2719
    %3325 = vmatpush1.bf16.msra.mxu0 %v2718
    %3326 = vmatprep.subr.bf16.mxu0 %v2709
    %3327 = vmatpush1.bf16.msra.mxu0 %v2708
    %3328 = vmatprep.subr.bf16.mxu0 %v2699
    %3329 = vmatpush1.bf16.msra.mxu0 %v2698
    %3330 = vmatprep.subr.bf16.mxu0 %v2689
    %3331 = vmatpush1.bf16.msra.mxu0 %v2688
    %3332 = vmatprep.subr.bf16.mxu0 %v2679
    %3333 = vmatpush1.bf16.msra.mxu0 %v2678
    %3334 = vmatprep.subr.bf16.mxu0 %v2829
    %3335 = vmatpush2.bf16.msra.mxu0 %v2828
    %3336 = vmatprep.subr.bf16.mxu0 %v2819
    %3337 = vmatpush2.bf16.msra.mxu0 %v2818
    %3338 = vmatprep.subr.bf16.mxu0 %v2809
    %3339 = vmatpush2.bf16.msra.mxu0 %v2808
    %3340 = vmatprep.subr.bf16.mxu0 %v2799
    %3341 = vmatpush2.bf16.msra.mxu0 %v2798
    %3342 = vmatprep.subr.bf16.mxu0 %v2789
    %3343 = vmatpush2.bf16.msra.mxu0 %v2788
    %3344 = vmatprep.subr.bf16.mxu0 %v2779
    %3345 = vmatpush2.bf16.msra.mxu0 %v2778
    %3346 = vmatprep.subr.bf16.mxu0 %v2769
    %3347 = vmatpush2.bf16.msra.mxu0 %v2768
    %3348 = vmatprep.subr.bf16.mxu0 %v2759
    %3349 = vmatpush2.bf16.msra.mxu0 %v2758
    %3350 = vmatprep.mubr.bf16.mxu0 %v1658
    %3351 = vmatmul.mubr.bf16.gmra.mxu0 %v1657
    %v3352 = vpop.f32.mrf.mxu0
    %v3353 = vadd.f32 %v1923, %v3352
    %v3354 = vpop.f32.mrf.mxu0
    %v3355 = vadd.f32 %v1927, %v3354
    %v3356 = vpop.f32.mrf.mxu0
    %v3357 = vpop.f32.mrf.mxu0
    %3358 = vdwg.mxu0
    %3359 = vmatprep.subr.bf16.mxu0 %v2909
    %3360 = vmatpush1.bf16.msra.mxu0 %v2908
    %3361 = vmatprep.subr.bf16.mxu0 %v2899
    %3362 = vmatpush1.bf16.msra.mxu0 %v2898
    %3363 = vmatprep.subr.bf16.mxu0 %v2889
    %3364 = vmatpush1.bf16.msra.mxu0 %v2888
    %3365 = vmatprep.subr.bf16.mxu0 %v2879
    %3366 = vmatpush1.bf16.msra.mxu0 %v2878
    %3367 = vmatprep.subr.bf16.mxu0 %v2869
    %3368 = vmatpush1.bf16.msra.mxu0 %v2868
    %3369 = vmatprep.subr.bf16.mxu0 %v2859
    %3370 = vmatpush1.bf16.msra.mxu0 %v2858
    %3371 = vmatprep.subr.bf16.mxu0 %v2849
    %3372 = vmatpush1.bf16.msra.mxu0 %v2848
    %3373 = vmatprep.subr.bf16.mxu0 %v2839
    %3374 = vmatpush1.bf16.msra.mxu0 %v2838
    %3375 = vmatprep.subr.bf16.mxu0 0
    %3376 = vmatpush2.bf16.msra.mxu0 0
    %3377 = vmatprep.subr.bf16.mxu0 0
    %3378 = vmatpush2.bf16.msra.mxu0 0
    %3379 = vmatprep.subr.bf16.mxu0 0
    %3380 = vmatpush2.bf16.msra.mxu0 0
    %3381 = vmatprep.subr.bf16.mxu0 0
    %3382 = vmatpush2.bf16.msra.mxu0 0
    %3383 = vmatprep.subr.bf16.mxu0 0
    %3384 = vmatpush2.bf16.msra.mxu0 0
    %3385 = vmatprep.subr.bf16.mxu0 0
    %3386 = vmatpush2.bf16.msra.mxu0 0
    %3387 = vmatprep.subr.bf16.mxu0 0
    %3388 = vmatpush2.bf16.msra.mxu0 0
    %3389 = vmatprep.subr.bf16.mxu0 0
    %3390 = vmatpush2.bf16.msra.mxu0 0
    %3391 = vmatprep.mubr.bf16.mxu0 0
    %3392 = vmatmul.mubr.bf16.gmra.mxu0 %v1659
    %v3393 = vpop.f32.mrf.mxu0
    %v3394 = vadd.f32 %v3353, %v3393
    %v3395 = vpop.f32.mrf.mxu0
    %v3396 = vadd.f32 %v3355, %v3395
    %v3397 = vpop.f32.mrf.mxu0
    %v3398 = vpop.f32.mrf.mxu0
    %3399 = vdwg.mxu0
    %3400 = vmatprep.subr.bf16.mxu0 %v2751
    %3401 = vmatpush1.bf16.msra.mxu0 %v2750
    %3402 = vmatprep.subr.bf16.mxu0 %v2741
    %3403 = vmatpush1.bf16.msra.mxu0 %v2740
    %3404 = vmatprep.subr.bf16.mxu0 %v2731
    %3405 = vmatpush1.bf16.msra.mxu0 %v2730
    %3406 = vmatprep.subr.bf16.mxu0 %v2721
    %3407 = vmatpush1.bf16.msra.mxu0 %v2720
    %3408 = vmatprep.subr.bf16.mxu0 %v2711
    %3409 = vmatpush1.bf16.msra.mxu0 %v2710
    %3410 = vmatprep.subr.bf16.mxu0 %v2701
    %3411 = vmatpush1.bf16.msra.mxu0 %v2700
    %3412 = vmatprep.subr.bf16.mxu0 %v2691
    %3413 = vmatpush1.bf16.msra.mxu0 %v2690
    %3414 = vmatprep.subr.bf16.mxu0 %v2681
    %3415 = vmatpush1.bf16.msra.mxu0 %v2680
    %3416 = vmatprep.subr.bf16.mxu0 %v2831
    %3417 = vmatpush2.bf16.msra.mxu0 %v2830
    %3418 = vmatprep.subr.bf16.mxu0 %v2821
    %3419 = vmatpush2.bf16.msra.mxu0 %v2820
    %3420 = vmatprep.subr.bf16.mxu0 %v2811
    %3421 = vmatpush2.bf16.msra.mxu0 %v2810
    %3422 = vmatprep.subr.bf16.mxu0 %v2801
    %3423 = vmatpush2.bf16.msra.mxu0 %v2800
    %3424 = vmatprep.subr.bf16.mxu0 %v2791
    %3425 = vmatpush2.bf16.msra.mxu0 %v2790
    %3426 = vmatprep.subr.bf16.mxu0 %v2781
    %3427 = vmatpush2.bf16.msra.mxu0 %v2780
    %3428 = vmatprep.subr.bf16.mxu0 %v2771
    %3429 = vmatpush2.bf16.msra.mxu0 %v2770
    %3430 = vmatprep.subr.bf16.mxu0 %v2761
    %3431 = vmatpush2.bf16.msra.mxu0 %v2760
    %3432 = vmatprep.mubr.bf16.mxu0 %v1658
    %3433 = vmatmul.mubr.bf16.gmra.mxu0 %v1657
    %v3434 = vpop.f32.mrf.mxu0
    %v3435 = vadd.f32 %v1931, %v3434
    %v3436 = vpop.f32.mrf.mxu0
    %v3437 = vadd.f32 %v1935, %v3436
    %v3438 = vpop.f32.mrf.mxu0
    %v3439 = vpop.f32.mrf.mxu0
    %3440 = vdwg.mxu0
    %3441 = vmatprep.subr.bf16.mxu0 %v2911
    %3442 = vmatpush1.bf16.msra.mxu0 %v2910
    %3443 = vmatprep.subr.bf16.mxu0 %v2901
    %3444 = vmatpush1.bf16.msra.mxu0 %v2900
    %3445 = vmatprep.subr.bf16.mxu0 %v2891
    %3446 = vmatpush1.bf16.msra.mxu0 %v2890
    %3447 = vmatprep.subr.bf16.mxu0 %v2881
    %3448 = vmatpush1.bf16.msra.mxu0 %v2880
    %3449 = vmatprep.subr.bf16.mxu0 %v2871
    %3450 = vmatpush1.bf16.msra.mxu0 %v2870
    %3451 = vmatprep.subr.bf16.mxu0 %v2861
    %3452 = vmatpush1.bf16.msra.mxu0 %v2860
    %3453 = vmatprep.subr.bf16.mxu0 %v2851
    %3454 = vmatpush1.bf16.msra.mxu0 %v2850
    %3455 = vmatprep.subr.bf16.mxu0 %v2841
    %3456 = vmatpush1.bf16.msra.mxu0 %v2840
    %3457 = vmatprep.subr.bf16.mxu0 0
    %3458 = vmatpush2.bf16.msra.mxu0 0
    %3459 = vmatprep.subr.bf16.mxu0 0
    %3460 = vmatpush2.bf16.msra.mxu0 0
    %3461 = vmatprep.subr.bf16.mxu0 0
    %3462 = vmatpush2.bf16.msra.mxu0 0
    %3463 = vmatprep.subr.bf16.mxu0 0
    %3464 = vmatpush2.bf16.msra.mxu0 0
    %3465 = vmatprep.subr.bf16.mxu0 0
    %3466 = vmatpush2.bf16.msra.mxu0 0
    %3467 = vmatprep.subr.bf16.mxu0 0
    %3468 = vmatpush2.bf16.msra.mxu0 0
    %3469 = vmatprep.subr.bf16.mxu0 0
    %3470 = vmatpush2.bf16.msra.mxu0 0
    %3471 = vmatprep.subr.bf16.mxu0 0
    %3472 = vmatpush2.bf16.msra.mxu0 0
    %3473 = vmatprep.mubr.bf16.mxu0 0
    %3474 = vmatmul.mubr.bf16.gmra.mxu0 %v1659
    %v3475 = vpop.f32.mrf.mxu0
    %v3476 = vadd.f32 %v3435, %v3475
    %v3477 = vpop.f32.mrf.mxu0
    %v3478 = vadd.f32 %v3437, %v3477
    %v3479 = vpop.f32.mrf.mxu0
    %v3480 = vpop.f32.mrf.mxu0
    %3481 = vdwg.mxu0
    %3482 = vmatprep.subr.bf16.mxu0 %v2753
    %3483 = vmatpush1.bf16.msra.mxu0 %v2752
    %3484 = vmatprep.subr.bf16.mxu0 %v2743
    %3485 = vmatpush1.bf16.msra.mxu0 %v2742
    %3486 = vmatprep.subr.bf16.mxu0 %v2733
    %3487 = vmatpush1.bf16.msra.mxu0 %v2732
    %3488 = vmatprep.subr.bf16.mxu0 %v2723
    %3489 = vmatpush1.bf16.msra.mxu0 %v2722
    %3490 = vmatprep.subr.bf16.mxu0 %v2713
    %3491 = vmatpush1.bf16.msra.mxu0 %v2712
    %3492 = vmatprep.subr.bf16.mxu0 %v2703
    %3493 = vmatpush1.bf16.msra.mxu0 %v2702
    %3494 = vmatprep.subr.bf16.mxu0 %v2693
    %3495 = vmatpush1.bf16.msra.mxu0 %v2692
    %3496 = vmatprep.subr.bf16.mxu0 %v2683
    %3497 = vmatpush1.bf16.msra.mxu0 %v2682
    %3498 = vmatprep.subr.bf16.mxu0 %v2833
    %3499 = vmatpush2.bf16.msra.mxu0 %v2832
    %3500 = vmatprep.subr.bf16.mxu0 %v2823
    %3501 = vmatpush2.bf16.msra.mxu0 %v2822
    %3502 = vmatprep.subr.bf16.mxu0 %v2813
    %3503 = vmatpush2.bf16.msra.mxu0 %v2812
    %3504 = vmatprep.subr.bf16.mxu0 %v2803
    %3505 = vmatpush2.bf16.msra.mxu0 %v2802
    %3506 = vmatprep.subr.bf16.mxu0 %v2793
    %3507 = vmatpush2.bf16.msra.mxu0 %v2792
    %3508 = vmatprep.subr.bf16.mxu0 %v2783
    %3509 = vmatpush2.bf16.msra.mxu0 %v2782
    %3510 = vmatprep.subr.bf16.mxu0 %v2773
    %3511 = vmatpush2.bf16.msra.mxu0 %v2772
    %3512 = vmatprep.subr.bf16.mxu0 %v2763
    %3513 = vmatpush2.bf16.msra.mxu0 %v2762
    %3514 = vmatprep.mubr.bf16.mxu0 %v1658
    %3515 = vmatmul.mubr.bf16.gmra.mxu0 %v1657
    %v3516 = vpop.f32.mrf.mxu0
    %v3517 = vadd.f32 %v1939, %v3516
    %v3518 = vpop.f32.mrf.mxu0
    %v3519 = vadd.f32 %v1943, %v3518
    %v3520 = vpop.f32.mrf.mxu0
    %v3521 = vpop.f32.mrf.mxu0
    %3522 = vdwg.mxu0
    %3523 = vmatprep.subr.bf16.mxu0 %v2913
    %3524 = vmatpush1.bf16.msra.mxu0 %v2912
    %3525 = vmatprep.subr.bf16.mxu0 %v2903
    %3526 = vmatpush1.bf16.msra.mxu0 %v2902
    %3527 = vmatprep.subr.bf16.mxu0 %v2893
    %3528 = vmatpush1.bf16.msra.mxu0 %v2892
    %3529 = vmatprep.subr.bf16.mxu0 %v2883
    %3530 = vmatpush1.bf16.msra.mxu0 %v2882
    %3531 = vmatprep.subr.bf16.mxu0 %v2873
    %3532 = vmatpush1.bf16.msra.mxu0 %v2872
    %3533 = vmatprep.subr.bf16.mxu0 %v2863
    %3534 = vmatpush1.bf16.msra.mxu0 %v2862
    %3535 = vmatprep.subr.bf16.mxu0 %v2853
    %3536 = vmatpush1.bf16.msra.mxu0 %v2852
    %3537 = vmatprep.subr.bf16.mxu0 %v2843
    %3538 = vmatpush1.bf16.msra.mxu0 %v2842
    %3539 = vmatprep.subr.bf16.mxu0 0
    %3540 = vmatpush2.bf16.msra.mxu0 0
    %3541 = vmatprep.subr.bf16.mxu0 0
    %3542 = vmatpush2.bf16.msra.mxu0 0
    %3543 = vmatprep.subr.bf16.mxu0 0
    %3544 = vmatpush2.bf16.msra.mxu0 0
    %3545 = vmatprep.subr.bf16.mxu0 0
    %3546 = vmatpush2.bf16.msra.mxu0 0
    %3547 = vmatprep.subr.bf16.mxu0 0
    %3548 = vmatpush2.bf16.msra.mxu0 0
    %3549 = vmatprep.subr.bf16.mxu0 0
    %3550 = vmatpush2.bf16.msra.mxu0 0
    %3551 = vmatprep.subr.bf16.mxu0 0
    %3552 = vmatpush2.bf16.msra.mxu0 0
    %3553 = vmatprep.subr.bf16.mxu0 0
    %3554 = vmatpush2.bf16.msra.mxu0 0
    %3555 = vmatprep.mubr.bf16.mxu0 0
    %3556 = vmatmul.mubr.bf16.gmra.mxu0 %v1659
    %v3557 = vpop.f32.mrf.mxu0
    %v3558 = vadd.f32 %v3517, %v3557
    %v3559 = vpop.f32.mrf.mxu0
    %v3560 = vadd.f32 %v3519, %v3559
    %v3561 = vpop.f32.mrf.mxu0
    %v3562 = vpop.f32.mrf.mxu0
    %3563 = vdwg.mxu0
    %v3564 = vmul.f32 %v3230, 0.5
    %v3565 = vmul.f32 %v3232, 0.5
    %v3566 = vmul.f32 %v3312, 0.5
    %v3567 = vmul.f32 %v3314, 0.5
    %v3568 = vmul.f32 %v3394, 0.5
    %v3569 = vmul.f32 %v3396, 0.5
    %v3570 = vmul.f32 %v3476, 0.5
    %v3571 = vmul.f32 %v3478, 0.5
    %v3572 = vmul.f32 %v3558, 0.5
    %v3573 = vmul.f32 %v3560, 0.5
    %v3574 = vmul.f32 %v3230, 0.70710677
    %v3575 = vmul.f32 %v3232, 0.70710677
    %v3576 = vmul.f32 %v3312, 0.70710677
    %v3577 = vmul.f32 %v3314, 0.70710677
    %v3578 = vmul.f32 %v3394, 0.70710677
    %v3579 = vmul.f32 %v3396, 0.70710677
    %v3580 = vmul.f32 %v3476, 0.70710677
    %v3581 = vmul.f32 %v3478, 0.70710677
    %v3582 = vmul.f32 %v3558, 0.70710677
    %v3583 = vmul.f32 %v3560, 0.70710677
    %v3584 = verf.f32.pop %v3574
    %v3585 = verf.f32.pop %v3575
    %v3586 = verf.f32.pop %v3576
    %v3587 = verf.f32.pop %v3577
    %v3588 = verf.f32.pop %v3578
    %v3589 = verf.f32.pop %v3579
    %v3590 = verf.f32.pop %v3580
    %v3591 = verf.f32.pop %v3581
    %v3592 = verf.f32.pop %v3582
    %v3593 = verf.f32.pop %v3583
    %v3594 = vadd.f32 %v3584, 1.0
    %v3595 = vadd.f32 %v3585, 1.0
    %v3596 = vadd.f32 %v3586, 1.0
    %v3597 = vadd.f32 %v3587, 1.0
    %v3598 = vadd.f32 %v3588, 1.0
    %v3599 = vadd.f32 %v3589, 1.0
    %v3600 = vadd.f32 %v3590, 1.0
    %v3601 = vadd.f32 %v3591, 1.0
    %v3602 = vadd.f32 %v3592, 1.0
    %v3603 = vadd.f32 %v3593, 1.0
    %v3604 = vmul.f32 %v3564, %v3594
    %v3605 = vmul.f32 %v3565, %v3595
    %v3606 = vmul.f32 %v3566, %v3596
    %v3607 = vmul.f32 %v3567, %v3597
    %v3608 = vmul.f32 %v3568, %v3598
    %v3609 = vmul.f32 %v3569, %v3599
    %v3610 = vmul.f32 %v3570, %v3600
    %v3611 = vmul.f32 %v3571, %v3601
    %v3612 = vmul.f32 %v3572, %v3602
    %v3613 = vmul.f32 %v3573, %v3603
    %v3614 = vpack.c.bf16 %v3604, %v3604
    %v3615 = vpack.c.bf16 %v3605, %v3605
    %v3616 = vpack.c.bf16 %v3606, %v3606
    %v3617 = vpack.c.bf16 %v3607, %v3607
    %v3618 = vpack.c.bf16 %v3608, %v3608
    %v3619 = vpack.c.bf16 %v3609, %v3609
    %v3620 = vpack.c.bf16 %v3610, %v3610
    %v3621 = vpack.c.bf16 %v3611, %v3611
    %v3622 = vpack.c.bf16 %v3612, %v3612
    %v3623 = vpack.c.bf16 %v3613, %v3613
    %v3634 = vcombine.low %v3614, %v3615
    %v3635 = vcombine.low %v3616, %v3617
    %v3636 = vcombine.low %v3618, %v3619
    %v3637 = vcombine.low %v3620, %v3621
    %v3639 = vunpack.c.l.s4 1966171168
    %v3640 = vunpack.c.0.s8 %v3639
    %v3641 = vlaneseq
    %v3642 = vshrl.u32 %v3641, 7
    %v3643 = vsub.s32 %v3640, %v3642
    %v3644 = vrot.slane %v3634, %v3643
    %v3646 = vunpack.c.l.s4 1966171168
    %v3647 = vunpack.c.0.s8 %v3646
    %v3648 = vlaneseq
    %v3649 = vshrl.u32 %v3648, 7
    %v3650 = vsub.s32 %v3647, %v3649
    %v3651 = vrot.slane %v3635, %v3650
    %v3653 = vunpack.c.l.s4 1966171168
    %v3654 = vunpack.c.0.s8 %v3653
    %v3655 = vlaneseq
    %v3656 = vshrl.u32 %v3655, 7
    %v3657 = vsub.s32 %v3654, %v3656
    %v3658 = vrot.slane %v3636, %v3657
    %v3660 = vunpack.c.l.s4 1966171168
    %v3661 = vunpack.c.0.s8 %v3660
    %v3662 = vlaneseq
    %v3663 = vshrl.u32 %v3662, 7
    %v3664 = vsub.s32 %v3661, %v3663
    %v3665 = vrot.slane %v3637, %v3664
    %v3666 = vcombine.low %v3644, %v3651
    %v3667 = vcombine.low %v3658, %v3665
    %v3669 = vunpack.c.l.s4 1966171168
    %v3670 = vunpack.c.0.s8 %v3669
    %v3671 = vlaneseq
    %v3672 = vshrl.u32 %v3671, 7
    %v3673 = vsub.s32 %v3670, %v3672
    %v3674 = vrot.slane %v3666, %v3673
    %v3676 = vunpack.c.l.s4 1966171168
    %v3677 = vunpack.c.0.s8 %v3676
    %v3678 = vlaneseq
    %v3679 = vshrl.u32 %v3678, 7
    %v3680 = vsub.s32 %v3677, %v3679
    %v3681 = vrot.slane %v3667, %v3680
    %v3682 = vcombine.low %v3674, %v3681
    %v3683 = vcombine.low %v3622, %v3623
    %v3685 = vunpack.c.l.s4 1966171168
    %v3686 = vunpack.c.0.s8 %v3685
    %v3687 = vlaneseq
    %v3688 = vshrl.u32 %v3687, 7
    %v3689 = vsub.s32 %v3686, %v3688
    %v3690 = vrot.slane %v3683, %v3689
    %v3692 = vunpack.c.l.s4 1966171168
    %v3693 = vunpack.c.0.s8 %v3692
    %v3694 = vlaneseq
    %v3695 = vshrl.u32 %v3694, 7
    %v3696 = vsub.s32 %v3693, %v3695
    %v3697 = vrot.slane %v3690, %v3696
    %3700 = vst [vmem:[#allocation17] sm:$0xff] %v3682
    %3701 = vst [vmem:[#allocation17 + $0x8] sm:$0x3] %v3697
    %s3702 = scalar_lea.vmem [#allocation11], 1920
    %v3703 = vld [vmem:[%s3702] sm:$0xff]
    %v3704 = vld [vmem:[%s3702 + $0x8] sm:$0xff]
    %v3705 = vld [vmem:[%s3702 + $0x10] sm:$0xff]
    %v3706 = vld [vmem:[%s3702 + $0x18] sm:$0xff]
    %v3707 = vld [vmem:[%s3702 + $0x20] sm:$0xff]
    %v3708 = vld [vmem:[%s3702 + $0x28] sm:$0xff]
    %v3709 = vld [vmem:[%s3702 + $0x30] sm:$0xff]
    %v3710 = vld [vmem:[%s3702 + $0x38] sm:$0xff]
    %v3711 = vld [vmem:[%s3702 + $0x40] sm:$0xff]
    %v3712 = vld [vmem:[%s3702 + $0x48] sm:$0xff]
    %v3713 = vld [vmem:[%s3702 + $0x50] sm:$0xff]
    %v3714 = vld [vmem:[%s3702 + $0x58] sm:$0xff]
    %v3715 = vld [vmem:[%s3702 + $0x60] sm:$0xff]
    %v3716 = vld [vmem:[%s3702 + $0x68] sm:$0xff]
    %v3717 = vld [vmem:[%s3702 + $0x70] sm:$0xff]
    %v3718 = vld [vmem:[%s3702 + $0x78] sm:$0xff]
    %v3719 = vld [vmem:[%s3702 + $0x80] sm:$0xff]
    %v3720 = vld [vmem:[%s3702 + $0x88] sm:$0xff]
    %v3721 = vld [vmem:[%s3702 + $0x90] sm:$0xff]
    %v3722 = vld [vmem:[%s3702 + $0x98] sm:$0xff]
    %v3723 = vld [vmem:[%s3702 + $0xa0] sm:$0xff]
    %v3724 = vld [vmem:[%s3702 + $0xa8] sm:$0xff]
    %v3725 = vld [vmem:[%s3702 + $0xb0] sm:$0xff]
    %v3726 = vld [vmem:[%s3702 + $0xb8] sm:$0xff]
    %v3727 = vld [vmem:[%s3702 + $0xc0] sm:$0xff]
    %v3728 = vld [vmem:[%s3702 + $0xc8] sm:$0xff]
    %v3729 = vld [vmem:[%s3702 + $0xd0] sm:$0xff]
    %v3730 = vld [vmem:[%s3702 + $0xd8] sm:$0xff]
    %v3731 = vld [vmem:[%s3702 + $0xe0] sm:$0xff]
    %v3732 = vld [vmem:[%s3702 + $0xe8] sm:$0xff]
    %v3733 = vld [vmem:[%s3702 + $0xf0] sm:$0xff]
    %v3734 = vld [vmem:[%s3702 + $0xf8] sm:$0xff]
    %v3735 = vld [vmem:[%s3702 + $0x100] sm:$0xff]
    %v3736 = vld [vmem:[%s3702 + $0x108] sm:$0xff]
    %v3737 = vld [vmem:[%s3702 + $0x110] sm:$0xff]
    %v3738 = vld [vmem:[%s3702 + $0x118] sm:$0xff]
    %v3739 = vld [vmem:[%s3702 + $0x120] sm:$0xff]
    %v3740 = vld [vmem:[%s3702 + $0x128] sm:$0xff]
    %v3741 = vld [vmem:[%s3702 + $0x130] sm:$0xff]
    %v3742 = vld [vmem:[%s3702 + $0x138] sm:$0xff]
    %v3743 = vld [vmem:[%s3702 + $0x140] sm:$0xff]
    %v3744 = vld [vmem:[%s3702 + $0x148] sm:$0xff]
    %v3745 = vld [vmem:[%s3702 + $0x150] sm:$0xff]
    %v3746 = vld [vmem:[%s3702 + $0x158] sm:$0xff]
    %v3747 = vld [vmem:[%s3702 + $0x160] sm:$0xff]
    %v3748 = vld [vmem:[%s3702 + $0x168] sm:$0xff]
    %v3749 = vld [vmem:[%s3702 + $0x170] sm:$0xff]
    %v3750 = vld [vmem:[%s3702 + $0x178] sm:$0xff]
    %v3751 = vld [vmem:[%s3702 + $0x180] sm:$0xff]
    %v3752 = vld [vmem:[%s3702 + $0x188] sm:$0xff]
    %v3753 = vld [vmem:[%s3702 + $0x190] sm:$0xff]
    %v3754 = vld [vmem:[%s3702 + $0x198] sm:$0xff]
    %v3755 = vld [vmem:[%s3702 + $0x1a0] sm:$0xff]
    %v3756 = vld [vmem:[%s3702 + $0x1a8] sm:$0xff]
    %v3757 = vld [vmem:[%s3702 + $0x1b0] sm:$0xff]
    %v3758 = vld [vmem:[%s3702 + $0x1b8] sm:$0xff]
    %v3759 = vld [vmem:[%s3702 + $0x1c0] sm:$0xff]
    %v3760 = vld [vmem:[%s3702 + $0x1c8] sm:$0xff]
    %v3761 = vld [vmem:[%s3702 + $0x1d0] sm:$0xff]
    %v3762 = vld [vmem:[%s3702 + $0x1d8] sm:$0xff]
    %v3763 = vld [vmem:[%s3702 + $0x1e0] sm:$0xff]
    %v3764 = vld [vmem:[%s3702 + $0x1e8] sm:$0xff]
    %v3765 = vld [vmem:[%s3702 + $0x1f0] sm:$0xff]
    %v3766 = vld [vmem:[%s3702 + $0x1f8] sm:$0xff]
    %v3767 = vld [vmem:[%s3702 + $0x200] sm:$0xff]
    %v3768 = vld [vmem:[%s3702 + $0x208] sm:$0xff]
    %v3769 = vld [vmem:[%s3702 + $0x210] sm:$0xff]
    %v3770 = vld [vmem:[%s3702 + $0x218] sm:$0xff]
    %v3771 = vld [vmem:[%s3702 + $0x220] sm:$0xff]
    %v3772 = vld [vmem:[%s3702 + $0x228] sm:$0xff]
    %v3773 = vld [vmem:[%s3702 + $0x230] sm:$0xff]
    %v3774 = vld [vmem:[%s3702 + $0x238] sm:$0xff]
    %v3775 = vld [vmem:[%s3702 + $0x240] sm:$0xff]
    %v3776 = vld [vmem:[%s3702 + $0x248] sm:$0xff]
    %v3777 = vld [vmem:[%s3702 + $0x250] sm:$0xff]
    %v3778 = vld [vmem:[%s3702 + $0x258] sm:$0xff]
    %v3779 = vld [vmem:[%s3702 + $0x260] sm:$0xff]
    %v3780 = vld [vmem:[%s3702 + $0x268] sm:$0xff]
    %v3781 = vld [vmem:[%s3702 + $0x270] sm:$0xff]
    %v3782 = vld [vmem:[%s3702 + $0x278] sm:$0xff]
    %v3783 = vld [vmem:[%s3702 + $0x280] sm:$0xff]
    %v3784 = vld [vmem:[%s3702 + $0x288] sm:$0xff]
    %v3785 = vld [vmem:[%s3702 + $0x290] sm:$0xff]
    %v3786 = vld [vmem:[%s3702 + $0x298] sm:$0xff]
    %v3787 = vld [vmem:[%s3702 + $0x2a0] sm:$0xff]
    %v3788 = vld [vmem:[%s3702 + $0x2a8] sm:$0xff]
    %v3789 = vld [vmem:[%s3702 + $0x2b0] sm:$0xff]
    %v3790 = vld [vmem:[%s3702 + $0x2b8] sm:$0xff]
    %v3791 = vld [vmem:[%s3702 + $0x2c0] sm:$0xff]
    %v3792 = vld [vmem:[%s3702 + $0x2c8] sm:$0xff]
    %v3793 = vld [vmem:[%s3702 + $0x2d0] sm:$0xff]
    %v3794 = vld [vmem:[%s3702 + $0x2d8] sm:$0xff]
    %v3795 = vld [vmem:[%s3702 + $0x2e0] sm:$0xff]
    %v3796 = vld [vmem:[%s3702 + $0x2e8] sm:$0xff]
    %v3797 = vld [vmem:[%s3702 + $0x2f0] sm:$0xff]
    %v3798 = vld [vmem:[%s3702 + $0x2f8] sm:$0xff]
    %v3799 = vld [vmem:[%s3702 + $0x300] sm:$0xff]
    %v3800 = vld [vmem:[%s3702 + $0x308] sm:$0xff]
    %v3801 = vld [vmem:[%s3702 + $0x310] sm:$0xff]
    %v3802 = vld [vmem:[%s3702 + $0x318] sm:$0xff]
    %v3803 = vld [vmem:[%s3702 + $0x320] sm:$0xff]
    %v3804 = vld [vmem:[%s3702 + $0x328] sm:$0xff]
    %v3805 = vld [vmem:[%s3702 + $0x330] sm:$0xff]
    %v3806 = vld [vmem:[%s3702 + $0x338] sm:$0xff]
    %v3807 = vld [vmem:[%s3702 + $0x340] sm:$0xff]
    %v3808 = vld [vmem:[%s3702 + $0x348] sm:$0xff]
    %v3809 = vld [vmem:[%s3702 + $0x350] sm:$0xff]
    %v3810 = vld [vmem:[%s3702 + $0x358] sm:$0xff]
    %v3811 = vld [vmem:[%s3702 + $0x360] sm:$0xff]
    %v3812 = vld [vmem:[%s3702 + $0x368] sm:$0xff]
    %v3813 = vld [vmem:[%s3702 + $0x370] sm:$0xff]
    %v3814 = vld [vmem:[%s3702 + $0x378] sm:$0xff]
    %v3815 = vld [vmem:[%s3702 + $0x380] sm:$0xff]
    %v3816 = vld [vmem:[%s3702 + $0x388] sm:$0xff]
    %v3817 = vld [vmem:[%s3702 + $0x390] sm:$0xff]
    %v3818 = vld [vmem:[%s3702 + $0x398] sm:$0xff]
    %v3819 = vld [vmem:[%s3702 + $0x3a0] sm:$0xff]
    %v3820 = vld [vmem:[%s3702 + $0x3a8] sm:$0xff]
    %v3821 = vld [vmem:[%s3702 + $0x3b0] sm:$0xff]
    %v3822 = vld [vmem:[%s3702 + $0x3b8] sm:$0xff]
    %v3823 = vld [vmem:[%s3702 + $0x3c0] sm:$0xff]
    %v3824 = vld [vmem:[%s3702 + $0x3c8] sm:$0xff]
    %v3825 = vld [vmem:[%s3702 + $0x3d0] sm:$0xff]
    %v3826 = vld [vmem:[%s3702 + $0x3d8] sm:$0xff]
    %v3827 = vld [vmem:[%s3702 + $0x3e0] sm:$0xff]
    %v3828 = vld [vmem:[%s3702 + $0x3e8] sm:$0xff]
    %v3829 = vld [vmem:[%s3702 + $0x3f0] sm:$0xff]
    %v3830 = vld [vmem:[%s3702 + $0x3f8] sm:$0xff]
    %v3831 = vld [vmem:[%s3702 + $0x400] sm:$0xff]
    %v3832 = vld [vmem:[%s3702 + $0x408] sm:$0xff]
    %v3833 = vld [vmem:[%s3702 + $0x410] sm:$0xff]
    %v3834 = vld [vmem:[%s3702 + $0x418] sm:$0xff]
    %v3835 = vld [vmem:[%s3702 + $0x420] sm:$0xff]
    %v3836 = vld [vmem:[%s3702 + $0x428] sm:$0xff]
    %v3837 = vld [vmem:[%s3702 + $0x430] sm:$0xff]
    %v3838 = vld [vmem:[%s3702 + $0x438] sm:$0xff]
    %v3839 = vld [vmem:[%s3702 + $0x440] sm:$0xff]
    %v3840 = vld [vmem:[%s3702 + $0x448] sm:$0xff]
    %v3841 = vld [vmem:[%s3702 + $0x450] sm:$0xff]
    %v3842 = vld [vmem:[%s3702 + $0x458] sm:$0xff]
    %v3843 = vld [vmem:[%s3702 + $0x460] sm:$0xff]
    %v3844 = vld [vmem:[%s3702 + $0x468] sm:$0xff]
    %v3845 = vld [vmem:[%s3702 + $0x470] sm:$0xff]
    %v3846 = vld [vmem:[%s3702 + $0x478] sm:$0xff]
    %v3847 = vld [vmem:[%s3702 + $0x480] sm:$0xff]
    %v3848 = vld [vmem:[%s3702 + $0x488] sm:$0xff]
    %v3849 = vld [vmem:[%s3702 + $0x490] sm:$0xff]
    %v3850 = vld [vmem:[%s3702 + $0x498] sm:$0xff]
    %v3851 = vld [vmem:[%s3702 + $0x4a0] sm:$0xff]
    %v3852 = vld [vmem:[%s3702 + $0x4a8] sm:$0xff]
    %v3853 = vld [vmem:[%s3702 + $0x4b0] sm:$0xff]
    %v3854 = vld [vmem:[%s3702 + $0x4b8] sm:$0xff]
    %v3855 = vld [vmem:[%s3702 + $0x4c0] sm:$0xff]
    %v3856 = vld [vmem:[%s3702 + $0x4c8] sm:$0xff]
    %v3857 = vld [vmem:[%s3702 + $0x4d0] sm:$0xff]
    %v3858 = vld [vmem:[%s3702 + $0x4d8] sm:$0xff]
    %v3859 = vld [vmem:[%s3702 + $0x4e0] sm:$0xff]
    %v3860 = vld [vmem:[%s3702 + $0x4e8] sm:$0xff]
    %v3861 = vld [vmem:[%s3702 + $0x4f0] sm:$0xff]
    %v3862 = vld [vmem:[%s3702 + $0x4f8] sm:$0xff]
    %v3863 = vld [vmem:[%s3702 + $0x500] sm:$0xff]
    %v3864 = vld [vmem:[%s3702 + $0x508] sm:$0xff]
    %v3865 = vld [vmem:[%s3702 + $0x510] sm:$0xff]
    %v3866 = vld [vmem:[%s3702 + $0x518] sm:$0xff]
    %v3867 = vld [vmem:[%s3702 + $0x520] sm:$0xff]
    %v3868 = vld [vmem:[%s3702 + $0x528] sm:$0xff]
    %v3869 = vld [vmem:[%s3702 + $0x530] sm:$0xff]
    %v3870 = vld [vmem:[%s3702 + $0x538] sm:$0xff]
    %v3871 = vld [vmem:[%s3702 + $0x540] sm:$0xff]
    %v3872 = vld [vmem:[%s3702 + $0x548] sm:$0xff]
    %v3873 = vld [vmem:[%s3702 + $0x550] sm:$0xff]
    %v3874 = vld [vmem:[%s3702 + $0x558] sm:$0xff]
    %v3875 = vld [vmem:[%s3702 + $0x560] sm:$0xff]
    %v3876 = vld [vmem:[%s3702 + $0x568] sm:$0xff]
    %v3877 = vld [vmem:[%s3702 + $0x570] sm:$0xff]
    %v3878 = vld [vmem:[%s3702 + $0x578] sm:$0xff]
    %v3879 = vld [vmem:[%s3702 + $0x580] sm:$0xff]
    %v3880 = vld [vmem:[%s3702 + $0x588] sm:$0xff]
    %v3881 = vld [vmem:[%s3702 + $0x590] sm:$0xff]
    %v3882 = vld [vmem:[%s3702 + $0x598] sm:$0xff]
    %v3883 = vld [vmem:[%s3702 + $0x5a0] sm:$0xff]
    %v3884 = vld [vmem:[%s3702 + $0x5a8] sm:$0xff]
    %v3885 = vld [vmem:[%s3702 + $0x5b0] sm:$0xff]
    %v3886 = vld [vmem:[%s3702 + $0x5b8] sm:$0xff]
    %v3887 = vld [vmem:[%s3702 + $0x5c0] sm:$0xff]
    %v3888 = vld [vmem:[%s3702 + $0x5c8] sm:$0xff]
    %v3889 = vld [vmem:[%s3702 + $0x5d0] sm:$0xff]
    %v3890 = vld [vmem:[%s3702 + $0x5d8] sm:$0xff]
    %v3891 = vld [vmem:[%s3702 + $0x5e0] sm:$0xff]
    %v3892 = vld [vmem:[%s3702 + $0x5e8] sm:$0xff]
    %v3893 = vld [vmem:[%s3702 + $0x5f0] sm:$0xff]
    %v3894 = vld [vmem:[%s3702 + $0x5f8] sm:$0xff]
    %v3895 = vld [vmem:[%s3702 + $0x600] sm:$0xff]
    %v3896 = vld [vmem:[%s3702 + $0x608] sm:$0xff]
    %v3897 = vld [vmem:[%s3702 + $0x610] sm:$0xff]
    %v3898 = vld [vmem:[%s3702 + $0x618] sm:$0xff]
    %v3899 = vld [vmem:[%s3702 + $0x620] sm:$0xff]
    %v3900 = vld [vmem:[%s3702 + $0x628] sm:$0xff]
    %v3901 = vld [vmem:[%s3702 + $0x630] sm:$0xff]
    %v3902 = vld [vmem:[%s3702 + $0x638] sm:$0xff]
    %v3903 = vld [vmem:[%s3702 + $0x640] sm:$0xff]
    %v3904 = vld [vmem:[%s3702 + $0x648] sm:$0xff]
    %v3905 = vld [vmem:[%s3702 + $0x650] sm:$0xff]
    %v3906 = vld [vmem:[%s3702 + $0x658] sm:$0xff]
    %v3907 = vld [vmem:[%s3702 + $0x660] sm:$0xff]
    %v3908 = vld [vmem:[%s3702 + $0x668] sm:$0xff]
    %v3909 = vld [vmem:[%s3702 + $0x670] sm:$0xff]
    %v3910 = vld [vmem:[%s3702 + $0x678] sm:$0xff]
    %v3911 = vld [vmem:[%s3702 + $0x680] sm:$0xff]
    %v3912 = vld [vmem:[%s3702 + $0x688] sm:$0xff]
    %v3913 = vld [vmem:[%s3702 + $0x690] sm:$0xff]
    %v3914 = vld [vmem:[%s3702 + $0x698] sm:$0xff]
    %v3915 = vld [vmem:[%s3702 + $0x6a0] sm:$0xff]
    %v3916 = vld [vmem:[%s3702 + $0x6a8] sm:$0xff]
    %v3917 = vld [vmem:[%s3702 + $0x6b0] sm:$0xff]
    %v3918 = vld [vmem:[%s3702 + $0x6b8] sm:$0xff]
    %v3919 = vld [vmem:[%s3702 + $0x6c0] sm:$0xff]
    %v3920 = vld [vmem:[%s3702 + $0x6c8] sm:$0xff]
    %v3921 = vld [vmem:[%s3702 + $0x6d0] sm:$0xff]
    %v3922 = vld [vmem:[%s3702 + $0x6d8] sm:$0xff]
    %v3923 = vld [vmem:[%s3702 + $0x6e0] sm:$0xff]
    %v3924 = vld [vmem:[%s3702 + $0x6e8] sm:$0xff]
    %v3925 = vld [vmem:[%s3702 + $0x6f0] sm:$0xff]
    %v3926 = vld [vmem:[%s3702 + $0x6f8] sm:$0xff]
    %v3927 = vld [vmem:[%s3702 + $0x700] sm:$0xff]
    %v3928 = vld [vmem:[%s3702 + $0x708] sm:$0xff]
    %v3929 = vld [vmem:[%s3702 + $0x710] sm:$0xff]
    %v3930 = vld [vmem:[%s3702 + $0x718] sm:$0xff]
    %v3931 = vld [vmem:[%s3702 + $0x720] sm:$0xff]
    %v3932 = vld [vmem:[%s3702 + $0x728] sm:$0xff]
    %v3933 = vld [vmem:[%s3702 + $0x730] sm:$0xff]
    %v3934 = vld [vmem:[%s3702 + $0x738] sm:$0xff]
    %v3935 = vld [vmem:[%s3702 + $0x740] sm:$0xff]
    %v3936 = vld [vmem:[%s3702 + $0x748] sm:$0xff]
    %v3937 = vld [vmem:[%s3702 + $0x750] sm:$0xff]
    %v3938 = vld [vmem:[%s3702 + $0x758] sm:$0xff]
    %v3939 = vld [vmem:[%s3702 + $0x760] sm:$0xff]
    %v3940 = vld [vmem:[%s3702 + $0x768] sm:$0xff]
    %v3941 = vld [vmem:[%s3702 + $0x770] sm:$0xff]
    %v3942 = vld [vmem:[%s3702 + $0x778] sm:$0xff]
    %s3943 = scalar_lea.vmem [#allocation13], 10
    %v3944 = vld [vmem:[%s3943] sm:$0xff]
    %v3945 = vld [vmem:[%s3943 + $0x8] sm:$0x3]
    %v3948 = vlaneseq
    %v3949 = vshrl.u32 %v3948, 7
    %v3950 = vsub.s32 0, %v3949
    %v3951 = vrot.slane %v3944, %v3950
    %v3952 = vlaneseq
    %v3953 = vshrl.u32 %v3952, 7
    %v3954 = vsub.s32 1, %v3953
    %v3955 = vrot.slane %v3944, %v3954
    %v3956 = vlaneseq
    %v3957 = vshrl.u32 %v3956, 7
    %v3958 = vsub.s32 2, %v3957
    %v3959 = vrot.slane %v3944, %v3958
    %v3960 = vlaneseq
    %v3961 = vshrl.u32 %v3960, 7
    %v3962 = vsub.s32 3, %v3961
    %v3963 = vrot.slane %v3944, %v3962
    %v3964 = vlaneseq
    %v3965 = vshrl.u32 %v3964, 7
    %v3966 = vsub.s32 4, %v3965
    %v3967 = vrot.slane %v3944, %v3966
    %v3968 = vlaneseq
    %v3969 = vshrl.u32 %v3968, 7
    %v3970 = vsub.s32 5, %v3969
    %v3971 = vrot.slane %v3944, %v3970
    %v3972 = vlaneseq
    %v3973 = vshrl.u32 %v3972, 7
    %v3974 = vsub.s32 6, %v3973
    %v3975 = vrot.slane %v3944, %v3974
    %v3976 = vlaneseq
    %v3977 = vshrl.u32 %v3976, 7
    %v3978 = vsub.s32 7, %v3977
    %v3979 = vrot.slane %v3944, %v3978
    %v3980 = vlaneseq
    %v3981 = vshrl.u32 %v3980, 7
    %v3982 = vsub.s32 0, %v3981
    %v3983 = vrot.slane %v3945, %v3982
    %v3984 = vlaneseq
    %v3985 = vshrl.u32 %v3984, 7
    %v3986 = vsub.s32 1, %v3985
    %v3987 = vrot.slane %v3945, %v3986
    %v4238 = vunpack.c.l.b16 %v3703
    %v4239 = vunpack.c.h.b16 %v3703
    %v4240 = vunpack.c.l.b16 %v3704
    %v4241 = vunpack.c.h.b16 %v3704
    %v4242 = vunpack.c.l.b16 %v3705
    %v4243 = vunpack.c.h.b16 %v3705
    %v4244 = vunpack.c.l.b16 %v3706
    %v4245 = vunpack.c.h.b16 %v3706
    %v4246 = vunpack.c.l.b16 %v3707
    %v4247 = vunpack.c.h.b16 %v3707
    %v4248 = vunpack.c.l.b16 %v3708
    %v4249 = vunpack.c.h.b16 %v3708
    %v4250 = vunpack.c.l.b16 %v3709
    %v4251 = vunpack.c.h.b16 %v3709
    %v4252 = vunpack.c.l.b16 %v3710
    %v4253 = vunpack.c.h.b16 %v3710
    %v4254 = vunpack.c.l.b16 %v3711
    %v4255 = vunpack.c.h.b16 %v3711
    %v4256 = vunpack.c.l.b16 %v3712
    %v4257 = vunpack.c.h.b16 %v3712
    %v4258 = vunpack.c.l.b16 %v3713
    %v4259 = vunpack.c.h.b16 %v3713
    %v4260 = vunpack.c.l.b16 %v3714
    %v4261 = vunpack.c.h.b16 %v3714
    %v4262 = vunpack.c.l.b16 %v3715
    %v4263 = vunpack.c.h.b16 %v3715
    %v4264 = vunpack.c.l.b16 %v3716
    %v4265 = vunpack.c.h.b16 %v3716
    %v4266 = vunpack.c.l.b16 %v3717
    %v4267 = vunpack.c.h.b16 %v3717
    %v4268 = vunpack.c.l.b16 %v3718
    %v4269 = vunpack.c.h.b16 %v3718
    %v4270 = vunpack.c.l.b16 %v3719
    %v4271 = vunpack.c.h.b16 %v3719
    %v4272 = vunpack.c.l.b16 %v3720
    %v4273 = vunpack.c.h.b16 %v3720
    %v4274 = vunpack.c.l.b16 %v3721
    %v4275 = vunpack.c.h.b16 %v3721
    %v4276 = vunpack.c.l.b16 %v3722
    %v4277 = vunpack.c.h.b16 %v3722
    %v4278 = vunpack.c.l.b16 %v3723
    %v4279 = vunpack.c.h.b16 %v3723
    %v4280 = vunpack.c.l.b16 %v3724
    %v4281 = vunpack.c.h.b16 %v3724
    %v4282 = vunpack.c.l.b16 %v3725
    %v4283 = vunpack.c.h.b16 %v3725
    %v4284 = vunpack.c.l.b16 %v3726
    %v4285 = vunpack.c.h.b16 %v3726
    %v4286 = vunpack.c.l.b16 %v3727
    %v4287 = vunpack.c.h.b16 %v3727
    %v4288 = vunpack.c.l.b16 %v3728
    %v4289 = vunpack.c.h.b16 %v3728
    %v4290 = vunpack.c.l.b16 %v3729
    %v4291 = vunpack.c.h.b16 %v3729
    %v4292 = vunpack.c.l.b16 %v3730
    %v4293 = vunpack.c.h.b16 %v3730
    %v4294 = vunpack.c.l.b16 %v3731
    %v4295 = vunpack.c.h.b16 %v3731
    %v4296 = vunpack.c.l.b16 %v3732
    %v4297 = vunpack.c.h.b16 %v3732
    %v4298 = vunpack.c.l.b16 %v3733
    %v4299 = vunpack.c.h.b16 %v3733
    %v4300 = vunpack.c.l.b16 %v3734
    %v4301 = vunpack.c.h.b16 %v3734
    %v4302 = vunpack.c.l.b16 %v3735
    %v4303 = vunpack.c.h.b16 %v3735
    %v4304 = vunpack.c.l.b16 %v3736
    %v4305 = vunpack.c.h.b16 %v3736
    %v4306 = vunpack.c.l.b16 %v3737
    %v4307 = vunpack.c.h.b16 %v3737
    %v4308 = vunpack.c.l.b16 %v3738
    %v4309 = vunpack.c.h.b16 %v3738
    %v4310 = vunpack.c.l.b16 %v3739
    %v4311 = vunpack.c.h.b16 %v3739
    %v4312 = vunpack.c.l.b16 %v3740
    %v4313 = vunpack.c.h.b16 %v3740
    %v4314 = vunpack.c.l.b16 %v3741
    %v4315 = vunpack.c.h.b16 %v3741
    %v4316 = vunpack.c.l.b16 %v3742
    %v4317 = vunpack.c.h.b16 %v3742
    %v4318 = vunpack.c.l.b16 %v3743
    %v4319 = vunpack.c.h.b16 %v3743
    %v4320 = vunpack.c.l.b16 %v3744
    %v4321 = vunpack.c.h.b16 %v3744
    %v4322 = vunpack.c.l.b16 %v3745
    %v4323 = vunpack.c.h.b16 %v3745
    %v4324 = vunpack.c.l.b16 %v3746
    %v4325 = vunpack.c.h.b16 %v3746
    %v4326 = vunpack.c.l.b16 %v3747
    %v4327 = vunpack.c.h.b16 %v3747
    %v4328 = vunpack.c.l.b16 %v3748
    %v4329 = vunpack.c.h.b16 %v3748
    %v4330 = vunpack.c.l.b16 %v3749
    %v4331 = vunpack.c.h.b16 %v3749
    %v4332 = vunpack.c.l.b16 %v3750
    %v4333 = vunpack.c.h.b16 %v3750
    %v4334 = vunpack.c.l.b16 %v3751
    %v4335 = vunpack.c.h.b16 %v3751
    %v4336 = vunpack.c.l.b16 %v3752
    %v4337 = vunpack.c.h.b16 %v3752
    %v4338 = vunpack.c.l.b16 %v3753
    %v4339 = vunpack.c.h.b16 %v3753
    %v4340 = vunpack.c.l.b16 %v3754
    %v4341 = vunpack.c.h.b16 %v3754
    %v4342 = vunpack.c.l.b16 %v3755
    %v4343 = vunpack.c.h.b16 %v3755
    %v4344 = vunpack.c.l.b16 %v3756
    %v4345 = vunpack.c.h.b16 %v3756
    %v4346 = vunpack.c.l.b16 %v3757
    %v4347 = vunpack.c.h.b16 %v3757
    %v4348 = vunpack.c.l.b16 %v3758
    %v4349 = vunpack.c.h.b16 %v3758
    %v4350 = vunpack.c.l.b16 %v3759
    %v4351 = vunpack.c.h.b16 %v3759
    %v4352 = vunpack.c.l.b16 %v3760
    %v4353 = vunpack.c.h.b16 %v3760
    %v4354 = vunpack.c.l.b16 %v3761
    %v4355 = vunpack.c.h.b16 %v3761
    %v4356 = vunpack.c.l.b16 %v3762
    %v4357 = vunpack.c.h.b16 %v3762
    %v4358 = vunpack.c.l.b16 %v3763
    %v4359 = vunpack.c.h.b16 %v3763
    %v4360 = vunpack.c.l.b16 %v3764
    %v4361 = vunpack.c.h.b16 %v3764
    %v4362 = vunpack.c.l.b16 %v3765
    %v4363 = vunpack.c.h.b16 %v3765
    %v4364 = vunpack.c.l.b16 %v3766
    %v4365 = vunpack.c.h.b16 %v3766
    %v4366 = vunpack.c.l.b16 %v3767
    %v4367 = vunpack.c.h.b16 %v3767
    %v4368 = vunpack.c.l.b16 %v3768
    %v4369 = vunpack.c.h.b16 %v3768
    %v4370 = vunpack.c.l.b16 %v3769
    %v4371 = vunpack.c.h.b16 %v3769
    %v4372 = vunpack.c.l.b16 %v3770
    %v4373 = vunpack.c.h.b16 %v3770
    %v4374 = vunpack.c.l.b16 %v3771
    %v4375 = vunpack.c.h.b16 %v3771
    %v4376 = vunpack.c.l.b16 %v3772
    %v4377 = vunpack.c.h.b16 %v3772
    %v4378 = vunpack.c.l.b16 %v3773
    %v4379 = vunpack.c.h.b16 %v3773
    %v4380 = vunpack.c.l.b16 %v3774
    %v4381 = vunpack.c.h.b16 %v3774
    %v4382 = vunpack.c.l.b16 %v3775
    %v4383 = vunpack.c.h.b16 %v3775
    %v4384 = vunpack.c.l.b16 %v3776
    %v4385 = vunpack.c.h.b16 %v3776
    %v4386 = vunpack.c.l.b16 %v3777
    %v4387 = vunpack.c.h.b16 %v3777
    %v4388 = vunpack.c.l.b16 %v3778
    %v4389 = vunpack.c.h.b16 %v3778
    %v4390 = vunpack.c.l.b16 %v3779
    %v4391 = vunpack.c.h.b16 %v3779
    %v4392 = vunpack.c.l.b16 %v3780
    %v4393 = vunpack.c.h.b16 %v3780
    %v4394 = vunpack.c.l.b16 %v3781
    %v4395 = vunpack.c.h.b16 %v3781
    %v4396 = vunpack.c.l.b16 %v3782
    %v4397 = vunpack.c.h.b16 %v3782
    %v4398 = vunpack.c.l.b16 %v3783
    %v4399 = vunpack.c.h.b16 %v3783
    %v4400 = vunpack.c.l.b16 %v3784
    %v4401 = vunpack.c.h.b16 %v3784
    %v4402 = vunpack.c.l.b16 %v3785
    %v4403 = vunpack.c.h.b16 %v3785
    %v4404 = vunpack.c.l.b16 %v3786
    %v4405 = vunpack.c.h.b16 %v3786
    %v4406 = vunpack.c.l.b16 %v3787
    %v4407 = vunpack.c.h.b16 %v3787
    %v4408 = vunpack.c.l.b16 %v3788
    %v4409 = vunpack.c.h.b16 %v3788
    %v4410 = vunpack.c.l.b16 %v3789
    %v4411 = vunpack.c.h.b16 %v3789
    %v4412 = vunpack.c.l.b16 %v3790
    %v4413 = vunpack.c.h.b16 %v3790
    %v4414 = vunpack.c.l.b16 %v3791
    %v4415 = vunpack.c.h.b16 %v3791
    %v4416 = vunpack.c.l.b16 %v3792
    %v4417 = vunpack.c.h.b16 %v3792
    %v4418 = vunpack.c.l.b16 %v3793
    %v4419 = vunpack.c.h.b16 %v3793
    %v4420 = vunpack.c.l.b16 %v3794
    %v4421 = vunpack.c.h.b16 %v3794
    %v4422 = vunpack.c.l.b16 %v3795
    %v4423 = vunpack.c.h.b16 %v3795
    %v4424 = vunpack.c.l.b16 %v3796
    %v4425 = vunpack.c.h.b16 %v3796
    %v4426 = vunpack.c.l.b16 %v3797
    %v4427 = vunpack.c.h.b16 %v3797
    %v4428 = vunpack.c.l.b16 %v3798
    %v4429 = vunpack.c.h.b16 %v3798
    %v4430 = vunpack.c.l.b16 %v3799
    %v4431 = vunpack.c.h.b16 %v3799
    %v4432 = vunpack.c.l.b16 %v3800
    %v4433 = vunpack.c.h.b16 %v3800
    %v4434 = vunpack.c.l.b16 %v3801
    %v4435 = vunpack.c.h.b16 %v3801
    %v4436 = vunpack.c.l.b16 %v3802
    %v4437 = vunpack.c.h.b16 %v3802
    %v4438 = vunpack.c.l.b16 %v3803
    %v4439 = vunpack.c.h.b16 %v3803
    %v4440 = vunpack.c.l.b16 %v3804
    %v4441 = vunpack.c.h.b16 %v3804
    %v4442 = vunpack.c.l.b16 %v3805
    %v4443 = vunpack.c.h.b16 %v3805
    %v4444 = vunpack.c.l.b16 %v3806
    %v4445 = vunpack.c.h.b16 %v3806
    %v4446 = vunpack.c.l.b16 %v3807
    %v4447 = vunpack.c.h.b16 %v3807
    %v4448 = vunpack.c.l.b16 %v3808
    %v4449 = vunpack.c.h.b16 %v3808
    %v4450 = vunpack.c.l.b16 %v3809
    %v4451 = vunpack.c.h.b16 %v3809
    %v4452 = vunpack.c.l.b16 %v3810
    %v4453 = vunpack.c.h.b16 %v3810
    %v4454 = vunpack.c.l.b16 %v3811
    %v4455 = vunpack.c.h.b16 %v3811
    %v4456 = vunpack.c.l.b16 %v3812
    %v4457 = vunpack.c.h.b16 %v3812
    %v4458 = vunpack.c.l.b16 %v3813
    %v4459 = vunpack.c.h.b16 %v3813
    %v4460 = vunpack.c.l.b16 %v3814
    %v4461 = vunpack.c.h.b16 %v3814
    %v4462 = vunpack.c.l.b16 %v3815
    %v4463 = vunpack.c.h.b16 %v3815
    %v4464 = vunpack.c.l.b16 %v3816
    %v4465 = vunpack.c.h.b16 %v3816
    %v4466 = vunpack.c.l.b16 %v3817
    %v4467 = vunpack.c.h.b16 %v3817
    %v4468 = vunpack.c.l.b16 %v3818
    %v4469 = vunpack.c.h.b16 %v3818
    %v4470 = vunpack.c.l.b16 %v3819
    %v4471 = vunpack.c.h.b16 %v3819
    %v4472 = vunpack.c.l.b16 %v3820
    %v4473 = vunpack.c.h.b16 %v3820
    %v4474 = vunpack.c.l.b16 %v3821
    %v4475 = vunpack.c.h.b16 %v3821
    %v4476 = vunpack.c.l.b16 %v3822
    %v4477 = vunpack.c.h.b16 %v3822
    %v4478 = vunpack.c.l.b16 %v3823
    %v4479 = vunpack.c.h.b16 %v3823
    %v4480 = vunpack.c.l.b16 %v3824
    %v4481 = vunpack.c.h.b16 %v3824
    %v4482 = vunpack.c.l.b16 %v3825
    %v4483 = vunpack.c.h.b16 %v3825
    %v4484 = vunpack.c.l.b16 %v3826
    %v4485 = vunpack.c.h.b16 %v3826
    %v4486 = vunpack.c.l.b16 %v3827
    %v4487 = vunpack.c.h.b16 %v3827
    %v4488 = vunpack.c.l.b16 %v3828
    %v4489 = vunpack.c.h.b16 %v3828
    %v4490 = vunpack.c.l.b16 %v3829
    %v4491 = vunpack.c.h.b16 %v3829
    %v4492 = vunpack.c.l.b16 %v3830
    %v4493 = vunpack.c.h.b16 %v3830
    %v4494 = vunpack.c.l.b16 %v3831
    %v4495 = vunpack.c.h.b16 %v3831
    %v4496 = vunpack.c.l.b16 %v3832
    %v4497 = vunpack.c.h.b16 %v3832
    %v4498 = vunpack.c.l.b16 %v3833
    %v4499 = vunpack.c.h.b16 %v3833
    %v4500 = vunpack.c.l.b16 %v3834
    %v4501 = vunpack.c.h.b16 %v3834
    %v4502 = vunpack.c.l.b16 %v3835
    %v4503 = vunpack.c.h.b16 %v3835
    %v4504 = vunpack.c.l.b16 %v3836
    %v4505 = vunpack.c.h.b16 %v3836
    %v4506 = vunpack.c.l.b16 %v3837
    %v4507 = vunpack.c.h.b16 %v3837
    %v4508 = vunpack.c.l.b16 %v3838
    %v4509 = vunpack.c.h.b16 %v3838
    %v4510 = vunpack.c.l.b16 %v3839
    %v4511 = vunpack.c.h.b16 %v3839
    %v4512 = vunpack.c.l.b16 %v3840
    %v4513 = vunpack.c.h.b16 %v3840
    %v4514 = vunpack.c.l.b16 %v3841
    %v4515 = vunpack.c.h.b16 %v3841
    %v4516 = vunpack.c.l.b16 %v3842
    %v4517 = vunpack.c.h.b16 %v3842
    %v4518 = vunpack.c.l.b16 %v3843
    %v4519 = vunpack.c.h.b16 %v3843
    %v4520 = vunpack.c.l.b16 %v3844
    %v4521 = vunpack.c.h.b16 %v3844
    %v4522 = vunpack.c.l.b16 %v3845
    %v4523 = vunpack.c.h.b16 %v3845
    %v4524 = vunpack.c.l.b16 %v3846
    %v4525 = vunpack.c.h.b16 %v3846
    %v4526 = vunpack.c.l.b16 %v3847
    %v4527 = vunpack.c.h.b16 %v3847
    %v4528 = vunpack.c.l.b16 %v3848
    %v4529 = vunpack.c.h.b16 %v3848
    %v4530 = vunpack.c.l.b16 %v3849
    %v4531 = vunpack.c.h.b16 %v3849
    %v4532 = vunpack.c.l.b16 %v3850
    %v4533 = vunpack.c.h.b16 %v3850
    %v4534 = vunpack.c.l.b16 %v3851
    %v4535 = vunpack.c.h.b16 %v3851
    %v4536 = vunpack.c.l.b16 %v3852
    %v4537 = vunpack.c.h.b16 %v3852
    %v4538 = vunpack.c.l.b16 %v3853
    %v4539 = vunpack.c.h.b16 %v3853
    %v4540 = vunpack.c.l.b16 %v3854
    %v4541 = vunpack.c.h.b16 %v3854
    %v4542 = vunpack.c.l.b16 %v3855
    %v4543 = vunpack.c.h.b16 %v3855
    %v4544 = vunpack.c.l.b16 %v3856
    %v4545 = vunpack.c.h.b16 %v3856
    %v4546 = vunpack.c.l.b16 %v3857
    %v4547 = vunpack.c.h.b16 %v3857
    %v4548 = vunpack.c.l.b16 %v3858
    %v4549 = vunpack.c.h.b16 %v3858
    %v4550 = vunpack.c.l.b16 %v3859
    %v4551 = vunpack.c.h.b16 %v3859
    %v4552 = vunpack.c.l.b16 %v3860
    %v4553 = vunpack.c.h.b16 %v3860
    %v4554 = vunpack.c.l.b16 %v3861
    %v4555 = vunpack.c.h.b16 %v3861
    %v4556 = vunpack.c.l.b16 %v3862
    %v4557 = vunpack.c.h.b16 %v3862
    %v4558 = vunpack.c.l.b16 %v3863
    %v4559 = vunpack.c.h.b16 %v3863
    %v4560 = vunpack.c.l.b16 %v3864
    %v4561 = vunpack.c.h.b16 %v3864
    %v4562 = vunpack.c.l.b16 %v3865
    %v4563 = vunpack.c.h.b16 %v3865
    %v4564 = vunpack.c.l.b16 %v3866
    %v4565 = vunpack.c.h.b16 %v3866
    %v4566 = vunpack.c.l.b16 %v3867
    %v4567 = vunpack.c.h.b16 %v3867
    %v4568 = vunpack.c.l.b16 %v3868
    %v4569 = vunpack.c.h.b16 %v3868
    %v4570 = vunpack.c.l.b16 %v3869
    %v4571 = vunpack.c.h.b16 %v3869
    %v4572 = vunpack.c.l.b16 %v3870
    %v4573 = vunpack.c.h.b16 %v3870
    %v4574 = vunpack.c.l.b16 %v3871
    %v4575 = vunpack.c.h.b16 %v3871
    %v4576 = vunpack.c.l.b16 %v3872
    %v4577 = vunpack.c.h.b16 %v3872
    %v4578 = vunpack.c.l.b16 %v3873
    %v4579 = vunpack.c.h.b16 %v3873
    %v4580 = vunpack.c.l.b16 %v3874
    %v4581 = vunpack.c.h.b16 %v3874
    %v4582 = vunpack.c.l.b16 %v3875
    %v4583 = vunpack.c.h.b16 %v3875
    %v4584 = vunpack.c.l.b16 %v3876
    %v4585 = vunpack.c.h.b16 %v3876
    %v4586 = vunpack.c.l.b16 %v3877
    %v4587 = vunpack.c.h.b16 %v3877
    %v4588 = vunpack.c.l.b16 %v3878
    %v4589 = vunpack.c.h.b16 %v3878
    %v4590 = vunpack.c.l.b16 %v3879
    %v4591 = vunpack.c.h.b16 %v3879
    %v4592 = vunpack.c.l.b16 %v3880
    %v4593 = vunpack.c.h.b16 %v3880
    %v4594 = vunpack.c.l.b16 %v3881
    %v4595 = vunpack.c.h.b16 %v3881
    %v4596 = vunpack.c.l.b16 %v3882
    %v4597 = vunpack.c.h.b16 %v3882
    %v4598 = vunpack.c.l.b16 %v3883
    %v4599 = vunpack.c.h.b16 %v3883
    %v4600 = vunpack.c.l.b16 %v3884
    %v4601 = vunpack.c.h.b16 %v3884
    %v4602 = vunpack.c.l.b16 %v3885
    %v4603 = vunpack.c.h.b16 %v3885
    %v4604 = vunpack.c.l.b16 %v3886
    %v4605 = vunpack.c.h.b16 %v3886
    %v4606 = vunpack.c.l.b16 %v3887
    %v4607 = vunpack.c.h.b16 %v3887
    %v4608 = vunpack.c.l.b16 %v3888
    %v4609 = vunpack.c.h.b16 %v3888
    %v4610 = vunpack.c.l.b16 %v3889
    %v4611 = vunpack.c.h.b16 %v3889
    %v4612 = vunpack.c.l.b16 %v3890
    %v4613 = vunpack.c.h.b16 %v3890
    %v4614 = vunpack.c.l.b16 %v3891
    %v4615 = vunpack.c.h.b16 %v3891
    %v4616 = vunpack.c.l.b16 %v3892
    %v4617 = vunpack.c.h.b16 %v3892
    %v4618 = vunpack.c.l.b16 %v3893
    %v4619 = vunpack.c.h.b16 %v3893
    %v4620 = vunpack.c.l.b16 %v3894
    %v4621 = vunpack.c.h.b16 %v3894
    %v4622 = vunpack.c.l.b16 %v3895
    %v4623 = vunpack.c.h.b16 %v3895
    %v4624 = vunpack.c.l.b16 %v3896
    %v4625 = vunpack.c.h.b16 %v3896
    %v4626 = vunpack.c.l.b16 %v3897
    %v4627 = vunpack.c.h.b16 %v3897
    %v4628 = vunpack.c.l.b16 %v3898
    %v4629 = vunpack.c.h.b16 %v3898
    %v4630 = vunpack.c.l.b16 %v3899
    %v4631 = vunpack.c.h.b16 %v3899
    %v4632 = vunpack.c.l.b16 %v3900
    %v4633 = vunpack.c.h.b16 %v3900
    %v4634 = vunpack.c.l.b16 %v3901
    %v4635 = vunpack.c.h.b16 %v3901
    %v4636 = vunpack.c.l.b16 %v3902
    %v4637 = vunpack.c.h.b16 %v3902
    %v4638 = vunpack.c.l.b16 %v3903
    %v4639 = vunpack.c.h.b16 %v3903
    %v4640 = vunpack.c.l.b16 %v3904
    %v4641 = vunpack.c.h.b16 %v3904
    %v4642 = vunpack.c.l.b16 %v3905
    %v4643 = vunpack.c.h.b16 %v3905
    %v4644 = vunpack.c.l.b16 %v3906
    %v4645 = vunpack.c.h.b16 %v3906
    %v4646 = vunpack.c.l.b16 %v3907
    %v4647 = vunpack.c.h.b16 %v3907
    %v4648 = vunpack.c.l.b16 %v3908
    %v4649 = vunpack.c.h.b16 %v3908
    %v4650 = vunpack.c.l.b16 %v3909
    %v4651 = vunpack.c.h.b16 %v3909
    %v4652 = vunpack.c.l.b16 %v3910
    %v4653 = vunpack.c.h.b16 %v3910
    %v4654 = vunpack.c.l.b16 %v3911
    %v4655 = vunpack.c.h.b16 %v3911
    %v4656 = vunpack.c.l.b16 %v3912
    %v4657 = vunpack.c.h.b16 %v3912
    %v4658 = vunpack.c.l.b16 %v3913
    %v4659 = vunpack.c.h.b16 %v3913
    %v4660 = vunpack.c.l.b16 %v3914
    %v4661 = vunpack.c.h.b16 %v3914
    %v4662 = vunpack.c.l.b16 %v3915
    %v4663 = vunpack.c.h.b16 %v3915
    %v4664 = vunpack.c.l.b16 %v3916
    %v4665 = vunpack.c.h.b16 %v3916
    %v4666 = vunpack.c.l.b16 %v3917
    %v4667 = vunpack.c.h.b16 %v3917
    %v4668 = vunpack.c.l.b16 %v3918
    %v4669 = vunpack.c.h.b16 %v3918
    %v4670 = vunpack.c.l.b16 %v3919
    %v4671 = vunpack.c.h.b16 %v3919
    %v4672 = vunpack.c.l.b16 %v3920
    %v4673 = vunpack.c.h.b16 %v3920
    %v4674 = vunpack.c.l.b16 %v3921
    %v4675 = vunpack.c.h.b16 %v3921
    %v4676 = vunpack.c.l.b16 %v3922
    %v4677 = vunpack.c.h.b16 %v3922
    %v4678 = vunpack.c.l.b16 %v3923
    %v4679 = vunpack.c.h.b16 %v3923
    %v4680 = vunpack.c.l.b16 %v3924
    %v4681 = vunpack.c.h.b16 %v3924
    %v4682 = vunpack.c.l.b16 %v3925
    %v4683 = vunpack.c.h.b16 %v3925
    %v4684 = vunpack.c.l.b16 %v3926
    %v4685 = vunpack.c.h.b16 %v3926
    %v4686 = vunpack.c.l.b16 %v3927
    %v4687 = vunpack.c.h.b16 %v3927
    %v4688 = vunpack.c.l.b16 %v3928
    %v4689 = vunpack.c.h.b16 %v3928
    %v4690 = vunpack.c.l.b16 %v3929
    %v4691 = vunpack.c.h.b16 %v3929
    %v4692 = vunpack.c.l.b16 %v3930
    %v4693 = vunpack.c.h.b16 %v3930
    %v4694 = vunpack.c.l.b16 %v3931
    %v4695 = vunpack.c.h.b16 %v3931
    %v4696 = vunpack.c.l.b16 %v3932
    %v4697 = vunpack.c.h.b16 %v3932
    %v4698 = vunpack.c.l.b16 %v3933
    %v4699 = vunpack.c.h.b16 %v3933
    %v4700 = vunpack.c.l.b16 %v3934
    %v4701 = vunpack.c.h.b16 %v3934
    %v4702 = vunpack.c.l.b16 %v3935
    %v4703 = vunpack.c.h.b16 %v3935
    %v4704 = vunpack.c.l.b16 %v3936
    %v4705 = vunpack.c.h.b16 %v3936
    %v4706 = vunpack.c.l.b16 %v3937
    %v4707 = vunpack.c.h.b16 %v3937
    %v4708 = vunpack.c.l.b16 %v3938
    %v4709 = vunpack.c.h.b16 %v3938
    %v4710 = vunpack.c.l.b16 %v3939
    %v4711 = vunpack.c.h.b16 %v3939
    %v4712 = vunpack.c.l.b16 %v3940
    %v4713 = vunpack.c.h.b16 %v3940
    %v4714 = vunpack.c.l.b16 %v3941
    %v4715 = vunpack.c.h.b16 %v3941
    %v4716 = vunpack.c.l.b16 %v3942
    %v4717 = vunpack.c.h.b16 %v3942
    %v4718 = vpack.c.b16 %v4248, %v4238
    %v4719 = vpack.c.b16 %v4249, %v4239
    %v4720 = vpack.c.b16 %v4250, %v4240
    %v4721 = vpack.c.b16 %v4251, %v4241
    %v4722 = vpack.c.b16 %v4252, %v4242
    %v4723 = vpack.c.b16 %v4253, %v4243
    %v4724 = vpack.c.b16 %v4254, %v4244
    %v4725 = vpack.c.b16 %v4255, %v4245
    %v4726 = vpack.c.b16 %v4256, %v4246
    %v4727 = vpack.c.b16 %v4257, %v4247
    %v4728 = vpack.c.b16 %v4268, %v4258
    %v4729 = vpack.c.b16 %v4269, %v4259
    %v4730 = vpack.c.b16 %v4270, %v4260
    %v4731 = vpack.c.b16 %v4271, %v4261
    %v4732 = vpack.c.b16 %v4272, %v4262
    %v4733 = vpack.c.b16 %v4273, %v4263
    %v4734 = vpack.c.b16 %v4274, %v4264
    %v4735 = vpack.c.b16 %v4275, %v4265
    %v4736 = vpack.c.b16 %v4276, %v4266
    %v4737 = vpack.c.b16 %v4277, %v4267
    %v4738 = vpack.c.b16 %v4288, %v4278
    %v4739 = vpack.c.b16 %v4289, %v4279
    %v4740 = vpack.c.b16 %v4290, %v4280
    %v4741 = vpack.c.b16 %v4291, %v4281
    %v4742 = vpack.c.b16 %v4292, %v4282
    %v4743 = vpack.c.b16 %v4293, %v4283
    %v4744 = vpack.c.b16 %v4294, %v4284
    %v4745 = vpack.c.b16 %v4295, %v4285
    %v4746 = vpack.c.b16 %v4296, %v4286
    %v4747 = vpack.c.b16 %v4297, %v4287
    %v4748 = vpack.c.b16 %v4308, %v4298
    %v4749 = vpack.c.b16 %v4309, %v4299
    %v4750 = vpack.c.b16 %v4310, %v4300
    %v4751 = vpack.c.b16 %v4311, %v4301
    %v4752 = vpack.c.b16 %v4312, %v4302
    %v4753 = vpack.c.b16 %v4313, %v4303
    %v4754 = vpack.c.b16 %v4314, %v4304
    %v4755 = vpack.c.b16 %v4315, %v4305
    %v4756 = vpack.c.b16 %v4316, %v4306
    %v4757 = vpack.c.b16 %v4317, %v4307
    %v4758 = vpack.c.b16 %v4328, %v4318
    %v4759 = vpack.c.b16 %v4329, %v4319
    %v4760 = vpack.c.b16 %v4330, %v4320
    %v4761 = vpack.c.b16 %v4331, %v4321
    %v4762 = vpack.c.b16 %v4332, %v4322
    %v4763 = vpack.c.b16 %v4333, %v4323
    %v4764 = vpack.c.b16 %v4334, %v4324
    %v4765 = vpack.c.b16 %v4335, %v4325
    %v4766 = vpack.c.b16 %v4336, %v4326
    %v4767 = vpack.c.b16 %v4337, %v4327
    %v4768 = vpack.c.b16 %v4348, %v4338
    %v4769 = vpack.c.b16 %v4349, %v4339
    %v4770 = vpack.c.b16 %v4350, %v4340
    %v4771 = vpack.c.b16 %v4351, %v4341
    %v4772 = vpack.c.b16 %v4352, %v4342
    %v4773 = vpack.c.b16 %v4353, %v4343
    %v4774 = vpack.c.b16 %v4354, %v4344
    %v4775 = vpack.c.b16 %v4355, %v4345
    %v4776 = vpack.c.b16 %v4356, %v4346
    %v4777 = vpack.c.b16 %v4357, %v4347
    %v4778 = vpack.c.b16 %v4368, %v4358
    %v4779 = vpack.c.b16 %v4369, %v4359
    %v4780 = vpack.c.b16 %v4370, %v4360
    %v4781 = vpack.c.b16 %v4371, %v4361
    %v4782 = vpack.c.b16 %v4372, %v4362
    %v4783 = vpack.c.b16 %v4373, %v4363
    %v4784 = vpack.c.b16 %v4374, %v4364
    %v4785 = vpack.c.b16 %v4375, %v4365
    %v4786 = vpack.c.b16 %v4376, %v4366
    %v4787 = vpack.c.b16 %v4377, %v4367
    %v4788 = vpack.c.b16 %v4388, %v4378
    %v4789 = vpack.c.b16 %v4389, %v4379
    %v4790 = vpack.c.b16 %v4390, %v4380
    %v4791 = vpack.c.b16 %v4391, %v4381
    %v4792 = vpack.c.b16 %v4392, %v4382
    %v4793 = vpack.c.b16 %v4393, %v4383
    %v4794 = vpack.c.b16 %v4394, %v4384
    %v4795 = vpack.c.b16 %v4395, %v4385
    %v4796 = vpack.c.b16 %v4396, %v4386
    %v4797 = vpack.c.b16 %v4397, %v4387
    %v4798 = vpack.c.b16 %v4408, %v4398
    %v4799 = vpack.c.b16 %v4409, %v4399
    %v4800 = vpack.c.b16 %v4410, %v4400
    %v4801 = vpack.c.b16 %v4411, %v4401
    %v4802 = vpack.c.b16 %v4412, %v4402
    %v4803 = vpack.c.b16 %v4413, %v4403
    %v4804 = vpack.c.b16 %v4414, %v4404
    %v4805 = vpack.c.b16 %v4415, %v4405
    %v4806 = vpack.c.b16 %v4416, %v4406
    %v4807 = vpack.c.b16 %v4417, %v4407
    %v4808 = vpack.c.b16 %v4428, %v4418
    %v4809 = vpack.c.b16 %v4429, %v4419
    %v4810 = vpack.c.b16 %v4430, %v4420
    %v4811 = vpack.c.b16 %v4431, %v4421
    %v4812 = vpack.c.b16 %v4432, %v4422
    %v4813 = vpack.c.b16 %v4433, %v4423
    %v4814 = vpack.c.b16 %v4434, %v4424
    %v4815 = vpack.c.b16 %v4435, %v4425
    %v4816 = vpack.c.b16 %v4436, %v4426
    %v4817 = vpack.c.b16 %v4437, %v4427
    %v4818 = vpack.c.b16 %v4448, %v4438
    %v4819 = vpack.c.b16 %v4449, %v4439
    %v4820 = vpack.c.b16 %v4450, %v4440
    %v4821 = vpack.c.b16 %v4451, %v4441
    %v4822 = vpack.c.b16 %v4452, %v4442
    %v4823 = vpack.c.b16 %v4453, %v4443
    %v4824 = vpack.c.b16 %v4454, %v4444
    %v4825 = vpack.c.b16 %v4455, %v4445
    %v4826 = vpack.c.b16 %v4456, %v4446
    %v4827 = vpack.c.b16 %v4457, %v4447
    %v4828 = vpack.c.b16 %v4468, %v4458
    %v4829 = vpack.c.b16 %v4469, %v4459
    %v4830 = vpack.c.b16 %v4470, %v4460
    %v4831 = vpack.c.b16 %v4471, %v4461
    %v4832 = vpack.c.b16 %v4472, %v4462
    %v4833 = vpack.c.b16 %v4473, %v4463
    %v4834 = vpack.c.b16 %v4474, %v4464
    %v4835 = vpack.c.b16 %v4475, %v4465
    %v4836 = vpack.c.b16 %v4476, %v4466
    %v4837 = vpack.c.b16 %v4477, %v4467
    %v4838 = vpack.c.b16 %v4488, %v4478
    %v4839 = vpack.c.b16 %v4489, %v4479
    %v4840 = vpack.c.b16 %v4490, %v4480
    %v4841 = vpack.c.b16 %v4491, %v4481
    %v4842 = vpack.c.b16 %v4492, %v4482
    %v4843 = vpack.c.b16 %v4493, %v4483
    %v4844 = vpack.c.b16 %v4494, %v4484
    %v4845 = vpack.c.b16 %v4495, %v4485
    %v4846 = vpack.c.b16 %v4496, %v4486
    %v4847 = vpack.c.b16 %v4497, %v4487
    %v4848 = vpack.c.b16 %v4508, %v4498
    %v4849 = vpack.c.b16 %v4509, %v4499
    %v4850 = vpack.c.b16 %v4510, %v4500
    %v4851 = vpack.c.b16 %v4511, %v4501
    %v4852 = vpack.c.b16 %v4512, %v4502
    %v4853 = vpack.c.b16 %v4513, %v4503
    %v4854 = vpack.c.b16 %v4514, %v4504
    %v4855 = vpack.c.b16 %v4515, %v4505
    %v4856 = vpack.c.b16 %v4516, %v4506
    %v4857 = vpack.c.b16 %v4517, %v4507
    %v4858 = vpack.c.b16 %v4528, %v4518
    %v4859 = vpack.c.b16 %v4529, %v4519
    %v4860 = vpack.c.b16 %v4530, %v4520
    %v4861 = vpack.c.b16 %v4531, %v4521
    %v4862 = vpack.c.b16 %v4532, %v4522
    %v4863 = vpack.c.b16 %v4533, %v4523
    %v4864 = vpack.c.b16 %v4534, %v4524
    %v4865 = vpack.c.b16 %v4535, %v4525
    %v4866 = vpack.c.b16 %v4536, %v4526
    %v4867 = vpack.c.b16 %v4537, %v4527
    %v4868 = vpack.c.b16 %v4548, %v4538
    %v4869 = vpack.c.b16 %v4549, %v4539
    %v4870 = vpack.c.b16 %v4550, %v4540
    %v4871 = vpack.c.b16 %v4551, %v4541
    %v4872 = vpack.c.b16 %v4552, %v4542
    %v4873 = vpack.c.b16 %v4553, %v4543
    %v4874 = vpack.c.b16 %v4554, %v4544
    %v4875 = vpack.c.b16 %v4555, %v4545
    %v4876 = vpack.c.b16 %v4556, %v4546
    %v4877 = vpack.c.b16 %v4557, %v4547
    %v4878 = vpack.c.b16 %v4568, %v4558
    %v4879 = vpack.c.b16 %v4569, %v4559
    %v4880 = vpack.c.b16 %v4570, %v4560
    %v4881 = vpack.c.b16 %v4571, %v4561
    %v4882 = vpack.c.b16 %v4572, %v4562
    %v4883 = vpack.c.b16 %v4573, %v4563
    %v4884 = vpack.c.b16 %v4574, %v4564
    %v4885 = vpack.c.b16 %v4575, %v4565
    %v4886 = vpack.c.b16 %v4576, %v4566
    %v4887 = vpack.c.b16 %v4577, %v4567
    %v4888 = vpack.c.b16 %v4588, %v4578
    %v4889 = vpack.c.b16 %v4589, %v4579
    %v4890 = vpack.c.b16 %v4590, %v4580
    %v4891 = vpack.c.b16 %v4591, %v4581
    %v4892 = vpack.c.b16 %v4592, %v4582
    %v4893 = vpack.c.b16 %v4593, %v4583
    %v4894 = vpack.c.b16 %v4594, %v4584
    %v4895 = vpack.c.b16 %v4595, %v4585
    %v4896 = vpack.c.b16 %v4596, %v4586
    %v4897 = vpack.c.b16 %v4597, %v4587
    %v4898 = vpack.c.b16 %v4608, %v4598
    %v4899 = vpack.c.b16 %v4609, %v4599
    %v4900 = vpack.c.b16 %v4610, %v4600
    %v4901 = vpack.c.b16 %v4611, %v4601
    %v4902 = vpack.c.b16 %v4612, %v4602
    %v4903 = vpack.c.b16 %v4613, %v4603
    %v4904 = vpack.c.b16 %v4614, %v4604
    %v4905 = vpack.c.b16 %v4615, %v4605
    %v4906 = vpack.c.b16 %v4616, %v4606
    %v4907 = vpack.c.b16 %v4617, %v4607
    %v4908 = vpack.c.b16 %v4628, %v4618
    %v4909 = vpack.c.b16 %v4629, %v4619
    %v4910 = vpack.c.b16 %v4630, %v4620
    %v4911 = vpack.c.b16 %v4631, %v4621
    %v4912 = vpack.c.b16 %v4632, %v4622
    %v4913 = vpack.c.b16 %v4633, %v4623
    %v4914 = vpack.c.b16 %v4634, %v4624
    %v4915 = vpack.c.b16 %v4635, %v4625
    %v4916 = vpack.c.b16 %v4636, %v4626
    %v4917 = vpack.c.b16 %v4637, %v4627
    %v4918 = vpack.c.b16 %v4648, %v4638
    %v4919 = vpack.c.b16 %v4649, %v4639
    %v4920 = vpack.c.b16 %v4650, %v4640
    %v4921 = vpack.c.b16 %v4651, %v4641
    %v4922 = vpack.c.b16 %v4652, %v4642
    %v4923 = vpack.c.b16 %v4653, %v4643
    %v4924 = vpack.c.b16 %v4654, %v4644
    %v4925 = vpack.c.b16 %v4655, %v4645
    %v4926 = vpack.c.b16 %v4656, %v4646
    %v4927 = vpack.c.b16 %v4657, %v4647
    %v4928 = vpack.c.b16 %v4668, %v4658
    %v4929 = vpack.c.b16 %v4669, %v4659
    %v4930 = vpack.c.b16 %v4670, %v4660
    %v4931 = vpack.c.b16 %v4671, %v4661
    %v4932 = vpack.c.b16 %v4672, %v4662
    %v4933 = vpack.c.b16 %v4673, %v4663
    %v4934 = vpack.c.b16 %v4674, %v4664
    %v4935 = vpack.c.b16 %v4675, %v4665
    %v4936 = vpack.c.b16 %v4676, %v4666
    %v4937 = vpack.c.b16 %v4677, %v4667
    %v4938 = vpack.c.b16 %v4688, %v4678
    %v4939 = vpack.c.b16 %v4689, %v4679
    %v4940 = vpack.c.b16 %v4690, %v4680
    %v4941 = vpack.c.b16 %v4691, %v4681
    %v4942 = vpack.c.b16 %v4692, %v4682
    %v4943 = vpack.c.b16 %v4693, %v4683
    %v4944 = vpack.c.b16 %v4694, %v4684
    %v4945 = vpack.c.b16 %v4695, %v4685
    %v4946 = vpack.c.b16 %v4696, %v4686
    %v4947 = vpack.c.b16 %v4697, %v4687
    %v4948 = vpack.c.b16 %v4708, %v4698
    %v4949 = vpack.c.b16 %v4709, %v4699
    %v4950 = vpack.c.b16 %v4710, %v4700
    %v4951 = vpack.c.b16 %v4711, %v4701
    %v4952 = vpack.c.b16 %v4712, %v4702
    %v4953 = vpack.c.b16 %v4713, %v4703
    %v4954 = vpack.c.b16 %v4714, %v4704
    %v4955 = vpack.c.b16 %v4715, %v4705
    %v4956 = vpack.c.b16 %v4716, %v4706
    %v4957 = vpack.c.b16 %v4717, %v4707
    %5198 = vmatprep.subr.bf16.mxu0 %v4789
    %5199 = vmatpush1.bf16.msra.mxu0 %v4788
    %5200 = vmatprep.subr.bf16.mxu0 %v4779
    %5201 = vmatpush1.bf16.msra.mxu0 %v4778
    %5202 = vmatprep.subr.bf16.mxu0 %v4769
    %5203 = vmatpush1.bf16.msra.mxu0 %v4768
    %5204 = vmatprep.subr.bf16.mxu0 %v4759
    %5205 = vmatpush1.bf16.msra.mxu0 %v4758
    %5206 = vmatprep.subr.bf16.mxu0 %v4749
    %5207 = vmatpush1.bf16.msra.mxu0 %v4748
    %5208 = vmatprep.subr.bf16.mxu0 %v4739
    %5209 = vmatpush1.bf16.msra.mxu0 %v4738
    %5210 = vmatprep.subr.bf16.mxu0 %v4729
    %5211 = vmatpush1.bf16.msra.mxu0 %v4728
    %5212 = vmatprep.subr.bf16.mxu0 %v4719
    %5213 = vmatpush1.bf16.msra.mxu0 %v4718
    %5214 = vmatprep.subr.bf16.mxu0 %v4869
    %5215 = vmatpush2.bf16.msra.mxu0 %v4868
    %5216 = vmatprep.subr.bf16.mxu0 %v4859
    %5217 = vmatpush2.bf16.msra.mxu0 %v4858
    %5218 = vmatprep.subr.bf16.mxu0 %v4849
    %5219 = vmatpush2.bf16.msra.mxu0 %v4848
    %5220 = vmatprep.subr.bf16.mxu0 %v4839
    %5221 = vmatpush2.bf16.msra.mxu0 %v4838
    %5222 = vmatprep.subr.bf16.mxu0 %v4829
    %5223 = vmatpush2.bf16.msra.mxu0 %v4828
    %5224 = vmatprep.subr.bf16.mxu0 %v4819
    %5225 = vmatpush2.bf16.msra.mxu0 %v4818
    %5226 = vmatprep.subr.bf16.mxu0 %v4809
    %5227 = vmatpush2.bf16.msra.mxu0 %v4808
    %5228 = vmatprep.subr.bf16.mxu0 %v4799
    %5229 = vmatpush2.bf16.msra.mxu0 %v4798
    %5230 = vmatprep.mubr.bf16.mxu0 %v1658
    %5231 = vmatmul.mubr.bf16.gmra.mxu0 %v1657
    %v5232 = vpop.f32.mrf.mxu0
    %v5233 = vadd.f32 %v3951, %v5232
    %v5234 = vpop.f32.mrf.mxu0
    %v5235 = vadd.f32 %v3955, %v5234
    %v5236 = vpop.f32.mrf.mxu0
    %v5237 = vpop.f32.mrf.mxu0
    %5238 = vdwg.mxu0
    %5239 = vmatprep.subr.bf16.mxu0 %v4949
    %5240 = vmatpush1.bf16.msra.mxu0 %v4948
    %5241 = vmatprep.subr.bf16.mxu0 %v4939
    %5242 = vmatpush1.bf16.msra.mxu0 %v4938
    %5243 = vmatprep.subr.bf16.mxu0 %v4929
    %5244 = vmatpush1.bf16.msra.mxu0 %v4928
    %5245 = vmatprep.subr.bf16.mxu0 %v4919
    %5246 = vmatpush1.bf16.msra.mxu0 %v4918
    %5247 = vmatprep.subr.bf16.mxu0 %v4909
    %5248 = vmatpush1.bf16.msra.mxu0 %v4908
    %5249 = vmatprep.subr.bf16.mxu0 %v4899
    %5250 = vmatpush1.bf16.msra.mxu0 %v4898
    %5251 = vmatprep.subr.bf16.mxu0 %v4889
    %5252 = vmatpush1.bf16.msra.mxu0 %v4888
    %5253 = vmatprep.subr.bf16.mxu0 %v4879
    %5254 = vmatpush1.bf16.msra.mxu0 %v4878
    %5255 = vmatprep.subr.bf16.mxu0 0
    %5256 = vmatpush2.bf16.msra.mxu0 0
    %5257 = vmatprep.subr.bf16.mxu0 0
    %5258 = vmatpush2.bf16.msra.mxu0 0
    %5259 = vmatprep.subr.bf16.mxu0 0
    %5260 = vmatpush2.bf16.msra.mxu0 0
    %5261 = vmatprep.subr.bf16.mxu0 0
    %5262 = vmatpush2.bf16.msra.mxu0 0
    %5263 = vmatprep.subr.bf16.mxu0 0
    %5264 = vmatpush2.bf16.msra.mxu0 0
    %5265 = vmatprep.subr.bf16.mxu0 0
    %5266 = vmatpush2.bf16.msra.mxu0 0
    %5267 = vmatprep.subr.bf16.mxu0 0
    %5268 = vmatpush2.bf16.msra.mxu0 0
    %5269 = vmatprep.subr.bf16.mxu0 0
    %5270 = vmatpush2.bf16.msra.mxu0 0
    %5271 = vmatprep.mubr.bf16.mxu0 0
    %5272 = vmatmul.mubr.bf16.gmra.mxu0 %v1659
    %v5273 = vpop.f32.mrf.mxu0
    %v5274 = vadd.f32 %v5233, %v5273
    %v5275 = vpop.f32.mrf.mxu0
    %v5276 = vadd.f32 %v5235, %v5275
    %v5277 = vpop.f32.mrf.mxu0
    %v5278 = vpop.f32.mrf.mxu0
    %5279 = vdwg.mxu0
    %5280 = vmatprep.subr.bf16.mxu0 %v4791
    %5281 = vmatpush1.bf16.msra.mxu0 %v4790
    %5282 = vmatprep.subr.bf16.mxu0 %v4781
    %5283 = vmatpush1.bf16.msra.mxu0 %v4780
    %5284 = vmatprep.subr.bf16.mxu0 %v4771
    %5285 = vmatpush1.bf16.msra.mxu0 %v4770
    %5286 = vmatprep.subr.bf16.mxu0 %v4761
    %5287 = vmatpush1.bf16.msra.mxu0 %v4760
    %5288 = vmatprep.subr.bf16.mxu0 %v4751
    %5289 = vmatpush1.bf16.msra.mxu0 %v4750
    %5290 = vmatprep.subr.bf16.mxu0 %v4741
    %5291 = vmatpush1.bf16.msra.mxu0 %v4740
    %5292 = vmatprep.subr.bf16.mxu0 %v4731
    %5293 = vmatpush1.bf16.msra.mxu0 %v4730
    %5294 = vmatprep.subr.bf16.mxu0 %v4721
    %5295 = vmatpush1.bf16.msra.mxu0 %v4720
    %5296 = vmatprep.subr.bf16.mxu0 %v4871
    %5297 = vmatpush2.bf16.msra.mxu0 %v4870
    %5298 = vmatprep.subr.bf16.mxu0 %v4861
    %5299 = vmatpush2.bf16.msra.mxu0 %v4860
    %5300 = vmatprep.subr.bf16.mxu0 %v4851
    %5301 = vmatpush2.bf16.msra.mxu0 %v4850
    %5302 = vmatprep.subr.bf16.mxu0 %v4841
    %5303 = vmatpush2.bf16.msra.mxu0 %v4840
    %5304 = vmatprep.subr.bf16.mxu0 %v4831
    %5305 = vmatpush2.bf16.msra.mxu0 %v4830
    %5306 = vmatprep.subr.bf16.mxu0 %v4821
    %5307 = vmatpush2.bf16.msra.mxu0 %v4820
    %5308 = vmatprep.subr.bf16.mxu0 %v4811
    %5309 = vmatpush2.bf16.msra.mxu0 %v4810
    %5310 = vmatprep.subr.bf16.mxu0 %v4801
    %5311 = vmatpush2.bf16.msra.mxu0 %v4800
    %5312 = vmatprep.mubr.bf16.mxu0 %v1658
    %5313 = vmatmul.mubr.bf16.gmra.mxu0 %v1657
    %v5314 = vpop.f32.mrf.mxu0
    %v5315 = vadd.f32 %v3959, %v5314
    %v5316 = vpop.f32.mrf.mxu0
    %v5317 = vadd.f32 %v3963, %v5316
    %v5318 = vpop.f32.mrf.mxu0
    %v5319 = vpop.f32.mrf.mxu0
    %5320 = vdwg.mxu0
    %5321 = vmatprep.subr.bf16.mxu0 %v4951
    %5322 = vmatpush1.bf16.msra.mxu0 %v4950
    %5323 = vmatprep.subr.bf16.mxu0 %v4941
    %5324 = vmatpush1.bf16.msra.mxu0 %v4940
    %5325 = vmatprep.subr.bf16.mxu0 %v4931
    %5326 = vmatpush1.bf16.msra.mxu0 %v4930
    %5327 = vmatprep.subr.bf16.mxu0 %v4921
    %5328 = vmatpush1.bf16.msra.mxu0 %v4920
    %5329 = vmatprep.subr.bf16.mxu0 %v4911
    %5330 = vmatpush1.bf16.msra.mxu0 %v4910
    %5331 = vmatprep.subr.bf16.mxu0 %v4901
    %5332 = vmatpush1.bf16.msra.mxu0 %v4900
    %5333 = vmatprep.subr.bf16.mxu0 %v4891
    %5334 = vmatpush1.bf16.msra.mxu0 %v4890
    %5335 = vmatprep.subr.bf16.mxu0 %v4881
    %5336 = vmatpush1.bf16.msra.mxu0 %v4880
    %5337 = vmatprep.subr.bf16.mxu0 0
    %5338 = vmatpush2.bf16.msra.mxu0 0
    %5339 = vmatprep.subr.bf16.mxu0 0
    %5340 = vmatpush2.bf16.msra.mxu0 0
    %5341 = vmatprep.subr.bf16.mxu0 0
    %5342 = vmatpush2.bf16.msra.mxu0 0
    %5343 = vmatprep.subr.bf16.mxu0 0
    %5344 = vmatpush2.bf16.msra.mxu0 0
    %5345 = vmatprep.subr.bf16.mxu0 0
    %5346 = vmatpush2.bf16.msra.mxu0 0
    %5347 = vmatprep.subr.bf16.mxu0 0
    %5348 = vmatpush2.bf16.msra.mxu0 0
    %5349 = vmatprep.subr.bf16.mxu0 0
    %5350 = vmatpush2.bf16.msra.mxu0 0
    %5351 = vmatprep.subr.bf16.mxu0 0
    %5352 = vmatpush2.bf16.msra.mxu0 0
    %5353 = vmatprep.mubr.bf16.mxu0 0
    %5354 = vmatmul.mubr.bf16.gmra.mxu0 %v1659
    %v5355 = vpop.f32.mrf.mxu0
    %v5356 = vadd.f32 %v5315, %v5355
    %v5357 = vpop.f32.mrf.mxu0
    %v5358 = vadd.f32 %v5317, %v5357
    %v5359 = vpop.f32.mrf.mxu0
    %v5360 = vpop.f32.mrf.mxu0
    %5361 = vdwg.mxu0
    %5362 = vmatprep.subr.bf16.mxu0 %v4793
    %5363 = vmatpush1.bf16.msra.mxu0 %v4792
    %5364 = vmatprep.subr.bf16.mxu0 %v4783
    %5365 = vmatpush1.bf16.msra.mxu0 %v4782
    %5366 = vmatprep.subr.bf16.mxu0 %v4773
    %5367 = vmatpush1.bf16.msra.mxu0 %v4772
    %5368 = vmatprep.subr.bf16.mxu0 %v4763
    %5369 = vmatpush1.bf16.msra.mxu0 %v4762
    %5370 = vmatprep.subr.bf16.mxu0 %v4753
    %5371 = vmatpush1.bf16.msra.mxu0 %v4752
    %5372 = vmatprep.subr.bf16.mxu0 %v4743
    %5373 = vmatpush1.bf16.msra.mxu0 %v4742
    %5374 = vmatprep.subr.bf16.mxu0 %v4733
    %5375 = vmatpush1.bf16.msra.mxu0 %v4732
    %5376 = vmatprep.subr.bf16.mxu0 %v4723
    %5377 = vmatpush1.bf16.msra.mxu0 %v4722
    %5378 = vmatprep.subr.bf16.mxu0 %v4873
    %5379 = vmatpush2.bf16.msra.mxu0 %v4872
    %5380 = vmatprep.subr.bf16.mxu0 %v4863
    %5381 = vmatpush2.bf16.msra.mxu0 %v4862
    %5382 = vmatprep.subr.bf16.mxu0 %v4853
    %5383 = vmatpush2.bf16.msra.mxu0 %v4852
    %5384 = vmatprep.subr.bf16.mxu0 %v4843
    %5385 = vmatpush2.bf16.msra.mxu0 %v4842
    %5386 = vmatprep.subr.bf16.mxu0 %v4833
    %5387 = vmatpush2.bf16.msra.mxu0 %v4832
    %5388 = vmatprep.subr.bf16.mxu0 %v4823
    %5389 = vmatpush2.bf16.msra.mxu0 %v4822
    %5390 = vmatprep.subr.bf16.mxu0 %v4813
    %5391 = vmatpush2.bf16.msra.mxu0 %v4812
    %5392 = vmatprep.subr.bf16.mxu0 %v4803
    %5393 = vmatpush2.bf16.msra.mxu0 %v4802
    %5394 = vmatprep.mubr.bf16.mxu0 %v1658
    %5395 = vmatmul.mubr.bf16.gmra.mxu0 %v1657
    %v5396 = vpop.f32.mrf.mxu0
    %v5397 = vadd.f32 %v3967, %v5396
    %v5398 = vpop.f32.mrf.mxu0
    %v5399 = vadd.f32 %v3971, %v5398
    %v5400 = vpop.f32.mrf.mxu0
    %v5401 = vpop.f32.mrf.mxu0
    %5402 = vdwg.mxu0
    %5403 = vmatprep.subr.bf16.mxu0 %v4953
    %5404 = vmatpush1.bf16.msra.mxu0 %v4952
    %5405 = vmatprep.subr.bf16.mxu0 %v4943
    %5406 = vmatpush1.bf16.msra.mxu0 %v4942
    %5407 = vmatprep.subr.bf16.mxu0 %v4933
    %5408 = vmatpush1.bf16.msra.mxu0 %v4932
    %5409 = vmatprep.subr.bf16.mxu0 %v4923
    %5410 = vmatpush1.bf16.msra.mxu0 %v4922
    %5411 = vmatprep.subr.bf16.mxu0 %v4913
    %5412 = vmatpush1.bf16.msra.mxu0 %v4912
    %5413 = vmatprep.subr.bf16.mxu0 %v4903
    %5414 = vmatpush1.bf16.msra.mxu0 %v4902
    %5415 = vmatprep.subr.bf16.mxu0 %v4893
    %5416 = vmatpush1.bf16.msra.mxu0 %v4892
    %5417 = vmatprep.subr.bf16.mxu0 %v4883
    %5418 = vmatpush1.bf16.msra.mxu0 %v4882
    %5419 = vmatprep.subr.bf16.mxu0 0
    %5420 = vmatpush2.bf16.msra.mxu0 0
    %5421 = vmatprep.subr.bf16.mxu0 0
    %5422 = vmatpush2.bf16.msra.mxu0 0
    %5423 = vmatprep.subr.bf16.mxu0 0
    %5424 = vmatpush2.bf16.msra.mxu0 0
    %5425 = vmatprep.subr.bf16.mxu0 0
    %5426 = vmatpush2.bf16.msra.mxu0 0
    %5427 = vmatprep.subr.bf16.mxu0 0
    %5428 = vmatpush2.bf16.msra.mxu0 0
    %5429 = vmatprep.subr.bf16.mxu0 0
    %5430 = vmatpush2.bf16.msra.mxu0 0
    %5431 = vmatprep.subr.bf16.mxu0 0
    %5432 = vmatpush2.bf16.msra.mxu0 0
    %5433 = vmatprep.subr.bf16.mxu0 0
    %5434 = vmatpush2.bf16.msra.mxu0 0
    %5435 = vmatprep.mubr.bf16.mxu0 0
    %5436 = vmatmul.mubr.bf16.gmra.mxu0 %v1659
    %v5437 = vpop.f32.mrf.mxu0
    %v5438 = vadd.f32 %v5397, %v5437
    %v5439 = vpop.f32.mrf.mxu0
    %v5440 = vadd.f32 %v5399, %v5439
    %v5441 = vpop.f32.mrf.mxu0
    %v5442 = vpop.f32.mrf.mxu0
    %5443 = vdwg.mxu0
    %5444 = vmatprep.subr.bf16.mxu0 %v4795
    %5445 = vmatpush1.bf16.msra.mxu0 %v4794
    %5446 = vmatprep.subr.bf16.mxu0 %v4785
    %5447 = vmatpush1.bf16.msra.mxu0 %v4784
    %5448 = vmatprep.subr.bf16.mxu0 %v4775
    %5449 = vmatpush1.bf16.msra.mxu0 %v4774
    %5450 = vmatprep.subr.bf16.mxu0 %v4765
    %5451 = vmatpush1.bf16.msra.mxu0 %v4764
    %5452 = vmatprep.subr.bf16.mxu0 %v4755
    %5453 = vmatpush1.bf16.msra.mxu0 %v4754
    %5454 = vmatprep.subr.bf16.mxu0 %v4745
    %5455 = vmatpush1.bf16.msra.mxu0 %v4744
    %5456 = vmatprep.subr.bf16.mxu0 %v4735
    %5457 = vmatpush1.bf16.msra.mxu0 %v4734
    %5458 = vmatprep.subr.bf16.mxu0 %v4725
    %5459 = vmatpush1.bf16.msra.mxu0 %v4724
    %5460 = vmatprep.subr.bf16.mxu0 %v4875
    %5461 = vmatpush2.bf16.msra.mxu0 %v4874
    %5462 = vmatprep.subr.bf16.mxu0 %v4865
    %5463 = vmatpush2.bf16.msra.mxu0 %v4864
    %5464 = vmatprep.subr.bf16.mxu0 %v4855
    %5465 = vmatpush2.bf16.msra.mxu0 %v4854
    %5466 = vmatprep.subr.bf16.mxu0 %v4845
    %5467 = vmatpush2.bf16.msra.mxu0 %v4844
    %5468 = vmatprep.subr.bf16.mxu0 %v4835
    %5469 = vmatpush2.bf16.msra.mxu0 %v4834
    %5470 = vmatprep.subr.bf16.mxu0 %v4825
    %5471 = vmatpush2.bf16.msra.mxu0 %v4824
    %5472 = vmatprep.subr.bf16.mxu0 %v4815
    %5473 = vmatpush2.bf16.msra.mxu0 %v4814
    %5474 = vmatprep.subr.bf16.mxu0 %v4805
    %5475 = vmatpush2.bf16.msra.mxu0 %v4804
    %5476 = vmatprep.mubr.bf16.mxu0 %v1658
    %5477 = vmatmul.mubr.bf16.gmra.mxu0 %v1657
    %v5478 = vpop.f32.mrf.mxu0
    %v5479 = vadd.f32 %v3975, %v5478
    %v5480 = vpop.f32.mrf.mxu0
    %v5481 = vadd.f32 %v3979, %v5480
    %v5482 = vpop.f32.mrf.mxu0
    %v5483 = vpop.f32.mrf.mxu0
    %5484 = vdwg.mxu0
    %5485 = vmatprep.subr.bf16.mxu0 %v4955
    %5486 = vmatpush1.bf16.msra.mxu0 %v4954
    %5487 = vmatprep.subr.bf16.mxu0 %v4945
    %5488 = vmatpush1.bf16.msra.mxu0 %v4944
    %5489 = vmatprep.subr.bf16.mxu0 %v4935
    %5490 = vmatpush1.bf16.msra.mxu0 %v4934
    %5491 = vmatprep.subr.bf16.mxu0 %v4925
    %5492 = vmatpush1.bf16.msra.mxu0 %v4924
    %5493 = vmatprep.subr.bf16.mxu0 %v4915
    %5494 = vmatpush1.bf16.msra.mxu0 %v4914
    %5495 = vmatprep.subr.bf16.mxu0 %v4905
    %5496 = vmatpush1.bf16.msra.mxu0 %v4904
    %5497 = vmatprep.subr.bf16.mxu0 %v4895
    %5498 = vmatpush1.bf16.msra.mxu0 %v4894
    %5499 = vmatprep.subr.bf16.mxu0 %v4885
    %5500 = vmatpush1.bf16.msra.mxu0 %v4884
    %5501 = vmatprep.subr.bf16.mxu0 0
    %5502 = vmatpush2.bf16.msra.mxu0 0
    %5503 = vmatprep.subr.bf16.mxu0 0
    %5504 = vmatpush2.bf16.msra.mxu0 0
    %5505 = vmatprep.subr.bf16.mxu0 0
    %5506 = vmatpush2.bf16.msra.mxu0 0
    %5507 = vmatprep.subr.bf16.mxu0 0
    %5508 = vmatpush2.bf16.msra.mxu0 0
    %5509 = vmatprep.subr.bf16.mxu0 0
    %5510 = vmatpush2.bf16.msra.mxu0 0
    %5511 = vmatprep.subr.bf16.mxu0 0
    %5512 = vmatpush2.bf16.msra.mxu0 0
    %5513 = vmatprep.subr.bf16.mxu0 0
    %5514 = vmatpush2.bf16.msra.mxu0 0
    %5515 = vmatprep.subr.bf16.mxu0 0
    %5516 = vmatpush2.bf16.msra.mxu0 0
    %5517 = vmatprep.mubr.bf16.mxu0 0
    %5518 = vmatmul.mubr.bf16.gmra.mxu0 %v1659
    %v5519 = vpop.f32.mrf.mxu0
    %v5520 = vadd.f32 %v5479, %v5519
    %v5521 = vpop.f32.mrf.mxu0
    %v5522 = vadd.f32 %v5481, %v5521
    %v5523 = vpop.f32.mrf.mxu0
    %v5524 = vpop.f32.mrf.mxu0
    %5525 = vdwg.mxu0
    %5526 = vmatprep.subr.bf16.mxu0 %v4797
    %5527 = vmatpush1.bf16.msra.mxu0 %v4796
    %5528 = vmatprep.subr.bf16.mxu0 %v4787
    %5529 = vmatpush1.bf16.msra.mxu0 %v4786
    %5530 = vmatprep.subr.bf16.mxu0 %v4777
    %5531 = vmatpush1.bf16.msra.mxu0 %v4776
    %5532 = vmatprep.subr.bf16.mxu0 %v4767
    %5533 = vmatpush1.bf16.msra.mxu0 %v4766
    %5534 = vmatprep.subr.bf16.mxu0 %v4757
    %5535 = vmatpush1.bf16.msra.mxu0 %v4756
    %5536 = vmatprep.subr.bf16.mxu0 %v4747
    %5537 = vmatpush1.bf16.msra.mxu0 %v4746
    %5538 = vmatprep.subr.bf16.mxu0 %v4737
    %5539 = vmatpush1.bf16.msra.mxu0 %v4736
    %5540 = vmatprep.subr.bf16.mxu0 %v4727
    %5541 = vmatpush1.bf16.msra.mxu0 %v4726
    %5542 = vmatprep.subr.bf16.mxu0 %v4877
    %5543 = vmatpush2.bf16.msra.mxu0 %v4876
    %5544 = vmatprep.subr.bf16.mxu0 %v4867
    %5545 = vmatpush2.bf16.msra.mxu0 %v4866
    %5546 = vmatprep.subr.bf16.mxu0 %v4857
    %5547 = vmatpush2.bf16.msra.mxu0 %v4856
    %5548 = vmatprep.subr.bf16.mxu0 %v4847
    %5549 = vmatpush2.bf16.msra.mxu0 %v4846
    %5550 = vmatprep.subr.bf16.mxu0 %v4837
    %5551 = vmatpush2.bf16.msra.mxu0 %v4836
    %5552 = vmatprep.subr.bf16.mxu0 %v4827
    %5553 = vmatpush2.bf16.msra.mxu0 %v4826
    %5554 = vmatprep.subr.bf16.mxu0 %v4817
    %5555 = vmatpush2.bf16.msra.mxu0 %v4816
    %5556 = vmatprep.subr.bf16.mxu0 %v4807
    %5557 = vmatpush2.bf16.msra.mxu0 %v4806
    %5558 = vmatprep.mubr.bf16.mxu0 %v1658
    %5559 = vmatmul.mubr.bf16.gmra.mxu0 %v1657
    %v5560 = vpop.f32.mrf.mxu0
    %v5561 = vadd.f32 %v3983, %v5560
    %v5562 = vpop.f32.mrf.mxu0
    %v5563 = vadd.f32 %v3987, %v5562
    %v5564 = vpop.f32.mrf.mxu0
    %v5565 = vpop.f32.mrf.mxu0
    %5566 = vdwg.mxu0
    %5567 = vmatprep.subr.bf16.mxu0 %v4957
    %5568 = vmatpush1.bf16.msra.mxu0 %v4956
    %5569 = vmatprep.subr.bf16.mxu0 %v4947
    %5570 = vmatpush1.bf16.msra.mxu0 %v4946
    %5571 = vmatprep.subr.bf16.mxu0 %v4937
    %5572 = vmatpush1.bf16.msra.mxu0 %v4936
    %5573 = vmatprep.subr.bf16.mxu0 %v4927
    %5574 = vmatpush1.bf16.msra.mxu0 %v4926
    %5575 = vmatprep.subr.bf16.mxu0 %v4917
    %5576 = vmatpush1.bf16.msra.mxu0 %v4916
    %5577 = vmatprep.subr.bf16.mxu0 %v4907
    %5578 = vmatpush1.bf16.msra.mxu0 %v4906
    %5579 = vmatprep.subr.bf16.mxu0 %v4897
    %5580 = vmatpush1.bf16.msra.mxu0 %v4896
    %5581 = vmatprep.subr.bf16.mxu0 %v4887
    %5582 = vmatpush1.bf16.msra.mxu0 %v4886
    %5583 = vmatprep.subr.bf16.mxu0 0
    %5584 = vmatpush2.bf16.msra.mxu0 0
    %5585 = vmatprep.subr.bf16.mxu0 0
    %5586 = vmatpush2.bf16.msra.mxu0 0
    %5587 = vmatprep.subr.bf16.mxu0 0
    %5588 = vmatpush2.bf16.msra.mxu0 0
    %5589 = vmatprep.subr.bf16.mxu0 0
    %5590 = vmatpush2.bf16.msra.mxu0 0
    %5591 = vmatprep.subr.bf16.mxu0 0
    %5592 = vmatpush2.bf16.msra.mxu0 0
    %5593 = vmatprep.subr.bf16.mxu0 0
    %5594 = vmatpush2.bf16.msra.mxu0 0
    %5595 = vmatprep.subr.bf16.mxu0 0
    %5596 = vmatpush2.bf16.msra.mxu0 0
    %5597 = vmatprep.subr.bf16.mxu0 0
    %5598 = vmatpush2.bf16.msra.mxu0 0
    %5599 = vmatprep.mubr.bf16.mxu0 0
    %5600 = vmatmul.mubr.bf16.gmra.mxu0 %v1659
    %v5601 = vpop.f32.mrf.mxu0
    %v5602 = vadd.f32 %v5561, %v5601
    %v5603 = vpop.f32.mrf.mxu0
    %v5604 = vadd.f32 %v5563, %v5603
    %v5605 = vpop.f32.mrf.mxu0
    %v5606 = vpop.f32.mrf.mxu0
    %5607 = vdwg.mxu0
    %v5608 = vmul.f32 %v5274, 0.5
    %v5609 = vmul.f32 %v5276, 0.5
    %v5610 = vmul.f32 %v5356, 0.5
    %v5611 = vmul.f32 %v5358, 0.5
    %v5612 = vmul.f32 %v5438, 0.5
    %v5613 = vmul.f32 %v5440, 0.5
    %v5614 = vmul.f32 %v5520, 0.5
    %v5615 = vmul.f32 %v5522, 0.5
    %v5616 = vmul.f32 %v5602, 0.5
    %v5617 = vmul.f32 %v5604, 0.5
    %v5618 = vmul.f32 %v5274, 0.70710677
    %v5619 = vmul.f32 %v5276, 0.70710677
    %v5620 = vmul.f32 %v5356, 0.70710677
    %v5621 = vmul.f32 %v5358, 0.70710677
    %v5622 = vmul.f32 %v5438, 0.70710677
    %v5623 = vmul.f32 %v5440, 0.70710677
    %v5624 = vmul.f32 %v5520, 0.70710677
    %v5625 = vmul.f32 %v5522, 0.70710677
    %v5626 = vmul.f32 %v5602, 0.70710677
    %v5627 = vmul.f32 %v5604, 0.70710677
    %v5628 = verf.f32.pop %v5618
    %v5629 = verf.f32.pop %v5619
    %v5630 = verf.f32.pop %v5620
    %v5631 = verf.f32.pop %v5621
    %v5632 = verf.f32.pop %v5622
    %v5633 = verf.f32.pop %v5623
    %v5634 = verf.f32.pop %v5624
    %v5635 = verf.f32.pop %v5625
    %v5636 = verf.f32.pop %v5626
    %v5637 = verf.f32.pop %v5627
    %v5638 = vadd.f32 %v5628, 1.0
    %v5639 = vadd.f32 %v5629, 1.0
    %v5640 = vadd.f32 %v5630, 1.0
    %v5641 = vadd.f32 %v5631, 1.0
    %v5642 = vadd.f32 %v5632, 1.0
    %v5643 = vadd.f32 %v5633, 1.0
    %v5644 = vadd.f32 %v5634, 1.0
    %v5645 = vadd.f32 %v5635, 1.0
    %v5646 = vadd.f32 %v5636, 1.0
    %v5647 = vadd.f32 %v5637, 1.0
    %v5648 = vmul.f32 %v5608, %v5638
    %v5649 = vmul.f32 %v5609, %v5639
    %v5650 = vmul.f32 %v5610, %v5640
    %v5651 = vmul.f32 %v5611, %v5641
    %v5652 = vmul.f32 %v5612, %v5642
    %v5653 = vmul.f32 %v5613, %v5643
    %v5654 = vmul.f32 %v5614, %v5644
    %v5655 = vmul.f32 %v5615, %v5645
    %v5656 = vmul.f32 %v5616, %v5646
    %v5657 = vmul.f32 %v5617, %v5647
    %v5658 = vpack.c.bf16 %v5648, %v5648
    %v5659 = vpack.c.bf16 %v5649, %v5649
    %v5660 = vpack.c.bf16 %v5650, %v5650
    %v5661 = vpack.c.bf16 %v5651, %v5651
    %v5662 = vpack.c.bf16 %v5652, %v5652
    %v5663 = vpack.c.bf16 %v5653, %v5653
    %v5664 = vpack.c.bf16 %v5654, %v5654
    %v5665 = vpack.c.bf16 %v5655, %v5655
    %v5666 = vpack.c.bf16 %v5656, %v5656
    %v5667 = vpack.c.bf16 %v5657, %v5657
    %v5678 = vcombine.low %v5658, %v5659
    %v5679 = vcombine.low %v5660, %v5661
    %v5680 = vcombine.low %v5662, %v5663
    %v5681 = vcombine.low %v5664, %v5665
    %v5683 = vunpack.c.l.s4 1966171168
    %v5684 = vunpack.c.0.s8 %v5683
    %v5685 = vlaneseq
    %v5686 = vshrl.u32 %v5685, 7
    %v5687 = vsub.s32 %v5684, %v5686
    %v5688 = vrot.slane %v5678, %v5687
    %v5690 = vunpack.c.l.s4 1966171168
    %v5691 = vunpack.c.0.s8 %v5690
    %v5692 = vlaneseq
    %v5693 = vshrl.u32 %v5692, 7
    %v5694 = vsub.s32 %v5691, %v5693
    %v5695 = vrot.slane %v5679, %v5694
    %v5697 = vunpack.c.l.s4 1966171168
    %v5698 = vunpack.c.0.s8 %v5697
    %v5699 = vlaneseq
    %v5700 = vshrl.u32 %v5699, 7
    %v5701 = vsub.s32 %v5698, %v5700
    %v5702 = vrot.slane %v5680, %v5701
    %v5704 = vunpack.c.l.s4 1966171168
    %v5705 = vunpack.c.0.s8 %v5704
    %v5706 = vlaneseq
    %v5707 = vshrl.u32 %v5706, 7
    %v5708 = vsub.s32 %v5705, %v5707
    %v5709 = vrot.slane %v5681, %v5708
    %v5710 = vcombine.low %v5688, %v5695
    %v5711 = vcombine.low %v5702, %v5709
    %v5713 = vunpack.c.l.s4 1966171168
    %v5714 = vunpack.c.0.s8 %v5713
    %v5715 = vlaneseq
    %v5716 = vshrl.u32 %v5715, 7
    %v5717 = vsub.s32 %v5714, %v5716
    %v5718 = vrot.slane %v5710, %v5717
    %v5720 = vunpack.c.l.s4 1966171168
    %v5721 = vunpack.c.0.s8 %v5720
    %v5722 = vlaneseq
    %v5723 = vshrl.u32 %v5722, 7
    %v5724 = vsub.s32 %v5721, %v5723
    %v5725 = vrot.slane %v5711, %v5724
    %v5726 = vcombine.low %v5718, %v5725
    %v5727 = vcombine.low %v5666, %v5667
    %v5729 = vunpack.c.l.s4 1966171168
    %v5730 = vunpack.c.0.s8 %v5729
    %v5731 = vlaneseq
    %v5732 = vshrl.u32 %v5731, 7
    %v5733 = vsub.s32 %v5730, %v5732
    %v5734 = vrot.slane %v5727, %v5733
    %v5736 = vunpack.c.l.s4 1966171168
    %v5737 = vunpack.c.0.s8 %v5736
    %v5738 = vlaneseq
    %v5739 = vshrl.u32 %v5738, 7
    %v5740 = vsub.s32 %v5737, %v5739
    %v5741 = vrot.slane %v5734, %v5740
    %s5744 = scalar_lea.vmem [#allocation17], 10
    %5745 = vst [vmem:[%s5744] sm:$0xff] %v5726
    %5746 = vst [vmem:[%s5744 + $0x8] sm:$0x3] %v5741
    %s5747 = scalar_lea.vmem [#allocation11], 3840
    %v5748 = vld [vmem:[%s5747] sm:$0xff]
    %v5749 = vld [vmem:[%s5747 + $0x8] sm:$0xff]
    %v5750 = vld [vmem:[%s5747 + $0x10] sm:$0xff]
    %v5751 = vld [vmem:[%s5747 + $0x18] sm:$0xff]
    %v5752 = vld [vmem:[%s5747 + $0x20] sm:$0xff]
    %v5753 = vld [vmem:[%s5747 + $0x28] sm:$0xff]
    %v5754 = vld [vmem:[%s5747 + $0x30] sm:$0xff]
    %v5755 = vld [vmem:[%s5747 + $0x38] sm:$0xff]
    %v5756 = vld [vmem:[%s5747 + $0x40] sm:$0xff]
    %v5757 = vld [vmem:[%s5747 + $0x48] sm:$0xff]
    %v5758 = vld [vmem:[%s5747 + $0x50] sm:$0xff]
    %v5759 = vld [vmem:[%s5747 + $0x58] sm:$0xff]
    %v5760 = vld [vmem:[%s5747 + $0x60] sm:$0xff]
    %v5761 = vld [vmem:[%s5747 + $0x68] sm:$0xff]
    %v5762 = vld [vmem:[%s5747 + $0x70] sm:$0xff]
    %v5763 = vld [vmem:[%s5747 + $0x78] sm:$0xff]
    %v5764 = vld [vmem:[%s5747 + $0x80] sm:$0xff]
    %v5765 = vld [vmem:[%s5747 + $0x88] sm:$0xff]
    %v5766 = vld [vmem:[%s5747 + $0x90] sm:$0xff]
    %v5767 = vld [vmem:[%s5747 + $0x98] sm:$0xff]
    %v5768 = vld [vmem:[%s5747 + $0xa0] sm:$0xff]
    %v5769 = vld [vmem:[%s5747 + $0xa8] sm:$0xff]
    %v5770 = vld [vmem:[%s5747 + $0xb0] sm:$0xff]
    %v5771 = vld [vmem:[%s5747 + $0xb8] sm:$0xff]
    %v5772 = vld [vmem:[%s5747 + $0xc0] sm:$0xff]
    %v5773 = vld [vmem:[%s5747 + $0xc8] sm:$0xff]
    %v5774 = vld [vmem:[%s5747 + $0xd0] sm:$0xff]
    %v5775 = vld [vmem:[%s5747 + $0xd8] sm:$0xff]
    %v5776 = vld [vmem:[%s5747 + $0xe0] sm:$0xff]
    %v5777 = vld [vmem:[%s5747 + $0xe8] sm:$0xff]
    %v5778 = vld [vmem:[%s5747 + $0xf0] sm:$0xff]
    %v5779 = vld [vmem:[%s5747 + $0xf8] sm:$0xff]
    %v5780 = vld [vmem:[%s5747 + $0x100] sm:$0xff]
    %v5781 = vld [vmem:[%s5747 + $0x108] sm:$0xff]
    %v5782 = vld [vmem:[%s5747 + $0x110] sm:$0xff]
    %v5783 = vld [vmem:[%s5747 + $0x118] sm:$0xff]
    %v5784 = vld [vmem:[%s5747 + $0x120] sm:$0xff]
    %v5785 = vld [vmem:[%s5747 + $0x128] sm:$0xff]
    %v5786 = vld [vmem:[%s5747 + $0x130] sm:$0xff]
    %v5787 = vld [vmem:[%s5747 + $0x138] sm:$0xff]
    %v5788 = vld [vmem:[%s5747 + $0x140] sm:$0xff]
    %v5789 = vld [vmem:[%s5747 + $0x148] sm:$0xff]
    %v5790 = vld [vmem:[%s5747 + $0x150] sm:$0xff]
    %v5791 = vld [vmem:[%s5747 + $0x158] sm:$0xff]
    %v5792 = vld [vmem:[%s5747 + $0x160] sm:$0xff]
    %v5793 = vld [vmem:[%s5747 + $0x168] sm:$0xff]
    %v5794 = vld [vmem:[%s5747 + $0x170] sm:$0xff]
    %v5795 = vld [vmem:[%s5747 + $0x178] sm:$0xff]
    %v5796 = vld [vmem:[%s5747 + $0x180] sm:$0xff]
    %v5797 = vld [vmem:[%s5747 + $0x188] sm:$0xff]
    %v5798 = vld [vmem:[%s5747 + $0x190] sm:$0xff]
    %v5799 = vld [vmem:[%s5747 + $0x198] sm:$0xff]
    %v5800 = vld [vmem:[%s5747 + $0x1a0] sm:$0xff]
    %v5801 = vld [vmem:[%s5747 + $0x1a8] sm:$0xff]
    %v5802 = vld [vmem:[%s5747 + $0x1b0] sm:$0xff]
    %v5803 = vld [vmem:[%s5747 + $0x1b8] sm:$0xff]
    %v5804 = vld [vmem:[%s5747 + $0x1c0] sm:$0xff]
    %v5805 = vld [vmem:[%s5747 + $0x1c8] sm:$0xff]
    %v5806 = vld [vmem:[%s5747 + $0x1d0] sm:$0xff]
    %v5807 = vld [vmem:[%s5747 + $0x1d8] sm:$0xff]
    %v5808 = vld [vmem:[%s5747 + $0x1e0] sm:$0xff]
    %v5809 = vld [vmem:[%s5747 + $0x1e8] sm:$0xff]
    %v5810 = vld [vmem:[%s5747 + $0x1f0] sm:$0xff]
    %v5811 = vld [vmem:[%s5747 + $0x1f8] sm:$0xff]
    %v5812 = vld [vmem:[%s5747 + $0x200] sm:$0xff]
    %v5813 = vld [vmem:[%s5747 + $0x208] sm:$0xff]
    %v5814 = vld [vmem:[%s5747 + $0x210] sm:$0xff]
    %v5815 = vld [vmem:[%s5747 + $0x218] sm:$0xff]
    %v5816 = vld [vmem:[%s5747 + $0x220] sm:$0xff]
    %v5817 = vld [vmem:[%s5747 + $0x228] sm:$0xff]
    %v5818 = vld [vmem:[%s5747 + $0x230] sm:$0xff]
    %v5819 = vld [vmem:[%s5747 + $0x238] sm:$0xff]
    %v5820 = vld [vmem:[%s5747 + $0x240] sm:$0xff]
    %v5821 = vld [vmem:[%s5747 + $0x248] sm:$0xff]
    %v5822 = vld [vmem:[%s5747 + $0x250] sm:$0xff]
    %v5823 = vld [vmem:[%s5747 + $0x258] sm:$0xff]
    %v5824 = vld [vmem:[%s5747 + $0x260] sm:$0xff]
    %v5825 = vld [vmem:[%s5747 + $0x268] sm:$0xff]
    %v5826 = vld [vmem:[%s5747 + $0x270] sm:$0xff]
    %v5827 = vld [vmem:[%s5747 + $0x278] sm:$0xff]
    %v5828 = vld [vmem:[%s5747 + $0x280] sm:$0xff]
    %v5829 = vld [vmem:[%s5747 + $0x288] sm:$0xff]
    %v5830 = vld [vmem:[%s5747 + $0x290] sm:$0xff]
    %v5831 = vld [vmem:[%s5747 + $0x298] sm:$0xff]
    %v5832 = vld [vmem:[%s5747 + $0x2a0] sm:$0xff]
    %v5833 = vld [vmem:[%s5747 + $0x2a8] sm:$0xff]
    %v5834 = vld [vmem:[%s5747 + $0x2b0] sm:$0xff]
    %v5835 = vld [vmem:[%s5747 + $0x2b8] sm:$0xff]
    %v5836 = vld [vmem:[%s5747 + $0x2c0] sm:$0xff]
    %v5837 = vld [vmem:[%s5747 + $0x2c8] sm:$0xff]
    %v5838 = vld [vmem:[%s5747 + $0x2d0] sm:$0xff]
    %v5839 = vld [vmem:[%s5747 + $0x2d8] sm:$0xff]
    %v5840 = vld [vmem:[%s5747 + $0x2e0] sm:$0xff]
    %v5841 = vld [vmem:[%s5747 + $0x2e8] sm:$0xff]
    %v5842 = vld [vmem:[%s5747 + $0x2f0] sm:$0xff]
    %v5843 = vld [vmem:[%s5747 + $0x2f8] sm:$0xff]
    %v5844 = vld [vmem:[%s5747 + $0x300] sm:$0xff]
    %v5845 = vld [vmem:[%s5747 + $0x308] sm:$0xff]
    %v5846 = vld [vmem:[%s5747 + $0x310] sm:$0xff]
    %v5847 = vld [vmem:[%s5747 + $0x318] sm:$0xff]
    %v5848 = vld [vmem:[%s5747 + $0x320] sm:$0xff]
    %v5849 = vld [vmem:[%s5747 + $0x328] sm:$0xff]
    %v5850 = vld [vmem:[%s5747 + $0x330] sm:$0xff]
    %v5851 = vld [vmem:[%s5747 + $0x338] sm:$0xff]
    %v5852 = vld [vmem:[%s5747 + $0x340] sm:$0xff]
    %v5853 = vld [vmem:[%s5747 + $0x348] sm:$0xff]
    %v5854 = vld [vmem:[%s5747 + $0x350] sm:$0xff]
    %v5855 = vld [vmem:[%s5747 + $0x358] sm:$0xff]
    %v5856 = vld [vmem:[%s5747 + $0x360] sm:$0xff]
    %v5857 = vld [vmem:[%s5747 + $0x368] sm:$0xff]
    %v5858 = vld [vmem:[%s5747 + $0x370] sm:$0xff]
    %v5859 = vld [vmem:[%s5747 + $0x378] sm:$0xff]
    %v5860 = vld [vmem:[%s5747 + $0x380] sm:$0xff]
    %v5861 = vld [vmem:[%s5747 + $0x388] sm:$0xff]
    %v5862 = vld [vmem:[%s5747 + $0x390] sm:$0xff]
    %v5863 = vld [vmem:[%s5747 + $0x398] sm:$0xff]
    %v5864 = vld [vmem:[%s5747 + $0x3a0] sm:$0xff]
    %v5865 = vld [vmem:[%s5747 + $0x3a8] sm:$0xff]
    %v5866 = vld [vmem:[%s5747 + $0x3b0] sm:$0xff]
    %v5867 = vld [vmem:[%s5747 + $0x3b8] sm:$0xff]
    %v5868 = vld [vmem:[%s5747 + $0x3c0] sm:$0xff]
    %v5869 = vld [vmem:[%s5747 + $0x3c8] sm:$0xff]
    %v5870 = vld [vmem:[%s5747 + $0x3d0] sm:$0xff]
    %v5871 = vld [vmem:[%s5747 + $0x3d8] sm:$0xff]
    %v5872 = vld [vmem:[%s5747 + $0x3e0] sm:$0xff]
    %v5873 = vld [vmem:[%s5747 + $0x3e8] sm:$0xff]
    %v5874 = vld [vmem:[%s5747 + $0x3f0] sm:$0xff]
    %v5875 = vld [vmem:[%s5747 + $0x3f8] sm:$0xff]
    %v5876 = vld [vmem:[%s5747 + $0x400] sm:$0xff]
    %v5877 = vld [vmem:[%s5747 + $0x408] sm:$0xff]
    %v5878 = vld [vmem:[%s5747 + $0x410] sm:$0xff]
    %v5879 = vld [vmem:[%s5747 + $0x418] sm:$0xff]
    %v5880 = vld [vmem:[%s5747 + $0x420] sm:$0xff]
    %v5881 = vld [vmem:[%s5747 + $0x428] sm:$0xff]
    %v5882 = vld [vmem:[%s5747 + $0x430] sm:$0xff]
    %v5883 = vld [vmem:[%s5747 + $0x438] sm:$0xff]
    %v5884 = vld [vmem:[%s5747 + $0x440] sm:$0xff]
    %v5885 = vld [vmem:[%s5747 + $0x448] sm:$0xff]
    %v5886 = vld [vmem:[%s5747 + $0x450] sm:$0xff]
    %v5887 = vld [vmem:[%s5747 + $0x458] sm:$0xff]
    %v5888 = vld [vmem:[%s5747 + $0x460] sm:$0xff]
    %v5889 = vld [vmem:[%s5747 + $0x468] sm:$0xff]
    %v5890 = vld [vmem:[%s5747 + $0x470] sm:$0xff]
    %v5891 = vld [vmem:[%s5747 + $0x478] sm:$0xff]
    %v5892 = vld [vmem:[%s5747 + $0x480] sm:$0xff]
    %v5893 = vld [vmem:[%s5747 + $0x488] sm:$0xff]
    %v5894 = vld [vmem:[%s5747 + $0x490] sm:$0xff]
    %v5895 = vld [vmem:[%s5747 + $0x498] sm:$0xff]
    %v5896 = vld [vmem:[%s5747 + $0x4a0] sm:$0xff]
    %v5897 = vld [vmem:[%s5747 + $0x4a8] sm:$0xff]
    %v5898 = vld [vmem:[%s5747 + $0x4b0] sm:$0xff]
    %v5899 = vld [vmem:[%s5747 + $0x4b8] sm:$0xff]
    %v5900 = vld [vmem:[%s5747 + $0x4c0] sm:$0xff]
    %v5901 = vld [vmem:[%s5747 + $0x4c8] sm:$0xff]
    %v5902 = vld [vmem:[%s5747 + $0x4d0] sm:$0xff]
    %v5903 = vld [vmem:[%s5747 + $0x4d8] sm:$0xff]
    %v5904 = vld [vmem:[%s5747 + $0x4e0] sm:$0xff]
    %v5905 = vld [vmem:[%s5747 + $0x4e8] sm:$0xff]
    %v5906 = vld [vmem:[%s5747 + $0x4f0] sm:$0xff]
    %v5907 = vld [vmem:[%s5747 + $0x4f8] sm:$0xff]
    %v5908 = vld [vmem:[%s5747 + $0x500] sm:$0xff]
    %v5909 = vld [vmem:[%s5747 + $0x508] sm:$0xff]
    %v5910 = vld [vmem:[%s5747 + $0x510] sm:$0xff]
    %v5911 = vld [vmem:[%s5747 + $0x518] sm:$0xff]
    %v5912 = vld [vmem:[%s5747 + $0x520] sm:$0xff]
    %v5913 = vld [vmem:[%s5747 + $0x528] sm:$0xff]
    %v5914 = vld [vmem:[%s5747 + $0x530] sm:$0xff]
    %v5915 = vld [vmem:[%s5747 + $0x538] sm:$0xff]
    %v5916 = vld [vmem:[%s5747 + $0x540] sm:$0xff]
    %v5917 = vld [vmem:[%s5747 + $0x548] sm:$0xff]
    %v5918 = vld [vmem:[%s5747 + $0x550] sm:$0xff]
    %v5919 = vld [vmem:[%s5747 + $0x558] sm:$0xff]
    %v5920 = vld [vmem:[%s5747 + $0x560] sm:$0xff]
    %v5921 = vld [vmem:[%s5747 + $0x568] sm:$0xff]
    %v5922 = vld [vmem:[%s5747 + $0x570] sm:$0xff]
    %v5923 = vld [vmem:[%s5747 + $0x578] sm:$0xff]
    %v5924 = vld [vmem:[%s5747 + $0x580] sm:$0xff]
    %v5925 = vld [vmem:[%s5747 + $0x588] sm:$0xff]
    %v5926 = vld [vmem:[%s5747 + $0x590] sm:$0xff]
    %v5927 = vld [vmem:[%s5747 + $0x598] sm:$0xff]
    %v5928 = vld [vmem:[%s5747 + $0x5a0] sm:$0xff]
    %v5929 = vld [vmem:[%s5747 + $0x5a8] sm:$0xff]
    %v5930 = vld [vmem:[%s5747 + $0x5b0] sm:$0xff]
    %v5931 = vld [vmem:[%s5747 + $0x5b8] sm:$0xff]
    %v5932 = vld [vmem:[%s5747 + $0x5c0] sm:$0xff]
    %v5933 = vld [vmem:[%s5747 + $0x5c8] sm:$0xff]
    %v5934 = vld [vmem:[%s5747 + $0x5d0] sm:$0xff]
    %v5935 = vld [vmem:[%s5747 + $0x5d8] sm:$0xff]
    %v5936 = vld [vmem:[%s5747 + $0x5e0] sm:$0xff]
    %v5937 = vld [vmem:[%s5747 + $0x5e8] sm:$0xff]
    %v5938 = vld [vmem:[%s5747 + $0x5f0] sm:$0xff]
    %v5939 = vld [vmem:[%s5747 + $0x5f8] sm:$0xff]
    %v5940 = vld [vmem:[%s5747 + $0x600] sm:$0xff]
    %v5941 = vld [vmem:[%s5747 + $0x608] sm:$0xff]
    %v5942 = vld [vmem:[%s5747 + $0x610] sm:$0xff]
    %v5943 = vld [vmem:[%s5747 + $0x618] sm:$0xff]
    %v5944 = vld [vmem:[%s5747 + $0x620] sm:$0xff]
    %v5945 = vld [vmem:[%s5747 + $0x628] sm:$0xff]
    %v5946 = vld [vmem:[%s5747 + $0x630] sm:$0xff]
    %v5947 = vld [vmem:[%s5747 + $0x638] sm:$0xff]
    %v5948 = vld [vmem:[%s5747 + $0x640] sm:$0xff]
    %v5949 = vld [vmem:[%s5747 + $0x648] sm:$0xff]
    %v5950 = vld [vmem:[%s5747 + $0x650] sm:$0xff]
    %v5951 = vld [vmem:[%s5747 + $0x658] sm:$0xff]
    %v5952 = vld [vmem:[%s5747 + $0x660] sm:$0xff]
    %v5953 = vld [vmem:[%s5747 + $0x668] sm:$0xff]
    %v5954 = vld [vmem:[%s5747 + $0x670] sm:$0xff]
    %v5955 = vld [vmem:[%s5747 + $0x678] sm:$0xff]
    %v5956 = vld [vmem:[%s5747 + $0x680] sm:$0xff]
    %v5957 = vld [vmem:[%s5747 + $0x688] sm:$0xff]
    %v5958 = vld [vmem:[%s5747 + $0x690] sm:$0xff]
    %v5959 = vld [vmem:[%s5747 + $0x698] sm:$0xff]
    %v5960 = vld [vmem:[%s5747 + $0x6a0] sm:$0xff]
    %v5961 = vld [vmem:[%s5747 + $0x6a8] sm:$0xff]
    %v5962 = vld [vmem:[%s5747 + $0x6b0] sm:$0xff]
    %v5963 = vld [vmem:[%s5747 + $0x6b8] sm:$0xff]
    %v5964 = vld [vmem:[%s5747 + $0x6c0] sm:$0xff]
    %v5965 = vld [vmem:[%s5747 + $0x6c8] sm:$0xff]
    %v5966 = vld [vmem:[%s5747 + $0x6d0] sm:$0xff]
    %v5967 = vld [vmem:[%s5747 + $0x6d8] sm:$0xff]
    %v5968 = vld [vmem:[%s5747 + $0x6e0] sm:$0xff]
    %v5969 = vld [vmem:[%s5747 + $0x6e8] sm:$0xff]
    %v5970 = vld [vmem:[%s5747 + $0x6f0] sm:$0xff]
    %v5971 = vld [vmem:[%s5747 + $0x6f8] sm:$0xff]
    %v5972 = vld [vmem:[%s5747 + $0x700] sm:$0xff]
    %v5973 = vld [vmem:[%s5747 + $0x708] sm:$0xff]
    %v5974 = vld [vmem:[%s5747 + $0x710] sm:$0xff]
    %v5975 = vld [vmem:[%s5747 + $0x718] sm:$0xff]
    %v5976 = vld [vmem:[%s5747 + $0x720] sm:$0xff]
    %v5977 = vld [vmem:[%s5747 + $0x728] sm:$0xff]
    %v5978 = vld [vmem:[%s5747 + $0x730] sm:$0xff]
    %v5979 = vld [vmem:[%s5747 + $0x738] sm:$0xff]
    %v5980 = vld [vmem:[%s5747 + $0x740] sm:$0xff]
    %v5981 = vld [vmem:[%s5747 + $0x748] sm:$0xff]
    %v5982 = vld [vmem:[%s5747 + $0x750] sm:$0xff]
    %v5983 = vld [vmem:[%s5747 + $0x758] sm:$0xff]
    %v5984 = vld [vmem:[%s5747 + $0x760] sm:$0xff]
    %v5985 = vld [vmem:[%s5747 + $0x768] sm:$0xff]
    %v5986 = vld [vmem:[%s5747 + $0x770] sm:$0xff]
    %v5987 = vld [vmem:[%s5747 + $0x778] sm:$0xff]
    %s5988 = scalar_lea.vmem [#allocation13], 20
    %v5989 = vld [vmem:[%s5988] sm:$0xff]
    %v5990 = vld [vmem:[%s5988 + $0x8] sm:$0x3]
    %v5993 = vlaneseq
    %v5994 = vshrl.u32 %v5993, 7
    %v5995 = vsub.s32 0, %v5994
    %v5996 = vrot.slane %v5989, %v5995
    %v5997 = vlaneseq
    %v5998 = vshrl.u32 %v5997, 7
    %v5999 = vsub.s32 1, %v5998
    %v6000 = vrot.slane %v5989, %v5999
    %v6001 = vlaneseq
    %v6002 = vshrl.u32 %v6001, 7
    %v6003 = vsub.s32 2, %v6002
    %v6004 = vrot.slane %v5989, %v6003
    %v6005 = vlaneseq
    %v6006 = vshrl.u32 %v6005, 7
    %v6007 = vsub.s32 3, %v6006
    %v6008 = vrot.slane %v5989, %v6007
    %v6009 = vlaneseq
    %v6010 = vshrl.u32 %v6009, 7
    %v6011 = vsub.s32 4, %v6010
    %v6012 = vrot.slane %v5989, %v6011
    %v6013 = vlaneseq
    %v6014 = vshrl.u32 %v6013, 7
    %v6015 = vsub.s32 5, %v6014
    %v6016 = vrot.slane %v5989, %v6015
    %v6017 = vlaneseq
    %v6018 = vshrl.u32 %v6017, 7
    %v6019 = vsub.s32 6, %v6018
    %v6020 = vrot.slane %v5989, %v6019
    %v6021 = vlaneseq
    %v6022 = vshrl.u32 %v6021, 7
    %v6023 = vsub.s32 7, %v6022
    %v6024 = vrot.slane %v5989, %v6023
    %v6025 = vlaneseq
    %v6026 = vshrl.u32 %v6025, 7
    %v6027 = vsub.s32 0, %v6026
    %v6028 = vrot.slane %v5990, %v6027
    %v6029 = vlaneseq
    %v6030 = vshrl.u32 %v6029, 7
    %v6031 = vsub.s32 1, %v6030
    %v6032 = vrot.slane %v5990, %v6031
    %v6283 = vunpack.c.l.b16 %v5748
    %v6284 = vunpack.c.h.b16 %v5748
    %v6285 = vunpack.c.l.b16 %v5749
    %v6286 = vunpack.c.h.b16 %v5749
    %v6287 = vunpack.c.l.b16 %v5750
    %v6288 = vunpack.c.h.b16 %v5750
    %v6289 = vunpack.c.l.b16 %v5751
    %v6290 = vunpack.c.h.b16 %v5751
    %v6291 = vunpack.c.l.b16 %v5752
    %v6292 = vunpack.c.h.b16 %v5752
    %v6293 = vunpack.c.l.b16 %v5753
    %v6294 = vunpack.c.h.b16 %v5753
    %v6295 = vunpack.c.l.b16 %v5754
    %v6296 = vunpack.c.h.b16 %v5754
    %v6297 = vunpack.c.l.b16 %v5755
    %v6298 = vunpack.c.h.b16 %v5755
    %v6299 = vunpack.c.l.b16 %v5756
    %v6300 = vunpack.c.h.b16 %v5756
    %v6301 = vunpack.c.l.b16 %v5757
    %v6302 = vunpack.c.h.b16 %v5757
    %v6303 = vunpack.c.l.b16 %v5758
    %v6304 = vunpack.c.h.b16 %v5758
    %v6305 = vunpack.c.l.b16 %v5759
    %v6306 = vunpack.c.h.b16 %v5759
    %v6307 = vunpack.c.l.b16 %v5760
    %v6308 = vunpack.c.h.b16 %v5760
    %v6309 = vunpack.c.l.b16 %v5761
    %v6310 = vunpack.c.h.b16 %v5761
    %v6311 = vunpack.c.l.b16 %v5762
    %v6312 = vunpack.c.h.b16 %v5762
    %v6313 = vunpack.c.l.b16 %v5763
    %v6314 = vunpack.c.h.b16 %v5763
    %v6315 = vunpack.c.l.b16 %v5764
    %v6316 = vunpack.c.h.b16 %v5764
    %v6317 = vunpack.c.l.b16 %v5765
    %v6318 = vunpack.c.h.b16 %v5765
    %v6319 = vunpack.c.l.b16 %v5766
    %v6320 = vunpack.c.h.b16 %v5766
    %v6321 = vunpack.c.l.b16 %v5767
    %v6322 = vunpack.c.h.b16 %v5767
    %v6323 = vunpack.c.l.b16 %v5768
    %v6324 = vunpack.c.h.b16 %v5768
    %v6325 = vunpack.c.l.b16 %v5769
    %v6326 = vunpack.c.h.b16 %v5769
    %v6327 = vunpack.c.l.b16 %v5770
    %v6328 = vunpack.c.h.b16 %v5770
    %v6329 = vunpack.c.l.b16 %v5771
    %v6330 = vunpack.c.h.b16 %v5771
    %v6331 = vunpack.c.l.b16 %v5772
    %v6332 = vunpack.c.h.b16 %v5772
    %v6333 = vunpack.c.l.b16 %v5773
    %v6334 = vunpack.c.h.b16 %v5773
    %v6335 = vunpack.c.l.b16 %v5774
    %v6336 = vunpack.c.h.b16 %v5774
    %v6337 = vunpack.c.l.b16 %v5775
    %v6338 = vunpack.c.h.b16 %v5775
    %v6339 = vunpack.c.l.b16 %v5776
    %v6340 = vunpack.c.h.b16 %v5776
    %v6341 = vunpack.c.l.b16 %v5777
    %v6342 = vunpack.c.h.b16 %v5777
    %v6343 = vunpack.c.l.b16 %v5778
    %v6344 = vunpack.c.h.b16 %v5778
    %v6345 = vunpack.c.l.b16 %v5779
    %v6346 = vunpack.c.h.b16 %v5779
    %v6347 = vunpack.c.l.b16 %v5780
    %v6348 = vunpack.c.h.b16 %v5780
    %v6349 = vunpack.c.l.b16 %v5781
    %v6350 = vunpack.c.h.b16 %v5781
    %v6351 = vunpack.c.l.b16 %v5782
    %v6352 = vunpack.c.h.b16 %v5782
    %v6353 = vunpack.c.l.b16 %v5783
    %v6354 = vunpack.c.h.b16 %v5783
    %v6355 = vunpack.c.l.b16 %v5784
    %v6356 = vunpack.c.h.b16 %v5784
    %v6357 = vunpack.c.l.b16 %v5785
    %v6358 = vunpack.c.h.b16 %v5785
    %v6359 = vunpack.c.l.b16 %v5786
    %v6360 = vunpack.c.h.b16 %v5786
    %v6361 = vunpack.c.l.b16 %v5787
    %v6362 = vunpack.c.h.b16 %v5787
    %v6363 = vunpack.c.l.b16 %v5788
    %v6364 = vunpack.c.h.b16 %v5788
    %v6365 = vunpack.c.l.b16 %v5789
    %v6366 = vunpack.c.h.b16 %v5789
    %v6367 = vunpack.c.l.b16 %v5790
    %v6368 = vunpack.c.h.b16 %v5790
    %v6369 = vunpack.c.l.b16 %v5791
    %v6370 = vunpack.c.h.b16 %v5791
    %v6371 = vunpack.c.l.b16 %v5792
    %v6372 = vunpack.c.h.b16 %v5792
    %v6373 = vunpack.c.l.b16 %v5793
    %v6374 = vunpack.c.h.b16 %v5793
    %v6375 = vunpack.c.l.b16 %v5794
    %v6376 = vunpack.c.h.b16 %v5794
    %v6377 = vunpack.c.l.b16 %v5795
    %v6378 = vunpack.c.h.b16 %v5795
    %v6379 = vunpack.c.l.b16 %v5796
    %v6380 = vunpack.c.h.b16 %v5796
    %v6381 = vunpack.c.l.b16 %v5797
    %v6382 = vunpack.c.h.b16 %v5797
    %v6383 = vunpack.c.l.b16 %v5798
    %v6384 = vunpack.c.h.b16 %v5798
    %v6385 = vunpack.c.l.b16 %v5799
    %v6386 = vunpack.c.h.b16 %v5799
    %v6387 = vunpack.c.l.b16 %v5800
    %v6388 = vunpack.c.h.b16 %v5800
    %v6389 = vunpack.c.l.b16 %v5801
    %v6390 = vunpack.c.h.b16 %v5801
    %v6391 = vunpack.c.l.b16 %v5802
    %v6392 = vunpack.c.h.b16 %v5802
    %v6393 = vunpack.c.l.b16 %v5803
    %v6394 = vunpack.c.h.b16 %v5803
    %v6395 = vunpack.c.l.b16 %v5804
    %v6396 = vunpack.c.h.b16 %v5804
    %v6397 = vunpack.c.l.b16 %v5805
    %v6398 = vunpack.c.h.b16 %v5805
    %v6399 = vunpack.c.l.b16 %v5806
    %v6400 = vunpack.c.h.b16 %v5806
    %v6401 = vunpack.c.l.b16 %v5807
    %v6402 = vunpack.c.h.b16 %v5807
    %v6403 = vunpack.c.l.b16 %v5808
    %v6404 = vunpack.c.h.b16 %v5808
    %v6405 = vunpack.c.l.b16 %v5809
    %v6406 = vunpack.c.h.b16 %v5809
    %v6407 = vunpack.c.l.b16 %v5810
    %v6408 = vunpack.c.h.b16 %v5810
    %v6409 = vunpack.c.l.b16 %v5811
    %v6410 = vunpack.c.h.b16 %v5811
    %v6411 = vunpack.c.l.b16 %v5812
    %v6412 = vunpack.c.h.b16 %v5812
    %v6413 = vunpack.c.l.b16 %v5813
    %v6414 = vunpack.c.h.b16 %v5813
    %v6415 = vunpack.c.l.b16 %v5814
    %v6416 = vunpack.c.h.b16 %v5814
    %v6417 = vunpack.c.l.b16 %v5815
    %v6418 = vunpack.c.h.b16 %v5815
    %v6419 = vunpack.c.l.b16 %v5816
    %v6420 = vunpack.c.h.b16 %v5816
    %v6421 = vunpack.c.l.b16 %v5817
    %v6422 = vunpack.c.h.b16 %v5817
    %v6423 = vunpack.c.l.b16 %v5818
    %v6424 = vunpack.c.h.b16 %v5818
    %v6425 = vunpack.c.l.b16 %v5819
    %v6426 = vunpack.c.h.b16 %v5819
    %v6427 = vunpack.c.l.b16 %v5820
    %v6428 = vunpack.c.h.b16 %v5820
    %v6429 = vunpack.c.l.b16 %v5821
    %v6430 = vunpack.c.h.b16 %v5821
    %v6431 = vunpack.c.l.b16 %v5822
    %v6432 = vunpack.c.h.b16 %v5822
    %v6433 = vunpack.c.l.b16 %v5823
    %v6434 = vunpack.c.h.b16 %v5823
    %v6435 = vunpack.c.l.b16 %v5824
    %v6436 = vunpack.c.h.b16 %v5824
    %v6437 = vunpack.c.l.b16 %v5825
    %v6438 = vunpack.c.h.b16 %v5825
    %v6439 = vunpack.c.l.b16 %v5826
    %v6440 = vunpack.c.h.b16 %v5826
    %v6441 = vunpack.c.l.b16 %v5827
    %v6442 = vunpack.c.h.b16 %v5827
    %v6443 = vunpack.c.l.b16 %v5828
    %v6444 = vunpack.c.h.b16 %v5828
    %v6445 = vunpack.c.l.b16 %v5829
    %v6446 = vunpack.c.h.b16 %v5829
    %v6447 = vunpack.c.l.b16 %v5830
    %v6448 = vunpack.c.h.b16 %v5830
    %v6449 = vunpack.c.l.b16 %v5831
    %v6450 = vunpack.c.h.b16 %v5831
    %v6451 = vunpack.c.l.b16 %v5832
    %v6452 = vunpack.c.h.b16 %v5832
    %v6453 = vunpack.c.l.b16 %v5833
    %v6454 = vunpack.c.h.b16 %v5833
    %v6455 = vunpack.c.l.b16 %v5834
    %v6456 = vunpack.c.h.b16 %v5834
    %v6457 = vunpack.c.l.b16 %v5835
    %v6458 = vunpack.c.h.b16 %v5835
    %v6459 = vunpack.c.l.b16 %v5836
    %v6460 = vunpack.c.h.b16 %v5836
    %v6461 = vunpack.c.l.b16 %v5837
    %v6462 = vunpack.c.h.b16 %v5837
    %v6463 = vunpack.c.l.b16 %v5838
    %v6464 = vunpack.c.h.b16 %v5838
    %v6465 = vunpack.c.l.b16 %v5839
    %v6466 = vunpack.c.h.b16 %v5839
    %v6467 = vunpack.c.l.b16 %v5840
    %v6468 = vunpack.c.h.b16 %v5840
    %v6469 = vunpack.c.l.b16 %v5841
    %v6470 = vunpack.c.h.b16 %v5841
    %v6471 = vunpack.c.l.b16 %v5842
    %v6472 = vunpack.c.h.b16 %v5842
    %v6473 = vunpack.c.l.b16 %v5843
    %v6474 = vunpack.c.h.b16 %v5843
    %v6475 = vunpack.c.l.b16 %v5844
    %v6476 = vunpack.c.h.b16 %v5844
    %v6477 = vunpack.c.l.b16 %v5845
    %v6478 = vunpack.c.h.b16 %v5845
    %v6479 = vunpack.c.l.b16 %v5846
    %v6480 = vunpack.c.h.b16 %v5846
    %v6481 = vunpack.c.l.b16 %v5847
    %v6482 = vunpack.c.h.b16 %v5847
    %v6483 = vunpack.c.l.b16 %v5848
    %v6484 = vunpack.c.h.b16 %v5848
    %v6485 = vunpack.c.l.b16 %v5849
    %v6486 = vunpack.c.h.b16 %v5849
    %v6487 = vunpack.c.l.b16 %v5850
    %v6488 = vunpack.c.h.b16 %v5850
    %v6489 = vunpack.c.l.b16 %v5851
    %v6490 = vunpack.c.h.b16 %v5851
    %v6491 = vunpack.c.l.b16 %v5852
    %v6492 = vunpack.c.h.b16 %v5852
    %v6493 = vunpack.c.l.b16 %v5853
    %v6494 = vunpack.c.h.b16 %v5853
    %v6495 = vunpack.c.l.b16 %v5854
    %v6496 = vunpack.c.h.b16 %v5854
    %v6497 = vunpack.c.l.b16 %v5855
    %v6498 = vunpack.c.h.b16 %v5855
    %v6499 = vunpack.c.l.b16 %v5856
    %v6500 = vunpack.c.h.b16 %v5856
    %v6501 = vunpack.c.l.b16 %v5857
    %v6502 = vunpack.c.h.b16 %v5857
    %v6503 = vunpack.c.l.b16 %v5858
    %v6504 = vunpack.c.h.b16 %v5858
    %v6505 = vunpack.c.l.b16 %v5859
    %v6506 = vunpack.c.h.b16 %v5859
    %v6507 = vunpack.c.l.b16 %v5860
    %v6508 = vunpack.c.h.b16 %v5860
    %v6509 = vunpack.c.l.b16 %v5861
    %v6510 = vunpack.c.h.b16 %v5861
    %v6511 = vunpack.c.l.b16 %v5862
    %v6512 = vunpack.c.h.b16 %v5862
    %v6513 = vunpack.c.l.b16 %v5863
    %v6514 = vunpack.c.h.b16 %v5863
    %v6515 = vunpack.c.l.b16 %v5864
    %v6516 = vunpack.c.h.b16 %v5864
    %v6517 = vunpack.c.l.b16 %v5865
    %v6518 = vunpack.c.h.b16 %v5865
    %v6519 = vunpack.c.l.b16 %v5866
    %v6520 = vunpack.c.h.b16 %v5866
    %v6521 = vunpack.c.l.b16 %v5867
    %v6522 = vunpack.c.h.b16 %v5867
    %v6523 = vunpack.c.l.b16 %v5868
    %v6524 = vunpack.c.h.b16 %v5868
    %v6525 = vunpack.c.l.b16 %v5869
    %v6526 = vunpack.c.h.b16 %v5869
    %v6527 = vunpack.c.l.b16 %v5870
    %v6528 = vunpack.c.h.b16 %v5870
    %v6529 = vunpack.c.l.b16 %v5871
    %v6530 = vunpack.c.h.b16 %v5871
    %v6531 = vunpack.c.l.b16 %v5872
    %v6532 = vunpack.c.h.b16 %v5872
    %v6533 = vunpack.c.l.b16 %v5873
    %v6534 = vunpack.c.h.b16 %v5873
    %v6535 = vunpack.c.l.b16 %v5874
    %v6536 = vunpack.c.h.b16 %v5874
    %v6537 = vunpack.c.l.b16 %v5875
    %v6538 = vunpack.c.h.b16 %v5875
    %v6539 = vunpack.c.l.b16 %v5876
    %v6540 = vunpack.c.h.b16 %v5876
    %v6541 = vunpack.c.l.b16 %v5877
    %v6542 = vunpack.c.h.b16 %v5877
    %v6543 = vunpack.c.l.b16 %v5878
    %v6544 = vunpack.c.h.b16 %v5878
    %v6545 = vunpack.c.l.b16 %v5879
    %v6546 = vunpack.c.h.b16 %v5879
    %v6547 = vunpack.c.l.b16 %v5880
    %v6548 = vunpack.c.h.b16 %v5880
    %v6549 = vunpack.c.l.b16 %v5881
    %v6550 = vunpack.c.h.b16 %v5881
    %v6551 = vunpack.c.l.b16 %v5882
    %v6552 = vunpack.c.h.b16 %v5882
    %v6553 = vunpack.c.l.b16 %v5883
    %v6554 = vunpack.c.h.b16 %v5883
    %v6555 = vunpack.c.l.b16 %v5884
    %v6556 = vunpack.c.h.b16 %v5884
    %v6557 = vunpack.c.l.b16 %v5885
    %v6558 = vunpack.c.h.b16 %v5885
    %v6559 = vunpack.c.l.b16 %v5886
    %v6560 = vunpack.c.h.b16 %v5886
    %v6561 = vunpack.c.l.b16 %v5887
    %v6562 = vunpack.c.h.b16 %v5887
    %v6563 = vunpack.c.l.b16 %v5888
    %v6564 = vunpack.c.h.b16 %v5888
    %v6565 = vunpack.c.l.b16 %v5889
    %v6566 = vunpack.c.h.b16 %v5889
    %v6567 = vunpack.c.l.b16 %v5890
    %v6568 = vunpack.c.h.b16 %v5890
    %v6569 = vunpack.c.l.b16 %v5891
    %v6570 = vunpack.c.h.b16 %v5891
    %v6571 = vunpack.c.l.b16 %v5892
    %v6572 = vunpack.c.h.b16 %v5892
    %v6573 = vunpack.c.l.b16 %v5893
    %v6574 = vunpack.c.h.b16 %v5893
    %v6575 = vunpack.c.l.b16 %v5894
    %v6576 = vunpack.c.h.b16 %v5894
    %v6577 = vunpack.c.l.b16 %v5895
    %v6578 = vunpack.c.h.b16 %v5895
    %v6579 = vunpack.c.l.b16 %v5896
    %v6580 = vunpack.c.h.b16 %v5896
    %v6581 = vunpack.c.l.b16 %v5897
    %v6582 = vunpack.c.h.b16 %v5897
    %v6583 = vunpack.c.l.b16 %v5898
    %v6584 = vunpack.c.h.b16 %v5898
    %v6585 = vunpack.c.l.b16 %v5899
    %v6586 = vunpack.c.h.b16 %v5899
    %v6587 = vunpack.c.l.b16 %v5900
    %v6588 = vunpack.c.h.b16 %v5900
    %v6589 = vunpack.c.l.b16 %v5901
    %v6590 = vunpack.c.h.b16 %v5901
    %v6591 = vunpack.c.l.b16 %v5902
    %v6592 = vunpack.c.h.b16 %v5902
    %v6593 = vunpack.c.l.b16 %v5903
    %v6594 = vunpack.c.h.b16 %v5903
    %v6595 = vunpack.c.l.b16 %v5904
    %v6596 = vunpack.c.h.b16 %v5904
    %v6597 = vunpack.c.l.b16 %v5905
    %v6598 = vunpack.c.h.b16 %v5905
    %v6599 = vunpack.c.l.b16 %v5906
    %v6600 = vunpack.c.h.b16 %v5906
    %v6601 = vunpack.c.l.b16 %v5907
    %v6602 = vunpack.c.h.b16 %v5907
    %v6603 = vunpack.c.l.b16 %v5908
    %v6604 = vunpack.c.h.b16 %v5908
    %v6605 = vunpack.c.l.b16 %v5909
    %v6606 = vunpack.c.h.b16 %v5909
    %v6607 = vunpack.c.l.b16 %v5910
    %v6608 = vunpack.c.h.b16 %v5910
    %v6609 = vunpack.c.l.b16 %v5911
    %v6610 = vunpack.c.h.b16 %v5911
    %v6611 = vunpack.c.l.b16 %v5912
    %v6612 = vunpack.c.h.b16 %v5912
    %v6613 = vunpack.c.l.b16 %v5913
    %v6614 = vunpack.c.h.b16 %v5913
    %v6615 = vunpack.c.l.b16 %v5914
    %v6616 = vunpack.c.h.b16 %v5914
    %v6617 = vunpack.c.l.b16 %v5915
    %v6618 = vunpack.c.h.b16 %v5915
    %v6619 = vunpack.c.l.b16 %v5916
    %v6620 = vunpack.c.h.b16 %v5916
    %v6621 = vunpack.c.l.b16 %v5917
    %v6622 = vunpack.c.h.b16 %v5917
    %v6623 = vunpack.c.l.b16 %v5918
    %v6624 = vunpack.c.h.b16 %v5918
    %v6625 = vunpack.c.l.b16 %v5919
    %v6626 = vunpack.c.h.b16 %v5919
    %v6627 = vunpack.c.l.b16 %v5920
    %v6628 = vunpack.c.h.b16 %v5920
    %v6629 = vunpack.c.l.b16 %v5921
    %v6630 = vunpack.c.h.b16 %v5921
    %v6631 = vunpack.c.l.b16 %v5922
    %v6632 = vunpack.c.h.b16 %v5922
    %v6633 = vunpack.c.l.b16 %v5923
    %v6634 = vunpack.c.h.b16 %v5923
    %v6635 = vunpack.c.l.b16 %v5924
    %v6636 = vunpack.c.h.b16 %v5924
    %v6637 = vunpack.c.l.b16 %v5925
    %v6638 = vunpack.c.h.b16 %v5925
    %v6639 = vunpack.c.l.b16 %v5926
    %v6640 = vunpack.c.h.b16 %v5926
    %v6641 = vunpack.c.l.b16 %v5927
    %v6642 = vunpack.c.h.b16 %v5927
    %v6643 = vunpack.c.l.b16 %v5928
    %v6644 = vunpack.c.h.b16 %v5928
    %v6645 = vunpack.c.l.b16 %v5929
    %v6646 = vunpack.c.h.b16 %v5929
    %v6647 = vunpack.c.l.b16 %v5930
    %v6648 = vunpack.c.h.b16 %v5930
    %v6649 = vunpack.c.l.b16 %v5931
    %v6650 = vunpack.c.h.b16 %v5931
    %v6651 = vunpack.c.l.b16 %v5932
    %v6652 = vunpack.c.h.b16 %v5932
    %v6653 = vunpack.c.l.b16 %v5933
    %v6654 = vunpack.c.h.b16 %v5933
    %v6655 = vunpack.c.l.b16 %v5934
    %v6656 = vunpack.c.h.b16 %v5934
    %v6657 = vunpack.c.l.b16 %v5935
    %v6658 = vunpack.c.h.b16 %v5935
    %v6659 = vunpack.c.l.b16 %v5936
    %v6660 = vunpack.c.h.b16 %v5936
    %v6661 = vunpack.c.l.b16 %v5937
    %v6662 = vunpack.c.h.b16 %v5937
    %v6663 = vunpack.c.l.b16 %v5938
    %v6664 = vunpack.c.h.b16 %v5938
    %v6665 = vunpack.c.l.b16 %v5939
    %v6666 = vunpack.c.h.b16 %v5939
    %v6667 = vunpack.c.l.b16 %v5940
    %v6668 = vunpack.c.h.b16 %v5940
    %v6669 = vunpack.c.l.b16 %v5941
    %v6670 = vunpack.c.h.b16 %v5941
    %v6671 = vunpack.c.l.b16 %v5942
    %v6672 = vunpack.c.h.b16 %v5942
    %v6673 = vunpack.c.l.b16 %v5943
    %v6674 = vunpack.c.h.b16 %v5943
    %v6675 = vunpack.c.l.b16 %v5944
    %v6676 = vunpack.c.h.b16 %v5944
    %v6677 = vunpack.c.l.b16 %v5945
    %v6678 = vunpack.c.h.b16 %v5945
    %v6679 = vunpack.c.l.b16 %v5946
    %v6680 = vunpack.c.h.b16 %v5946
    %v6681 = vunpack.c.l.b16 %v5947
    %v6682 = vunpack.c.h.b16 %v5947
    %v6683 = vunpack.c.l.b16 %v5948
    %v6684 = vunpack.c.h.b16 %v5948
    %v6685 = vunpack.c.l.b16 %v5949
    %v6686 = vunpack.c.h.b16 %v5949
    %v6687 = vunpack.c.l.b16 %v5950
    %v6688 = vunpack.c.h.b16 %v5950
    %v6689 = vunpack.c.l.b16 %v5951
    %v6690 = vunpack.c.h.b16 %v5951
    %v6691 = vunpack.c.l.b16 %v5952
    %v6692 = vunpack.c.h.b16 %v5952
    %v6693 = vunpack.c.l.b16 %v5953
    %v6694 = vunpack.c.h.b16 %v5953
    %v6695 = vunpack.c.l.b16 %v5954
    %v6696 = vunpack.c.h.b16 %v5954
    %v6697 = vunpack.c.l.b16 %v5955
    %v6698 = vunpack.c.h.b16 %v5955
    %v6699 = vunpack.c.l.b16 %v5956
    %v6700 = vunpack.c.h.b16 %v5956
    %v6701 = vunpack.c.l.b16 %v5957
    %v6702 = vunpack.c.h.b16 %v5957
    %v6703 = vunpack.c.l.b16 %v5958
    %v6704 = vunpack.c.h.b16 %v5958
    %v6705 = vunpack.c.l.b16 %v5959
    %v6706 = vunpack.c.h.b16 %v5959
    %v6707 = vunpack.c.l.b16 %v5960
    %v6708 = vunpack.c.h.b16 %v5960
    %v6709 = vunpack.c.l.b16 %v5961
    %v6710 = vunpack.c.h.b16 %v5961
    %v6711 = vunpack.c.l.b16 %v5962
    %v6712 = vunpack.c.h.b16 %v5962
    %v6713 = vunpack.c.l.b16 %v5963
    %v6714 = vunpack.c.h.b16 %v5963
    %v6715 = vunpack.c.l.b16 %v5964
    %v6716 = vunpack.c.h.b16 %v5964
    %v6717 = vunpack.c.l.b16 %v5965
    %v6718 = vunpack.c.h.b16 %v5965
    %v6719 = vunpack.c.l.b16 %v5966
    %v6720 = vunpack.c.h.b16 %v5966
    %v6721 = vunpack.c.l.b16 %v5967
    %v6722 = vunpack.c.h.b16 %v5967
    %v6723 = vunpack.c.l.b16 %v5968
    %v6724 = vunpack.c.h.b16 %v5968
    %v6725 = vunpack.c.l.b16 %v5969
    %v6726 = vunpack.c.h.b16 %v5969
    %v6727 = vunpack.c.l.b16 %v5970
    %v6728 = vunpack.c.h.b16 %v5970
    %v6729 = vunpack.c.l.b16 %v5971
    %v6730 = vunpack.c.h.b16 %v5971
    %v6731 = vunpack.c.l.b16 %v5972
    %v6732 = vunpack.c.h.b16 %v5972
    %v6733 = vunpack.c.l.b16 %v5973
    %v6734 = vunpack.c.h.b16 %v5973
    %v6735 = vunpack.c.l.b16 %v5974
    %v6736 = vunpack.c.h.b16 %v5974
    %v6737 = vunpack.c.l.b16 %v5975
    %v6738 = vunpack.c.h.b16 %v5975
    %v6739 = vunpack.c.l.b16 %v5976
    %v6740 = vunpack.c.h.b16 %v5976
    %v6741 = vunpack.c.l.b16 %v5977
    %v6742 = vunpack.c.h.b16 %v5977
    %v6743 = vunpack.c.l.b16 %v5978
    %v6744 = vunpack.c.h.b16 %v5978
    %v6745 = vunpack.c.l.b16 %v5979
    %v6746 = vunpack.c.h.b16 %v5979
    %v6747 = vunpack.c.l.b16 %v5980
    %v6748 = vunpack.c.h.b16 %v5980
    %v6749 = vunpack.c.l.b16 %v5981
    %v6750 = vunpack.c.h.b16 %v5981
    %v6751 = vunpack.c.l.b16 %v5982
    %v6752 = vunpack.c.h.b16 %v5982
    %v6753 = vunpack.c.l.b16 %v5983
    %v6754 = vunpack.c.h.b16 %v5983
    %v6755 = vunpack.c.l.b16 %v5984
    %v6756 = vunpack.c.h.b16 %v5984
    %v6757 = vunpack.c.l.b16 %v5985
    %v6758 = vunpack.c.h.b16 %v5985
    %v6759 = vunpack.c.l.b16 %v5986
    %v6760 = vunpack.c.h.b16 %v5986
    %v6761 = vunpack.c.l.b16 %v5987
    %v6762 = vunpack.c.h.b16 %v5987
    %v6763 = vpack.c.b16 %v6293, %v6283
    %v6764 = vpack.c.b16 %v6294, %v6284
    %v6765 = vpack.c.b16 %v6295, %v6285
    %v6766 = vpack.c.b16 %v6296, %v6286
    %v6767 = vpack.c.b16 %v6297, %v6287
    %v6768 = vpack.c.b16 %v6298, %v6288
    %v6769 = vpack.c.b16 %v6299, %v6289
    %v6770 = vpack.c.b16 %v6300, %v6290
    %v6771 = vpack.c.b16 %v6301, %v6291
    %v6772 = vpack.c.b16 %v6302, %v6292
    %v6773 = vpack.c.b16 %v6313, %v6303
    %v6774 = vpack.c.b16 %v6314, %v6304
    %v6775 = vpack.c.b16 %v6315, %v6305
    %v6776 = vpack.c.b16 %v6316, %v6306
    %v6777 = vpack.c.b16 %v6317, %v6307
    %v6778 = vpack.c.b16 %v6318, %v6308
    %v6779 = vpack.c.b16 %v6319, %v6309
    %v6780 = vpack.c.b16 %v6320, %v6310
    %v6781 = vpack.c.b16 %v6321, %v6311
    %v6782 = vpack.c.b16 %v6322, %v6312
    %v6783 = vpack.c.b16 %v6333, %v6323
    %v6784 = vpack.c.b16 %v6334, %v6324
    %v6785 = vpack.c.b16 %v6335, %v6325
    %v6786 = vpack.c.b16 %v6336, %v6326
    %v6787 = vpack.c.b16 %v6337, %v6327
    %v6788 = vpack.c.b16 %v6338, %v6328
    %v6789 = vpack.c.b16 %v6339, %v6329
    %v6790 = vpack.c.b16 %v6340, %v6330
    %v6791 = vpack.c.b16 %v6341, %v6331
    %v6792 = vpack.c.b16 %v6342, %v6332
    %v6793 = vpack.c.b16 %v6353, %v6343
    %v6794 = vpack.c.b16 %v6354, %v6344
    %v6795 = vpack.c.b16 %v6355, %v6345
    %v6796 = vpack.c.b16 %v6356, %v6346
    %v6797 = vpack.c.b16 %v6357, %v6347
    %v6798 = vpack.c.b16 %v6358, %v6348
    %v6799 = vpack.c.b16 %v6359, %v6349
    %v6800 = vpack.c.b16 %v6360, %v6350
    %v6801 = vpack.c.b16 %v6361, %v6351
    %v6802 = vpack.c.b16 %v6362, %v6352
    %v6803 = vpack.c.b16 %v6373, %v6363
    %v6804 = vpack.c.b16 %v6374, %v6364
    %v6805 = vpack.c.b16 %v6375, %v6365
    %v6806 = vpack.c.b16 %v6376, %v6366
    %v6807 = vpack.c.b16 %v6377, %v6367
    %v6808 = vpack.c.b16 %v6378, %v6368
    %v6809 = vpack.c.b16 %v6379, %v6369
    %v6810 = vpack.c.b16 %v6380, %v6370
    %v6811 = vpack.c.b16 %v6381, %v6371
    %v6812 = vpack.c.b16 %v6382, %v6372
    %v6813 = vpack.c.b16 %v6393, %v6383
    %v6814 = vpack.c.b16 %v6394, %v6384
    %v6815 = vpack.c.b16 %v6395, %v6385
    %v6816 = vpack.c.b16 %v6396, %v6386
    %v6817 = vpack.c.b16 %v6397, %v6387
    %v6818 = vpack.c.b16 %v6398, %v6388
    %v6819 = vpack.c.b16 %v6399, %v6389
    %v6820 = vpack.c.b16 %v6400, %v6390
    %v6821 = vpack.c.b16 %v6401, %v6391
    %v6822 = vpack.c.b16 %v6402, %v6392
    %v6823 = vpack.c.b16 %v6413, %v6403
    %v6824 = vpack.c.b16 %v6414, %v6404
    %v6825 = vpack.c.b16 %v6415, %v6405
    %v6826 = vpack.c.b16 %v6416, %v6406
    %v6827 = vpack.c.b16 %v6417, %v6407
    %v6828 = vpack.c.b16 %v6418, %v6408
    %v6829 = vpack.c.b16 %v6419, %v6409
    %v6830 = vpack.c.b16 %v6420, %v6410
    %v6831 = vpack.c.b16 %v6421, %v6411
    %v6832 = vpack.c.b16 %v6422, %v6412
    %v6833 = vpack.c.b16 %v6433, %v6423
    %v6834 = vpack.c.b16 %v6434, %v6424
    %v6835 = vpack.c.b16 %v6435, %v6425
    %v6836 = vpack.c.b16 %v6436, %v6426
    %v6837 = vpack.c.b16 %v6437, %v6427
    %v6838 = vpack.c.b16 %v6438, %v6428
    %v6839 = vpack.c.b16 %v6439, %v6429
    %v6840 = vpack.c.b16 %v6440, %v6430
    %v6841 = vpack.c.b16 %v6441, %v6431
    %v6842 = vpack.c.b16 %v6442, %v6432
    %v6843 = vpack.c.b16 %v6453, %v6443
    %v6844 = vpack.c.b16 %v6454, %v6444
    %v6845 = vpack.c.b16 %v6455, %v6445
    %v6846 = vpack.c.b16 %v6456, %v6446
    %v6847 = vpack.c.b16 %v6457, %v6447
    %v6848 = vpack.c.b16 %v6458, %v6448
    %v6849 = vpack.c.b16 %v6459, %v6449
    %v6850 = vpack.c.b16 %v6460, %v6450
    %v6851 = vpack.c.b16 %v6461, %v6451
    %v6852 = vpack.c.b16 %v6462, %v6452
    %v6853 = vpack.c.b16 %v6473, %v6463
    %v6854 = vpack.c.b16 %v6474, %v6464
    %v6855 = vpack.c.b16 %v6475, %v6465
    %v6856 = vpack.c.b16 %v6476, %v6466
    %v6857 = vpack.c.b16 %v6477, %v6467
    %v6858 = vpack.c.b16 %v6478, %v6468
    %v6859 = vpack.c.b16 %v6479, %v6469
    %v6860 = vpack.c.b16 %v6480, %v6470
    %v6861 = vpack.c.b16 %v6481, %v6471
    %v6862 = vpack.c.b16 %v6482, %v6472
    %v6863 = vpack.c.b16 %v6493, %v6483
    %v6864 = vpack.c.b16 %v6494, %v6484
    %v6865 = vpack.c.b16 %v6495, %v6485
    %v6866 = vpack.c.b16 %v6496, %v6486
    %v6867 = vpack.c.b16 %v6497, %v6487
    %v6868 = vpack.c.b16 %v6498, %v6488
    %v6869 = vpack.c.b16 %v6499, %v6489
    %v6870 = vpack.c.b16 %v6500, %v6490
    %v6871 = vpack.c.b16 %v6501, %v6491
    %v6872 = vpack.c.b16 %v6502, %v6492
    %v6873 = vpack.c.b16 %v6513, %v6503
    %v6874 = vpack.c.b16 %v6514, %v6504
    %v6875 = vpack.c.b16 %v6515, %v6505
    %v6876 = vpack.c.b16 %v6516, %v6506
    %v6877 = vpack.c.b16 %v6517, %v6507
    %v6878 = vpack.c.b16 %v6518, %v6508
    %v6879 = vpack.c.b16 %v6519, %v6509
    %v6880 = vpack.c.b16 %v6520, %v6510
    %v6881 = vpack.c.b16 %v6521, %v6511
    %v6882 = vpack.c.b16 %v6522, %v6512
    %v6883 = vpack.c.b16 %v6533, %v6523
    %v6884 = vpack.c.b16 %v6534, %v6524
    %v6885 = vpack.c.b16 %v6535, %v6525
    %v6886 = vpack.c.b16 %v6536, %v6526
    %v6887 = vpack.c.b16 %v6537, %v6527
    %v6888 = vpack.c.b16 %v6538, %v6528
    %v6889 = vpack.c.b16 %v6539, %v6529
    %v6890 = vpack.c.b16 %v6540, %v6530
    %v6891 = vpack.c.b16 %v6541, %v6531
    %v6892 = vpack.c.b16 %v6542, %v6532
    %v6893 = vpack.c.b16 %v6553, %v6543
    %v6894 = vpack.c.b16 %v6554, %v6544
    %v6895 = vpack.c.b16 %v6555, %v6545
    %v6896 = vpack.c.b16 %v6556, %v6546
    %v6897 = vpack.c.b16 %v6557, %v6547
    %v6898 = vpack.c.b16 %v6558, %v6548
    %v6899 = vpack.c.b16 %v6559, %v6549
    %v6900 = vpack.c.b16 %v6560, %v6550
    %v6901 = vpack.c.b16 %v6561, %v6551
    %v6902 = vpack.c.b16 %v6562, %v6552
    %v6903 = vpack.c.b16 %v6573, %v6563
    %v6904 = vpack.c.b16 %v6574, %v6564
    %v6905 = vpack.c.b16 %v6575, %v6565
    %v6906 = vpack.c.b16 %v6576, %v6566
    %v6907 = vpack.c.b16 %v6577, %v6567
    %v6908 = vpack.c.b16 %v6578, %v6568
    %v6909 = vpack.c.b16 %v6579, %v6569
    %v6910 = vpack.c.b16 %v6580, %v6570
    %v6911 = vpack.c.b16 %v6581, %v6571
    %v6912 = vpack.c.b16 %v6582, %v6572
    %v6913 = vpack.c.b16 %v6593, %v6583
    %v6914 = vpack.c.b16 %v6594, %v6584
    %v6915 = vpack.c.b16 %v6595, %v6585
    %v6916 = vpack.c.b16 %v6596, %v6586
    %v6917 = vpack.c.b16 %v6597, %v6587
    %v6918 = vpack.c.b16 %v6598, %v6588
    %v6919 = vpack.c.b16 %v6599, %v6589
    %v6920 = vpack.c.b16 %v6600, %v6590
    %v6921 = vpack.c.b16 %v6601, %v6591
    %v6922 = vpack.c.b16 %v6602, %v6592
    %v6923 = vpack.c.b16 %v6613, %v6603
    %v6924 = vpack.c.b16 %v6614, %v6604
    %v6925 = vpack.c.b16 %v6615, %v6605
    %v6926 = vpack.c.b16 %v6616, %v6606
    %v6927 = vpack.c.b16 %v6617, %v6607
    %v6928 = vpack.c.b16 %v6618, %v6608
    %v6929 = vpack.c.b16 %v6619, %v6609
    %v6930 = vpack.c.b16 %v6620, %v6610
    %v6931 = vpack.c.b16 %v6621, %v6611
    %v6932 = vpack.c.b16 %v6622, %v6612
    %v6933 = vpack.c.b16 %v6633, %v6623
    %v6934 = vpack.c.b16 %v6634, %v6624
    %v6935 = vpack.c.b16 %v6635, %v6625
    %v6936 = vpack.c.b16 %v6636, %v6626
    %v6937 = vpack.c.b16 %v6637, %v6627
    %v6938 = vpack.c.b16 %v6638, %v6628
    %v6939 = vpack.c.b16 %v6639, %v6629
    %v6940 = vpack.c.b16 %v6640, %v6630
    %v6941 = vpack.c.b16 %v6641, %v6631
    %v6942 = vpack.c.b16 %v6642, %v6632
    %v6943 = vpack.c.b16 %v6653, %v6643
    %v6944 = vpack.c.b16 %v6654, %v6644
    %v6945 = vpack.c.b16 %v6655, %v6645
    %v6946 = vpack.c.b16 %v6656, %v6646
    %v6947 = vpack.c.b16 %v6657, %v6647
    %v6948 = vpack.c.b16 %v6658, %v6648
    %v6949 = vpack.c.b16 %v6659, %v6649
    %v6950 = vpack.c.b16 %v6660, %v6650
    %v6951 = vpack.c.b16 %v6661, %v6651
    %v6952 = vpack.c.b16 %v6662, %v6652
    %v6953 = vpack.c.b16 %v6673, %v6663
    %v6954 = vpack.c.b16 %v6674, %v6664
    %v6955 = vpack.c.b16 %v6675, %v6665
    %v6956 = vpack.c.b16 %v6676, %v6666
    %v6957 = vpack.c.b16 %v6677, %v6667
    %v6958 = vpack.c.b16 %v6678, %v6668
    %v6959 = vpack.c.b16 %v6679, %v6669
    %v6960 = vpack.c.b16 %v6680, %v6670
    %v6961 = vpack.c.b16 %v6681, %v6671
    %v6962 = vpack.c.b16 %v6682, %v6672
    %v6963 = vpack.c.b16 %v6693, %v6683
    %v6964 = vpack.c.b16 %v6694, %v6684
    %v6965 = vpack.c.b16 %v6695, %v6685
    %v6966 = vpack.c.b16 %v6696, %v6686
    %v6967 = vpack.c.b16 %v6697, %v6687
    %v6968 = vpack.c.b16 %v6698, %v6688
    %v6969 = vpack.c.b16 %v6699, %v6689
    %v6970 = vpack.c.b16 %v6700, %v6690
    %v6971 = vpack.c.b16 %v6701, %v6691
    %v6972 = vpack.c.b16 %v6702, %v6692
    %v6973 = vpack.c.b16 %v6713, %v6703
    %v6974 = vpack.c.b16 %v6714, %v6704
    %v6975 = vpack.c.b16 %v6715, %v6705
    %v6976 = vpack.c.b16 %v6716, %v6706
    %v6977 = vpack.c.b16 %v6717, %v6707
    %v6978 = vpack.c.b16 %v6718, %v6708
    %v6979 = vpack.c.b16 %v6719, %v6709
    %v6980 = vpack.c.b16 %v6720, %v6710
    %v6981 = vpack.c.b16 %v6721, %v6711
    %v6982 = vpack.c.b16 %v6722, %v6712
    %v6983 = vpack.c.b16 %v6733, %v6723
    %v6984 = vpack.c.b16 %v6734, %v6724
    %v6985 = vpack.c.b16 %v6735, %v6725
    %v6986 = vpack.c.b16 %v6736, %v6726
    %v6987 = vpack.c.b16 %v6737, %v6727
    %v6988 = vpack.c.b16 %v6738, %v6728
    %v6989 = vpack.c.b16 %v6739, %v6729
    %v6990 = vpack.c.b16 %v6740, %v6730
    %v6991 = vpack.c.b16 %v6741, %v6731
    %v6992 = vpack.c.b16 %v6742, %v6732
    %v6993 = vpack.c.b16 %v6753, %v6743
    %v6994 = vpack.c.b16 %v6754, %v6744
    %v6995 = vpack.c.b16 %v6755, %v6745
    %v6996 = vpack.c.b16 %v6756, %v6746
    %v6997 = vpack.c.b16 %v6757, %v6747
    %v6998 = vpack.c.b16 %v6758, %v6748
    %v6999 = vpack.c.b16 %v6759, %v6749
    %v7000 = vpack.c.b16 %v6760, %v6750
    %v7001 = vpack.c.b16 %v6761, %v6751
    %v7002 = vpack.c.b16 %v6762, %v6752
    %7243 = vmatprep.subr.bf16.mxu0 %v6834
    %7244 = vmatpush1.bf16.msra.mxu0 %v6833
    %7245 = vmatprep.subr.bf16.mxu0 %v6824
    %7246 = vmatpush1.bf16.msra.mxu0 %v6823
    %7247 = vmatprep.subr.bf16.mxu0 %v6814
    %7248 = vmatpush1.bf16.msra.mxu0 %v6813
    %7249 = vmatprep.subr.bf16.mxu0 %v6804
    %7250 = vmatpush1.bf16.msra.mxu0 %v6803
    %7251 = vmatprep.subr.bf16.mxu0 %v6794
    %7252 = vmatpush1.bf16.msra.mxu0 %v6793
    %7253 = vmatprep.subr.bf16.mxu0 %v6784
    %7254 = vmatpush1.bf16.msra.mxu0 %v6783
    %7255 = vmatprep.subr.bf16.mxu0 %v6774
    %7256 = vmatpush1.bf16.msra.mxu0 %v6773
    %7257 = vmatprep.subr.bf16.mxu0 %v6764
    %7258 = vmatpush1.bf16.msra.mxu0 %v6763
    %7259 = vmatprep.subr.bf16.mxu0 %v6914
    %7260 = vmatpush2.bf16.msra.mxu0 %v6913
    %7261 = vmatprep.subr.bf16.mxu0 %v6904
    %7262 = vmatpush2.bf16.msra.mxu0 %v6903
    %7263 = vmatprep.subr.bf16.mxu0 %v6894
    %7264 = vmatpush2.bf16.msra.mxu0 %v6893
    %7265 = vmatprep.subr.bf16.mxu0 %v6884
    %7266 = vmatpush2.bf16.msra.mxu0 %v6883
    %7267 = vmatprep.subr.bf16.mxu0 %v6874
    %7268 = vmatpush2.bf16.msra.mxu0 %v6873
    %7269 = vmatprep.subr.bf16.mxu0 %v6864
    %7270 = vmatpush2.bf16.msra.mxu0 %v6863
    %7271 = vmatprep.subr.bf16.mxu0 %v6854
    %7272 = vmatpush2.bf16.msra.mxu0 %v6853
    %7273 = vmatprep.subr.bf16.mxu0 %v6844
    %7274 = vmatpush2.bf16.msra.mxu0 %v6843
    %7275 = vmatprep.mubr.bf16.mxu0 %v1658
    %7276 = vmatmul.mubr.bf16.gmra.mxu0 %v1657
    %v7277 = vpop.f32.mrf.mxu0
    %v7278 = vadd.f32 %v5996, %v7277
    %v7279 = vpop.f32.mrf.mxu0
    %v7280 = vadd.f32 %v6000, %v7279
    %v7281 = vpop.f32.mrf.mxu0
    %v7282 = vpop.f32.mrf.mxu0
    %7283 = vdwg.mxu0
    %7284 = vmatprep.subr.bf16.mxu0 %v6994
    %7285 = vmatpush1.bf16.msra.mxu0 %v6993
    %7286 = vmatprep.subr.bf16.mxu0 %v6984
    %7287 = vmatpush1.bf16.msra.mxu0 %v6983
    %7288 = vmatprep.subr.bf16.mxu0 %v6974
    %7289 = vmatpush1.bf16.msra.mxu0 %v6973
    %7290 = vmatprep.subr.bf16.mxu0 %v6964
    %7291 = vmatpush1.bf16.msra.mxu0 %v6963
    %7292 = vmatprep.subr.bf16.mxu0 %v6954
    %7293 = vmatpush1.bf16.msra.mxu0 %v6953
    %7294 = vmatprep.subr.bf16.mxu0 %v6944
    %7295 = vmatpush1.bf16.msra.mxu0 %v6943
    %7296 = vmatprep.subr.bf16.mxu0 %v6934
    %7297 = vmatpush1.bf16.msra.mxu0 %v6933
    %7298 = vmatprep.subr.bf16.mxu0 %v6924
    %7299 = vmatpush1.bf16.msra.mxu0 %v6923
    %7300 = vmatprep.subr.bf16.mxu0 0
    %7301 = vmatpush2.bf16.msra.mxu0 0
    %7302 = vmatprep.subr.bf16.mxu0 0
    %7303 = vmatpush2.bf16.msra.mxu0 0
    %7304 = vmatprep.subr.bf16.mxu0 0
    %7305 = vmatpush2.bf16.msra.mxu0 0
    %7306 = vmatprep.subr.bf16.mxu0 0
    %7307 = vmatpush2.bf16.msra.mxu0 0
    %7308 = vmatprep.subr.bf16.mxu0 0
    %7309 = vmatpush2.bf16.msra.mxu0 0
    %7310 = vmatprep.subr.bf16.mxu0 0
    %7311 = vmatpush2.bf16.msra.mxu0 0
    %7312 = vmatprep.subr.bf16.mxu0 0
    %7313 = vmatpush2.bf16.msra.mxu0 0
    %7314 = vmatprep.subr.bf16.mxu0 0
    %7315 = vmatpush2.bf16.msra.mxu0 0
    %7316 = vmatprep.mubr.bf16.mxu0 0
    %7317 = vmatmul.mubr.bf16.gmra.mxu0 %v1659
    %v7318 = vpop.f32.mrf.mxu0
    %v7319 = vadd.f32 %v7278, %v7318
    %v7320 = vpop.f32.mrf.mxu0
    %v7321 = vadd.f32 %v7280, %v7320
    %v7322 = vpop.f32.mrf.mxu0
    %v7323 = vpop.f32.mrf.mxu0
    %7324 = vdwg.mxu0
    %7325 = vmatprep.subr.bf16.mxu0 %v6836
    %7326 = vmatpush1.bf16.msra.mxu0 %v6835
    %7327 = vmatprep.subr.bf16.mxu0 %v6826
    %7328 = vmatpush1.bf16.msra.mxu0 %v6825
    %7329 = vmatprep.subr.bf16.mxu0 %v6816
    %7330 = vmatpush1.bf16.msra.mxu0 %v6815
    %7331 = vmatprep.subr.bf16.mxu0 %v6806
    %7332 = vmatpush1.bf16.msra.mxu0 %v6805
    %7333 = vmatprep.subr.bf16.mxu0 %v6796
    %7334 = vmatpush1.bf16.msra.mxu0 %v6795
    %7335 = vmatprep.subr.bf16.mxu0 %v6786
    %7336 = vmatpush1.bf16.msra.mxu0 %v6785
    %7337 = vmatprep.subr.bf16.mxu0 %v6776
    %7338 = vmatpush1.bf16.msra.mxu0 %v6775
    %7339 = vmatprep.subr.bf16.mxu0 %v6766
    %7340 = vmatpush1.bf16.msra.mxu0 %v6765
    %7341 = vmatprep.subr.bf16.mxu0 %v6916
    %7342 = vmatpush2.bf16.msra.mxu0 %v6915
    %7343 = vmatprep.subr.bf16.mxu0 %v6906
    %7344 = vmatpush2.bf16.msra.mxu0 %v6905
    %7345 = vmatprep.subr.bf16.mxu0 %v6896
    %7346 = vmatpush2.bf16.msra.mxu0 %v6895
    %7347 = vmatprep.subr.bf16.mxu0 %v6886
    %7348 = vmatpush2.bf16.msra.mxu0 %v6885
    %7349 = vmatprep.subr.bf16.mxu0 %v6876
    %7350 = vmatpush2.bf16.msra.mxu0 %v6875
    %7351 = vmatprep.subr.bf16.mxu0 %v6866
    %7352 = vmatpush2.bf16.msra.mxu0 %v6865
    %7353 = vmatprep.subr.bf16.mxu0 %v6856
    %7354 = vmatpush2.bf16.msra.mxu0 %v6855
    %7355 = vmatprep.subr.bf16.mxu0 %v6846
    %7356 = vmatpush2.bf16.msra.mxu0 %v6845
    %7357 = vmatprep.mubr.bf16.mxu0 %v1658
    %7358 = vmatmul.mubr.bf16.gmra.mxu0 %v1657
    %v7359 = vpop.f32.mrf.mxu0
    %v7360 = vadd.f32 %v6004, %v7359
    %v7361 = vpop.f32.mrf.mxu0
    %v7362 = vadd.f32 %v6008, %v7361
    %v7363 = vpop.f32.mrf.mxu0
    %v7364 = vpop.f32.mrf.mxu0
    %7365 = vdwg.mxu0
    %7366 = vmatprep.subr.bf16.mxu0 %v6996
    %7367 = vmatpush1.bf16.msra.mxu0 %v6995
    %7368 = vmatprep.subr.bf16.mxu0 %v6986
    %7369 = vmatpush1.bf16.msra.mxu0 %v6985
    %7370 = vmatprep.subr.bf16.mxu0 %v6976
    %7371 = vmatpush1.bf16.msra.mxu0 %v6975
    %7372 = vmatprep.subr.bf16.mxu0 %v6966
    %7373 = vmatpush1.bf16.msra.mxu0 %v6965
    %7374 = vmatprep.subr.bf16.mxu0 %v6956
    %7375 = vmatpush1.bf16.msra.mxu0 %v6955
    %7376 = vmatprep.subr.bf16.mxu0 %v6946
    %7377 = vmatpush1.bf16.msra.mxu0 %v6945
    %7378 = vmatprep.subr.bf16.mxu0 %v6936
    %7379 = vmatpush1.bf16.msra.mxu0 %v6935
    %7380 = vmatprep.subr.bf16.mxu0 %v6926
    %7381 = vmatpush1.bf16.msra.mxu0 %v6925
    %7382 = vmatprep.subr.bf16.mxu0 0
    %7383 = vmatpush2.bf16.msra.mxu0 0
    %7384 = vmatprep.subr.bf16.mxu0 0
    %7385 = vmatpush2.bf16.msra.mxu0 0
    %7386 = vmatprep.subr.bf16.mxu0 0
    %7387 = vmatpush2.bf16.msra.mxu0 0
    %7388 = vmatprep.subr.bf16.mxu0 0
    %7389 = vmatpush2.bf16.msra.mxu0 0
    %7390 = vmatprep.subr.bf16.mxu0 0
    %7391 = vmatpush2.bf16.msra.mxu0 0
    %7392 = vmatprep.subr.bf16.mxu0 0
    %7393 = vmatpush2.bf16.msra.mxu0 0
    %7394 = vmatprep.subr.bf16.mxu0 0
    %7395 = vmatpush2.bf16.msra.mxu0 0
    %7396 = vmatprep.subr.bf16.mxu0 0
    %7397 = vmatpush2.bf16.msra.mxu0 0
    %7398 = vmatprep.mubr.bf16.mxu0 0
    %7399 = vmatmul.mubr.bf16.gmra.mxu0 %v1659
    %v7400 = vpop.f32.mrf.mxu0
    %v7401 = vadd.f32 %v7360, %v7400
    %v7402 = vpop.f32.mrf.mxu0
    %v7403 = vadd.f32 %v7362, %v7402
    %v7404 = vpop.f32.mrf.mxu0
    %v7405 = vpop.f32.mrf.mxu0
    %7406 = vdwg.mxu0
    %7407 = vmatprep.subr.bf16.mxu0 %v6838
    %7408 = vmatpush1.bf16.msra.mxu0 %v6837
    %7409 = vmatprep.subr.bf16.mxu0 %v6828
    %7410 = vmatpush1.bf16.msra.mxu0 %v6827
    %7411 = vmatprep.subr.bf16.mxu0 %v6818
    %7412 = vmatpush1.bf16.msra.mxu0 %v6817
    %7413 = vmatprep.subr.bf16.mxu0 %v6808
    %7414 = vmatpush1.bf16.msra.mxu0 %v6807
    %7415 = vmatprep.subr.bf16.mxu0 %v6798
    %7416 = vmatpush1.bf16.msra.mxu0 %v6797
    %7417 = vmatprep.subr.bf16.mxu0 %v6788
    %7418 = vmatpush1.bf16.msra.mxu0 %v6787
    %7419 = vmatprep.subr.bf16.mxu0 %v6778
    %7420 = vmatpush1.bf16.msra.mxu0 %v6777
    %7421 = vmatprep.subr.bf16.mxu0 %v6768
    %7422 = vmatpush1.bf16.msra.mxu0 %v6767
    %7423 = vmatprep.subr.bf16.mxu0 %v6918
    %7424 = vmatpush2.bf16.msra.mxu0 %v6917
    %7425 = vmatprep.subr.bf16.mxu0 %v6908
    %7426 = vmatpush2.bf16.msra.mxu0 %v6907
    %7427 = vmatprep.subr.bf16.mxu0 %v6898
    %7428 = vmatpush2.bf16.msra.mxu0 %v6897
    %7429 = vmatprep.subr.bf16.mxu0 %v6888
    %7430 = vmatpush2.bf16.msra.mxu0 %v6887
    %7431 = vmatprep.subr.bf16.mxu0 %v6878
    %7432 = vmatpush2.bf16.msra.mxu0 %v6877
    %7433 = vmatprep.subr.bf16.mxu0 %v6868
    %7434 = vmatpush2.bf16.msra.mxu0 %v6867
    %7435 = vmatprep.subr.bf16.mxu0 %v6858
    %7436 = vmatpush2.bf16.msra.mxu0 %v6857
    %7437 = vmatprep.subr.bf16.mxu0 %v6848
    %7438 = vmatpush2.bf16.msra.mxu0 %v6847
    %7439 = vmatprep.mubr.bf16.mxu0 %v1658
    %7440 = vmatmul.mubr.bf16.gmra.mxu0 %v1657
    %v7441 = vpop.f32.mrf.mxu0
    %v7442 = vadd.f32 %v6012, %v7441
    %v7443 = vpop.f32.mrf.mxu0
    %v7444 = vadd.f32 %v6016, %v7443
    %v7445 = vpop.f32.mrf.mxu0
    %v7446 = vpop.f32.mrf.mxu0
    %7447 = vdwg.mxu0
    %7448 = vmatprep.subr.bf16.mxu0 %v6998
    %7449 = vmatpush1.bf16.msra.mxu0 %v6997
    %7450 = vmatprep.subr.bf16.mxu0 %v6988
    %7451 = vmatpush1.bf16.msra.mxu0 %v6987
    %7452 = vmatprep.subr.bf16.mxu0 %v6978
    %7453 = vmatpush1.bf16.msra.mxu0 %v6977
    %7454 = vmatprep.subr.bf16.mxu0 %v6968
    %7455 = vmatpush1.bf16.msra.mxu0 %v6967
    %7456 = vmatprep.subr.bf16.mxu0 %v6958
    %7457 = vmatpush1.bf16.msra.mxu0 %v6957
    %7458 = vmatprep.subr.bf16.mxu0 %v6948
    %7459 = vmatpush1.bf16.msra.mxu0 %v6947
    %7460 = vmatprep.subr.bf16.mxu0 %v6938
    %7461 = vmatpush1.bf16.msra.mxu0 %v6937
    %7462 = vmatprep.subr.bf16.mxu0 %v6928
    %7463 = vmatpush1.bf16.msra.mxu0 %v6927
    %7464 = vmatprep.subr.bf16.mxu0 0
    %7465 = vmatpush2.bf16.msra.mxu0 0
    %7466 = vmatprep.subr.bf16.mxu0 0
    %7467 = vmatpush2.bf16.msra.mxu0 0
    %7468 = vmatprep.subr.bf16.mxu0 0
    %7469 = vmatpush2.bf16.msra.mxu0 0
    %7470 = vmatprep.subr.bf16.mxu0 0
    %7471 = vmatpush2.bf16.msra.mxu0 0
    %7472 = vmatprep.subr.bf16.mxu0 0
    %7473 = vmatpush2.bf16.msra.mxu0 0
    %7474 = vmatprep.subr.bf16.mxu0 0
    %7475 = vmatpush2.bf16.msra.mxu0 0
    %7476 = vmatprep.subr.bf16.mxu0 0
    %7477 = vmatpush2.bf16.msra.mxu0 0
    %7478 = vmatprep.subr.bf16.mxu0 0
    %7479 = vmatpush2.bf16.msra.mxu0 0
    %7480 = vmatprep.mubr.bf16.mxu0 0
    %7481 = vmatmul.mubr.bf16.gmra.mxu0 %v1659
    %v7482 = vpop.f32.mrf.mxu0
    %v7483 = vadd.f32 %v7442, %v7482
    %v7484 = vpop.f32.mrf.mxu0
    %v7485 = vadd.f32 %v7444, %v7484
    %v7486 = vpop.f32.mrf.mxu0
    %v7487 = vpop.f32.mrf.mxu0
    %7488 = vdwg.mxu0
    %7489 = vmatprep.subr.bf16.mxu0 %v6840
    %7490 = vmatpush1.bf16.msra.mxu0 %v6839
    %7491 = vmatprep.subr.bf16.mxu0 %v6830
    %7492 = vmatpush1.bf16.msra.mxu0 %v6829
    %7493 = vmatprep.subr.bf16.mxu0 %v6820
    %7494 = vmatpush1.bf16.msra.mxu0 %v6819
    %7495 = vmatprep.subr.bf16.mxu0 %v6810
    %7496 = vmatpush1.bf16.msra.mxu0 %v6809
    %7497 = vmatprep.subr.bf16.mxu0 %v6800
    %7498 = vmatpush1.bf16.msra.mxu0 %v6799
    %7499 = vmatprep.subr.bf16.mxu0 %v6790
    %7500 = vmatpush1.bf16.msra.mxu0 %v6789
    %7501 = vmatprep.subr.bf16.mxu0 %v6780
    %7502 = vmatpush1.bf16.msra.mxu0 %v6779
    %7503 = vmatprep.subr.bf16.mxu0 %v6770
    %7504 = vmatpush1.bf16.msra.mxu0 %v6769
    %7505 = vmatprep.subr.bf16.mxu0 %v6920
    %7506 = vmatpush2.bf16.msra.mxu0 %v6919
    %7507 = vmatprep.subr.bf16.mxu0 %v6910
    %7508 = vmatpush2.bf16.msra.mxu0 %v6909
    %7509 = vmatprep.subr.bf16.mxu0 %v6900
    %7510 = vmatpush2.bf16.msra.mxu0 %v6899
    %7511 = vmatprep.subr.bf16.mxu0 %v6890
    %7512 = vmatpush2.bf16.msra.mxu0 %v6889
    %7513 = vmatprep.subr.bf16.mxu0 %v6880
    %7514 = vmatpush2.bf16.msra.mxu0 %v6879
    %7515 = vmatprep.subr.bf16.mxu0 %v6870
    %7516 = vmatpush2.bf16.msra.mxu0 %v6869
    %7517 = vmatprep.subr.bf16.mxu0 %v6860
    %7518 = vmatpush2.bf16.msra.mxu0 %v6859
    %7519 = vmatprep.subr.bf16.mxu0 %v6850
    %7520 = vmatpush2.bf16.msra.mxu0 %v6849
    %7521 = vmatprep.mubr.bf16.mxu0 %v1658
    %7522 = vmatmul.mubr.bf16.gmra.mxu0 %v1657
    %v7523 = vpop.f32.mrf.mxu0
    %v7524 = vadd.f32 %v6020, %v7523
    %v7525 = vpop.f32.mrf.mxu0
    %v7526 = vadd.f32 %v6024, %v7525
    %v7527 = vpop.f32.mrf.mxu0
    %v7528 = vpop.f32.mrf.mxu0
    %7529 = vdwg.mxu0
    %7530 = vmatprep.subr.bf16.mxu0 %v7000
    %7531 = vmatpush1.bf16.msra.mxu0 %v6999
    %7532 = vmatprep.subr.bf16.mxu0 %v6990
    %7533 = vmatpush1.bf16.msra.mxu0 %v6989
    %7534 = vmatprep.subr.bf16.mxu0 %v6980
    %7535 = vmatpush1.bf16.msra.mxu0 %v6979
    %7536 = vmatprep.subr.bf16.mxu0 %v6970
    %7537 = vmatpush1.bf16.msra.mxu0 %v6969
    %7538 = vmatprep.subr.bf16.mxu0 %v6960
    %7539 = vmatpush1.bf16.msra.mxu0 %v6959
    %7540 = vmatprep.subr.bf16.mxu0 %v6950
    %7541 = vmatpush1.bf16.msra.mxu0 %v6949
    %7542 = vmatprep.subr.bf16.mxu0 %v6940
    %7543 = vmatpush1.bf16.msra.mxu0 %v6939
    %7544 = vmatprep.subr.bf16.mxu0 %v6930
    %7545 = vmatpush1.bf16.msra.mxu0 %v6929
    %7546 = vmatprep.subr.bf16.mxu0 0
    %7547 = vmatpush2.bf16.msra.mxu0 0
    %7548 = vmatprep.subr.bf16.mxu0 0
    %7549 = vmatpush2.bf16.msra.mxu0 0
    %7550 = vmatprep.subr.bf16.mxu0 0
    %7551 = vmatpush2.bf16.msra.mxu0 0
    %7552 = vmatprep.subr.bf16.mxu0 0
    %7553 = vmatpush2.bf16.msra.mxu0 0
    %7554 = vmatprep.subr.bf16.mxu0 0
    %7555 = vmatpush2.bf16.msra.mxu0 0
    %7556 = vmatprep.subr.bf16.mxu0 0
    %7557 = vmatpush2.bf16.msra.mxu0 0
    %7558 = vmatprep.subr.bf16.mxu0 0
    %7559 = vmatpush2.bf16.msra.mxu0 0
    %7560 = vmatprep.subr.bf16.mxu0 0
    %7561 = vmatpush2.bf16.msra.mxu0 0
    %7562 = vmatprep.mubr.bf16.mxu0 0
    %7563 = vmatmul.mubr.bf16.gmra.mxu0 %v1659
    %v7564 = vpop.f32.mrf.mxu0
    %v7565 = vadd.f32 %v7524, %v7564
    %v7566 = vpop.f32.mrf.mxu0
    %v7567 = vadd.f32 %v7526, %v7566
    %v7568 = vpop.f32.mrf.mxu0
    %v7569 = vpop.f32.mrf.mxu0
    %7570 = vdwg.mxu0
    %7571 = vmatprep.subr.bf16.mxu0 %v6842
    %7572 = vmatpush1.bf16.msra.mxu0 %v6841
    %7573 = vmatprep.subr.bf16.mxu0 %v6832
    %7574 = vmatpush1.bf16.msra.mxu0 %v6831
    %7575 = vmatprep.subr.bf16.mxu0 %v6822
    %7576 = vmatpush1.bf16.msra.mxu0 %v6821
    %7577 = vmatprep.subr.bf16.mxu0 %v6812
    %7578 = vmatpush1.bf16.msra.mxu0 %v6811
    %7579 = vmatprep.subr.bf16.mxu0 %v6802
    %7580 = vmatpush1.bf16.msra.mxu0 %v6801
    %7581 = vmatprep.subr.bf16.mxu0 %v6792
    %7582 = vmatpush1.bf16.msra.mxu0 %v6791
    %7583 = vmatprep.subr.bf16.mxu0 %v6782
    %7584 = vmatpush1.bf16.msra.mxu0 %v6781
    %7585 = vmatprep.subr.bf16.mxu0 %v6772
    %7586 = vmatpush1.bf16.msra.mxu0 %v6771
    %7587 = vmatprep.subr.bf16.mxu0 %v6922
    %7588 = vmatpush2.bf16.msra.mxu0 %v6921
    %7589 = vmatprep.subr.bf16.mxu0 %v6912
    %7590 = vmatpush2.bf16.msra.mxu0 %v6911
    %7591 = vmatprep.subr.bf16.mxu0 %v6902
    %7592 = vmatpush2.bf16.msra.mxu0 %v6901
    %7593 = vmatprep.subr.bf16.mxu0 %v6892
    %7594 = vmatpush2.bf16.msra.mxu0 %v6891
    %7595 = vmatprep.subr.bf16.mxu0 %v6882
    %7596 = vmatpush2.bf16.msra.mxu0 %v6881
    %7597 = vmatprep.subr.bf16.mxu0 %v6872
    %7598 = vmatpush2.bf16.msra.mxu0 %v6871
    %7599 = vmatprep.subr.bf16.mxu0 %v6862
    %7600 = vmatpush2.bf16.msra.mxu0 %v6861
    %7601 = vmatprep.subr.bf16.mxu0 %v6852
    %7602 = vmatpush2.bf16.msra.mxu0 %v6851
    %7603 = vmatprep.mubr.bf16.mxu0 %v1658
    %7604 = vmatmul.mubr.bf16.gmra.mxu0 %v1657
    %v7605 = vpop.f32.mrf.mxu0
    %v7606 = vadd.f32 %v6028, %v7605
    %v7607 = vpop.f32.mrf.mxu0
    %v7608 = vadd.f32 %v6032, %v7607
    %v7609 = vpop.f32.mrf.mxu0
    %v7610 = vpop.f32.mrf.mxu0
    %7611 = vdwg.mxu0
    %7612 = vmatprep.subr.bf16.mxu0 %v7002
    %7613 = vmatpush1.bf16.msra.mxu0 %v7001
    %7614 = vmatprep.subr.bf16.mxu0 %v6992
    %7615 = vmatpush1.bf16.msra.mxu0 %v6991
    %7616 = vmatprep.subr.bf16.mxu0 %v6982
    %7617 = vmatpush1.bf16.msra.mxu0 %v6981
    %7618 = vmatprep.subr.bf16.mxu0 %v6972
    %7619 = vmatpush1.bf16.msra.mxu0 %v6971
    %7620 = vmatprep.subr.bf16.mxu0 %v6962
    %7621 = vmatpush1.bf16.msra.mxu0 %v6961
    %7622 = vmatprep.subr.bf16.mxu0 %v6952
    %7623 = vmatpush1.bf16.msra.mxu0 %v6951
    %7624 = vmatprep.subr.bf16.mxu0 %v6942
    %7625 = vmatpush1.bf16.msra.mxu0 %v6941
    %7626 = vmatprep.subr.bf16.mxu0 %v6932
    %7627 = vmatpush1.bf16.msra.mxu0 %v6931
    %7628 = vmatprep.subr.bf16.mxu0 0
    %7629 = vmatpush2.bf16.msra.mxu0 0
    %7630 = vmatprep.subr.bf16.mxu0 0
    %7631 = vmatpush2.bf16.msra.mxu0 0
    %7632 = vmatprep.subr.bf16.mxu0 0
    %7633 = vmatpush2.bf16.msra.mxu0 0
    %7634 = vmatprep.subr.bf16.mxu0 0
    %7635 = vmatpush2.bf16.msra.mxu0 0
    %7636 = vmatprep.subr.bf16.mxu0 0
    %7637 = vmatpush2.bf16.msra.mxu0 0
    %7638 = vmatprep.subr.bf16.mxu0 0
    %7639 = vmatpush2.bf16.msra.mxu0 0
    %7640 = vmatprep.subr.bf16.mxu0 0
    %7641 = vmatpush2.bf16.msra.mxu0 0
    %7642 = vmatprep.subr.bf16.mxu0 0
    %7643 = vmatpush2.bf16.msra.mxu0 0
    %7644 = vmatprep.mubr.bf16.mxu0 0
    %7645 = vmatmul.mubr.bf16.gmra.mxu0 %v1659
    %v7646 = vpop.f32.mrf.mxu0
    %v7647 = vadd.f32 %v7606, %v7646
    %v7648 = vpop.f32.mrf.mxu0
    %v7649 = vadd.f32 %v7608, %v7648
    %v7650 = vpop.f32.mrf.mxu0
    %v7651 = vpop.f32.mrf.mxu0
    %7652 = vdwg.mxu0
    %v7653 = vmul.f32 %v7319, 0.5
    %v7654 = vmul.f32 %v7321, 0.5
    %v7655 = vmul.f32 %v7401, 0.5
    %v7656 = vmul.f32 %v7403, 0.5
    %v7657 = vmul.f32 %v7483, 0.5
    %v7658 = vmul.f32 %v7485, 0.5
    %v7659 = vmul.f32 %v7565, 0.5
    %v7660 = vmul.f32 %v7567, 0.5
    %v7661 = vmul.f32 %v7647, 0.5
    %v7662 = vmul.f32 %v7649, 0.5
    %v7663 = vmul.f32 %v7319, 0.70710677
    %v7664 = vmul.f32 %v7321, 0.70710677
    %v7665 = vmul.f32 %v7401, 0.70710677
    %v7666 = vmul.f32 %v7403, 0.70710677
    %v7667 = vmul.f32 %v7483, 0.70710677
    %v7668 = vmul.f32 %v7485, 0.70710677
    %v7669 = vmul.f32 %v7565, 0.70710677
    %v7670 = vmul.f32 %v7567, 0.70710677
    %v7671 = vmul.f32 %v7647, 0.70710677
    %v7672 = vmul.f32 %v7649, 0.70710677
    %v7673 = verf.f32.pop %v7663
    %v7674 = verf.f32.pop %v7664
    %v7675 = verf.f32.pop %v7665
    %v7676 = verf.f32.pop %v7666
    %v7677 = verf.f32.pop %v7667
    %v7678 = verf.f32.pop %v7668
    %v7679 = verf.f32.pop %v7669
    %v7680 = verf.f32.pop %v7670
    %v7681 = verf.f32.pop %v7671
    %v7682 = verf.f32.pop %v7672
    %v7683 = vadd.f32 %v7673, 1.0
    %v7684 = vadd.f32 %v7674, 1.0
    %v7685 = vadd.f32 %v7675, 1.0
    %v7686 = vadd.f32 %v7676, 1.0
    %v7687 = vadd.f32 %v7677, 1.0
    %v7688 = vadd.f32 %v7678, 1.0
    %v7689 = vadd.f32 %v7679, 1.0
    %v7690 = vadd.f32 %v7680, 1.0
    %v7691 = vadd.f32 %v7681, 1.0
    %v7692 = vadd.f32 %v7682, 1.0
    %v7693 = vmul.f32 %v7653, %v7683
    %v7694 = vmul.f32 %v7654, %v7684
    %v7695 = vmul.f32 %v7655, %v7685
    %v7696 = vmul.f32 %v7656, %v7686
    %v7697 = vmul.f32 %v7657, %v7687
    %v7698 = vmul.f32 %v7658, %v7688
    %v7699 = vmul.f32 %v7659, %v7689
    %v7700 = vmul.f32 %v7660, %v7690
    %v7701 = vmul.f32 %v7661, %v7691
    %v7702 = vmul.f32 %v7662, %v7692
    %v7703 = vpack.c.bf16 %v7693, %v7693
    %v7704 = vpack.c.bf16 %v7694, %v7694
    %v7705 = vpack.c.bf16 %v7695, %v7695
    %v7706 = vpack.c.bf16 %v7696, %v7696
    %v7707 = vpack.c.bf16 %v7697, %v7697
    %v7708 = vpack.c.bf16 %v7698, %v7698
    %v7709 = vpack.c.bf16 %v7699, %v7699
    %v7710 = vpack.c.bf16 %v7700, %v7700
    %v7711 = vpack.c.bf16 %v7701, %v7701
    %v7712 = vpack.c.bf16 %v7702, %v7702
    %v7723 = vcombine.low %v7703, %v7704
    %v7724 = vcombine.low %v7705, %v7706
    %v7725 = vcombine.low %v7707, %v7708
    %v7726 = vcombine.low %v7709, %v7710
    %v7728 = vunpack.c.l.s4 1966171168
    %v7729 = vunpack.c.0.s8 %v7728
    %v7730 = vlaneseq
    %v7731 = vshrl.u32 %v7730, 7
    %v7732 = vsub.s32 %v7729, %v7731
    %v7733 = vrot.slane %v7723, %v7732
    %v7735 = vunpack.c.l.s4 1966171168
    %v7736 = vunpack.c.0.s8 %v7735
    %v7737 = vlaneseq
    %v7738 = vshrl.u32 %v7737, 7
    %v7739 = vsub.s32 %v7736, %v7738
    %v7740 = vrot.slane %v7724, %v7739
    %v7742 = vunpack.c.l.s4 1966171168
    %v7743 = vunpack.c.0.s8 %v7742
    %v7744 = vlaneseq
    %v7745 = vshrl.u32 %v7744, 7
    %v7746 = vsub.s32 %v7743, %v7745
    %v7747 = vrot.slane %v7725, %v7746
    %v7749 = vunpack.c.l.s4 1966171168
    %v7750 = vunpack.c.0.s8 %v7749
    %v7751 = vlaneseq
    %v7752 = vshrl.u32 %v7751, 7
    %v7753 = vsub.s32 %v7750, %v7752
    %v7754 = vrot.slane %v7726, %v7753
    %v7755 = vcombine.low %v7733, %v7740
    %v7756 = vcombine.low %v7747, %v7754
    %v7758 = vunpack.c.l.s4 1966171168
    %v7759 = vunpack.c.0.s8 %v7758
    %v7760 = vlaneseq
    %v7761 = vshrl.u32 %v7760, 7
    %v7762 = vsub.s32 %v7759, %v7761
    %v7763 = vrot.slane %v7755, %v7762
    %v7765 = vunpack.c.l.s4 1966171168
    %v7766 = vunpack.c.0.s8 %v7765
    %v7767 = vlaneseq
    %v7768 = vshrl.u32 %v7767, 7
    %v7769 = vsub.s32 %v7766, %v7768
    %v7770 = vrot.slane %v7756, %v7769
    %v7771 = vcombine.low %v7763, %v7770
    %v7772 = vcombine.low %v7711, %v7712
    %v7774 = vunpack.c.l.s4 1966171168
    %v7775 = vunpack.c.0.s8 %v7774
    %v7776 = vlaneseq
    %v7777 = vshrl.u32 %v7776, 7
    %v7778 = vsub.s32 %v7775, %v7777
    %v7779 = vrot.slane %v7772, %v7778
    %v7781 = vunpack.c.l.s4 1966171168
    %v7782 = vunpack.c.0.s8 %v7781
    %v7783 = vlaneseq
    %v7784 = vshrl.u32 %v7783, 7
    %v7785 = vsub.s32 %v7782, %v7784
    %v7786 = vrot.slane %v7779, %v7785
    %s7789 = scalar_lea.vmem [#allocation17], 20
    %7790 = vst [vmem:[%s7789] sm:$0xff] %v7771
    %7791 = vst [vmem:[%s7789 + $0x8] sm:$0x3] %v7786
    %s7792 = scalar_lea.vmem [#allocation11], 5760
    %v7793 = vld [vmem:[%s7792] sm:$0xff]
    %v7794 = vld [vmem:[%s7792 + $0x8] sm:$0xff]
    %v7795 = vld [vmem:[%s7792 + $0x10] sm:$0xff]
    %v7796 = vld [vmem:[%s7792 + $0x18] sm:$0xff]
    %v7797 = vld [vmem:[%s7792 + $0x20] sm:$0xff]
    %v7798 = vld [vmem:[%s7792 + $0x28] sm:$0xff]
    %v7799 = vld [vmem:[%s7792 + $0x30] sm:$0xff]
    %v7800 = vld [vmem:[%s7792 + $0x38] sm:$0xff]
    %v7801 = vld [vmem:[%s7792 + $0x40] sm:$0xff]
    %v7802 = vld [vmem:[%s7792 + $0x48] sm:$0xff]
    %v7803 = vld [vmem:[%s7792 + $0x50] sm:$0xff]
    %v7804 = vld [vmem:[%s7792 + $0x58] sm:$0xff]
    %v7805 = vld [vmem:[%s7792 + $0x60] sm:$0xff]
    %v7806 = vld [vmem:[%s7792 + $0x68] sm:$0xff]
    %v7807 = vld [vmem:[%s7792 + $0x70] sm:$0xff]
    %v7808 = vld [vmem:[%s7792 + $0x78] sm:$0xff]
    %v7809 = vld [vmem:[%s7792 + $0x80] sm:$0xff]
    %v7810 = vld [vmem:[%s7792 + $0x88] sm:$0xff]
    %v7811 = vld [vmem:[%s7792 + $0x90] sm:$0xff]
    %v7812 = vld [vmem:[%s7792 + $0x98] sm:$0xff]
    %v7813 = vld [vmem:[%s7792 + $0xa0] sm:$0xff]
    %v7814 = vld [vmem:[%s7792 + $0xa8] sm:$0xff]
    %v7815 = vld [vmem:[%s7792 + $0xb0] sm:$0xff]
    %v7816 = vld [vmem:[%s7792 + $0xb8] sm:$0xff]
    %v7817 = vld [vmem:[%s7792 + $0xc0] sm:$0xff]
    %v7818 = vld [vmem:[%s7792 + $0xc8] sm:$0xff]
    %v7819 = vld [vmem:[%s7792 + $0xd0] sm:$0xff]
    %v7820 = vld [vmem:[%s7792 + $0xd8] sm:$0xff]
    %v7821 = vld [vmem:[%s7792 + $0xe0] sm:$0xff]
    %v7822 = vld [vmem:[%s7792 + $0xe8] sm:$0xff]
    %v7823 = vld [vmem:[%s7792 + $0xf0] sm:$0xff]
    %v7824 = vld [vmem:[%s7792 + $0xf8] sm:$0xff]
    %v7825 = vld [vmem:[%s7792 + $0x100] sm:$0xff]
    %v7826 = vld [vmem:[%s7792 + $0x108] sm:$0xff]
    %v7827 = vld [vmem:[%s7792 + $0x110] sm:$0xff]
    %v7828 = vld [vmem:[%s7792 + $0x118] sm:$0xff]
    %v7829 = vld [vmem:[%s7792 + $0x120] sm:$0xff]
    %v7830 = vld [vmem:[%s7792 + $0x128] sm:$0xff]
    %v7831 = vld [vmem:[%s7792 + $0x130] sm:$0xff]
    %v7832 = vld [vmem:[%s7792 + $0x138] sm:$0xff]
    %v7833 = vld [vmem:[%s7792 + $0x140] sm:$0xff]
    %v7834 = vld [vmem:[%s7792 + $0x148] sm:$0xff]
    %v7835 = vld [vmem:[%s7792 + $0x150] sm:$0xff]
    %v7836 = vld [vmem:[%s7792 + $0x158] sm:$0xff]
    %v7837 = vld [vmem:[%s7792 + $0x160] sm:$0xff]
    %v7838 = vld [vmem:[%s7792 + $0x168] sm:$0xff]
    %v7839 = vld [vmem:[%s7792 + $0x170] sm:$0xff]
    %v7840 = vld [vmem:[%s7792 + $0x178] sm:$0xff]
    %v7841 = vld [vmem:[%s7792 + $0x180] sm:$0xff]
    %v7842 = vld [vmem:[%s7792 + $0x188] sm:$0xff]
    %v7843 = vld [vmem:[%s7792 + $0x190] sm:$0xff]
    %v7844 = vld [vmem:[%s7792 + $0x198] sm:$0xff]
    %v7845 = vld [vmem:[%s7792 + $0x1a0] sm:$0xff]
    %v7846 = vld [vmem:[%s7792 + $0x1a8] sm:$0xff]
    %v7847 = vld [vmem:[%s7792 + $0x1b0] sm:$0xff]
    %v7848 = vld [vmem:[%s7792 + $0x1b8] sm:$0xff]
    %v7849 = vld [vmem:[%s7792 + $0x1c0] sm:$0xff]
    %v7850 = vld [vmem:[%s7792 + $0x1c8] sm:$0xff]
    %v7851 = vld [vmem:[%s7792 + $0x1d0] sm:$0xff]
    %v7852 = vld [vmem:[%s7792 + $0x1d8] sm:$0xff]
    %v7853 = vld [vmem:[%s7792 + $0x1e0] sm:$0xff]
    %v7854 = vld [vmem:[%s7792 + $0x1e8] sm:$0xff]
    %v7855 = vld [vmem:[%s7792 + $0x1f0] sm:$0xff]
    %v7856 = vld [vmem:[%s7792 + $0x1f8] sm:$0xff]
    %v7857 = vld [vmem:[%s7792 + $0x200] sm:$0xff]
    %v7858 = vld [vmem:[%s7792 + $0x208] sm:$0xff]
    %v7859 = vld [vmem:[%s7792 + $0x210] sm:$0xff]
    %v7860 = vld [vmem:[%s7792 + $0x218] sm:$0xff]
    %v7861 = vld [vmem:[%s7792 + $0x220] sm:$0xff]
    %v7862 = vld [vmem:[%s7792 + $0x228] sm:$0xff]
    %v7863 = vld [vmem:[%s7792 + $0x230] sm:$0xff]
    %v7864 = vld [vmem:[%s7792 + $0x238] sm:$0xff]
    %v7865 = vld [vmem:[%s7792 + $0x240] sm:$0xff]
    %v7866 = vld [vmem:[%s7792 + $0x248] sm:$0xff]
    %v7867 = vld [vmem:[%s7792 + $0x250] sm:$0xff]
    %v7868 = vld [vmem:[%s7792 + $0x258] sm:$0xff]
    %v7869 = vld [vmem:[%s7792 + $0x260] sm:$0xff]
    %v7870 = vld [vmem:[%s7792 + $0x268] sm:$0xff]
    %v7871 = vld [vmem:[%s7792 + $0x270] sm:$0xff]
    %v7872 = vld [vmem:[%s7792 + $0x278] sm:$0xff]
    %v7873 = vld [vmem:[%s7792 + $0x280] sm:$0xff]
    %v7874 = vld [vmem:[%s7792 + $0x288] sm:$0xff]
    %v7875 = vld [vmem:[%s7792 + $0x290] sm:$0xff]
    %v7876 = vld [vmem:[%s7792 + $0x298] sm:$0xff]
    %v7877 = vld [vmem:[%s7792 + $0x2a0] sm:$0xff]
    %v7878 = vld [vmem:[%s7792 + $0x2a8] sm:$0xff]
    %v7879 = vld [vmem:[%s7792 + $0x2b0] sm:$0xff]
    %v7880 = vld [vmem:[%s7792 + $0x2b8] sm:$0xff]
    %v7881 = vld [vmem:[%s7792 + $0x2c0] sm:$0xff]
    %v7882 = vld [vmem:[%s7792 + $0x2c8] sm:$0xff]
    %v7883 = vld [vmem:[%s7792 + $0x2d0] sm:$0xff]
    %v7884 = vld [vmem:[%s7792 + $0x2d8] sm:$0xff]
    %v7885 = vld [vmem:[%s7792 + $0x2e0] sm:$0xff]
    %v7886 = vld [vmem:[%s7792 + $0x2e8] sm:$0xff]
    %v7887 = vld [vmem:[%s7792 + $0x2f0] sm:$0xff]
    %v7888 = vld [vmem:[%s7792 + $0x2f8] sm:$0xff]
    %v7889 = vld [vmem:[%s7792 + $0x300] sm:$0xff]
    %v7890 = vld [vmem:[%s7792 + $0x308] sm:$0xff]
    %v7891 = vld [vmem:[%s7792 + $0x310] sm:$0xff]
    %v7892 = vld [vmem:[%s7792 + $0x318] sm:$0xff]
    %v7893 = vld [vmem:[%s7792 + $0x320] sm:$0xff]
    %v7894 = vld [vmem:[%s7792 + $0x328] sm:$0xff]
    %v7895 = vld [vmem:[%s7792 + $0x330] sm:$0xff]
    %v7896 = vld [vmem:[%s7792 + $0x338] sm:$0xff]
    %v7897 = vld [vmem:[%s7792 + $0x340] sm:$0xff]
    %v7898 = vld [vmem:[%s7792 + $0x348] sm:$0xff]
    %v7899 = vld [vmem:[%s7792 + $0x350] sm:$0xff]
    %v7900 = vld [vmem:[%s7792 + $0x358] sm:$0xff]
    %v7901 = vld [vmem:[%s7792 + $0x360] sm:$0xff]
    %v7902 = vld [vmem:[%s7792 + $0x368] sm:$0xff]
    %v7903 = vld [vmem:[%s7792 + $0x370] sm:$0xff]
    %v7904 = vld [vmem:[%s7792 + $0x378] sm:$0xff]
    %v7905 = vld [vmem:[%s7792 + $0x380] sm:$0xff]
    %v7906 = vld [vmem:[%s7792 + $0x388] sm:$0xff]
    %v7907 = vld [vmem:[%s7792 + $0x390] sm:$0xff]
    %v7908 = vld [vmem:[%s7792 + $0x398] sm:$0xff]
    %v7909 = vld [vmem:[%s7792 + $0x3a0] sm:$0xff]
    %v7910 = vld [vmem:[%s7792 + $0x3a8] sm:$0xff]
    %v7911 = vld [vmem:[%s7792 + $0x3b0] sm:$0xff]
    %v7912 = vld [vmem:[%s7792 + $0x3b8] sm:$0xff]
    %v7913 = vld [vmem:[%s7792 + $0x3c0] sm:$0xff]
    %v7914 = vld [vmem:[%s7792 + $0x3c8] sm:$0xff]
    %v7915 = vld [vmem:[%s7792 + $0x3d0] sm:$0xff]
    %v7916 = vld [vmem:[%s7792 + $0x3d8] sm:$0xff]
    %v7917 = vld [vmem:[%s7792 + $0x3e0] sm:$0xff]
    %v7918 = vld [vmem:[%s7792 + $0x3e8] sm:$0xff]
    %v7919 = vld [vmem:[%s7792 + $0x3f0] sm:$0xff]
    %v7920 = vld [vmem:[%s7792 + $0x3f8] sm:$0xff]
    %v7921 = vld [vmem:[%s7792 + $0x400] sm:$0xff]
    %v7922 = vld [vmem:[%s7792 + $0x408] sm:$0xff]
    %v7923 = vld [vmem:[%s7792 + $0x410] sm:$0xff]
    %v7924 = vld [vmem:[%s7792 + $0x418] sm:$0xff]
    %v7925 = vld [vmem:[%s7792 + $0x420] sm:$0xff]
    %v7926 = vld [vmem:[%s7792 + $0x428] sm:$0xff]
    %v7927 = vld [vmem:[%s7792 + $0x430] sm:$0xff]
    %v7928 = vld [vmem:[%s7792 + $0x438] sm:$0xff]
    %v7929 = vld [vmem:[%s7792 + $0x440] sm:$0xff]
    %v7930 = vld [vmem:[%s7792 + $0x448] sm:$0xff]
    %v7931 = vld [vmem:[%s7792 + $0x450] sm:$0xff]
    %v7932 = vld [vmem:[%s7792 + $0x458] sm:$0xff]
    %v7933 = vld [vmem:[%s7792 + $0x460] sm:$0xff]
    %v7934 = vld [vmem:[%s7792 + $0x468] sm:$0xff]
    %v7935 = vld [vmem:[%s7792 + $0x470] sm:$0xff]
    %v7936 = vld [vmem:[%s7792 + $0x478] sm:$0xff]
    %v7937 = vld [vmem:[%s7792 + $0x480] sm:$0xff]
    %v7938 = vld [vmem:[%s7792 + $0x488] sm:$0xff]
    %v7939 = vld [vmem:[%s7792 + $0x490] sm:$0xff]
    %v7940 = vld [vmem:[%s7792 + $0x498] sm:$0xff]
    %v7941 = vld [vmem:[%s7792 + $0x4a0] sm:$0xff]
    %v7942 = vld [vmem:[%s7792 + $0x4a8] sm:$0xff]
    %v7943 = vld [vmem:[%s7792 + $0x4b0] sm:$0xff]
    %v7944 = vld [vmem:[%s7792 + $0x4b8] sm:$0xff]
    %v7945 = vld [vmem:[%s7792 + $0x4c0] sm:$0xff]
    %v7946 = vld [vmem:[%s7792 + $0x4c8] sm:$0xff]
    %v7947 = vld [vmem:[%s7792 + $0x4d0] sm:$0xff]
    %v7948 = vld [vmem:[%s7792 + $0x4d8] sm:$0xff]
    %v7949 = vld [vmem:[%s7792 + $0x4e0] sm:$0xff]
    %v7950 = vld [vmem:[%s7792 + $0x4e8] sm:$0xff]
    %v7951 = vld [vmem:[%s7792 + $0x4f0] sm:$0xff]
    %v7952 = vld [vmem:[%s7792 + $0x4f8] sm:$0xff]
    %v7953 = vld [vmem:[%s7792 + $0x500] sm:$0xff]
    %v7954 = vld [vmem:[%s7792 + $0x508] sm:$0xff]
    %v7955 = vld [vmem:[%s7792 + $0x510] sm:$0xff]
    %v7956 = vld [vmem:[%s7792 + $0x518] sm:$0xff]
    %v7957 = vld [vmem:[%s7792 + $0x520] sm:$0xff]
    %v7958 = vld [vmem:[%s7792 + $0x528] sm:$0xff]
    %v7959 = vld [vmem:[%s7792 + $0x530] sm:$0xff]
    %v7960 = vld [vmem:[%s7792 + $0x538] sm:$0xff]
    %v7961 = vld [vmem:[%s7792 + $0x540] sm:$0xff]
    %v7962 = vld [vmem:[%s7792 + $0x548] sm:$0xff]
    %v7963 = vld [vmem:[%s7792 + $0x550] sm:$0xff]
    %v7964 = vld [vmem:[%s7792 + $0x558] sm:$0xff]
    %v7965 = vld [vmem:[%s7792 + $0x560] sm:$0xff]
    %v7966 = vld [vmem:[%s7792 + $0x568] sm:$0xff]
    %v7967 = vld [vmem:[%s7792 + $0x570] sm:$0xff]
    %v7968 = vld [vmem:[%s7792 + $0x578] sm:$0xff]
    %v7969 = vld [vmem:[%s7792 + $0x580] sm:$0xff]
    %v7970 = vld [vmem:[%s7792 + $0x588] sm:$0xff]
    %v7971 = vld [vmem:[%s7792 + $0x590] sm:$0xff]
    %v7972 = vld [vmem:[%s7792 + $0x598] sm:$0xff]
    %v7973 = vld [vmem:[%s7792 + $0x5a0] sm:$0xff]
    %v7974 = vld [vmem:[%s7792 + $0x5a8] sm:$0xff]
    %v7975 = vld [vmem:[%s7792 + $0x5b0] sm:$0xff]
    %v7976 = vld [vmem:[%s7792 + $0x5b8] sm:$0xff]
    %v7977 = vld [vmem:[%s7792 + $0x5c0] sm:$0xff]
    %v7978 = vld [vmem:[%s7792 + $0x5c8] sm:$0xff]
    %v7979 = vld [vmem:[%s7792 + $0x5d0] sm:$0xff]
    %v7980 = vld [vmem:[%s7792 + $0x5d8] sm:$0xff]
    %v7981 = vld [vmem:[%s7792 + $0x5e0] sm:$0xff]
    %v7982 = vld [vmem:[%s7792 + $0x5e8] sm:$0xff]
    %v7983 = vld [vmem:[%s7792 + $0x5f0] sm:$0xff]
    %v7984 = vld [vmem:[%s7792 + $0x5f8] sm:$0xff]
    %v7985 = vld [vmem:[%s7792 + $0x600] sm:$0xff]
    %v7986 = vld [vmem:[%s7792 + $0x608] sm:$0xff]
    %v7987 = vld [vmem:[%s7792 + $0x610] sm:$0xff]
    %v7988 = vld [vmem:[%s7792 + $0x618] sm:$0xff]
    %v7989 = vld [vmem:[%s7792 + $0x620] sm:$0xff]
    %v7990 = vld [vmem:[%s7792 + $0x628] sm:$0xff]
    %v7991 = vld [vmem:[%s7792 + $0x630] sm:$0xff]
    %v7992 = vld [vmem:[%s7792 + $0x638] sm:$0xff]
    %v7993 = vld [vmem:[%s7792 + $0x640] sm:$0xff]
    %v7994 = vld [vmem:[%s7792 + $0x648] sm:$0xff]
    %v7995 = vld [vmem:[%s7792 + $0x650] sm:$0xff]
    %v7996 = vld [vmem:[%s7792 + $0x658] sm:$0xff]
    %v7997 = vld [vmem:[%s7792 + $0x660] sm:$0xff]
    %v7998 = vld [vmem:[%s7792 + $0x668] sm:$0xff]
    %v7999 = vld [vmem:[%s7792 + $0x670] sm:$0xff]
    %v8000 = vld [vmem:[%s7792 + $0x678] sm:$0xff]
    %v8001 = vld [vmem:[%s7792 + $0x680] sm:$0xff]
    %v8002 = vld [vmem:[%s7792 + $0x688] sm:$0xff]
    %v8003 = vld [vmem:[%s7792 + $0x690] sm:$0xff]
    %v8004 = vld [vmem:[%s7792 + $0x698] sm:$0xff]
    %v8005 = vld [vmem:[%s7792 + $0x6a0] sm:$0xff]
    %v8006 = vld [vmem:[%s7792 + $0x6a8] sm:$0xff]
    %v8007 = vld [vmem:[%s7792 + $0x6b0] sm:$0xff]
    %v8008 = vld [vmem:[%s7792 + $0x6b8] sm:$0xff]
    %v8009 = vld [vmem:[%s7792 + $0x6c0] sm:$0xff]
    %v8010 = vld [vmem:[%s7792 + $0x6c8] sm:$0xff]
    %v8011 = vld [vmem:[%s7792 + $0x6d0] sm:$0xff]
    %v8012 = vld [vmem:[%s7792 + $0x6d8] sm:$0xff]
    %v8013 = vld [vmem:[%s7792 + $0x6e0] sm:$0xff]
    %v8014 = vld [vmem:[%s7792 + $0x6e8] sm:$0xff]
    %v8015 = vld [vmem:[%s7792 + $0x6f0] sm:$0xff]
    %v8016 = vld [vmem:[%s7792 + $0x6f8] sm:$0xff]
    %v8017 = vld [vmem:[%s7792 + $0x700] sm:$0xff]
    %v8018 = vld [vmem:[%s7792 + $0x708] sm:$0xff]
    %v8019 = vld [vmem:[%s7792 + $0x710] sm:$0xff]
    %v8020 = vld [vmem:[%s7792 + $0x718] sm:$0xff]
    %v8021 = vld [vmem:[%s7792 + $0x720] sm:$0xff]
    %v8022 = vld [vmem:[%s7792 + $0x728] sm:$0xff]
    %v8023 = vld [vmem:[%s7792 + $0x730] sm:$0xff]
    %v8024 = vld [vmem:[%s7792 + $0x738] sm:$0xff]
    %v8025 = vld [vmem:[%s7792 + $0x740] sm:$0xff]
    %v8026 = vld [vmem:[%s7792 + $0x748] sm:$0xff]
    %v8027 = vld [vmem:[%s7792 + $0x750] sm:$0xff]
    %v8028 = vld [vmem:[%s7792 + $0x758] sm:$0xff]
    %v8029 = vld [vmem:[%s7792 + $0x760] sm:$0xff]
    %v8030 = vld [vmem:[%s7792 + $0x768] sm:$0xff]
    %v8031 = vld [vmem:[%s7792 + $0x770] sm:$0xff]
    %v8032 = vld [vmem:[%s7792 + $0x778] sm:$0xff]
    %s8033 = scalar_lea.vmem [#allocation13], 30
    %v8034 = vld [vmem:[%s8033] sm:$0xff]
    %v8035 = vld [vmem:[%s8033 + $0x8] sm:$0x3]
    %v8038 = vlaneseq
    %v8039 = vshrl.u32 %v8038, 7
    %v8040 = vsub.s32 0, %v8039
    %v8041 = vrot.slane %v8034, %v8040
    %v8042 = vlaneseq
    %v8043 = vshrl.u32 %v8042, 7
    %v8044 = vsub.s32 1, %v8043
    %v8045 = vrot.slane %v8034, %v8044
    %v8046 = vlaneseq
    %v8047 = vshrl.u32 %v8046, 7
    %v8048 = vsub.s32 2, %v8047
    %v8049 = vrot.slane %v8034, %v8048
    %v8050 = vlaneseq
    %v8051 = vshrl.u32 %v8050, 7
    %v8052 = vsub.s32 3, %v8051
    %v8053 = vrot.slane %v8034, %v8052
    %v8054 = vlaneseq
    %v8055 = vshrl.u32 %v8054, 7
    %v8056 = vsub.s32 4, %v8055
    %v8057 = vrot.slane %v8034, %v8056
    %v8058 = vlaneseq
    %v8059 = vshrl.u32 %v8058, 7
    %v8060 = vsub.s32 5, %v8059
    %v8061 = vrot.slane %v8034, %v8060
    %v8062 = vlaneseq
    %v8063 = vshrl.u32 %v8062, 7
    %v8064 = vsub.s32 6, %v8063
    %v8065 = vrot.slane %v8034, %v8064
    %v8066 = vlaneseq
    %v8067 = vshrl.u32 %v8066, 7
    %v8068 = vsub.s32 7, %v8067
    %v8069 = vrot.slane %v8034, %v8068
    %v8070 = vlaneseq
    %v8071 = vshrl.u32 %v8070, 7
    %v8072 = vsub.s32 0, %v8071
    %v8073 = vrot.slane %v8035, %v8072
    %v8074 = vlaneseq
    %v8075 = vshrl.u32 %v8074, 7
    %v8076 = vsub.s32 1, %v8075
    %v8077 = vrot.slane %v8035, %v8076
    %v8328 = vunpack.c.l.b16 %v7793
    %v8329 = vunpack.c.h.b16 %v7793
    %v8330 = vunpack.c.l.b16 %v7794
    %v8331 = vunpack.c.h.b16 %v7794
    %v8332 = vunpack.c.l.b16 %v7795
    %v8333 = vunpack.c.h.b16 %v7795
    %v8334 = vunpack.c.l.b16 %v7796
    %v8335 = vunpack.c.h.b16 %v7796
    %v8336 = vunpack.c.l.b16 %v7797
    %v8337 = vunpack.c.h.b16 %v7797
    %v8338 = vunpack.c.l.b16 %v7798
    %v8339 = vunpack.c.h.b16 %v7798
    %v8340 = vunpack.c.l.b16 %v7799
    %v8341 = vunpack.c.h.b16 %v7799
    %v8342 = vunpack.c.l.b16 %v7800
    %v8343 = vunpack.c.h.b16 %v7800
    %v8344 = vunpack.c.l.b16 %v7801
    %v8345 = vunpack.c.h.b16 %v7801
    %v8346 = vunpack.c.l.b16 %v7802
    %v8347 = vunpack.c.h.b16 %v7802
    %v8348 = vunpack.c.l.b16 %v7803
    %v8349 = vunpack.c.h.b16 %v7803
    %v8350 = vunpack.c.l.b16 %v7804
    %v8351 = vunpack.c.h.b16 %v7804
    %v8352 = vunpack.c.l.b16 %v7805
    %v8353 = vunpack.c.h.b16 %v7805
    %v8354 = vunpack.c.l.b16 %v7806
    %v8355 = vunpack.c.h.b16 %v7806
    %v8356 = vunpack.c.l.b16 %v7807
    %v8357 = vunpack.c.h.b16 %v7807
    %v8358 = vunpack.c.l.b16 %v7808
    %v8359 = vunpack.c.h.b16 %v7808
    %v8360 = vunpack.c.l.b16 %v7809
    %v8361 = vunpack.c.h.b16 %v7809
    %v8362 = vunpack.c.l.b16 %v7810
    %v8363 = vunpack.c.h.b16 %v7810
    %v8364 = vunpack.c.l.b16 %v7811
    %v8365 = vunpack.c.h.b16 %v7811
    %v8366 = vunpack.c.l.b16 %v7812
    %v8367 = vunpack.c.h.b16 %v7812
    %v8368 = vunpack.c.l.b16 %v7813
    %v8369 = vunpack.c.h.b16 %v7813
    %v8370 = vunpack.c.l.b16 %v7814
    %v8371 = vunpack.c.h.b16 %v7814
    %v8372 = vunpack.c.l.b16 %v7815
    %v8373 = vunpack.c.h.b16 %v7815
    %v8374 = vunpack.c.l.b16 %v7816
    %v8375 = vunpack.c.h.b16 %v7816
    %v8376 = vunpack.c.l.b16 %v7817
    %v8377 = vunpack.c.h.b16 %v7817
    %v8378 = vunpack.c.l.b16 %v7818
    %v8379 = vunpack.c.h.b16 %v7818
    %v8380 = vunpack.c.l.b16 %v7819
    %v8381 = vunpack.c.h.b16 %v7819
    %v8382 = vunpack.c.l.b16 %v7820
    %v8383 = vunpack.c.h.b16 %v7820
    %v8384 = vunpack.c.l.b16 %v7821
    %v8385 = vunpack.c.h.b16 %v7821
    %v8386 = vunpack.c.l.b16 %v7822
    %v8387 = vunpack.c.h.b16 %v7822
    %v8388 = vunpack.c.l.b16 %v7823
    %v8389 = vunpack.c.h.b16 %v7823
    %v8390 = vunpack.c.l.b16 %v7824
    %v8391 = vunpack.c.h.b16 %v7824
    %v8392 = vunpack.c.l.b16 %v7825
    %v8393 = vunpack.c.h.b16 %v7825
    %v8394 = vunpack.c.l.b16 %v7826
    %v8395 = vunpack.c.h.b16 %v7826
    %v8396 = vunpack.c.l.b16 %v7827
    %v8397 = vunpack.c.h.b16 %v7827
    %v8398 = vunpack.c.l.b16 %v7828
    %v8399 = vunpack.c.h.b16 %v7828
    %v8400 = vunpack.c.l.b16 %v7829
    %v8401 = vunpack.c.h.b16 %v7829
    %v8402 = vunpack.c.l.b16 %v7830
    %v8403 = vunpack.c.h.b16 %v7830
    %v8404 = vunpack.c.l.b16 %v7831
    %v8405 = vunpack.c.h.b16 %v7831
    %v8406 = vunpack.c.l.b16 %v7832
    %v8407 = vunpack.c.h.b16 %v7832
    %v8408 = vunpack.c.l.b16 %v7833
    %v8409 = vunpack.c.h.b16 %v7833
    %v8410 = vunpack.c.l.b16 %v7834
    %v8411 = vunpack.c.h.b16 %v7834
    %v8412 = vunpack.c.l.b16 %v7835
    %v8413 = vunpack.c.h.b16 %v7835
    %v8414 = vunpack.c.l.b16 %v7836
    %v8415 = vunpack.c.h.b16 %v7836
    %v8416 = vunpack.c.l.b16 %v7837
    %v8417 = vunpack.c.h.b16 %v7837
    %v8418 = vunpack.c.l.b16 %v7838
    %v8419 = vunpack.c.h.b16 %v7838
    %v8420 = vunpack.c.l.b16 %v7839
    %v8421 = vunpack.c.h.b16 %v7839
    %v8422 = vunpack.c.l.b16 %v7840
    %v8423 = vunpack.c.h.b16 %v7840
    %v8424 = vunpack.c.l.b16 %v7841
    %v8425 = vunpack.c.h.b16 %v7841
    %v8426 = vunpack.c.l.b16 %v7842
    %v8427 = vunpack.c.h.b16 %v7842
    %v8428 = vunpack.c.l.b16 %v7843
    %v8429 = vunpack.c.h.b16 %v7843
    %v8430 = vunpack.c.l.b16 %v7844
    %v8431 = vunpack.c.h.b16 %v7844
    %v8432 = vunpack.c.l.b16 %v7845
    %v8433 = vunpack.c.h.b16 %v7845
    %v8434 = vunpack.c.l.b16 %v7846
    %v8435 = vunpack.c.h.b16 %v7846
    %v8436 = vunpack.c.l.b16 %v7847
    %v8437 = vunpack.c.h.b16 %v7847
    %v8438 = vunpack.c.l.b16 %v7848
    %v8439 = vunpack.c.h.b16 %v7848
    %v8440 = vunpack.c.l.b16 %v7849
    %v8441 = vunpack.c.h.b16 %v7849
    %v8442 = vunpack.c.l.b16 %v7850
    %v8443 = vunpack.c.h.b16 %v7850
    %v8444 = vunpack.c.l.b16 %v7851
    %v8445 = vunpack.c.h.b16 %v7851
    %v8446 = vunpack.c.l.b16 %v7852
    %v8447 = vunpack.c.h.b16 %v7852
    %v8448 = vunpack.c.l.b16 %v7853
    %v8449 = vunpack.c.h.b16 %v7853
    %v8450 = vunpack.c.l.b16 %v7854
    %v8451 = vunpack.c.h.b16 %v7854
    %v8452 = vunpack.c.l.b16 %v7855
    %v8453 = vunpack.c.h.b16 %v7855
    %v8454 = vunpack.c.l.b16 %v7856
    %v8455 = vunpack.c.h.b16 %v7856
    %v8456 = vunpack.c.l.b16 %v7857
    %v8457 = vunpack.c.h.b16 %v7857
    %v8458 = vunpack.c.l.b16 %v7858
    %v8459 = vunpack.c.h.b16 %v7858
    %v8460 = vunpack.c.l.b16 %v7859
    %v8461 = vunpack.c.h.b16 %v7859
    %v8462 = vunpack.c.l.b16 %v7860
    %v8463 = vunpack.c.h.b16 %v7860
    %v8464 = vunpack.c.l.b16 %v7861
    %v8465 = vunpack.c.h.b16 %v7861
    %v8466 = vunpack.c.l.b16 %v7862
    %v8467 = vunpack.c.h.b16 %v7862
    %v8468 = vunpack.c.l.b16 %v7863
    %v8469 = vunpack.c.h.b16 %v7863
    %v8470 = vunpack.c.l.b16 %v7864
    %v8471 = vunpack.c.h.b16 %v7864
    %v8472 = vunpack.c.l.b16 %v7865
    %v8473 = vunpack.c.h.b16 %v7865
    %v8474 = vunpack.c.l.b16 %v7866
    %v8475 = vunpack.c.h.b16 %v7866
    %v8476 = vunpack.c.l.b16 %v7867
    %v8477 = vunpack.c.h.b16 %v7867
    %v8478 = vunpack.c.l.b16 %v7868
    %v8479 = vunpack.c.h.b16 %v7868
    %v8480 = vunpack.c.l.b16 %v7869
    %v8481 = vunpack.c.h.b16 %v7869
    %v8482 = vunpack.c.l.b16 %v7870
    %v8483 = vunpack.c.h.b16 %v7870
    %v8484 = vunpack.c.l.b16 %v7871
    %v8485 = vunpack.c.h.b16 %v7871
    %v8486 = vunpack.c.l.b16 %v7872
    %v8487 = vunpack.c.h.b16 %v7872
    %v8488 = vunpack.c.l.b16 %v7873
    %v8489 = vunpack.c.h.b16 %v7873
    %v8490 = vunpack.c.l.b16 %v7874
    %v8491 = vunpack.c.h.b16 %v7874
    %v8492 = vunpack.c.l.b16 %v7875
    %v8493 = vunpack.c.h.b16 %v7875
    %v8494 = vunpack.c.l.b16 %v7876
    %v8495 = vunpack.c.h.b16 %v7876
    %v8496 = vunpack.c.l.b16 %v7877
    %v8497 = vunpack.c.h.b16 %v7877
    %v8498 = vunpack.c.l.b16 %v7878
    %v8499 = vunpack.c.h.b16 %v7878
    %v8500 = vunpack.c.l.b16 %v7879
    %v8501 = vunpack.c.h.b16 %v7879
    %v8502 = vunpack.c.l.b16 %v7880
    %v8503 = vunpack.c.h.b16 %v7880
    %v8504 = vunpack.c.l.b16 %v7881
    %v8505 = vunpack.c.h.b16 %v7881
    %v8506 = vunpack.c.l.b16 %v7882
    %v8507 = vunpack.c.h.b16 %v7882
    %v8508 = vunpack.c.l.b16 %v7883
    %v8509 = vunpack.c.h.b16 %v7883
    %v8510 = vunpack.c.l.b16 %v7884
    %v8511 = vunpack.c.h.b16 %v7884
    %v8512 = vunpack.c.l.b16 %v7885
    %v8513 = vunpack.c.h.b16 %v7885
    %v8514 = vunpack.c.l.b16 %v7886
    %v8515 = vunpack.c.h.b16 %v7886
    %v8516 = vunpack.c.l.b16 %v7887
    %v8517 = vunpack.c.h.b16 %v7887
    %v8518 = vunpack.c.l.b16 %v7888
    %v8519 = vunpack.c.h.b16 %v7888
    %v8520 = vunpack.c.l.b16 %v7889
    %v8521 = vunpack.c.h.b16 %v7889
    %v8522 = vunpack.c.l.b16 %v7890
    %v8523 = vunpack.c.h.b16 %v7890
    %v8524 = vunpack.c.l.b16 %v7891
    %v8525 = vunpack.c.h.b16 %v7891
    %v8526 = vunpack.c.l.b16 %v7892
    %v8527 = vunpack.c.h.b16 %v7892
    %v8528 = vunpack.c.l.b16 %v7893
    %v8529 = vunpack.c.h.b16 %v7893
    %v8530 = vunpack.c.l.b16 %v7894
    %v8531 = vunpack.c.h.b16 %v7894
    %v8532 = vunpack.c.l.b16 %v7895
    %v8533 = vunpack.c.h.b16 %v7895
    %v8534 = vunpack.c.l.b16 %v7896
    %v8535 = vunpack.c.h.b16 %v7896
    %v8536 = vunpack.c.l.b16 %v7897
    %v8537 = vunpack.c.h.b16 %v7897
    %v8538 = vunpack.c.l.b16 %v7898
    %v8539 = vunpack.c.h.b16 %v7898
    %v8540 = vunpack.c.l.b16 %v7899
    %v8541 = vunpack.c.h.b16 %v7899
    %v8542 = vunpack.c.l.b16 %v7900
    %v8543 = vunpack.c.h.b16 %v7900
    %v8544 = vunpack.c.l.b16 %v7901
    %v8545 = vunpack.c.h.b16 %v7901
    %v8546 = vunpack.c.l.b16 %v7902
    %v8547 = vunpack.c.h.b16 %v7902
    %v8548 = vunpack.c.l.b16 %v7903
    %v8549 = vunpack.c.h.b16 %v7903
    %v8550 = vunpack.c.l.b16 %v7904
    %v8551 = vunpack.c.h.b16 %v7904
    %v8552 = vunpack.c.l.b16 %v7905
    %v8553 = vunpack.c.h.b16 %v7905
    %v8554 = vunpack.c.l.b16 %v7906
    %v8555 = vunpack.c.h.b16 %v7906
    %v8556 = vunpack.c.l.b16 %v7907
    %v8557 = vunpack.c.h.b16 %v7907
    %v8558 = vunpack.c.l.b16 %v7908
    %v8559 = vunpack.c.h.b16 %v7908
    %v8560 = vunpack.c.l.b16 %v7909
    %v8561 = vunpack.c.h.b16 %v7909
    %v8562 = vunpack.c.l.b16 %v7910
    %v8563 = vunpack.c.h.b16 %v7910
    %v8564 = vunpack.c.l.b16 %v7911
    %v8565 = vunpack.c.h.b16 %v7911
    %v8566 = vunpack.c.l.b16 %v7912
    %v8567 = vunpack.c.h.b16 %v7912
    %v8568 = vunpack.c.l.b16 %v7913
    %v8569 = vunpack.c.h.b16 %v7913
    %v8570 = vunpack.c.l.b16 %v7914
    %v8571 = vunpack.c.h.b16 %v7914
    %v8572 = vunpack.c.l.b16 %v7915
    %v8573 = vunpack.c.h.b16 %v7915
    %v8574 = vunpack.c.l.b16 %v7916
    %v8575 = vunpack.c.h.b16 %v7916
    %v8576 = vunpack.c.l.b16 %v7917
    %v8577 = vunpack.c.h.b16 %v7917
    %v8578 = vunpack.c.l.b16 %v7918
    %v8579 = vunpack.c.h.b16 %v7918
    %v8580 = vunpack.c.l.b16 %v7919
    %v8581 = vunpack.c.h.b16 %v7919
    %v8582 = vunpack.c.l.b16 %v7920
    %v8583 = vunpack.c.h.b16 %v7920
    %v8584 = vunpack.c.l.b16 %v7921
    %v8585 = vunpack.c.h.b16 %v7921
    %v8586 = vunpack.c.l.b16 %v7922
    %v8587 = vunpack.c.h.b16 %v7922
    %v8588 = vunpack.c.l.b16 %v7923
    %v8589 = vunpack.c.h.b16 %v7923
    %v8590 = vunpack.c.l.b16 %v7924
    %v8591 = vunpack.c.h.b16 %v7924
    %v8592 = vunpack.c.l.b16 %v7925
    %v8593 = vunpack.c.h.b16 %v7925
    %v8594 = vunpack.c.l.b16 %v7926
    %v8595 = vunpack.c.h.b16 %v7926
    %v8596 = vunpack.c.l.b16 %v7927
    %v8597 = vunpack.c.h.b16 %v7927
    %v8598 = vunpack.c.l.b16 %v7928
    %v8599 = vunpack.c.h.b16 %v7928
    %v8600 = vunpack.c.l.b16 %v7929
    %v8601 = vunpack.c.h.b16 %v7929
    %v8602 = vunpack.c.l.b16 %v7930
    %v8603 = vunpack.c.h.b16 %v7930
    %v8604 = vunpack.c.l.b16 %v7931
    %v8605 = vunpack.c.h.b16 %v7931
    %v8606 = vunpack.c.l.b16 %v7932
    %v8607 = vunpack.c.h.b16 %v7932
    %v8608 = vunpack.c.l.b16 %v7933
    %v8609 = vunpack.c.h.b16 %v7933
    %v8610 = vunpack.c.l.b16 %v7934
    %v8611 = vunpack.c.h.b16 %v7934
    %v8612 = vunpack.c.l.b16 %v7935
    %v8613 = vunpack.c.h.b16 %v7935
    %v8614 = vunpack.c.l.b16 %v7936
    %v8615 = vunpack.c.h.b16 %v7936
    %v8616 = vunpack.c.l.b16 %v7937
    %v8617 = vunpack.c.h.b16 %v7937
    %v8618 = vunpack.c.l.b16 %v7938
    %v8619 = vunpack.c.h.b16 %v7938
    %v8620 = vunpack.c.l.b16 %v7939
    %v8621 = vunpack.c.h.b16 %v7939
    %v8622 = vunpack.c.l.b16 %v7940
    %v8623 = vunpack.c.h.b16 %v7940
    %v8624 = vunpack.c.l.b16 %v7941
    %v8625 = vunpack.c.h.b16 %v7941
    %v8626 = vunpack.c.l.b16 %v7942
    %v8627 = vunpack.c.h.b16 %v7942
    %v8628 = vunpack.c.l.b16 %v7943
    %v8629 = vunpack.c.h.b16 %v7943
    %v8630 = vunpack.c.l.b16 %v7944
    %v8631 = vunpack.c.h.b16 %v7944
    %v8632 = vunpack.c.l.b16 %v7945
    %v8633 = vunpack.c.h.b16 %v7945
    %v8634 = vunpack.c.l.b16 %v7946
    %v8635 = vunpack.c.h.b16 %v7946
    %v8636 = vunpack.c.l.b16 %v7947
    %v8637 = vunpack.c.h.b16 %v7947
    %v8638 = vunpack.c.l.b16 %v7948
    %v8639 = vunpack.c.h.b16 %v7948
    %v8640 = vunpack.c.l.b16 %v7949
    %v8641 = vunpack.c.h.b16 %v7949
    %v8642 = vunpack.c.l.b16 %v7950
    %v8643 = vunpack.c.h.b16 %v7950
    %v8644 = vunpack.c.l.b16 %v7951
    %v8645 = vunpack.c.h.b16 %v7951
    %v8646 = vunpack.c.l.b16 %v7952
    %v8647 = vunpack.c.h.b16 %v7952
    %v8648 = vunpack.c.l.b16 %v7953
    %v8649 = vunpack.c.h.b16 %v7953
    %v8650 = vunpack.c.l.b16 %v7954
    %v8651 = vunpack.c.h.b16 %v7954
    %v8652 = vunpack.c.l.b16 %v7955
    %v8653 = vunpack.c.h.b16 %v7955
    %v8654 = vunpack.c.l.b16 %v7956
    %v8655 = vunpack.c.h.b16 %v7956
    %v8656 = vunpack.c.l.b16 %v7957
    %v8657 = vunpack.c.h.b16 %v7957
    %v8658 = vunpack.c.l.b16 %v7958
    %v8659 = vunpack.c.h.b16 %v7958
    %v8660 = vunpack.c.l.b16 %v7959
    %v8661 = vunpack.c.h.b16 %v7959
    %v8662 = vunpack.c.l.b16 %v7960
    %v8663 = vunpack.c.h.b16 %v7960
    %v8664 = vunpack.c.l.b16 %v7961
    %v8665 = vunpack.c.h.b16 %v7961
    %v8666 = vunpack.c.l.b16 %v7962
    %v8667 = vunpack.c.h.b16 %v7962
    %v8668 = vunpack.c.l.b16 %v7963
    %v8669 = vunpack.c.h.b16 %v7963
    %v8670 = vunpack.c.l.b16 %v7964
    %v8671 = vunpack.c.h.b16 %v7964
    %v8672 = vunpack.c.l.b16 %v7965
    %v8673 = vunpack.c.h.b16 %v7965
    %v8674 = vunpack.c.l.b16 %v7966
    %v8675 = vunpack.c.h.b16 %v7966
    %v8676 = vunpack.c.l.b16 %v7967
    %v8677 = vunpack.c.h.b16 %v7967
    %v8678 = vunpack.c.l.b16 %v7968
    %v8679 = vunpack.c.h.b16 %v7968
    %v8680 = vunpack.c.l.b16 %v7969
    %v8681 = vunpack.c.h.b16 %v7969
    %v8682 = vunpack.c.l.b16 %v7970
    %v8683 = vunpack.c.h.b16 %v7970
    %v8684 = vunpack.c.l.b16 %v7971
    %v8685 = vunpack.c.h.b16 %v7971
    %v8686 = vunpack.c.l.b16 %v7972
    %v8687 = vunpack.c.h.b16 %v7972
    %v8688 = vunpack.c.l.b16 %v7973
    %v8689 = vunpack.c.h.b16 %v7973
    %v8690 = vunpack.c.l.b16 %v7974
    %v8691 = vunpack.c.h.b16 %v7974
    %v8692 = vunpack.c.l.b16 %v7975
    %v8693 = vunpack.c.h.b16 %v7975
    %v8694 = vunpack.c.l.b16 %v7976
    %v8695 = vunpack.c.h.b16 %v7976
    %v8696 = vunpack.c.l.b16 %v7977
    %v8697 = vunpack.c.h.b16 %v7977
    %v8698 = vunpack.c.l.b16 %v7978
    %v8699 = vunpack.c.h.b16 %v7978
    %v8700 = vunpack.c.l.b16 %v7979
    %v8701 = vunpack.c.h.b16 %v7979
    %v8702 = vunpack.c.l.b16 %v7980
    %v8703 = vunpack.c.h.b16 %v7980
    %v8704 = vunpack.c.l.b16 %v7981
    %v8705 = vunpack.c.h.b16 %v7981
    %v8706 = vunpack.c.l.b16 %v7982
    %v8707 = vunpack.c.h.b16 %v7982
    %v8708 = vunpack.c.l.b16 %v7983
    %v8709 = vunpack.c.h.b16 %v7983
    %v8710 = vunpack.c.l.b16 %v7984
    %v8711 = vunpack.c.h.b16 %v7984
    %v8712 = vunpack.c.l.b16 %v7985
    %v8713 = vunpack.c.h.b16 %v7985
    %v8714 = vunpack.c.l.b16 %v7986
    %v8715 = vunpack.c.h.b16 %v7986
    %v8716 = vunpack.c.l.b16 %v7987
    %v8717 = vunpack.c.h.b16 %v7987
    %v8718 = vunpack.c.l.b16 %v7988
    %v8719 = vunpack.c.h.b16 %v7988
    %v8720 = vunpack.c.l.b16 %v7989
    %v8721 = vunpack.c.h.b16 %v7989
    %v8722 = vunpack.c.l.b16 %v7990
    %v8723 = vunpack.c.h.b16 %v7990
    %v8724 = vunpack.c.l.b16 %v7991
    %v8725 = vunpack.c.h.b16 %v7991
    %v8726 = vunpack.c.l.b16 %v7992
    %v8727 = vunpack.c.h.b16 %v7992
    %v8728 = vunpack.c.l.b16 %v7993
    %v8729 = vunpack.c.h.b16 %v7993
    %v8730 = vunpack.c.l.b16 %v7994
    %v8731 = vunpack.c.h.b16 %v7994
    %v8732 = vunpack.c.l.b16 %v7995
    %v8733 = vunpack.c.h.b16 %v7995
    %v8734 = vunpack.c.l.b16 %v7996
    %v8735 = vunpack.c.h.b16 %v7996
    %v8736 = vunpack.c.l.b16 %v7997
    %v8737 = vunpack.c.h.b16 %v7997
    %v8738 = vunpack.c.l.b16 %v7998
    %v8739 = vunpack.c.h.b16 %v7998
    %v8740 = vunpack.c.l.b16 %v7999
    %v8741 = vunpack.c.h.b16 %v7999
    %v8742 = vunpack.c.l.b16 %v8000
    %v8743 = vunpack.c.h.b16 %v8000
    %v8744 = vunpack.c.l.b16 %v8001
    %v8745 = vunpack.c.h.b16 %v8001
    %v8746 = vunpack.c.l.b16 %v8002
    %v8747 = vunpack.c.h.b16 %v8002
    %v8748 = vunpack.c.l.b16 %v8003
    %v8749 = vunpack.c.h.b16 %v8003
    %v8750 = vunpack.c.l.b16 %v8004
    %v8751 = vunpack.c.h.b16 %v8004
    %v8752 = vunpack.c.l.b16 %v8005
    %v8753 = vunpack.c.h.b16 %v8005
    %v8754 = vunpack.c.l.b16 %v8006
    %v8755 = vunpack.c.h.b16 %v8006
    %v8756 = vunpack.c.l.b16 %v8007
    %v8757 = vunpack.c.h.b16 %v8007
    %v8758 = vunpack.c.l.b16 %v8008
    %v8759 = vunpack.c.h.b16 %v8008
    %v8760 = vunpack.c.l.b16 %v8009
    %v8761 = vunpack.c.h.b16 %v8009
    %v8762 = vunpack.c.l.b16 %v8010
    %v8763 = vunpack.c.h.b16 %v8010
    %v8764 = vunpack.c.l.b16 %v8011
    %v8765 = vunpack.c.h.b16 %v8011
    %v8766 = vunpack.c.l.b16 %v8012
    %v8767 = vunpack.c.h.b16 %v8012
    %v8768 = vunpack.c.l.b16 %v8013
    %v8769 = vunpack.c.h.b16 %v8013
    %v8770 = vunpack.c.l.b16 %v8014
    %v8771 = vunpack.c.h.b16 %v8014
    %v8772 = vunpack.c.l.b16 %v8015
    %v8773 = vunpack.c.h.b16 %v8015
    %v8774 = vunpack.c.l.b16 %v8016
    %v8775 = vunpack.c.h.b16 %v8016
    %v8776 = vunpack.c.l.b16 %v8017
    %v8777 = vunpack.c.h.b16 %v8017
    %v8778 = vunpack.c.l.b16 %v8018
    %v8779 = vunpack.c.h.b16 %v8018
    %v8780 = vunpack.c.l.b16 %v8019
    %v8781 = vunpack.c.h.b16 %v8019
    %v8782 = vunpack.c.l.b16 %v8020
    %v8783 = vunpack.c.h.b16 %v8020
    %v8784 = vunpack.c.l.b16 %v8021
    %v8785 = vunpack.c.h.b16 %v8021
    %v8786 = vunpack.c.l.b16 %v8022
    %v8787 = vunpack.c.h.b16 %v8022
    %v8788 = vunpack.c.l.b16 %v8023
    %v8789 = vunpack.c.h.b16 %v8023
    %v8790 = vunpack.c.l.b16 %v8024
    %v8791 = vunpack.c.h.b16 %v8024
    %v8792 = vunpack.c.l.b16 %v8025
    %v8793 = vunpack.c.h.b16 %v8025
    %v8794 = vunpack.c.l.b16 %v8026
    %v8795 = vunpack.c.h.b16 %v8026
    %v8796 = vunpack.c.l.b16 %v8027
    %v8797 = vunpack.c.h.b16 %v8027
    %v8798 = vunpack.c.l.b16 %v8028
    %v8799 = vunpack.c.h.b16 %v8028
    %v8800 = vunpack.c.l.b16 %v8029
    %v8801 = vunpack.c.h.b16 %v8029
    %v8802 = vunpack.c.l.b16 %v8030
    %v8803 = vunpack.c.h.b16 %v8030
    %v8804 = vunpack.c.l.b16 %v8031
    %v8805 = vunpack.c.h.b16 %v8031
    %v8806 = vunpack.c.l.b16 %v8032
    %v8807 = vunpack.c.h.b16 %v8032
    %v8808 = vpack.c.b16 %v8338, %v8328
    %v8809 = vpack.c.b16 %v8339, %v8329
    %v8810 = vpack.c.b16 %v8340, %v8330
    %v8811 = vpack.c.b16 %v8341, %v8331
    %v8812 = vpack.c.b16 %v8342, %v8332
    %v8813 = vpack.c.b16 %v8343, %v8333
    %v8814 = vpack.c.b16 %v8344, %v8334
    %v8815 = vpack.c.b16 %v8345, %v8335
    %v8816 = vpack.c.b16 %v8346, %v8336
    %v8817 = vpack.c.b16 %v8347, %v8337
    %v8818 = vpack.c.b16 %v8358, %v8348
    %v8819 = vpack.c.b16 %v8359, %v8349
    %v8820 = vpack.c.b16 %v8360, %v8350
    %v8821 = vpack.c.b16 %v8361, %v8351
    %v8822 = vpack.c.b16 %v8362, %v8352
    %v8823 = vpack.c.b16 %v8363, %v8353
    %v8824 = vpack.c.b16 %v8364, %v8354
    %v8825 = vpack.c.b16 %v8365, %v8355
    %v8826 = vpack.c.b16 %v8366, %v8356
    %v8827 = vpack.c.b16 %v8367, %v8357
    %v8828 = vpack.c.b16 %v8378, %v8368
    %v8829 = vpack.c.b16 %v8379, %v8369
    %v8830 = vpack.c.b16 %v8380, %v8370
    %v8831 = vpack.c.b16 %v8381, %v8371
    %v8832 = vpack.c.b16 %v8382, %v8372
    %v8833 = vpack.c.b16 %v8383, %v8373
    %v8834 = vpack.c.b16 %v8384, %v8374
    %v8835 = vpack.c.b16 %v8385, %v8375
    %v8836 = vpack.c.b16 %v8386, %v8376
    %v8837 = vpack.c.b16 %v8387, %v8377
    %v8838 = vpack.c.b16 %v8398, %v8388
    %v8839 = vpack.c.b16 %v8399, %v8389
    %v8840 = vpack.c.b16 %v8400, %v8390
    %v8841 = vpack.c.b16 %v8401, %v8391
    %v8842 = vpack.c.b16 %v8402, %v8392
    %v8843 = vpack.c.b16 %v8403, %v8393
    %v8844 = vpack.c.b16 %v8404, %v8394
    %v8845 = vpack.c.b16 %v8405, %v8395
    %v8846 = vpack.c.b16 %v8406, %v8396
    %v8847 = vpack.c.b16 %v8407, %v8397
    %v8848 = vpack.c.b16 %v8418, %v8408
    %v8849 = vpack.c.b16 %v8419, %v8409
    %v8850 = vpack.c.b16 %v8420, %v8410
    %v8851 = vpack.c.b16 %v8421, %v8411
    %v8852 = vpack.c.b16 %v8422, %v8412
    %v8853 = vpack.c.b16 %v8423, %v8413
    %v8854 = vpack.c.b16 %v8424, %v8414
    %v8855 = vpack.c.b16 %v8425, %v8415
    %v8856 = vpack.c.b16 %v8426, %v8416
    %v8857 = vpack.c.b16 %v8427, %v8417
    %v8858 = vpack.c.b16 %v8438, %v8428
    %v8859 = vpack.c.b16 %v8439, %v8429
    %v8860 = vpack.c.b16 %v8440, %v8430
    %v8861 = vpack.c.b16 %v8441, %v8431
    %v8862 = vpack.c.b16 %v8442, %v8432
    %v8863 = vpack.c.b16 %v8443, %v8433
    %v8864 = vpack.c.b16 %v8444, %v8434
    %v8865 = vpack.c.b16 %v8445, %v8435
    %v8866 = vpack.c.b16 %v8446, %v8436
    %v8867 = vpack.c.b16 %v8447, %v8437
    %v8868 = vpack.c.b16 %v8458, %v8448
    %v8869 = vpack.c.b16 %v8459, %v8449
    %v8870 = vpack.c.b16 %v8460, %v8450
    %v8871 = vpack.c.b16 %v8461, %v8451
    %v8872 = vpack.c.b16 %v8462, %v8452
    %v8873 = vpack.c.b16 %v8463, %v8453
    %v8874 = vpack.c.b16 %v8464, %v8454
    %v8875 = vpack.c.b16 %v8465, %v8455
    %v8876 = vpack.c.b16 %v8466, %v8456
    %v8877 = vpack.c.b16 %v8467, %v8457
    %v8878 = vpack.c.b16 %v8478, %v8468
    %v8879 = vpack.c.b16 %v8479, %v8469
    %v8880 = vpack.c.b16 %v8480, %v8470
    %v8881 = vpack.c.b16 %v8481, %v8471
    %v8882 = vpack.c.b16 %v8482, %v8472
    %v8883 = vpack.c.b16 %v8483, %v8473
    %v8884 = vpack.c.b16 %v8484, %v8474
    %v8885 = vpack.c.b16 %v8485, %v8475
    %v8886 = vpack.c.b16 %v8486, %v8476
    %v8887 = vpack.c.b16 %v8487, %v8477
    %v8888 = vpack.c.b16 %v8498, %v8488
    %v8889 = vpack.c.b16 %v8499, %v8489
    %v8890 = vpack.c.b16 %v8500, %v8490
    %v8891 = vpack.c.b16 %v8501, %v8491
    %v8892 = vpack.c.b16 %v8502, %v8492
    %v8893 = vpack.c.b16 %v8503, %v8493
    %v8894 = vpack.c.b16 %v8504, %v8494
    %v8895 = vpack.c.b16 %v8505, %v8495
    %v8896 = vpack.c.b16 %v8506, %v8496
    %v8897 = vpack.c.b16 %v8507, %v8497
    %v8898 = vpack.c.b16 %v8518, %v8508
    %v8899 = vpack.c.b16 %v8519, %v8509
    %v8900 = vpack.c.b16 %v8520, %v8510
    %v8901 = vpack.c.b16 %v8521, %v8511
    %v8902 = vpack.c.b16 %v8522, %v8512
    %v8903 = vpack.c.b16 %v8523, %v8513
    %v8904 = vpack.c.b16 %v8524, %v8514
    %v8905 = vpack.c.b16 %v8525, %v8515
    %v8906 = vpack.c.b16 %v8526, %v8516
    %v8907 = vpack.c.b16 %v8527, %v8517
    %v8908 = vpack.c.b16 %v8538, %v8528
    %v8909 = vpack.c.b16 %v8539, %v8529
    %v8910 = vpack.c.b16 %v8540, %v8530
    %v8911 = vpack.c.b16 %v8541, %v8531
    %v8912 = vpack.c.b16 %v8542, %v8532
    %v8913 = vpack.c.b16 %v8543, %v8533
    %v8914 = vpack.c.b16 %v8544, %v8534
    %v8915 = vpack.c.b16 %v8545, %v8535
    %v8916 = vpack.c.b16 %v8546, %v8536
    %v8917 = vpack.c.b16 %v8547, %v8537
    %v8918 = vpack.c.b16 %v8558, %v8548
    %v8919 = vpack.c.b16 %v8559, %v8549
    %v8920 = vpack.c.b16 %v8560, %v8550
    %v8921 = vpack.c.b16 %v8561, %v8551
    %v8922 = vpack.c.b16 %v8562, %v8552
    %v8923 = vpack.c.b16 %v8563, %v8553
    %v8924 = vpack.c.b16 %v8564, %v8554
    %v8925 = vpack.c.b16 %v8565, %v8555
    %v8926 = vpack.c.b16 %v8566, %v8556
    %v8927 = vpack.c.b16 %v8567, %v8557
    %v8928 = vpack.c.b16 %v8578, %v8568
    %v8929 = vpack.c.b16 %v8579, %v8569
    %v8930 = vpack.c.b16 %v8580, %v8570
    %v8931 = vpack.c.b16 %v8581, %v8571
    %v8932 = vpack.c.b16 %v8582, %v8572
    %v8933 = vpack.c.b16 %v8583, %v8573
    %v8934 = vpack.c.b16 %v8584, %v8574
    %v8935 = vpack.c.b16 %v8585, %v8575
    %v8936 = vpack.c.b16 %v8586, %v8576
    %v8937 = vpack.c.b16 %v8587, %v8577
    %v8938 = vpack.c.b16 %v8598, %v8588
    %v8939 = vpack.c.b16 %v8599, %v8589
    %v8940 = vpack.c.b16 %v8600, %v8590
    %v8941 = vpack.c.b16 %v8601, %v8591
    %v8942 = vpack.c.b16 %v8602, %v8592
    %v8943 = vpack.c.b16 %v8603, %v8593
    %v8944 = vpack.c.b16 %v8604, %v8594
    %v8945 = vpack.c.b16 %v8605, %v8595
    %v8946 = vpack.c.b16 %v8606, %v8596
    %v8947 = vpack.c.b16 %v8607, %v8597
    %v8948 = vpack.c.b16 %v8618, %v8608
    %v8949 = vpack.c.b16 %v8619, %v8609
    %v8950 = vpack.c.b16 %v8620, %v8610
    %v8951 = vpack.c.b16 %v8621, %v8611
    %v8952 = vpack.c.b16 %v8622, %v8612
    %v8953 = vpack.c.b16 %v8623, %v8613
    %v8954 = vpack.c.b16 %v8624, %v8614
    %v8955 = vpack.c.b16 %v8625, %v8615
    %v8956 = vpack.c.b16 %v8626, %v8616
    %v8957 = vpack.c.b16 %v8627, %v8617
    %v8958 = vpack.c.b16 %v8638, %v8628
    %v8959 = vpack.c.b16 %v8639, %v8629
    %v8960 = vpack.c.b16 %v8640, %v8630
    %v8961 = vpack.c.b16 %v8641, %v8631
    %v8962 = vpack.c.b16 %v8642, %v8632
    %v8963 = vpack.c.b16 %v8643, %v8633
    %v8964 = vpack.c.b16 %v8644, %v8634
    %v8965 = vpack.c.b16 %v8645, %v8635
    %v8966 = vpack.c.b16 %v8646, %v8636
    %v8967 = vpack.c.b16 %v8647, %v8637
    %v8968 = vpack.c.b16 %v8658, %v8648
    %v8969 = vpack.c.b16 %v8659, %v8649
    %v8970 = vpack.c.b16 %v8660, %v8650
    %v8971 = vpack.c.b16 %v8661, %v8651
    %v8972 = vpack.c.b16 %v8662, %v8652
    %v8973 = vpack.c.b16 %v8663, %v8653
    %v8974 = vpack.c.b16 %v8664, %v8654
    %v8975 = vpack.c.b16 %v8665, %v8655
    %v8976 = vpack.c.b16 %v8666, %v8656
    %v8977 = vpack.c.b16 %v8667, %v8657
    %v8978 = vpack.c.b16 %v8678, %v8668
    %v8979 = vpack.c.b16 %v8679, %v8669
    %v8980 = vpack.c.b16 %v8680, %v8670
    %v8981 = vpack.c.b16 %v8681, %v8671
    %v8982 = vpack.c.b16 %v8682, %v8672
    %v8983 = vpack.c.b16 %v8683, %v8673
    %v8984 = vpack.c.b16 %v8684, %v8674
    %v8985 = vpack.c.b16 %v8685, %v8675
    %v8986 = vpack.c.b16 %v8686, %v8676
    %v8987 = vpack.c.b16 %v8687, %v8677
    %v8988 = vpack.c.b16 %v8698, %v8688
    %v8989 = vpack.c.b16 %v8699, %v8689
    %v8990 = vpack.c.b16 %v8700, %v8690
    %v8991 = vpack.c.b16 %v8701, %v8691
    %v8992 = vpack.c.b16 %v8702, %v8692
    %v8993 = vpack.c.b16 %v8703, %v8693
    %v8994 = vpack.c.b16 %v8704, %v8694
    %v8995 = vpack.c.b16 %v8705, %v8695
    %v8996 = vpack.c.b16 %v8706, %v8696
    %v8997 = vpack.c.b16 %v8707, %v8697
    %v8998 = vpack.c.b16 %v8718, %v8708
    %v8999 = vpack.c.b16 %v8719, %v8709
    %v9000 = vpack.c.b16 %v8720, %v8710
    %v9001 = vpack.c.b16 %v8721, %v8711
    %v9002 = vpack.c.b16 %v8722, %v8712
    %v9003 = vpack.c.b16 %v8723, %v8713
    %v9004 = vpack.c.b16 %v8724, %v8714
    %v9005 = vpack.c.b16 %v8725, %v8715
    %v9006 = vpack.c.b16 %v8726, %v8716
    %v9007 = vpack.c.b16 %v8727, %v8717
    %v9008 = vpack.c.b16 %v8738, %v8728
    %v9009 = vpack.c.b16 %v8739, %v8729
    %v9010 = vpack.c.b16 %v8740, %v8730
    %v9011 = vpack.c.b16 %v8741, %v8731
    %v9012 = vpack.c.b16 %v8742, %v8732
    %v9013 = vpack.c.b16 %v8743, %v8733
    %v9014 = vpack.c.b16 %v8744, %v8734
    %v9015 = vpack.c.b16 %v8745, %v8735
    %v9016 = vpack.c.b16 %v8746, %v8736
    %v9017 = vpack.c.b16 %v8747, %v8737
    %v9018 = vpack.c.b16 %v8758, %v8748
    %v9019 = vpack.c.b16 %v8759, %v8749
    %v9020 = vpack.c.b16 %v8760, %v8750
    %v9021 = vpack.c.b16 %v8761, %v8751
    %v9022 = vpack.c.b16 %v8762, %v8752
    %v9023 = vpack.c.b16 %v8763, %v8753
    %v9024 = vpack.c.b16 %v8764, %v8754
    %v9025 = vpack.c.b16 %v8765, %v8755
    %v9026 = vpack.c.b16 %v8766, %v8756
    %v9027 = vpack.c.b16 %v8767, %v8757
    %v9028 = vpack.c.b16 %v8778, %v8768
    %v9029 = vpack.c.b16 %v8779, %v8769
    %v9030 = vpack.c.b16 %v8780, %v8770
    %v9031 = vpack.c.b16 %v8781, %v8771
    %v9032 = vpack.c.b16 %v8782, %v8772
    %v9033 = vpack.c.b16 %v8783, %v8773
    %v9034 = vpack.c.b16 %v8784, %v8774
    %v9035 = vpack.c.b16 %v8785, %v8775
    %v9036 = vpack.c.b16 %v8786, %v8776
    %v9037 = vpack.c.b16 %v8787, %v8777
    %v9038 = vpack.c.b16 %v8798, %v8788
    %v9039 = vpack.c.b16 %v8799, %v8789
    %v9040 = vpack.c.b16 %v8800, %v8790
    %v9041 = vpack.c.b16 %v8801, %v8791
    %v9042 = vpack.c.b16 %v8802, %v8792
    %v9043 = vpack.c.b16 %v8803, %v8793
    %v9044 = vpack.c.b16 %v8804, %v8794
    %v9045 = vpack.c.b16 %v8805, %v8795
    %v9046 = vpack.c.b16 %v8806, %v8796
    %v9047 = vpack.c.b16 %v8807, %v8797
    %9288 = vmatprep.subr.bf16.mxu0 %v8879
    %9289 = vmatpush1.bf16.msra.mxu0 %v8878
    %9290 = vmatprep.subr.bf16.mxu0 %v8869
    %9291 = vmatpush1.bf16.msra.mxu0 %v8868
    %9292 = vmatprep.subr.bf16.mxu0 %v8859
    %9293 = vmatpush1.bf16.msra.mxu0 %v8858
    %9294 = vmatprep.subr.bf16.mxu0 %v8849
    %9295 = vmatpush1.bf16.msra.mxu0 %v8848
    %9296 = vmatprep.subr.bf16.mxu0 %v8839
    %9297 = vmatpush1.bf16.msra.mxu0 %v8838
    %9298 = vmatprep.subr.bf16.mxu0 %v8829
    %9299 = vmatpush1.bf16.msra.mxu0 %v8828
    %9300 = vmatprep.subr.bf16.mxu0 %v8819
    %9301 = vmatpush1.bf16.msra.mxu0 %v8818
    %9302 = vmatprep.subr.bf16.mxu0 %v8809
    %9303 = vmatpush1.bf16.msra.mxu0 %v8808
    %9304 = vmatprep.subr.bf16.mxu0 %v8959
    %9305 = vmatpush2.bf16.msra.mxu0 %v8958
    %9306 = vmatprep.subr.bf16.mxu0 %v8949
    %9307 = vmatpush2.bf16.msra.mxu0 %v8948
    %9308 = vmatprep.subr.bf16.mxu0 %v8939
    %9309 = vmatpush2.bf16.msra.mxu0 %v8938
    %9310 = vmatprep.subr.bf16.mxu0 %v8929
    %9311 = vmatpush2.bf16.msra.mxu0 %v8928
    %9312 = vmatprep.subr.bf16.mxu0 %v8919
    %9313 = vmatpush2.bf16.msra.mxu0 %v8918
    %9314 = vmatprep.subr.bf16.mxu0 %v8909
    %9315 = vmatpush2.bf16.msra.mxu0 %v8908
    %9316 = vmatprep.subr.bf16.mxu0 %v8899
    %9317 = vmatpush2.bf16.msra.mxu0 %v8898
    %9318 = vmatprep.subr.bf16.mxu0 %v8889
    %9319 = vmatpush2.bf16.msra.mxu0 %v8888
    %9320 = vmatprep.mubr.bf16.mxu0 %v1658
    %9321 = vmatmul.mubr.bf16.gmra.mxu0 %v1657
    %v9322 = vpop.f32.mrf.mxu0
    %v9323 = vadd.f32 %v8041, %v9322
    %v9324 = vpop.f32.mrf.mxu0
    %v9325 = vadd.f32 %v8045, %v9324
    %v9326 = vpop.f32.mrf.mxu0
    %v9327 = vpop.f32.mrf.mxu0
    %9328 = vdwg.mxu0
    %9329 = vmatprep.subr.bf16.mxu0 %v9039
    %9330 = vmatpush1.bf16.msra.mxu0 %v9038
    %9331 = vmatprep.subr.bf16.mxu0 %v9029
    %9332 = vmatpush1.bf16.msra.mxu0 %v9028
    %9333 = vmatprep.subr.bf16.mxu0 %v9019
    %9334 = vmatpush1.bf16.msra.mxu0 %v9018
    %9335 = vmatprep.subr.bf16.mxu0 %v9009
    %9336 = vmatpush1.bf16.msra.mxu0 %v9008
    %9337 = vmatprep.subr.bf16.mxu0 %v8999
    %9338 = vmatpush1.bf16.msra.mxu0 %v8998
    %9339 = vmatprep.subr.bf16.mxu0 %v8989
    %9340 = vmatpush1.bf16.msra.mxu0 %v8988
    %9341 = vmatprep.subr.bf16.mxu0 %v8979
    %9342 = vmatpush1.bf16.msra.mxu0 %v8978
    %9343 = vmatprep.subr.bf16.mxu0 %v8969
    %9344 = vmatpush1.bf16.msra.mxu0 %v8968
    %9345 = vmatprep.subr.bf16.mxu0 0
    %9346 = vmatpush2.bf16.msra.mxu0 0
    %9347 = vmatprep.subr.bf16.mxu0 0
    %9348 = vmatpush2.bf16.msra.mxu0 0
    %9349 = vmatprep.subr.bf16.mxu0 0
    %9350 = vmatpush2.bf16.msra.mxu0 0
    %9351 = vmatprep.subr.bf16.mxu0 0
    %9352 = vmatpush2.bf16.msra.mxu0 0
    %9353 = vmatprep.subr.bf16.mxu0 0
    %9354 = vmatpush2.bf16.msra.mxu0 0
    %9355 = vmatprep.subr.bf16.mxu0 0
    %9356 = vmatpush2.bf16.msra.mxu0 0
    %9357 = vmatprep.subr.bf16.mxu0 0
    %9358 = vmatpush2.bf16.msra.mxu0 0
    %9359 = vmatprep.subr.bf16.mxu0 0
    %9360 = vmatpush2.bf16.msra.mxu0 0
    %9361 = vmatprep.mubr.bf16.mxu0 0
    %9362 = vmatmul.mubr.bf16.gmra.mxu0 %v1659
    %v9363 = vpop.f32.mrf.mxu0
    %v9364 = vadd.f32 %v9323, %v9363
    %v9365 = vpop.f32.mrf.mxu0
    %v9366 = vadd.f32 %v9325, %v9365
    %v9367 = vpop.f32.mrf.mxu0
    %v9368 = vpop.f32.mrf.mxu0
    %9369 = vdwg.mxu0
    %9370 = vmatprep.subr.bf16.mxu0 %v8881
    %9371 = vmatpush1.bf16.msra.mxu0 %v8880
    %9372 = vmatprep.subr.bf16.mxu0 %v8871
    %9373 = vmatpush1.bf16.msra.mxu0 %v8870
    %9374 = vmatprep.subr.bf16.mxu0 %v8861
    %9375 = vmatpush1.bf16.msra.mxu0 %v8860
    %9376 = vmatprep.subr.bf16.mxu0 %v8851
    %9377 = vmatpush1.bf16.msra.mxu0 %v8850
    %9378 = vmatprep.subr.bf16.mxu0 %v8841
    %9379 = vmatpush1.bf16.msra.mxu0 %v8840
    %9380 = vmatprep.subr.bf16.mxu0 %v8831
    %9381 = vmatpush1.bf16.msra.mxu0 %v8830
    %9382 = vmatprep.subr.bf16.mxu0 %v8821
    %9383 = vmatpush1.bf16.msra.mxu0 %v8820
    %9384 = vmatprep.subr.bf16.mxu0 %v8811
    %9385 = vmatpush1.bf16.msra.mxu0 %v8810
    %9386 = vmatprep.subr.bf16.mxu0 %v8961
    %9387 = vmatpush2.bf16.msra.mxu0 %v8960
    %9388 = vmatprep.subr.bf16.mxu0 %v8951
    %9389 = vmatpush2.bf16.msra.mxu0 %v8950
    %9390 = vmatprep.subr.bf16.mxu0 %v8941
    %9391 = vmatpush2.bf16.msra.mxu0 %v8940
    %9392 = vmatprep.subr.bf16.mxu0 %v8931
    %9393 = vmatpush2.bf16.msra.mxu0 %v8930
    %9394 = vmatprep.subr.bf16.mxu0 %v8921
    %9395 = vmatpush2.bf16.msra.mxu0 %v8920
    %9396 = vmatprep.subr.bf16.mxu0 %v8911
    %9397 = vmatpush2.bf16.msra.mxu0 %v8910
    %9398 = vmatprep.subr.bf16.mxu0 %v8901
    %9399 = vmatpush2.bf16.msra.mxu0 %v8900
    %9400 = vmatprep.subr.bf16.mxu0 %v8891
    %9401 = vmatpush2.bf16.msra.mxu0 %v8890
    %9402 = vmatprep.mubr.bf16.mxu0 %v1658
    %9403 = vmatmul.mubr.bf16.gmra.mxu0 %v1657
    %v9404 = vpop.f32.mrf.mxu0
    %v9405 = vadd.f32 %v8049, %v9404
    %v9406 = vpop.f32.mrf.mxu0
    %v9407 = vadd.f32 %v8053, %v9406
    %v9408 = vpop.f32.mrf.mxu0
    %v9409 = vpop.f32.mrf.mxu0
    %9410 = vdwg.mxu0
    %9411 = vmatprep.subr.bf16.mxu0 %v9041
    %9412 = vmatpush1.bf16.msra.mxu0 %v9040
    %9413 = vmatprep.subr.bf16.mxu0 %v9031
    %9414 = vmatpush1.bf16.msra.mxu0 %v9030
    %9415 = vmatprep.subr.bf16.mxu0 %v9021
    %9416 = vmatpush1.bf16.msra.mxu0 %v9020
    %9417 = vmatprep.subr.bf16.mxu0 %v9011
    %9418 = vmatpush1.bf16.msra.mxu0 %v9010
    %9419 = vmatprep.subr.bf16.mxu0 %v9001
    %9420 = vmatpush1.bf16.msra.mxu0 %v9000
    %9421 = vmatprep.subr.bf16.mxu0 %v8991
    %9422 = vmatpush1.bf16.msra.mxu0 %v8990
    %9423 = vmatprep.subr.bf16.mxu0 %v8981
    %9424 = vmatpush1.bf16.msra.mxu0 %v8980
    %9425 = vmatprep.subr.bf16.mxu0 %v8971
    %9426 = vmatpush1.bf16.msra.mxu0 %v8970
    %9427 = vmatprep.subr.bf16.mxu0 0
    %9428 = vmatpush2.bf16.msra.mxu0 0
    %9429 = vmatprep.subr.bf16.mxu0 0
    %9430 = vmatpush2.bf16.msra.mxu0 0
    %9431 = vmatprep.subr.bf16.mxu0 0
    %9432 = vmatpush2.bf16.msra.mxu0 0
    %9433 = vmatprep.subr.bf16.mxu0 0
    %9434 = vmatpush2.bf16.msra.mxu0 0
    %9435 = vmatprep.subr.bf16.mxu0 0
    %9436 = vmatpush2.bf16.msra.mxu0 0
    %9437 = vmatprep.subr.bf16.mxu0 0
    %9438 = vmatpush2.bf16.msra.mxu0 0
    %9439 = vmatprep.subr.bf16.mxu0 0
    %9440 = vmatpush2.bf16.msra.mxu0 0
    %9441 = vmatprep.subr.bf16.mxu0 0
    %9442 = vmatpush2.bf16.msra.mxu0 0
    %9443 = vmatprep.mubr.bf16.mxu0 0
    %9444 = vmatmul.mubr.bf16.gmra.mxu0 %v1659
    %v9445 = vpop.f32.mrf.mxu0
    %v9446 = vadd.f32 %v9405, %v9445
    %v9447 = vpop.f32.mrf.mxu0
    %v9448 = vadd.f32 %v9407, %v9447
    %v9449 = vpop.f32.mrf.mxu0
    %v9450 = vpop.f32.mrf.mxu0
    %9451 = vdwg.mxu0
    %9452 = vmatprep.subr.bf16.mxu0 %v8883
    %9453 = vmatpush1.bf16.msra.mxu0 %v8882
    %9454 = vmatprep.subr.bf16.mxu0 %v8873
    %9455 = vmatpush1.bf16.msra.mxu0 %v8872
    %9456 = vmatprep.subr.bf16.mxu0 %v8863
    %9457 = vmatpush1.bf16.msra.mxu0 %v8862
    %9458 = vmatprep.subr.bf16.mxu0 %v8853
    %9459 = vmatpush1.bf16.msra.mxu0 %v8852
    %9460 = vmatprep.subr.bf16.mxu0 %v8843
    %9461 = vmatpush1.bf16.msra.mxu0 %v8842
    %9462 = vmatprep.subr.bf16.mxu0 %v8833
    %9463 = vmatpush1.bf16.msra.mxu0 %v8832
    %9464 = vmatprep.subr.bf16.mxu0 %v8823
    %9465 = vmatpush1.bf16.msra.mxu0 %v8822
    %9466 = vmatprep.subr.bf16.mxu0 %v8813
    %9467 = vmatpush1.bf16.msra.mxu0 %v8812
    %9468 = vmatprep.subr.bf16.mxu0 %v8963
    %9469 = vmatpush2.bf16.msra.mxu0 %v8962
    %9470 = vmatprep.subr.bf16.mxu0 %v8953
    %9471 = vmatpush2.bf16.msra.mxu0 %v8952
    %9472 = vmatprep.subr.bf16.mxu0 %v8943
    %9473 = vmatpush2.bf16.msra.mxu0 %v8942
    %9474 = vmatprep.subr.bf16.mxu0 %v8933
    %9475 = vmatpush2.bf16.msra.mxu0 %v8932
    %9476 = vmatprep.subr.bf16.mxu0 %v8923
    %9477 = vmatpush2.bf16.msra.mxu0 %v8922
    %9478 = vmatprep.subr.bf16.mxu0 %v8913
    %9479 = vmatpush2.bf16.msra.mxu0 %v8912
    %9480 = vmatprep.subr.bf16.mxu0 %v8903
    %9481 = vmatpush2.bf16.msra.mxu0 %v8902
    %9482 = vmatprep.subr.bf16.mxu0 %v8893
    %9483 = vmatpush2.bf16.msra.mxu0 %v8892
    %9484 = vmatprep.mubr.bf16.mxu0 %v1658
    %9485 = vmatmul.mubr.bf16.gmra.mxu0 %v1657
    %v9486 = vpop.f32.mrf.mxu0
    %v9487 = vadd.f32 %v8057, %v9486
    %v9488 = vpop.f32.mrf.mxu0
    %v9489 = vadd.f32 %v8061, %v9488
    %v9490 = vpop.f32.mrf.mxu0
    %v9491 = vpop.f32.mrf.mxu0
    %9492 = vdwg.mxu0
    %9493 = vmatprep.subr.bf16.mxu0 %v9043
    %9494 = vmatpush1.bf16.msra.mxu0 %v9042
    %9495 = vmatprep.subr.bf16.mxu0 %v9033
    %9496 = vmatpush1.bf16.msra.mxu0 %v9032
    %9497 = vmatprep.subr.bf16.mxu0 %v9023
    %9498 = vmatpush1.bf16.msra.mxu0 %v9022
    %9499 = vmatprep.subr.bf16.mxu0 %v9013
    %9500 = vmatpush1.bf16.msra.mxu0 %v9012
    %9501 = vmatprep.subr.bf16.mxu0 %v9003
    %9502 = vmatpush1.bf16.msra.mxu0 %v9002
    %9503 = vmatprep.subr.bf16.mxu0 %v8993
    %9504 = vmatpush1.bf16.msra.mxu0 %v8992
    %9505 = vmatprep.subr.bf16.mxu0 %v8983
    %9506 = vmatpush1.bf16.msra.mxu0 %v8982
    %9507 = vmatprep.subr.bf16.mxu0 %v8973
    %9508 = vmatpush1.bf16.msra.mxu0 %v8972
    %9509 = vmatprep.subr.bf16.mxu0 0
    %9510 = vmatpush2.bf16.msra.mxu0 0
    %9511 = vmatprep.subr.bf16.mxu0 0
    %9512 = vmatpush2.bf16.msra.mxu0 0
    %9513 = vmatprep.subr.bf16.mxu0 0
    %9514 = vmatpush2.bf16.msra.mxu0 0
    %9515 = vmatprep.subr.bf16.mxu0 0
    %9516 = vmatpush2.bf16.msra.mxu0 0
    %9517 = vmatprep.subr.bf16.mxu0 0
    %9518 = vmatpush2.bf16.msra.mxu0 0
    %9519 = vmatprep.subr.bf16.mxu0 0
    %9520 = vmatpush2.bf16.msra.mxu0 0
    %9521 = vmatprep.subr.bf16.mxu0 0
    %9522 = vmatpush2.bf16.msra.mxu0 0
    %9523 = vmatprep.subr.bf16.mxu0 0
    %9524 = vmatpush2.bf16.msra.mxu0 0
    %9525 = vmatprep.mubr.bf16.mxu0 0
    %9526 = vmatmul.mubr.bf16.gmra.mxu0 %v1659
    %v9527 = vpop.f32.mrf.mxu0
    %v9528 = vadd.f32 %v9487, %v9527
    %v9529 = vpop.f32.mrf.mxu0
    %v9530 = vadd.f32 %v9489, %v9529
    %v9531 = vpop.f32.mrf.mxu0
    %v9532 = vpop.f32.mrf.mxu0
    %9533 = vdwg.mxu0
    %9534 = vmatprep.subr.bf16.mxu0 %v8885
    %9535 = vmatpush1.bf16.msra.mxu0 %v8884
    %9536 = vmatprep.subr.bf16.mxu0 %v8875
    %9537 = vmatpush1.bf16.msra.mxu0 %v8874
    %9538 = vmatprep.subr.bf16.mxu0 %v8865
    %9539 = vmatpush1.bf16.msra.mxu0 %v8864
    %9540 = vmatprep.subr.bf16.mxu0 %v8855
    %9541 = vmatpush1.bf16.msra.mxu0 %v8854
    %9542 = vmatprep.subr.bf16.mxu0 %v8845
    %9543 = vmatpush1.bf16.msra.mxu0 %v8844
    %9544 = vmatprep.subr.bf16.mxu0 %v8835
    %9545 = vmatpush1.bf16.msra.mxu0 %v8834
    %9546 = vmatprep.subr.bf16.mxu0 %v8825
    %9547 = vmatpush1.bf16.msra.mxu0 %v8824
    %9548 = vmatprep.subr.bf16.mxu0 %v8815
    %9549 = vmatpush1.bf16.msra.mxu0 %v8814
    %9550 = vmatprep.subr.bf16.mxu0 %v8965
    %9551 = vmatpush2.bf16.msra.mxu0 %v8964
    %9552 = vmatprep.subr.bf16.mxu0 %v8955
    %9553 = vmatpush2.bf16.msra.mxu0 %v8954
    %9554 = vmatprep.subr.bf16.mxu0 %v8945
    %9555 = vmatpush2.bf16.msra.mxu0 %v8944
    %9556 = vmatprep.subr.bf16.mxu0 %v8935
    %9557 = vmatpush2.bf16.msra.mxu0 %v8934
    %9558 = vmatprep.subr.bf16.mxu0 %v8925
    %9559 = vmatpush2.bf16.msra.mxu0 %v8924
    %9560 = vmatprep.subr.bf16.mxu0 %v8915
    %9561 = vmatpush2.bf16.msra.mxu0 %v8914
    %9562 = vmatprep.subr.bf16.mxu0 %v8905
    %9563 = vmatpush2.bf16.msra.mxu0 %v8904
    %9564 = vmatprep.subr.bf16.mxu0 %v8895
    %9565 = vmatpush2.bf16.msra.mxu0 %v8894
    %9566 = vmatprep.mubr.bf16.mxu0 %v1658
    %9567 = vmatmul.mubr.bf16.gmra.mxu0 %v1657
    %v9568 = vpop.f32.mrf.mxu0
    %v9569 = vadd.f32 %v8065, %v9568
    %v9570 = vpop.f32.mrf.mxu0
    %v9571 = vadd.f32 %v8069, %v9570
    %v9572 = vpop.f32.mrf.mxu0
    %v9573 = vpop.f32.mrf.mxu0
    %9574 = vdwg.mxu0
    %9575 = vmatprep.subr.bf16.mxu0 %v9045
    %9576 = vmatpush1.bf16.msra.mxu0 %v9044
    %9577 = vmatprep.subr.bf16.mxu0 %v9035
    %9578 = vmatpush1.bf16.msra.mxu0 %v9034
    %9579 = vmatprep.subr.bf16.mxu0 %v9025
    %9580 = vmatpush1.bf16.msra.mxu0 %v9024
    %9581 = vmatprep.subr.bf16.mxu0 %v9015
    %9582 = vmatpush1.bf16.msra.mxu0 %v9014
    %9583 = vmatprep.subr.bf16.mxu0 %v9005
    %9584 = vmatpush1.bf16.msra.mxu0 %v9004
    %9585 = vmatprep.subr.bf16.mxu0 %v8995
    %9586 = vmatpush1.bf16.msra.mxu0 %v8994
    %9587 = vmatprep.subr.bf16.mxu0 %v8985
    %9588 = vmatpush1.bf16.msra.mxu0 %v8984
    %9589 = vmatprep.subr.bf16.mxu0 %v8975
    %9590 = vmatpush1.bf16.msra.mxu0 %v8974
    %9591 = vmatprep.subr.bf16.mxu0 0
    %9592 = vmatpush2.bf16.msra.mxu0 0
    %9593 = vmatprep.subr.bf16.mxu0 0
    %9594 = vmatpush2.bf16.msra.mxu0 0
    %9595 = vmatprep.subr.bf16.mxu0 0
    %9596 = vmatpush2.bf16.msra.mxu0 0
    %9597 = vmatprep.subr.bf16.mxu0 0
    %9598 = vmatpush2.bf16.msra.mxu0 0
    %9599 = vmatprep.subr.bf16.mxu0 0
    %9600 = vmatpush2.bf16.msra.mxu0 0
    %9601 = vmatprep.subr.bf16.mxu0 0
    %9602 = vmatpush2.bf16.msra.mxu0 0
    %9603 = vmatprep.subr.bf16.mxu0 0
    %9604 = vmatpush2.bf16.msra.mxu0 0
    %9605 = vmatprep.subr.bf16.mxu0 0
    %9606 = vmatpush2.bf16.msra.mxu0 0
    %9607 = vmatprep.mubr.bf16.mxu0 0
    %9608 = vmatmul.mubr.bf16.gmra.mxu0 %v1659
    %v9609 = vpop.f32.mrf.mxu0
    %v9610 = vadd.f32 %v9569, %v9609
    %v9611 = vpop.f32.mrf.mxu0
    %v9612 = vadd.f32 %v9571, %v9611
    %v9613 = vpop.f32.mrf.mxu0
    %v9614 = vpop.f32.mrf.mxu0
    %9615 = vdwg.mxu0
    %9616 = vmatprep.subr.bf16.mxu0 %v8887
    %9617 = vmatpush1.bf16.msra.mxu0 %v8886
    %9618 = vmatprep.subr.bf16.mxu0 %v8877
    %9619 = vmatpush1.bf16.msra.mxu0 %v8876
    %9620 = vmatprep.subr.bf16.mxu0 %v8867
    %9621 = vmatpush1.bf16.msra.mxu0 %v8866
    %9622 = vmatprep.subr.bf16.mxu0 %v8857
    %9623 = vmatpush1.bf16.msra.mxu0 %v8856
    %9624 = vmatprep.subr.bf16.mxu0 %v8847
    %9625 = vmatpush1.bf16.msra.mxu0 %v8846
    %9626 = vmatprep.subr.bf16.mxu0 %v8837
    %9627 = vmatpush1.bf16.msra.mxu0 %v8836
    %9628 = vmatprep.subr.bf16.mxu0 %v8827
    %9629 = vmatpush1.bf16.msra.mxu0 %v8826
    %9630 = vmatprep.subr.bf16.mxu0 %v8817
    %9631 = vmatpush1.bf16.msra.mxu0 %v8816
    %9632 = vmatprep.subr.bf16.mxu0 %v8967
    %9633 = vmatpush2.bf16.msra.mxu0 %v8966
    %9634 = vmatprep.subr.bf16.mxu0 %v8957
    %9635 = vmatpush2.bf16.msra.mxu0 %v8956
    %9636 = vmatprep.subr.bf16.mxu0 %v8947
    %9637 = vmatpush2.bf16.msra.mxu0 %v8946
    %9638 = vmatprep.subr.bf16.mxu0 %v8937
    %9639 = vmatpush2.bf16.msra.mxu0 %v8936
    %9640 = vmatprep.subr.bf16.mxu0 %v8927
    %9641 = vmatpush2.bf16.msra.mxu0 %v8926
    %9642 = vmatprep.subr.bf16.mxu0 %v8917
    %9643 = vmatpush2.bf16.msra.mxu0 %v8916
    %9644 = vmatprep.subr.bf16.mxu0 %v8907
    %9645 = vmatpush2.bf16.msra.mxu0 %v8906
    %9646 = vmatprep.subr.bf16.mxu0 %v8897
    %9647 = vmatpush2.bf16.msra.mxu0 %v8896
    %9648 = vmatprep.mubr.bf16.mxu0 %v1658
    %9649 = vmatmul.mubr.bf16.gmra.mxu0 %v1657
    %v9650 = vpop.f32.mrf.mxu0
    %v9651 = vadd.f32 %v8073, %v9650
    %v9652 = vpop.f32.mrf.mxu0
    %v9653 = vadd.f32 %v8077, %v9652
    %v9654 = vpop.f32.mrf.mxu0
    %v9655 = vpop.f32.mrf.mxu0
    %9656 = vdwg.mxu0
    %9657 = vmatprep.subr.bf16.mxu0 %v9047
    %9658 = vmatpush1.bf16.msra.mxu0 %v9046
    %9659 = vmatprep.subr.bf16.mxu0 %v9037
    %9660 = vmatpush1.bf16.msra.mxu0 %v9036
    %9661 = vmatprep.subr.bf16.mxu0 %v9027
    %9662 = vmatpush1.bf16.msra.mxu0 %v9026
    %9663 = vmatprep.subr.bf16.mxu0 %v9017
    %9664 = vmatpush1.bf16.msra.mxu0 %v9016
    %9665 = vmatprep.subr.bf16.mxu0 %v9007
    %9666 = vmatpush1.bf16.msra.mxu0 %v9006
    %9667 = vmatprep.subr.bf16.mxu0 %v8997
    %9668 = vmatpush1.bf16.msra.mxu0 %v8996
    %9669 = vmatprep.subr.bf16.mxu0 %v8987
    %9670 = vmatpush1.bf16.msra.mxu0 %v8986
    %9671 = vmatprep.subr.bf16.mxu0 %v8977
    %9672 = vmatpush1.bf16.msra.mxu0 %v8976
    %9673 = vmatprep.subr.bf16.mxu0 0
    %9674 = vmatpush2.bf16.msra.mxu0 0
    %9675 = vmatprep.subr.bf16.mxu0 0
    %9676 = vmatpush2.bf16.msra.mxu0 0
    %9677 = vmatprep.subr.bf16.mxu0 0
    %9678 = vmatpush2.bf16.msra.mxu0 0
    %9679 = vmatprep.subr.bf16.mxu0 0
    %9680 = vmatpush2.bf16.msra.mxu0 0
    %9681 = vmatprep.subr.bf16.mxu0 0
    %9682 = vmatpush2.bf16.msra.mxu0 0
    %9683 = vmatprep.subr.bf16.mxu0 0
    %9684 = vmatpush2.bf16.msra.mxu0 0
    %9685 = vmatprep.subr.bf16.mxu0 0
    %9686 = vmatpush2.bf16.msra.mxu0 0
    %9687 = vmatprep.subr.bf16.mxu0 0
    %9688 = vmatpush2.bf16.msra.mxu0 0
    %9689 = vmatprep.mubr.bf16.mxu0 0
    %9690 = vmatmul.mubr.bf16.gmra.mxu0 %v1659
    %v9691 = vpop.f32.mrf.mxu0
    %v9692 = vadd.f32 %v9651, %v9691
    %v9693 = vpop.f32.mrf.mxu0
    %v9694 = vadd.f32 %v9653, %v9693
    %v9695 = vpop.f32.mrf.mxu0
    %v9696 = vpop.f32.mrf.mxu0
    %9697 = vdwg.mxu0
    %v9698 = vmul.f32 %v9364, 0.5
    %v9699 = vmul.f32 %v9366, 0.5
    %v9700 = vmul.f32 %v9446, 0.5
    %v9701 = vmul.f32 %v9448, 0.5
    %v9702 = vmul.f32 %v9528, 0.5
    %v9703 = vmul.f32 %v9530, 0.5
    %v9704 = vmul.f32 %v9610, 0.5
    %v9705 = vmul.f32 %v9612, 0.5
    %v9706 = vmul.f32 %v9692, 0.5
    %v9707 = vmul.f32 %v9694, 0.5
    %v9708 = vmul.f32 %v9364, 0.70710677
    %v9709 = vmul.f32 %v9366, 0.70710677
    %v9710 = vmul.f32 %v9446, 0.70710677
    %v9711 = vmul.f32 %v9448, 0.70710677
    %v9712 = vmul.f32 %v9528, 0.70710677
    %v9713 = vmul.f32 %v9530, 0.70710677
    %v9714 = vmul.f32 %v9610, 0.70710677
    %v9715 = vmul.f32 %v9612, 0.70710677
    %v9716 = vmul.f32 %v9692, 0.70710677
    %v9717 = vmul.f32 %v9694, 0.70710677
    %v9718 = verf.f32.pop %v9708
    %v9719 = verf.f32.pop %v9709
    %v9720 = verf.f32.pop %v9710
    %v9721 = verf.f32.pop %v9711
    %v9722 = verf.f32.pop %v9712
    %v9723 = verf.f32.pop %v9713
    %v9724 = verf.f32.pop %v9714
    %v9725 = verf.f32.pop %v9715
    %v9726 = verf.f32.pop %v9716
    %v9727 = verf.f32.pop %v9717
    %v9728 = vadd.f32 %v9718, 1.0
    %v9729 = vadd.f32 %v9719, 1.0
    %v9730 = vadd.f32 %v9720, 1.0
    %v9731 = vadd.f32 %v9721, 1.0
    %v9732 = vadd.f32 %v9722, 1.0
    %v9733 = vadd.f32 %v9723, 1.0
    %v9734 = vadd.f32 %v9724, 1.0
    %v9735 = vadd.f32 %v9725, 1.0
    %v9736 = vadd.f32 %v9726, 1.0
    %v9737 = vadd.f32 %v9727, 1.0
    %v9738 = vmul.f32 %v9698, %v9728
    %v9739 = vmul.f32 %v9699, %v9729
    %v9740 = vmul.f32 %v9700, %v9730
    %v9741 = vmul.f32 %v9701, %v9731
    %v9742 = vmul.f32 %v9702, %v9732
    %v9743 = vmul.f32 %v9703, %v9733
    %v9744 = vmul.f32 %v9704, %v9734
    %v9745 = vmul.f32 %v9705, %v9735
    %v9746 = vmul.f32 %v9706, %v9736
    %v9747 = vmul.f32 %v9707, %v9737
    %v9748 = vpack.c.bf16 %v9738, %v9738
    %v9749 = vpack.c.bf16 %v9739, %v9739
    %v9750 = vpack.c.bf16 %v9740, %v9740
    %v9751 = vpack.c.bf16 %v9741, %v9741
    %v9752 = vpack.c.bf16 %v9742, %v9742
    %v9753 = vpack.c.bf16 %v9743, %v9743
    %v9754 = vpack.c.bf16 %v9744, %v9744
    %v9755 = vpack.c.bf16 %v9745, %v9745
    %v9756 = vpack.c.bf16 %v9746, %v9746
    %v9757 = vpack.c.bf16 %v9747, %v9747
    %v9768 = vcombine.low %v9748, %v9749
    %v9769 = vcombine.low %v9750, %v9751
    %v9770 = vcombine.low %v9752, %v9753
    %v9771 = vcombine.low %v9754, %v9755
    %v9773 = vunpack.c.l.s4 1966171168
    %v9774 = vunpack.c.0.s8 %v9773
    %v9775 = vlaneseq
    %v9776 = vshrl.u32 %v9775, 7
    %v9777 = vsub.s32 %v9774, %v9776
    %v9778 = vrot.slane %v9768, %v9777
    %v9780 = vunpack.c.l.s4 1966171168
    %v9781 = vunpack.c.0.s8 %v9780
    %v9782 = vlaneseq
    %v9783 = vshrl.u32 %v9782, 7
    %v9784 = vsub.s32 %v9781, %v9783
    %v9785 = vrot.slane %v9769, %v9784
    %v9787 = vunpack.c.l.s4 1966171168
    %v9788 = vunpack.c.0.s8 %v9787
    %v9789 = vlaneseq
    %v9790 = vshrl.u32 %v9789, 7
    %v9791 = vsub.s32 %v9788, %v9790
    %v9792 = vrot.slane %v9770, %v9791
    %v9794 = vunpack.c.l.s4 1966171168
    %v9795 = vunpack.c.0.s8 %v9794
    %v9796 = vlaneseq
    %v9797 = vshrl.u32 %v9796, 7
    %v9798 = vsub.s32 %v9795, %v9797
    %v9799 = vrot.slane %v9771, %v9798
    %v9800 = vcombine.low %v9778, %v9785
    %v9801 = vcombine.low %v9792, %v9799
    %v9803 = vunpack.c.l.s4 1966171168
    %v9804 = vunpack.c.0.s8 %v9803
    %v9805 = vlaneseq
    %v9806 = vshrl.u32 %v9805, 7
    %v9807 = vsub.s32 %v9804, %v9806
    %v9808 = vrot.slane %v9800, %v9807
    %v9810 = vunpack.c.l.s4 1966171168
    %v9811 = vunpack.c.0.s8 %v9810
    %v9812 = vlaneseq
    %v9813 = vshrl.u32 %v9812, 7
    %v9814 = vsub.s32 %v9811, %v9813
    %v9815 = vrot.slane %v9801, %v9814
    %v9816 = vcombine.low %v9808, %v9815
    %v9817 = vcombine.low %v9756, %v9757
    %v9819 = vunpack.c.l.s4 1966171168
    %v9820 = vunpack.c.0.s8 %v9819
    %v9821 = vlaneseq
    %v9822 = vshrl.u32 %v9821, 7
    %v9823 = vsub.s32 %v9820, %v9822
    %v9824 = vrot.slane %v9817, %v9823
    %v9826 = vunpack.c.l.s4 1966171168
    %v9827 = vunpack.c.0.s8 %v9826
    %v9828 = vlaneseq
    %v9829 = vshrl.u32 %v9828, 7
    %v9830 = vsub.s32 %v9827, %v9829
    %v9831 = vrot.slane %v9824, %v9830
    %s9834 = scalar_lea.vmem [#allocation17], 30
    %9835 = vst [vmem:[%s9834] sm:$0xff] %v9816
    %9836 = vst [vmem:[%s9834 + $0x8] sm:$0x3] %v9831
    %s9837 = scalar_lea.vmem [#allocation11], 7680
    %v9838 = vld [vmem:[%s9837] sm:$0xff]
    %v9839 = vld [vmem:[%s9837 + $0x8] sm:$0xff]
    %v9840 = vld [vmem:[%s9837 + $0x10] sm:$0xff]
    %v9841 = vld [vmem:[%s9837 + $0x18] sm:$0xff]
    %v9842 = vld [vmem:[%s9837 + $0x20] sm:$0xff]
    %v9843 = vld [vmem:[%s9837 + $0x28] sm:$0xff]
    %v9844 = vld [vmem:[%s9837 + $0x30] sm:$0xff]
    %v9845 = vld [vmem:[%s9837 + $0x38] sm:$0xff]
    %v9846 = vld [vmem:[%s9837 + $0x40] sm:$0xff]
    %v9847 = vld [vmem:[%s9837 + $0x48] sm:$0xff]
    %v9848 = vld [vmem:[%s9837 + $0x50] sm:$0xff]
    %v9849 = vld [vmem:[%s9837 + $0x58] sm:$0xff]
    %v9850 = vld [vmem:[%s9837 + $0x60] sm:$0xff]
    %v9851 = vld [vmem:[%s9837 + $0x68] sm:$0xff]
    %v9852 = vld [vmem:[%s9837 + $0x70] sm:$0xff]
    %v9853 = vld [vmem:[%s9837 + $0x78] sm:$0xff]
    %v9854 = vld [vmem:[%s9837 + $0x80] sm:$0xff]
    %v9855 = vld [vmem:[%s9837 + $0x88] sm:$0xff]
    %v9856 = vld [vmem:[%s9837 + $0x90] sm:$0xff]
    %v9857 = vld [vmem:[%s9837 + $0x98] sm:$0xff]
    %v9858 = vld [vmem:[%s9837 + $0xa0] sm:$0xff]
    %v9859 = vld [vmem:[%s9837 + $0xa8] sm:$0xff]
    %v9860 = vld [vmem:[%s9837 + $0xb0] sm:$0xff]
    %v9861 = vld [vmem:[%s9837 + $0xb8] sm:$0xff]
    %v9862 = vld [vmem:[%s9837 + $0xc0] sm:$0xff]
    %v9863 = vld [vmem:[%s9837 + $0xc8] sm:$0xff]
    %v9864 = vld [vmem:[%s9837 + $0xd0] sm:$0xff]
    %v9865 = vld [vmem:[%s9837 + $0xd8] sm:$0xff]
    %v9866 = vld [vmem:[%s9837 + $0xe0] sm:$0xff]
    %v9867 = vld [vmem:[%s9837 + $0xe8] sm:$0xff]
    %v9868 = vld [vmem:[%s9837 + $0xf0] sm:$0xff]
    %v9869 = vld [vmem:[%s9837 + $0xf8] sm:$0xff]
    %v9870 = vld [vmem:[%s9837 + $0x100] sm:$0xff]
    %v9871 = vld [vmem:[%s9837 + $0x108] sm:$0xff]
    %v9872 = vld [vmem:[%s9837 + $0x110] sm:$0xff]
    %v9873 = vld [vmem:[%s9837 + $0x118] sm:$0xff]
    %v9874 = vld [vmem:[%s9837 + $0x120] sm:$0xff]
    %v9875 = vld [vmem:[%s9837 + $0x128] sm:$0xff]
    %v9876 = vld [vmem:[%s9837 + $0x130] sm:$0xff]
    %v9877 = vld [vmem:[%s9837 + $0x138] sm:$0xff]
    %v9878 = vld [vmem:[%s9837 + $0x140] sm:$0xff]
    %v9879 = vld [vmem:[%s9837 + $0x148] sm:$0xff]
    %v9880 = vld [vmem:[%s9837 + $0x150] sm:$0xff]
    %v9881 = vld [vmem:[%s9837 + $0x158] sm:$0xff]
    %v9882 = vld [vmem:[%s9837 + $0x160] sm:$0xff]
    %v9883 = vld [vmem:[%s9837 + $0x168] sm:$0xff]
    %v9884 = vld [vmem:[%s9837 + $0x170] sm:$0xff]
    %v9885 = vld [vmem:[%s9837 + $0x178] sm:$0xff]
    %v9886 = vld [vmem:[%s9837 + $0x180] sm:$0xff]
    %v9887 = vld [vmem:[%s9837 + $0x188] sm:$0xff]
    %v9888 = vld [vmem:[%s9837 + $0x190] sm:$0xff]
    %v9889 = vld [vmem:[%s9837 + $0x198] sm:$0xff]
    %v9890 = vld [vmem:[%s9837 + $0x1a0] sm:$0xff]
    %v9891 = vld [vmem:[%s9837 + $0x1a8] sm:$0xff]
    %v9892 = vld [vmem:[%s9837 + $0x1b0] sm:$0xff]
    %v9893 = vld [vmem:[%s9837 + $0x1b8] sm:$0xff]
    %v9894 = vld [vmem:[%s9837 + $0x1c0] sm:$0xff]
    %v9895 = vld [vmem:[%s9837 + $0x1c8] sm:$0xff]
    %v9896 = vld [vmem:[%s9837 + $0x1d0] sm:$0xff]
    %v9897 = vld [vmem:[%s9837 + $0x1d8] sm:$0xff]
    %v9898 = vld [vmem:[%s9837 + $0x1e0] sm:$0xff]
    %v9899 = vld [vmem:[%s9837 + $0x1e8] sm:$0xff]
    %v9900 = vld [vmem:[%s9837 + $0x1f0] sm:$0xff]
    %v9901 = vld [vmem:[%s9837 + $0x1f8] sm:$0xff]
    %v9902 = vld [vmem:[%s9837 + $0x200] sm:$0xff]
    %v9903 = vld [vmem:[%s9837 + $0x208] sm:$0xff]
    %v9904 = vld [vmem:[%s9837 + $0x210] sm:$0xff]
    %v9905 = vld [vmem:[%s9837 + $0x218] sm:$0xff]
    %v9906 = vld [vmem:[%s9837 + $0x220] sm:$0xff]
    %v9907 = vld [vmem:[%s9837 + $0x228] sm:$0xff]
    %v9908 = vld [vmem:[%s9837 + $0x230] sm:$0xff]
    %v9909 = vld [vmem:[%s9837 + $0x238] sm:$0xff]
    %v9910 = vld [vmem:[%s9837 + $0x240] sm:$0xff]
    %v9911 = vld [vmem:[%s9837 + $0x248] sm:$0xff]
    %v9912 = vld [vmem:[%s9837 + $0x250] sm:$0xff]
    %v9913 = vld [vmem:[%s9837 + $0x258] sm:$0xff]
    %v9914 = vld [vmem:[%s9837 + $0x260] sm:$0xff]
    %v9915 = vld [vmem:[%s9837 + $0x268] sm:$0xff]
    %v9916 = vld [vmem:[%s9837 + $0x270] sm:$0xff]
    %v9917 = vld [vmem:[%s9837 + $0x278] sm:$0xff]
    %v9918 = vld [vmem:[%s9837 + $0x280] sm:$0xff]
    %v9919 = vld [vmem:[%s9837 + $0x288] sm:$0xff]
    %v9920 = vld [vmem:[%s9837 + $0x290] sm:$0xff]
    %v9921 = vld [vmem:[%s9837 + $0x298] sm:$0xff]
    %v9922 = vld [vmem:[%s9837 + $0x2a0] sm:$0xff]
    %v9923 = vld [vmem:[%s9837 + $0x2a8] sm:$0xff]
    %v9924 = vld [vmem:[%s9837 + $0x2b0] sm:$0xff]
    %v9925 = vld [vmem:[%s9837 + $0x2b8] sm:$0xff]
    %v9926 = vld [vmem:[%s9837 + $0x2c0] sm:$0xff]
    %v9927 = vld [vmem:[%s9837 + $0x2c8] sm:$0xff]
    %v9928 = vld [vmem:[%s9837 + $0x2d0] sm:$0xff]
    %v9929 = vld [vmem:[%s9837 + $0x2d8] sm:$0xff]
    %v9930 = vld [vmem:[%s9837 + $0x2e0] sm:$0xff]
    %v9931 = vld [vmem:[%s9837 + $0x2e8] sm:$0xff]
    %v9932 = vld [vmem:[%s9837 + $0x2f0] sm:$0xff]
    %v9933 = vld [vmem:[%s9837 + $0x2f8] sm:$0xff]
    %v9934 = vld [vmem:[%s9837 + $0x300] sm:$0xff]
    %v9935 = vld [vmem:[%s9837 + $0x308] sm:$0xff]
    %v9936 = vld [vmem:[%s9837 + $0x310] sm:$0xff]
    %v9937 = vld [vmem:[%s9837 + $0x318] sm:$0xff]
    %v9938 = vld [vmem:[%s9837 + $0x320] sm:$0xff]
    %v9939 = vld [vmem:[%s9837 + $0x328] sm:$0xff]
    %v9940 = vld [vmem:[%s9837 + $0x330] sm:$0xff]
    %v9941 = vld [vmem:[%s9837 + $0x338] sm:$0xff]
    %v9942 = vld [vmem:[%s9837 + $0x340] sm:$0xff]
    %v9943 = vld [vmem:[%s9837 + $0x348] sm:$0xff]
    %v9944 = vld [vmem:[%s9837 + $0x350] sm:$0xff]
    %v9945 = vld [vmem:[%s9837 + $0x358] sm:$0xff]
    %v9946 = vld [vmem:[%s9837 + $0x360] sm:$0xff]
    %v9947 = vld [vmem:[%s9837 + $0x368] sm:$0xff]
    %v9948 = vld [vmem:[%s9837 + $0x370] sm:$0xff]
    %v9949 = vld [vmem:[%s9837 + $0x378] sm:$0xff]
    %v9950 = vld [vmem:[%s9837 + $0x380] sm:$0xff]
    %v9951 = vld [vmem:[%s9837 + $0x388] sm:$0xff]
    %v9952 = vld [vmem:[%s9837 + $0x390] sm:$0xff]
    %v9953 = vld [vmem:[%s9837 + $0x398] sm:$0xff]
    %v9954 = vld [vmem:[%s9837 + $0x3a0] sm:$0xff]
    %v9955 = vld [vmem:[%s9837 + $0x3a8] sm:$0xff]
    %v9956 = vld [vmem:[%s9837 + $0x3b0] sm:$0xff]
    %v9957 = vld [vmem:[%s9837 + $0x3b8] sm:$0xff]
    %v9958 = vld [vmem:[%s9837 + $0x3c0] sm:$0xff]
    %v9959 = vld [vmem:[%s9837 + $0x3c8] sm:$0xff]
    %v9960 = vld [vmem:[%s9837 + $0x3d0] sm:$0xff]
    %v9961 = vld [vmem:[%s9837 + $0x3d8] sm:$0xff]
    %v9962 = vld [vmem:[%s9837 + $0x3e0] sm:$0xff]
    %v9963 = vld [vmem:[%s9837 + $0x3e8] sm:$0xff]
    %v9964 = vld [vmem:[%s9837 + $0x3f0] sm:$0xff]
    %v9965 = vld [vmem:[%s9837 + $0x3f8] sm:$0xff]
    %v9966 = vld [vmem:[%s9837 + $0x400] sm:$0xff]
    %v9967 = vld [vmem:[%s9837 + $0x408] sm:$0xff]
    %v9968 = vld [vmem:[%s9837 + $0x410] sm:$0xff]
    %v9969 = vld [vmem:[%s9837 + $0x418] sm:$0xff]
    %v9970 = vld [vmem:[%s9837 + $0x420] sm:$0xff]
    %v9971 = vld [vmem:[%s9837 + $0x428] sm:$0xff]
    %v9972 = vld [vmem:[%s9837 + $0x430] sm:$0xff]
    %v9973 = vld [vmem:[%s9837 + $0x438] sm:$0xff]
    %v9974 = vld [vmem:[%s9837 + $0x440] sm:$0xff]
    %v9975 = vld [vmem:[%s9837 + $0x448] sm:$0xff]
    %v9976 = vld [vmem:[%s9837 + $0x450] sm:$0xff]
    %v9977 = vld [vmem:[%s9837 + $0x458] sm:$0xff]
    %v9978 = vld [vmem:[%s9837 + $0x460] sm:$0xff]
    %v9979 = vld [vmem:[%s9837 + $0x468] sm:$0xff]
    %v9980 = vld [vmem:[%s9837 + $0x470] sm:$0xff]
    %v9981 = vld [vmem:[%s9837 + $0x478] sm:$0xff]
    %v9982 = vld [vmem:[%s9837 + $0x480] sm:$0xff]
    %v9983 = vld [vmem:[%s9837 + $0x488] sm:$0xff]
    %v9984 = vld [vmem:[%s9837 + $0x490] sm:$0xff]
    %v9985 = vld [vmem:[%s9837 + $0x498] sm:$0xff]
    %v9986 = vld [vmem:[%s9837 + $0x4a0] sm:$0xff]
    %v9987 = vld [vmem:[%s9837 + $0x4a8] sm:$0xff]
    %v9988 = vld [vmem:[%s9837 + $0x4b0] sm:$0xff]
    %v9989 = vld [vmem:[%s9837 + $0x4b8] sm:$0xff]
    %v9990 = vld [vmem:[%s9837 + $0x4c0] sm:$0xff]
    %v9991 = vld [vmem:[%s9837 + $0x4c8] sm:$0xff]
    %v9992 = vld [vmem:[%s9837 + $0x4d0] sm:$0xff]
    %v9993 = vld [vmem:[%s9837 + $0x4d8] sm:$0xff]
    %v9994 = vld [vmem:[%s9837 + $0x4e0] sm:$0xff]
    %v9995 = vld [vmem:[%s9837 + $0x4e8] sm:$0xff]
    %v9996 = vld [vmem:[%s9837 + $0x4f0] sm:$0xff]
    %v9997 = vld [vmem:[%s9837 + $0x4f8] sm:$0xff]
    %v9998 = vld [vmem:[%s9837 + $0x500] sm:$0xff]
    %v9999 = vld [vmem:[%s9837 + $0x508] sm:$0xff]
    %v10000 = vld [vmem:[%s9837 + $0x510] sm:$0xff]
    %v10001 = vld [vmem:[%s9837 + $0x518] sm:$0xff]
    %v10002 = vld [vmem:[%s9837 + $0x520] sm:$0xff]
    %v10003 = vld [vmem:[%s9837 + $0x528] sm:$0xff]
    %v10004 = vld [vmem:[%s9837 + $0x530] sm:$0xff]
    %v10005 = vld [vmem:[%s9837 + $0x538] sm:$0xff]
    %v10006 = vld [vmem:[%s9837 + $0x540] sm:$0xff]
    %v10007 = vld [vmem:[%s9837 + $0x548] sm:$0xff]
    %v10008 = vld [vmem:[%s9837 + $0x550] sm:$0xff]
    %v10009 = vld [vmem:[%s9837 + $0x558] sm:$0xff]
    %v10010 = vld [vmem:[%s9837 + $0x560] sm:$0xff]
    %v10011 = vld [vmem:[%s9837 + $0x568] sm:$0xff]
    %v10012 = vld [vmem:[%s9837 + $0x570] sm:$0xff]
    %v10013 = vld [vmem:[%s9837 + $0x578] sm:$0xff]
    %v10014 = vld [vmem:[%s9837 + $0x580] sm:$0xff]
    %v10015 = vld [vmem:[%s9837 + $0x588] sm:$0xff]
    %v10016 = vld [vmem:[%s9837 + $0x590] sm:$0xff]
    %v10017 = vld [vmem:[%s9837 + $0x598] sm:$0xff]
    %v10018 = vld [vmem:[%s9837 + $0x5a0] sm:$0xff]
    %v10019 = vld [vmem:[%s9837 + $0x5a8] sm:$0xff]
    %v10020 = vld [vmem:[%s9837 + $0x5b0] sm:$0xff]
    %v10021 = vld [vmem:[%s9837 + $0x5b8] sm:$0xff]
    %v10022 = vld [vmem:[%s9837 + $0x5c0] sm:$0xff]
    %v10023 = vld [vmem:[%s9837 + $0x5c8] sm:$0xff]
    %v10024 = vld [vmem:[%s9837 + $0x5d0] sm:$0xff]
    %v10025 = vld [vmem:[%s9837 + $0x5d8] sm:$0xff]
    %v10026 = vld [vmem:[%s9837 + $0x5e0] sm:$0xff]
    %v10027 = vld [vmem:[%s9837 + $0x5e8] sm:$0xff]
    %v10028 = vld [vmem:[%s9837 + $0x5f0] sm:$0xff]
    %v10029 = vld [vmem:[%s9837 + $0x5f8] sm:$0xff]
    %v10030 = vld [vmem:[%s9837 + $0x600] sm:$0xff]
    %v10031 = vld [vmem:[%s9837 + $0x608] sm:$0xff]
    %v10032 = vld [vmem:[%s9837 + $0x610] sm:$0xff]
    %v10033 = vld [vmem:[%s9837 + $0x618] sm:$0xff]
    %v10034 = vld [vmem:[%s9837 + $0x620] sm:$0xff]
    %v10035 = vld [vmem:[%s9837 + $0x628] sm:$0xff]
    %v10036 = vld [vmem:[%s9837 + $0x630] sm:$0xff]
    %v10037 = vld [vmem:[%s9837 + $0x638] sm:$0xff]
    %v10038 = vld [vmem:[%s9837 + $0x640] sm:$0xff]
    %v10039 = vld [vmem:[%s9837 + $0x648] sm:$0xff]
    %v10040 = vld [vmem:[%s9837 + $0x650] sm:$0xff]
    %v10041 = vld [vmem:[%s9837 + $0x658] sm:$0xff]
    %v10042 = vld [vmem:[%s9837 + $0x660] sm:$0xff]
    %v10043 = vld [vmem:[%s9837 + $0x668] sm:$0xff]
    %v10044 = vld [vmem:[%s9837 + $0x670] sm:$0xff]
    %v10045 = vld [vmem:[%s9837 + $0x678] sm:$0xff]
    %v10046 = vld [vmem:[%s9837 + $0x680] sm:$0xff]
    %v10047 = vld [vmem:[%s9837 + $0x688] sm:$0xff]
    %v10048 = vld [vmem:[%s9837 + $0x690] sm:$0xff]
    %v10049 = vld [vmem:[%s9837 + $0x698] sm:$0xff]
    %v10050 = vld [vmem:[%s9837 + $0x6a0] sm:$0xff]
    %v10051 = vld [vmem:[%s9837 + $0x6a8] sm:$0xff]
    %v10052 = vld [vmem:[%s9837 + $0x6b0] sm:$0xff]
    %v10053 = vld [vmem:[%s9837 + $0x6b8] sm:$0xff]
    %v10054 = vld [vmem:[%s9837 + $0x6c0] sm:$0xff]
    %v10055 = vld [vmem:[%s9837 + $0x6c8] sm:$0xff]
    %v10056 = vld [vmem:[%s9837 + $0x6d0] sm:$0xff]
    %v10057 = vld [vmem:[%s9837 + $0x6d8] sm:$0xff]
    %v10058 = vld [vmem:[%s9837 + $0x6e0] sm:$0xff]
    %v10059 = vld [vmem:[%s9837 + $0x6e8] sm:$0xff]
    %v10060 = vld [vmem:[%s9837 + $0x6f0] sm:$0xff]
    %v10061 = vld [vmem:[%s9837 + $0x6f8] sm:$0xff]
    %v10062 = vld [vmem:[%s9837 + $0x700] sm:$0xff]
    %v10063 = vld [vmem:[%s9837 + $0x708] sm:$0xff]
    %v10064 = vld [vmem:[%s9837 + $0x710] sm:$0xff]
    %v10065 = vld [vmem:[%s9837 + $0x718] sm:$0xff]
    %v10066 = vld [vmem:[%s9837 + $0x720] sm:$0xff]
    %v10067 = vld [vmem:[%s9837 + $0x728] sm:$0xff]
    %v10068 = vld [vmem:[%s9837 + $0x730] sm:$0xff]
    %v10069 = vld [vmem:[%s9837 + $0x738] sm:$0xff]
    %v10070 = vld [vmem:[%s9837 + $0x740] sm:$0xff]
    %v10071 = vld [vmem:[%s9837 + $0x748] sm:$0xff]
    %v10072 = vld [vmem:[%s9837 + $0x750] sm:$0xff]
    %v10073 = vld [vmem:[%s9837 + $0x758] sm:$0xff]
    %v10074 = vld [vmem:[%s9837 + $0x760] sm:$0xff]
    %v10075 = vld [vmem:[%s9837 + $0x768] sm:$0xff]
    %v10076 = vld [vmem:[%s9837 + $0x770] sm:$0xff]
    %v10077 = vld [vmem:[%s9837 + $0x778] sm:$0xff]
    %s10078 = scalar_lea.vmem [#allocation13], 40
    %v10079 = vld [vmem:[%s10078] sm:$0xff]
    %v10080 = vld [vmem:[%s10078 + $0x8] sm:$0x3]
    %v10083 = vlaneseq
    %v10084 = vshrl.u32 %v10083, 7
    %v10085 = vsub.s32 0, %v10084
    %v10086 = vrot.slane %v10079, %v10085
    %v10087 = vlaneseq
    %v10088 = vshrl.u32 %v10087, 7
    %v10089 = vsub.s32 1, %v10088
    %v10090 = vrot.slane %v10079, %v10089
    %v10091 = vlaneseq
    %v10092 = vshrl.u32 %v10091, 7
    %v10093 = vsub.s32 2, %v10092
    %v10094 = vrot.slane %v10079, %v10093
    %v10095 = vlaneseq
    %v10096 = vshrl.u32 %v10095, 7
    %v10097 = vsub.s32 3, %v10096
    %v10098 = vrot.slane %v10079, %v10097
    %v10099 = vlaneseq
    %v10100 = vshrl.u32 %v10099, 7
    %v10101 = vsub.s32 4, %v10100
    %v10102 = vrot.slane %v10079, %v10101
    %v10103 = vlaneseq
    %v10104 = vshrl.u32 %v10103, 7
    %v10105 = vsub.s32 5, %v10104
    %v10106 = vrot.slane %v10079, %v10105
    %v10107 = vlaneseq
    %v10108 = vshrl.u32 %v10107, 7
    %v10109 = vsub.s32 6, %v10108
    %v10110 = vrot.slane %v10079, %v10109
    %v10111 = vlaneseq
    %v10112 = vshrl.u32 %v10111, 7
    %v10113 = vsub.s32 7, %v10112
    %v10114 = vrot.slane %v10079, %v10113
    %v10115 = vlaneseq
    %v10116 = vshrl.u32 %v10115, 7
    %v10117 = vsub.s32 0, %v10116
    %v10118 = vrot.slane %v10080, %v10117
    %v10119 = vlaneseq
    %v10120 = vshrl.u32 %v10119, 7
    %v10121 = vsub.s32 1, %v10120
    %v10122 = vrot.slane %v10080, %v10121
    %v10373 = vunpack.c.l.b16 %v9838
    %v10374 = vunpack.c.h.b16 %v9838
    %v10375 = vunpack.c.l.b16 %v9839
    %v10376 = vunpack.c.h.b16 %v9839
    %v10377 = vunpack.c.l.b16 %v9840
    %v10378 = vunpack.c.h.b16 %v9840
    %v10379 = vunpack.c.l.b16 %v9841
    %v10380 = vunpack.c.h.b16 %v9841
    %v10381 = vunpack.c.l.b16 %v9842
    %v10382 = vunpack.c.h.b16 %v9842
    %v10383 = vunpack.c.l.b16 %v9843
    %v10384 = vunpack.c.h.b16 %v9843
    %v10385 = vunpack.c.l.b16 %v9844
    %v10386 = vunpack.c.h.b16 %v9844
    %v10387 = vunpack.c.l.b16 %v9845
    %v10388 = vunpack.c.h.b16 %v9845
    %v10389 = vunpack.c.l.b16 %v9846
    %v10390 = vunpack.c.h.b16 %v9846
    %v10391 = vunpack.c.l.b16 %v9847
    %v10392 = vunpack.c.h.b16 %v9847
    %v10393 = vunpack.c.l.b16 %v9848
    %v10394 = vunpack.c.h.b16 %v9848
    %v10395 = vunpack.c.l.b16 %v9849
    %v10396 = vunpack.c.h.b16 %v9849
    %v10397 = vunpack.c.l.b16 %v9850
    %v10398 = vunpack.c.h.b16 %v9850
    %v10399 = vunpack.c.l.b16 %v9851
    %v10400 = vunpack.c.h.b16 %v9851
    %v10401 = vunpack.c.l.b16 %v9852
    %v10402 = vunpack.c.h.b16 %v9852
    %v10403 = vunpack.c.l.b16 %v9853
    %v10404 = vunpack.c.h.b16 %v9853
    %v10405 = vunpack.c.l.b16 %v9854
    %v10406 = vunpack.c.h.b16 %v9854
    %v10407 = vunpack.c.l.b16 %v9855
    %v10408 = vunpack.c.h.b16 %v9855
    %v10409 = vunpack.c.l.b16 %v9856
    %v10410 = vunpack.c.h.b16 %v9856
    %v10411 = vunpack.c.l.b16 %v9857
    %v10412 = vunpack.c.h.b16 %v9857
    %v10413 = vunpack.c.l.b16 %v9858
    %v10414 = vunpack.c.h.b16 %v9858
    %v10415 = vunpack.c.l.b16 %v9859
    %v10416 = vunpack.c.h.b16 %v9859
    %v10417 = vunpack.c.l.b16 %v9860
    %v10418 = vunpack.c.h.b16 %v9860
    %v10419 = vunpack.c.l.b16 %v9861
    %v10420 = vunpack.c.h.b16 %v9861
    %v10421 = vunpack.c.l.b16 %v9862
    %v10422 = vunpack.c.h.b16 %v9862
    %v10423 = vunpack.c.l.b16 %v9863
    %v10424 = vunpack.c.h.b16 %v9863
    %v10425 = vunpack.c.l.b16 %v9864
    %v10426 = vunpack.c.h.b16 %v9864
    %v10427 = vunpack.c.l.b16 %v9865
    %v10428 = vunpack.c.h.b16 %v9865
    %v10429 = vunpack.c.l.b16 %v9866
    %v10430 = vunpack.c.h.b16 %v9866
    %v10431 = vunpack.c.l.b16 %v9867
    %v10432 = vunpack.c.h.b16 %v9867
    %v10433 = vunpack.c.l.b16 %v9868
    %v10434 = vunpack.c.h.b16 %v9868
    %v10435 = vunpack.c.l.b16 %v9869
    %v10436 = vunpack.c.h.b16 %v9869
    %v10437 = vunpack.c.l.b16 %v9870
    %v10438 = vunpack.c.h.b16 %v9870
    %v10439 = vunpack.c.l.b16 %v9871
    %v10440 = vunpack.c.h.b16 %v9871
    %v10441 = vunpack.c.l.b16 %v9872
    %v10442 = vunpack.c.h.b16 %v9872
    %v10443 = vunpack.c.l.b16 %v9873
    %v10444 = vunpack.c.h.b16 %v9873
    %v10445 = vunpack.c.l.b16 %v9874
    %v10446 = vunpack.c.h.b16 %v9874
    %v10447 = vunpack.c.l.b16 %v9875
    %v10448 = vunpack.c.h.b16 %v9875
    %v10449 = vunpack.c.l.b16 %v9876
    %v10450 = vunpack.c.h.b16 %v9876
    %v10451 = vunpack.c.l.b16 %v9877
    %v10452 = vunpack.c.h.b16 %v9877
    %v10453 = vunpack.c.l.b16 %v9878
    %v10454 = vunpack.c.h.b16 %v9878
    %v10455 = vunpack.c.l.b16 %v9879
    %v10456 = vunpack.c.h.b16 %v9879
    %v10457 = vunpack.c.l.b16 %v9880
    %v10458 = vunpack.c.h.b16 %v9880
    %v10459 = vunpack.c.l.b16 %v9881
    %v10460 = vunpack.c.h.b16 %v9881
    %v10461 = vunpack.c.l.b16 %v9882
    %v10462 = vunpack.c.h.b16 %v9882
    %v10463 = vunpack.c.l.b16 %v9883
    %v10464 = vunpack.c.h.b16 %v9883
    %v10465 = vunpack.c.l.b16 %v9884
    %v10466 = vunpack.c.h.b16 %v9884
    %v10467 = vunpack.c.l.b16 %v9885
    %v10468 = vunpack.c.h.b16 %v9885
    %v10469 = vunpack.c.l.b16 %v9886
    %v10470 = vunpack.c.h.b16 %v9886
    %v10471 = vunpack.c.l.b16 %v9887
    %v10472 = vunpack.c.h.b16 %v9887
    %v10473 = vunpack.c.l.b16 %v9888
    %v10474 = vunpack.c.h.b16 %v9888
    %v10475 = vunpack.c.l.b16 %v9889
    %v10476 = vunpack.c.h.b16 %v9889
    %v10477 = vunpack.c.l.b16 %v9890
    %v10478 = vunpack.c.h.b16 %v9890
    %v10479 = vunpack.c.l.b16 %v9891
    %v10480 = vunpack.c.h.b16 %v9891
    %v10481 = vunpack.c.l.b16 %v9892
    %v10482 = vunpack.c.h.b16 %v9892
    %v10483 = vunpack.c.l.b16 %v9893
    %v10484 = vunpack.c.h.b16 %v9893
    %v10485 = vunpack.c.l.b16 %v9894
    %v10486 = vunpack.c.h.b16 %v9894
    %v10487 = vunpack.c.l.b16 %v9895
    %v10488 = vunpack.c.h.b16 %v9895
    %v10489 = vunpack.c.l.b16 %v9896
    %v10490 = vunpack.c.h.b16 %v9896
    %v10491 = vunpack.c.l.b16 %v9897
    %v10492 = vunpack.c.h.b16 %v9897
    %v10493 = vunpack.c.l.b16 %v9898
    %v10494 = vunpack.c.h.b16 %v9898
    %v10495 = vunpack.c.l.b16 %v9899
    %v10496 = vunpack.c.h.b16 %v9899
    %v10497 = vunpack.c.l.b16 %v9900
    %v10498 = vunpack.c.h.b16 %v9900
    %v10499 = vunpack.c.l.b16 %v9901
    %v10500 = vunpack.c.h.b16 %v9901
    %v10501 = vunpack.c.l.b16 %v9902
    %v10502 = vunpack.c.h.b16 %v9902
    %v10503 = vunpack.c.l.b16 %v9903
    %v10504 = vunpack.c.h.b16 %v9903
    %v10505 = vunpack.c.l.b16 %v9904
    %v10506 = vunpack.c.h.b16 %v9904
    %v10507 = vunpack.c.l.b16 %v9905
    %v10508 = vunpack.c.h.b16 %v9905
    %v10509 = vunpack.c.l.b16 %v9906
    %v10510 = vunpack.c.h.b16 %v9906
    %v10511 = vunpack.c.l.b16 %v9907
    %v10512 = vunpack.c.h.b16 %v9907
    %v10513 = vunpack.c.l.b16 %v9908
    %v10514 = vunpack.c.h.b16 %v9908
    %v10515 = vunpack.c.l.b16 %v9909
    %v10516 = vunpack.c.h.b16 %v9909
    %v10517 = vunpack.c.l.b16 %v9910
    %v10518 = vunpack.c.h.b16 %v9910
    %v10519 = vunpack.c.l.b16 %v9911
    %v10520 = vunpack.c.h.b16 %v9911
    %v10521 = vunpack.c.l.b16 %v9912
    %v10522 = vunpack.c.h.b16 %v9912
    %v10523 = vunpack.c.l.b16 %v9913
    %v10524 = vunpack.c.h.b16 %v9913
    %v10525 = vunpack.c.l.b16 %v9914
    %v10526 = vunpack.c.h.b16 %v9914
    %v10527 = vunpack.c.l.b16 %v9915
    %v10528 = vunpack.c.h.b16 %v9915
    %v10529 = vunpack.c.l.b16 %v9916
    %v10530 = vunpack.c.h.b16 %v9916
    %v10531 = vunpack.c.l.b16 %v9917
    %v10532 = vunpack.c.h.b16 %v9917
    %v10533 = vunpack.c.l.b16 %v9918
    %v10534 = vunpack.c.h.b16 %v9918
    %v10535 = vunpack.c.l.b16 %v9919
    %v10536 = vunpack.c.h.b16 %v9919
    %v10537 = vunpack.c.l.b16 %v9920
    %v10538 = vunpack.c.h.b16 %v9920
    %v10539 = vunpack.c.l.b16 %v9921
    %v10540 = vunpack.c.h.b16 %v9921
    %v10541 = vunpack.c.l.b16 %v9922
    %v10542 = vunpack.c.h.b16 %v9922
    %v10543 = vunpack.c.l.b16 %v9923
    %v10544 = vunpack.c.h.b16 %v9923
    %v10545 = vunpack.c.l.b16 %v9924
    %v10546 = vunpack.c.h.b16 %v9924
    %v10547 = vunpack.c.l.b16 %v9925
    %v10548 = vunpack.c.h.b16 %v9925
    %v10549 = vunpack.c.l.b16 %v9926
    %v10550 = vunpack.c.h.b16 %v9926
    %v10551 = vunpack.c.l.b16 %v9927
    %v10552 = vunpack.c.h.b16 %v9927
    %v10553 = vunpack.c.l.b16 %v9928
    %v10554 = vunpack.c.h.b16 %v9928
    %v10555 = vunpack.c.l.b16 %v9929
    %v10556 = vunpack.c.h.b16 %v9929
    %v10557 = vunpack.c.l.b16 %v9930
    %v10558 = vunpack.c.h.b16 %v9930
    %v10559 = vunpack.c.l.b16 %v9931
    %v10560 = vunpack.c.h.b16 %v9931
    %v10561 = vunpack.c.l.b16 %v9932
    %v10562 = vunpack.c.h.b16 %v9932
    %v10563 = vunpack.c.l.b16 %v9933
    %v10564 = vunpack.c.h.b16 %v9933
    %v10565 = vunpack.c.l.b16 %v9934
    %v10566 = vunpack.c.h.b16 %v9934
    %v10567 = vunpack.c.l.b16 %v9935
    %v10568 = vunpack.c.h.b16 %v9935
    %v10569 = vunpack.c.l.b16 %v9936
    %v10570 = vunpack.c.h.b16 %v9936
    %v10571 = vunpack.c.l.b16 %v9937
    %v10572 = vunpack.c.h.b16 %v9937
    %v10573 = vunpack.c.l.b16 %v9938
    %v10574 = vunpack.c.h.b16 %v9938
    %v10575 = vunpack.c.l.b16 %v9939
    %v10576 = vunpack.c.h.b16 %v9939
    %v10577 = vunpack.c.l.b16 %v9940
    %v10578 = vunpack.c.h.b16 %v9940
    %v10579 = vunpack.c.l.b16 %v9941
    %v10580 = vunpack.c.h.b16 %v9941
    %v10581 = vunpack.c.l.b16 %v9942
    %v10582 = vunpack.c.h.b16 %v9942
    %v10583 = vunpack.c.l.b16 %v9943
    %v10584 = vunpack.c.h.b16 %v9943
    %v10585 = vunpack.c.l.b16 %v9944
    %v10586 = vunpack.c.h.b16 %v9944
    %v10587 = vunpack.c.l.b16 %v9945
    %v10588 = vunpack.c.h.b16 %v9945
    %v10589 = vunpack.c.l.b16 %v9946
    %v10590 = vunpack.c.h.b16 %v9946
    %v10591 = vunpack.c.l.b16 %v9947
    %v10592 = vunpack.c.h.b16 %v9947
    %v10593 = vunpack.c.l.b16 %v9948
    %v10594 = vunpack.c.h.b16 %v9948
    %v10595 = vunpack.c.l.b16 %v9949
    %v10596 = vunpack.c.h.b16 %v9949
    %v10597 = vunpack.c.l.b16 %v9950
    %v10598 = vunpack.c.h.b16 %v9950
    %v10599 = vunpack.c.l.b16 %v9951
    %v10600 = vunpack.c.h.b16 %v9951
    %v10601 = vunpack.c.l.b16 %v9952
    %v10602 = vunpack.c.h.b16 %v9952
    %v10603 = vunpack.c.l.b16 %v9953
    %v10604 = vunpack.c.h.b16 %v9953
    %v10605 = vunpack.c.l.b16 %v9954
    %v10606 = vunpack.c.h.b16 %v9954
    %v10607 = vunpack.c.l.b16 %v9955
    %v10608 = vunpack.c.h.b16 %v9955
    %v10609 = vunpack.c.l.b16 %v9956
    %v10610 = vunpack.c.h.b16 %v9956
    %v10611 = vunpack.c.l.b16 %v9957
    %v10612 = vunpack.c.h.b16 %v9957
    %v10613 = vunpack.c.l.b16 %v9958
    %v10614 = vunpack.c.h.b16 %v9958
    %v10615 = vunpack.c.l.b16 %v9959
    %v10616 = vunpack.c.h.b16 %v9959
    %v10617 = vunpack.c.l.b16 %v9960
    %v10618 = vunpack.c.h.b16 %v9960
    %v10619 = vunpack.c.l.b16 %v9961
    %v10620 = vunpack.c.h.b16 %v9961
    %v10621 = vunpack.c.l.b16 %v9962
    %v10622 = vunpack.c.h.b16 %v9962
    %v10623 = vunpack.c.l.b16 %v9963
    %v10624 = vunpack.c.h.b16 %v9963
    %v10625 = vunpack.c.l.b16 %v9964
    %v10626 = vunpack.c.h.b16 %v9964
    %v10627 = vunpack.c.l.b16 %v9965
    %v10628 = vunpack.c.h.b16 %v9965
    %v10629 = vunpack.c.l.b16 %v9966
    %v10630 = vunpack.c.h.b16 %v9966
    %v10631 = vunpack.c.l.b16 %v9967
    %v10632 = vunpack.c.h.b16 %v9967
    %v10633 = vunpack.c.l.b16 %v9968
    %v10634 = vunpack.c.h.b16 %v9968
    %v10635 = vunpack.c.l.b16 %v9969
    %v10636 = vunpack.c.h.b16 %v9969
    %v10637 = vunpack.c.l.b16 %v9970
    %v10638 = vunpack.c.h.b16 %v9970
    %v10639 = vunpack.c.l.b16 %v9971
    %v10640 = vunpack.c.h.b16 %v9971
    %v10641 = vunpack.c.l.b16 %v9972
    %v10642 = vunpack.c.h.b16 %v9972
    %v10643 = vunpack.c.l.b16 %v9973
    %v10644 = vunpack.c.h.b16 %v9973
    %v10645 = vunpack.c.l.b16 %v9974
    %v10646 = vunpack.c.h.b16 %v9974
    %v10647 = vunpack.c.l.b16 %v9975
    %v10648 = vunpack.c.h.b16 %v9975
    %v10649 = vunpack.c.l.b16 %v9976
    %v10650 = vunpack.c.h.b16 %v9976
    %v10651 = vunpack.c.l.b16 %v9977
    %v10652 = vunpack.c.h.b16 %v9977
    %v10653 = vunpack.c.l.b16 %v9978
    %v10654 = vunpack.c.h.b16 %v9978
    %v10655 = vunpack.c.l.b16 %v9979
    %v10656 = vunpack.c.h.b16 %v9979
    %v10657 = vunpack.c.l.b16 %v9980
    %v10658 = vunpack.c.h.b16 %v9980
    %v10659 = vunpack.c.l.b16 %v9981
    %v10660 = vunpack.c.h.b16 %v9981
    %v10661 = vunpack.c.l.b16 %v9982
    %v10662 = vunpack.c.h.b16 %v9982
    %v10663 = vunpack.c.l.b16 %v9983
    %v10664 = vunpack.c.h.b16 %v9983
    %v10665 = vunpack.c.l.b16 %v9984
    %v10666 = vunpack.c.h.b16 %v9984
    %v10667 = vunpack.c.l.b16 %v9985
    %v10668 = vunpack.c.h.b16 %v9985
    %v10669 = vunpack.c.l.b16 %v9986
    %v10670 = vunpack.c.h.b16 %v9986
    %v10671 = vunpack.c.l.b16 %v9987
    %v10672 = vunpack.c.h.b16 %v9987
    %v10673 = vunpack.c.l.b16 %v9988
    %v10674 = vunpack.c.h.b16 %v9988
    %v10675 = vunpack.c.l.b16 %v9989
    %v10676 = vunpack.c.h.b16 %v9989
    %v10677 = vunpack.c.l.b16 %v9990
    %v10678 = vunpack.c.h.b16 %v9990
    %v10679 = vunpack.c.l.b16 %v9991
    %v10680 = vunpack.c.h.b16 %v9991
    %v10681 = vunpack.c.l.b16 %v9992
    %v10682 = vunpack.c.h.b16 %v9992
    %v10683 = vunpack.c.l.b16 %v9993
    %v10684 = vunpack.c.h.b16 %v9993
    %v10685 = vunpack.c.l.b16 %v9994
    %v10686 = vunpack.c.h.b16 %v9994
    %v10687 = vunpack.c.l.b16 %v9995
    %v10688 = vunpack.c.h.b16 %v9995
    %v10689 = vunpack.c.l.b16 %v9996
    %v10690 = vunpack.c.h.b16 %v9996
    %v10691 = vunpack.c.l.b16 %v9997
    %v10692 = vunpack.c.h.b16 %v9997
    %v10693 = vunpack.c.l.b16 %v9998
    %v10694 = vunpack.c.h.b16 %v9998
    %v10695 = vunpack.c.l.b16 %v9999
    %v10696 = vunpack.c.h.b16 %v9999
    %v10697 = vunpack.c.l.b16 %v10000
    %v10698 = vunpack.c.h.b16 %v10000
    %v10699 = vunpack.c.l.b16 %v10001
    %v10700 = vunpack.c.h.b16 %v10001
    %v10701 = vunpack.c.l.b16 %v10002
    %v10702 = vunpack.c.h.b16 %v10002
    %v10703 = vunpack.c.l.b16 %v10003
    %v10704 = vunpack.c.h.b16 %v10003
    %v10705 = vunpack.c.l.b16 %v10004
    %v10706 = vunpack.c.h.b16 %v10004
    %v10707 = vunpack.c.l.b16 %v10005
    %v10708 = vunpack.c.h.b16 %v10005
    %v10709 = vunpack.c.l.b16 %v10006
    %v10710 = vunpack.c.h.b16 %v10006
    %v10711 = vunpack.c.l.b16 %v10007
    %v10712 = vunpack.c.h.b16 %v10007
    %v10713 = vunpack.c.l.b16 %v10008
    %v10714 = vunpack.c.h.b16 %v10008
    %v10715 = vunpack.c.l.b16 %v10009
    %v10716 = vunpack.c.h.b16 %v10009
    %v10717 = vunpack.c.l.b16 %v10010
    %v10718 = vunpack.c.h.b16 %v10010
    %v10719 = vunpack.c.l.b16 %v10011
    %v10720 = vunpack.c.h.b16 %v10011
    %v10721 = vunpack.c.l.b16 %v10012
    %v10722 = vunpack.c.h.b16 %v10012
    %v10723 = vunpack.c.l.b16 %v10013
    %v10724 = vunpack.c.h.b16 %v10013
    %v10725 = vunpack.c.l.b16 %v10014
    %v10726 = vunpack.c.h.b16 %v10014
    %v10727 = vunpack.c.l.b16 %v10015
    %v10728 = vunpack.c.h.b16 %v10015
    %v10729 = vunpack.c.l.b16 %v10016
    %v10730 = vunpack.c.h.b16 %v10016
    %v10731 = vunpack.c.l.b16 %v10017
    %v10732 = vunpack.c.h.b16 %v10017
    %v10733 = vunpack.c.l.b16 %v10018
    %v10734 = vunpack.c.h.b16 %v10018
    %v10735 = vunpack.c.l.b16 %v10019
    %v10736 = vunpack.c.h.b16 %v10019
    %v10737 = vunpack.c.l.b16 %v10020
    %v10738 = vunpack.c.h.b16 %v10020
    %v10739 = vunpack.c.l.b16 %v10021
    %v10740 = vunpack.c.h.b16 %v10021
    %v10741 = vunpack.c.l.b16 %v10022
    %v10742 = vunpack.c.h.b16 %v10022
    %v10743 = vunpack.c.l.b16 %v10023
    %v10744 = vunpack.c.h.b16 %v10023
    %v10745 = vunpack.c.l.b16 %v10024
    %v10746 = vunpack.c.h.b16 %v10024
    %v10747 = vunpack.c.l.b16 %v10025
    %v10748 = vunpack.c.h.b16 %v10025
    %v10749 = vunpack.c.l.b16 %v10026
    %v10750 = vunpack.c.h.b16 %v10026
    %v10751 = vunpack.c.l.b16 %v10027
    %v10752 = vunpack.c.h.b16 %v10027
    %v10753 = vunpack.c.l.b16 %v10028
    %v10754 = vunpack.c.h.b16 %v10028
    %v10755 = vunpack.c.l.b16 %v10029
    %v10756 = vunpack.c.h.b16 %v10029
    %v10757 = vunpack.c.l.b16 %v10030
    %v10758 = vunpack.c.h.b16 %v10030
    %v10759 = vunpack.c.l.b16 %v10031
    %v10760 = vunpack.c.h.b16 %v10031
    %v10761 = vunpack.c.l.b16 %v10032
    %v10762 = vunpack.c.h.b16 %v10032
    %v10763 = vunpack.c.l.b16 %v10033
    %v10764 = vunpack.c.h.b16 %v10033
    %v10765 = vunpack.c.l.b16 %v10034
    %v10766 = vunpack.c.h.b16 %v10034
    %v10767 = vunpack.c.l.b16 %v10035
    %v10768 = vunpack.c.h.b16 %v10035
    %v10769 = vunpack.c.l.b16 %v10036
    %v10770 = vunpack.c.h.b16 %v10036
    %v10771 = vunpack.c.l.b16 %v10037
    %v10772 = vunpack.c.h.b16 %v10037
    %v10773 = vunpack.c.l.b16 %v10038
    %v10774 = vunpack.c.h.b16 %v10038
    %v10775 = vunpack.c.l.b16 %v10039
    %v10776 = vunpack.c.h.b16 %v10039
    %v10777 = vunpack.c.l.b16 %v10040
    %v10778 = vunpack.c.h.b16 %v10040
    %v10779 = vunpack.c.l.b16 %v10041
    %v10780 = vunpack.c.h.b16 %v10041
    %v10781 = vunpack.c.l.b16 %v10042
    %v10782 = vunpack.c.h.b16 %v10042
    %v10783 = vunpack.c.l.b16 %v10043
    %v10784 = vunpack.c.h.b16 %v10043
    %v10785 = vunpack.c.l.b16 %v10044
    %v10786 = vunpack.c.h.b16 %v10044
    %v10787 = vunpack.c.l.b16 %v10045
    %v10788 = vunpack.c.h.b16 %v10045
    %v10789 = vunpack.c.l.b16 %v10046
    %v10790 = vunpack.c.h.b16 %v10046
    %v10791 = vunpack.c.l.b16 %v10047
    %v10792 = vunpack.c.h.b16 %v10047
    %v10793 = vunpack.c.l.b16 %v10048
    %v10794 = vunpack.c.h.b16 %v10048
    %v10795 = vunpack.c.l.b16 %v10049
    %v10796 = vunpack.c.h.b16 %v10049
    %v10797 = vunpack.c.l.b16 %v10050
    %v10798 = vunpack.c.h.b16 %v10050
    %v10799 = vunpack.c.l.b16 %v10051
    %v10800 = vunpack.c.h.b16 %v10051
    %v10801 = vunpack.c.l.b16 %v10052
    %v10802 = vunpack.c.h.b16 %v10052
    %v10803 = vunpack.c.l.b16 %v10053
    %v10804 = vunpack.c.h.b16 %v10053
    %v10805 = vunpack.c.l.b16 %v10054
    %v10806 = vunpack.c.h.b16 %v10054
    %v10807 = vunpack.c.l.b16 %v10055
    %v10808 = vunpack.c.h.b16 %v10055
    %v10809 = vunpack.c.l.b16 %v10056
    %v10810 = vunpack.c.h.b16 %v10056
    %v10811 = vunpack.c.l.b16 %v10057
    %v10812 = vunpack.c.h.b16 %v10057
    %v10813 = vunpack.c.l.b16 %v10058
    %v10814 = vunpack.c.h.b16 %v10058
    %v10815 = vunpack.c.l.b16 %v10059
    %v10816 = vunpack.c.h.b16 %v10059
    %v10817 = vunpack.c.l.b16 %v10060
    %v10818 = vunpack.c.h.b16 %v10060
    %v10819 = vunpack.c.l.b16 %v10061
    %v10820 = vunpack.c.h.b16 %v10061
    %v10821 = vunpack.c.l.b16 %v10062
    %v10822 = vunpack.c.h.b16 %v10062
    %v10823 = vunpack.c.l.b16 %v10063
    %v10824 = vunpack.c.h.b16 %v10063
    %v10825 = vunpack.c.l.b16 %v10064
    %v10826 = vunpack.c.h.b16 %v10064
    %v10827 = vunpack.c.l.b16 %v10065
    %v10828 = vunpack.c.h.b16 %v10065
    %v10829 = vunpack.c.l.b16 %v10066
    %v10830 = vunpack.c.h.b16 %v10066
    %v10831 = vunpack.c.l.b16 %v10067
    %v10832 = vunpack.c.h.b16 %v10067
    %v10833 = vunpack.c.l.b16 %v10068
    %v10834 = vunpack.c.h.b16 %v10068
    %v10835 = vunpack.c.l.b16 %v10069
    %v10836 = vunpack.c.h.b16 %v10069
    %v10837 = vunpack.c.l.b16 %v10070
    %v10838 = vunpack.c.h.b16 %v10070
    %v10839 = vunpack.c.l.b16 %v10071
    %v10840 = vunpack.c.h.b16 %v10071
    %v10841 = vunpack.c.l.b16 %v10072
    %v10842 = vunpack.c.h.b16 %v10072
    %v10843 = vunpack.c.l.b16 %v10073
    %v10844 = vunpack.c.h.b16 %v10073
    %v10845 = vunpack.c.l.b16 %v10074
    %v10846 = vunpack.c.h.b16 %v10074
    %v10847 = vunpack.c.l.b16 %v10075
    %v10848 = vunpack.c.h.b16 %v10075
    %v10849 = vunpack.c.l.b16 %v10076
    %v10850 = vunpack.c.h.b16 %v10076
    %v10851 = vunpack.c.l.b16 %v10077
    %v10852 = vunpack.c.h.b16 %v10077
    %v10853 = vpack.c.b16 %v10383, %v10373
    %v10854 = vpack.c.b16 %v10384, %v10374
    %v10855 = vpack.c.b16 %v10385, %v10375
    %v10856 = vpack.c.b16 %v10386, %v10376
    %v10857 = vpack.c.b16 %v10387, %v10377
    %v10858 = vpack.c.b16 %v10388, %v10378
    %v10859 = vpack.c.b16 %v10389, %v10379
    %v10860 = vpack.c.b16 %v10390, %v10380
    %v10861 = vpack.c.b16 %v10391, %v10381
    %v10862 = vpack.c.b16 %v10392, %v10382
    %v10863 = vpack.c.b16 %v10403, %v10393
    %v10864 = vpack.c.b16 %v10404, %v10394
    %v10865 = vpack.c.b16 %v10405, %v10395
    %v10866 = vpack.c.b16 %v10406, %v10396
    %v10867 = vpack.c.b16 %v10407, %v10397
    %v10868 = vpack.c.b16 %v10408, %v10398
    %v10869 = vpack.c.b16 %v10409, %v10399
    %v10870 = vpack.c.b16 %v10410, %v10400
    %v10871 = vpack.c.b16 %v10411, %v10401
    %v10872 = vpack.c.b16 %v10412, %v10402
    %v10873 = vpack.c.b16 %v10423, %v10413
    %v10874 = vpack.c.b16 %v10424, %v10414
    %v10875 = vpack.c.b16 %v10425, %v10415
    %v10876 = vpack.c.b16 %v10426, %v10416
    %v10877 = vpack.c.b16 %v10427, %v10417
    %v10878 = vpack.c.b16 %v10428, %v10418
    %v10879 = vpack.c.b16 %v10429, %v10419
    %v10880 = vpack.c.b16 %v10430, %v10420
    %v10881 = vpack.c.b16 %v10431, %v10421
    %v10882 = vpack.c.b16 %v10432, %v10422
    %v10883 = vpack.c.b16 %v10443, %v10433
    %v10884 = vpack.c.b16 %v10444, %v10434
    %v10885 = vpack.c.b16 %v10445, %v10435
    %v10886 = vpack.c.b16 %v10446, %v10436
    %v10887 = vpack.c.b16 %v10447, %v10437
    %v10888 = vpack.c.b16 %v10448, %v10438
    %v10889 = vpack.c.b16 %v10449, %v10439
    %v10890 = vpack.c.b16 %v10450, %v10440
    %v10891 = vpack.c.b16 %v10451, %v10441
    %v10892 = vpack.c.b16 %v10452, %v10442
    %v10893 = vpack.c.b16 %v10463, %v10453
    %v10894 = vpack.c.b16 %v10464, %v10454
    %v10895 = vpack.c.b16 %v10465, %v10455
    %v10896 = vpack.c.b16 %v10466, %v10456
    %v10897 = vpack.c.b16 %v10467, %v10457
    %v10898 = vpack.c.b16 %v10468, %v10458
    %v10899 = vpack.c.b16 %v10469, %v10459
    %v10900 = vpack.c.b16 %v10470, %v10460
    %v10901 = vpack.c.b16 %v10471, %v10461
    %v10902 = vpack.c.b16 %v10472, %v10462
    %v10903 = vpack.c.b16 %v10483, %v10473
    %v10904 = vpack.c.b16 %v10484, %v10474
    %v10905 = vpack.c.b16 %v10485, %v10475
    %v10906 = vpack.c.b16 %v10486, %v10476
    %v10907 = vpack.c.b16 %v10487, %v10477
    %v10908 = vpack.c.b16 %v10488, %v10478
    %v10909 = vpack.c.b16 %v10489, %v10479
    %v10910 = vpack.c.b16 %v10490, %v10480
    %v10911 = vpack.c.b16 %v10491, %v10481
    %v10912 = vpack.c.b16 %v10492, %v10482
    %v10913 = vpack.c.b16 %v10503, %v10493
    %v10914 = vpack.c.b16 %v10504, %v10494
    %v10915 = vpack.c.b16 %v10505, %v10495
    %v10916 = vpack.c.b16 %v10506, %v10496
    %v10917 = vpack.c.b16 %v10507, %v10497
    %v10918 = vpack.c.b16 %v10508, %v10498
    %v10919 = vpack.c.b16 %v10509, %v10499
    %v10920 = vpack.c.b16 %v10510, %v10500
    %v10921 = vpack.c.b16 %v10511, %v10501
    %v10922 = vpack.c.b16 %v10512, %v10502
    %v10923 = vpack.c.b16 %v10523, %v10513
    %v10924 = vpack.c.b16 %v10524, %v10514
    %v10925 = vpack.c.b16 %v10525, %v10515
    %v10926 = vpack.c.b16 %v10526, %v10516
    %v10927 = vpack.c.b16 %v10527, %v10517
    %v10928 = vpack.c.b16 %v10528, %v10518
    %v10929 = vpack.c.b16 %v10529, %v10519
    %v10930 = vpack.c.b16 %v10530, %v10520
    %v10931 = vpack.c.b16 %v10531, %v10521
    %v10932 = vpack.c.b16 %v10532, %v10522
    %v10933 = vpack.c.b16 %v10543, %v10533
    %v10934 = vpack.c.b16 %v10544, %v10534
    %v10935 = vpack.c.b16 %v10545, %v10535
    %v10936 = vpack.c.b16 %v10546, %v10536
    %v10937 = vpack.c.b16 %v10547, %v10537
    %v10938 = vpack.c.b16 %v10548, %v10538
    %v10939 = vpack.c.b16 %v10549, %v10539
    %v10940 = vpack.c.b16 %v10550, %v10540
    %v10941 = vpack.c.b16 %v10551, %v10541
    %v10942 = vpack.c.b16 %v10552, %v10542
    %v10943 = vpack.c.b16 %v10563, %v10553
    %v10944 = vpack.c.b16 %v10564, %v10554
    %v10945 = vpack.c.b16 %v10565, %v10555
    %v10946 = vpack.c.b16 %v10566, %v10556
    %v10947 = vpack.c.b16 %v10567, %v10557
    %v10948 = vpack.c.b16 %v10568, %v10558
    %v10949 = vpack.c.b16 %v10569, %v10559
    %v10950 = vpack.c.b16 %v10570, %v10560
    %v10951 = vpack.c.b16 %v10571, %v10561
    %v10952 = vpack.c.b16 %v10572, %v10562
    %v10953 = vpack.c.b16 %v10583, %v10573
    %v10954 = vpack.c.b16 %v10584, %v10574
    %v10955 = vpack.c.b16 %v10585, %v10575
    %v10956 = vpack.c.b16 %v10586, %v10576
    %v10957 = vpack.c.b16 %v10587, %v10577
    %v10958 = vpack.c.b16 %v10588, %v10578
    %v10959 = vpack.c.b16 %v10589, %v10579
    %v10960 = vpack.c.b16 %v10590, %v10580
    %v10961 = vpack.c.b16 %v10591, %v10581
    %v10962 = vpack.c.b16 %v10592, %v10582
    %v10963 = vpack.c.b16 %v10603, %v10593
    %v10964 = vpack.c.b16 %v10604, %v10594
    %v10965 = vpack.c.b16 %v10605, %v10595
    %v10966 = vpack.c.b16 %v10606, %v10596
    %v10967 = vpack.c.b16 %v10607, %v10597
    %v10968 = vpack.c.b16 %v10608, %v10598
    %v10969 = vpack.c.b16 %v10609, %v10599
    %v10970 = vpack.c.b16 %v10610, %v10600
    %v10971 = vpack.c.b16 %v10611, %v10601
    %v10972 = vpack.c.b16 %v10612, %v10602
    %v10973 = vpack.c.b16 %v10623, %v10613
    %v10974 = vpack.c.b16 %v10624, %v10614
    %v10975 = vpack.c.b16 %v10625, %v10615
    %v10976 = vpack.c.b16 %v10626, %v10616
    %v10977 = vpack.c.b16 %v10627, %v10617
    %v10978 = vpack.c.b16 %v10628, %v10618
    %v10979 = vpack.c.b16 %v10629, %v10619
    %v10980 = vpack.c.b16 %v10630, %v10620
    %v10981 = vpack.c.b16 %v10631, %v10621
    %v10982 = vpack.c.b16 %v10632, %v10622
    %v10983 = vpack.c.b16 %v10643, %v10633
    %v10984 = vpack.c.b16 %v10644, %v10634
    %v10985 = vpack.c.b16 %v10645, %v10635
    %v10986 = vpack.c.b16 %v10646, %v10636
    %v10987 = vpack.c.b16 %v10647, %v10637
    %v10988 = vpack.c.b16 %v10648, %v10638
    %v10989 = vpack.c.b16 %v10649, %v10639
    %v10990 = vpack.c.b16 %v10650, %v10640
    %v10991 = vpack.c.b16 %v10651, %v10641
    %v10992 = vpack.c.b16 %v10652, %v10642
    %v10993 = vpack.c.b16 %v10663, %v10653
    %v10994 = vpack.c.b16 %v10664, %v10654
    %v10995 = vpack.c.b16 %v10665, %v10655
    %v10996 = vpack.c.b16 %v10666, %v10656
    %v10997 = vpack.c.b16 %v10667, %v10657
    %v10998 = vpack.c.b16 %v10668, %v10658
    %v10999 = vpack.c.b16 %v10669, %v10659
    %v11000 = vpack.c.b16 %v10670, %v10660
    %v11001 = vpack.c.b16 %v10671, %v10661
    %v11002 = vpack.c.b16 %v10672, %v10662
    %v11003 = vpack.c.b16 %v10683, %v10673
    %v11004 = vpack.c.b16 %v10684, %v10674
    %v11005 = vpack.c.b16 %v10685, %v10675
    %v11006 = vpack.c.b16 %v10686, %v10676
    %v11007 = vpack.c.b16 %v10687, %v10677
    %v11008 = vpack.c.b16 %v10688, %v10678
    %v11009 = vpack.c.b16 %v10689, %v10679
    %v11010 = vpack.c.b16 %v10690, %v10680
    %v11011 = vpack.c.b16 %v10691, %v10681
    %v11012 = vpack.c.b16 %v10692, %v10682
    %v11013 = vpack.c.b16 %v10703, %v10693
    %v11014 = vpack.c.b16 %v10704, %v10694
    %v11015 = vpack.c.b16 %v10705, %v10695
    %v11016 = vpack.c.b16 %v10706, %v10696
    %v11017 = vpack.c.b16 %v10707, %v10697
    %v11018 = vpack.c.b16 %v10708, %v10698
    %v11019 = vpack.c.b16 %v10709, %v10699
    %v11020 = vpack.c.b16 %v10710, %v10700
    %v11021 = vpack.c.b16 %v10711, %v10701
    %v11022 = vpack.c.b16 %v10712, %v10702
    %v11023 = vpack.c.b16 %v10723, %v10713
    %v11024 = vpack.c.b16 %v10724, %v10714
    %v11025 = vpack.c.b16 %v10725, %v10715
    %v11026 = vpack.c.b16 %v10726, %v10716
    %v11027 = vpack.c.b16 %v10727, %v10717
    %v11028 = vpack.c.b16 %v10728, %v10718
    %v11029 = vpack.c.b16 %v10729, %v10719
    %v11030 = vpack.c.b16 %v10730, %v10720
    %v11031 = vpack.c.b16 %v10731, %v10721
    %v11032 = vpack.c.b16 %v10732, %v10722
    %v11033 = vpack.c.b16 %v10743, %v10733
    %v11034 = vpack.c.b16 %v10744, %v10734
    %v11035 = vpack.c.b16 %v10745, %v10735
    %v11036 = vpack.c.b16 %v10746, %v10736
    %v11037 = vpack.c.b16 %v10747, %v10737
    %v11038 = vpack.c.b16 %v10748, %v10738
    %v11039 = vpack.c.b16 %v10749, %v10739
    %v11040 = vpack.c.b16 %v10750, %v10740
    %v11041 = vpack.c.b16 %v10751, %v10741
    %v11042 = vpack.c.b16 %v10752, %v10742
    %v11043 = vpack.c.b16 %v10763, %v10753
    %v11044 = vpack.c.b16 %v10764, %v10754
    %v11045 = vpack.c.b16 %v10765, %v10755
    %v11046 = vpack.c.b16 %v10766, %v10756
    %v11047 = vpack.c.b16 %v10767, %v10757
    %v11048 = vpack.c.b16 %v10768, %v10758
    %v11049 = vpack.c.b16 %v10769, %v10759
    %v11050 = vpack.c.b16 %v10770, %v10760
    %v11051 = vpack.c.b16 %v10771, %v10761
    %v11052 = vpack.c.b16 %v10772, %v10762
    %v11053 = vpack.c.b16 %v10783, %v10773
    %v11054 = vpack.c.b16 %v10784, %v10774
    %v11055 = vpack.c.b16 %v10785, %v10775
    %v11056 = vpack.c.b16 %v10786, %v10776
    %v11057 = vpack.c.b16 %v10787, %v10777
    %v11058 = vpack.c.b16 %v10788, %v10778
    %v11059 = vpack.c.b16 %v10789, %v10779
    %v11060 = vpack.c.b16 %v10790, %v10780
    %v11061 = vpack.c.b16 %v10791, %v10781
    %v11062 = vpack.c.b16 %v10792, %v10782
    %v11063 = vpack.c.b16 %v10803, %v10793
    %v11064 = vpack.c.b16 %v10804, %v10794
    %v11065 = vpack.c.b16 %v10805, %v10795
    %v11066 = vpack.c.b16 %v10806, %v10796
    %v11067 = vpack.c.b16 %v10807, %v10797
    %v11068 = vpack.c.b16 %v10808, %v10798
    %v11069 = vpack.c.b16 %v10809, %v10799
    %v11070 = vpack.c.b16 %v10810, %v10800
    %v11071 = vpack.c.b16 %v10811, %v10801
    %v11072 = vpack.c.b16 %v10812, %v10802
    %v11073 = vpack.c.b16 %v10823, %v10813
    %v11074 = vpack.c.b16 %v10824, %v10814
    %v11075 = vpack.c.b16 %v10825, %v10815
    %v11076 = vpack.c.b16 %v10826, %v10816
    %v11077 = vpack.c.b16 %v10827, %v10817
    %v11078 = vpack.c.b16 %v10828, %v10818
    %v11079 = vpack.c.b16 %v10829, %v10819
    %v11080 = vpack.c.b16 %v10830, %v10820
    %v11081 = vpack.c.b16 %v10831, %v10821
    %v11082 = vpack.c.b16 %v10832, %v10822
    %v11083 = vpack.c.b16 %v10843, %v10833
    %v11084 = vpack.c.b16 %v10844, %v10834
    %v11085 = vpack.c.b16 %v10845, %v10835
    %v11086 = vpack.c.b16 %v10846, %v10836
    %v11087 = vpack.c.b16 %v10847, %v10837
    %v11088 = vpack.c.b16 %v10848, %v10838
    %v11089 = vpack.c.b16 %v10849, %v10839
    %v11090 = vpack.c.b16 %v10850, %v10840
    %v11091 = vpack.c.b16 %v10851, %v10841
    %v11092 = vpack.c.b16 %v10852, %v10842
    %11333 = vmatprep.subr.bf16.mxu0 %v10924
    %11334 = vmatpush1.bf16.msra.mxu0 %v10923
    %11335 = vmatprep.subr.bf16.mxu0 %v10914
    %11336 = vmatpush1.bf16.msra.mxu0 %v10913
    %11337 = vmatprep.subr.bf16.mxu0 %v10904
    %11338 = vmatpush1.bf16.msra.mxu0 %v10903
    %11339 = vmatprep.subr.bf16.mxu0 %v10894
    %11340 = vmatpush1.bf16.msra.mxu0 %v10893
    %11341 = vmatprep.subr.bf16.mxu0 %v10884
    %11342 = vmatpush1.bf16.msra.mxu0 %v10883
    %11343 = vmatprep.subr.bf16.mxu0 %v10874
    %11344 = vmatpush1.bf16.msra.mxu0 %v10873
    %11345 = vmatprep.subr.bf16.mxu0 %v10864
    %11346 = vmatpush1.bf16.msra.mxu0 %v10863
    %11347 = vmatprep.subr.bf16.mxu0 %v10854
    %11348 = vmatpush1.bf16.msra.mxu0 %v10853
    %11349 = vmatprep.subr.bf16.mxu0 %v11004
    %11350 = vmatpush2.bf16.msra.mxu0 %v11003
    %11351 = vmatprep.subr.bf16.mxu0 %v10994
    %11352 = vmatpush2.bf16.msra.mxu0 %v10993
    %11353 = vmatprep.subr.bf16.mxu0 %v10984
    %11354 = vmatpush2.bf16.msra.mxu0 %v10983
    %11355 = vmatprep.subr.bf16.mxu0 %v10974
    %11356 = vmatpush2.bf16.msra.mxu0 %v10973
    %11357 = vmatprep.subr.bf16.mxu0 %v10964
    %11358 = vmatpush2.bf16.msra.mxu0 %v10963
    %11359 = vmatprep.subr.bf16.mxu0 %v10954
    %11360 = vmatpush2.bf16.msra.mxu0 %v10953
    %11361 = vmatprep.subr.bf16.mxu0 %v10944
    %11362 = vmatpush2.bf16.msra.mxu0 %v10943
    %11363 = vmatprep.subr.bf16.mxu0 %v10934
    %11364 = vmatpush2.bf16.msra.mxu0 %v10933
    %11365 = vmatprep.mubr.bf16.mxu0 %v1658
    %11366 = vmatmul.mubr.bf16.gmra.mxu0 %v1657
    %v11367 = vpop.f32.mrf.mxu0
    %v11368 = vadd.f32 %v10086, %v11367
    %v11369 = vpop.f32.mrf.mxu0
    %v11370 = vadd.f32 %v10090, %v11369
    %v11371 = vpop.f32.mrf.mxu0
    %v11372 = vpop.f32.mrf.mxu0
    %11373 = vdwg.mxu0
    %11374 = vmatprep.subr.bf16.mxu0 %v11084
    %11375 = vmatpush1.bf16.msra.mxu0 %v11083
    %11376 = vmatprep.subr.bf16.mxu0 %v11074
    %11377 = vmatpush1.bf16.msra.mxu0 %v11073
    %11378 = vmatprep.subr.bf16.mxu0 %v11064
    %11379 = vmatpush1.bf16.msra.mxu0 %v11063
    %11380 = vmatprep.subr.bf16.mxu0 %v11054
    %11381 = vmatpush1.bf16.msra.mxu0 %v11053
    %11382 = vmatprep.subr.bf16.mxu0 %v11044
    %11383 = vmatpush1.bf16.msra.mxu0 %v11043
    %11384 = vmatprep.subr.bf16.mxu0 %v11034
    %11385 = vmatpush1.bf16.msra.mxu0 %v11033
    %11386 = vmatprep.subr.bf16.mxu0 %v11024
    %11387 = vmatpush1.bf16.msra.mxu0 %v11023
    %11388 = vmatprep.subr.bf16.mxu0 %v11014
    %11389 = vmatpush1.bf16.msra.mxu0 %v11013
    %11390 = vmatprep.subr.bf16.mxu0 0
    %11391 = vmatpush2.bf16.msra.mxu0 0
    %11392 = vmatprep.subr.bf16.mxu0 0
    %11393 = vmatpush2.bf16.msra.mxu0 0
    %11394 = vmatprep.subr.bf16.mxu0 0
    %11395 = vmatpush2.bf16.msra.mxu0 0
    %11396 = vmatprep.subr.bf16.mxu0 0
    %11397 = vmatpush2.bf16.msra.mxu0 0
    %11398 = vmatprep.subr.bf16.mxu0 0
    %11399 = vmatpush2.bf16.msra.mxu0 0
    %11400 = vmatprep.subr.bf16.mxu0 0
    %11401 = vmatpush2.bf16.msra.mxu0 0
    %11402 = vmatprep.subr.bf16.mxu0 0
    %11403 = vmatpush2.bf16.msra.mxu0 0
    %11404 = vmatprep.subr.bf16.mxu0 0
    %11405 = vmatpush2.bf16.msra.mxu0 0
    %11406 = vmatprep.mubr.bf16.mxu0 0
    %11407 = vmatmul.mubr.bf16.gmra.mxu0 %v1659
    %v11408 = vpop.f32.mrf.mxu0
    %v11409 = vadd.f32 %v11368, %v11408
    %v11410 = vpop.f32.mrf.mxu0
    %v11411 = vadd.f32 %v11370, %v11410
    %v11412 = vpop.f32.mrf.mxu0
    %v11413 = vpop.f32.mrf.mxu0
    %11414 = vdwg.mxu0
    %11415 = vmatprep.subr.bf16.mxu0 %v10926
    %11416 = vmatpush1.bf16.msra.mxu0 %v10925
    %11417 = vmatprep.subr.bf16.mxu0 %v10916
    %11418 = vmatpush1.bf16.msra.mxu0 %v10915
    %11419 = vmatprep.subr.bf16.mxu0 %v10906
    %11420 = vmatpush1.bf16.msra.mxu0 %v10905
    %11421 = vmatprep.subr.bf16.mxu0 %v10896
    %11422 = vmatpush1.bf16.msra.mxu0 %v10895
    %11423 = vmatprep.subr.bf16.mxu0 %v10886
    %11424 = vmatpush1.bf16.msra.mxu0 %v10885
    %11425 = vmatprep.subr.bf16.mxu0 %v10876
    %11426 = vmatpush1.bf16.msra.mxu0 %v10875
    %11427 = vmatprep.subr.bf16.mxu0 %v10866
    %11428 = vmatpush1.bf16.msra.mxu0 %v10865
    %11429 = vmatprep.subr.bf16.mxu0 %v10856
    %11430 = vmatpush1.bf16.msra.mxu0 %v10855
    %11431 = vmatprep.subr.bf16.mxu0 %v11006
    %11432 = vmatpush2.bf16.msra.mxu0 %v11005
    %11433 = vmatprep.subr.bf16.mxu0 %v10996
    %11434 = vmatpush2.bf16.msra.mxu0 %v10995
    %11435 = vmatprep.subr.bf16.mxu0 %v10986
    %11436 = vmatpush2.bf16.msra.mxu0 %v10985
    %11437 = vmatprep.subr.bf16.mxu0 %v10976
    %11438 = vmatpush2.bf16.msra.mxu0 %v10975
    %11439 = vmatprep.subr.bf16.mxu0 %v10966
    %11440 = vmatpush2.bf16.msra.mxu0 %v10965
    %11441 = vmatprep.subr.bf16.mxu0 %v10956
    %11442 = vmatpush2.bf16.msra.mxu0 %v10955
    %11443 = vmatprep.subr.bf16.mxu0 %v10946
    %11444 = vmatpush2.bf16.msra.mxu0 %v10945
    %11445 = vmatprep.subr.bf16.mxu0 %v10936
    %11446 = vmatpush2.bf16.msra.mxu0 %v10935
    %11447 = vmatprep.mubr.bf16.mxu0 %v1658
    %11448 = vmatmul.mubr.bf16.gmra.mxu0 %v1657
    %v11449 = vpop.f32.mrf.mxu0
    %v11450 = vadd.f32 %v10094, %v11449
    %v11451 = vpop.f32.mrf.mxu0
    %v11452 = vadd.f32 %v10098, %v11451
    %v11453 = vpop.f32.mrf.mxu0
    %v11454 = vpop.f32.mrf.mxu0
    %11455 = vdwg.mxu0
    %11456 = vmatprep.subr.bf16.mxu0 %v11086
    %11457 = vmatpush1.bf16.msra.mxu0 %v11085
    %11458 = vmatprep.subr.bf16.mxu0 %v11076
    %11459 = vmatpush1.bf16.msra.mxu0 %v11075
    %11460 = vmatprep.subr.bf16.mxu0 %v11066
    %11461 = vmatpush1.bf16.msra.mxu0 %v11065
    %11462 = vmatprep.subr.bf16.mxu0 %v11056
    %11463 = vmatpush1.bf16.msra.mxu0 %v11055
    %11464 = vmatprep.subr.bf16.mxu0 %v11046
    %11465 = vmatpush1.bf16.msra.mxu0 %v11045
    %11466 = vmatprep.subr.bf16.mxu0 %v11036
    %11467 = vmatpush1.bf16.msra.mxu0 %v11035
    %11468 = vmatprep.subr.bf16.mxu0 %v11026
    %11469 = vmatpush1.bf16.msra.mxu0 %v11025
    %11470 = vmatprep.subr.bf16.mxu0 %v11016
    %11471 = vmatpush1.bf16.msra.mxu0 %v11015
    %11472 = vmatprep.subr.bf16.mxu0 0
    %11473 = vmatpush2.bf16.msra.mxu0 0
    %11474 = vmatprep.subr.bf16.mxu0 0
    %11475 = vmatpush2.bf16.msra.mxu0 0
    %11476 = vmatprep.subr.bf16.mxu0 0
    %11477 = vmatpush2.bf16.msra.mxu0 0
    %11478 = vmatprep.subr.bf16.mxu0 0
    %11479 = vmatpush2.bf16.msra.mxu0 0
    %11480 = vmatprep.subr.bf16.mxu0 0
    %11481 = vmatpush2.bf16.msra.mxu0 0
    %11482 = vmatprep.subr.bf16.mxu0 0
    %11483 = vmatpush2.bf16.msra.mxu0 0
    %11484 = vmatprep.subr.bf16.mxu0 0
    %11485 = vmatpush2.bf16.msra.mxu0 0
    %11486 = vmatprep.subr.bf16.mxu0 0
    %11487 = vmatpush2.bf16.msra.mxu0 0
    %11488 = vmatprep.mubr.bf16.mxu0 0
    %11489 = vmatmul.mubr.bf16.gmra.mxu0 %v1659
    %v11490 = vpop.f32.mrf.mxu0
    %v11491 = vadd.f32 %v11450, %v11490
    %v11492 = vpop.f32.mrf.mxu0
    %v11493 = vadd.f32 %v11452, %v11492
    %v11494 = vpop.f32.mrf.mxu0
    %v11495 = vpop.f32.mrf.mxu0
    %11496 = vdwg.mxu0
    %11497 = vmatprep.subr.bf16.mxu0 %v10928
    %11498 = vmatpush1.bf16.msra.mxu0 %v10927
    %11499 = vmatprep.subr.bf16.mxu0 %v10918
    %11500 = vmatpush1.bf16.msra.mxu0 %v10917
    %11501 = vmatprep.subr.bf16.mxu0 %v10908
    %11502 = vmatpush1.bf16.msra.mxu0 %v10907
    %11503 = vmatprep.subr.bf16.mxu0 %v10898
    %11504 = vmatpush1.bf16.msra.mxu0 %v10897
    %11505 = vmatprep.subr.bf16.mxu0 %v10888
    %11506 = vmatpush1.bf16.msra.mxu0 %v10887
    %11507 = vmatprep.subr.bf16.mxu0 %v10878
    %11508 = vmatpush1.bf16.msra.mxu0 %v10877
    %11509 = vmatprep.subr.bf16.mxu0 %v10868
    %11510 = vmatpush1.bf16.msra.mxu0 %v10867
    %11511 = vmatprep.subr.bf16.mxu0 %v10858
    %11512 = vmatpush1.bf16.msra.mxu0 %v10857
    %11513 = vmatprep.subr.bf16.mxu0 %v11008
    %11514 = vmatpush2.bf16.msra.mxu0 %v11007
    %11515 = vmatprep.subr.bf16.mxu0 %v10998
    %11516 = vmatpush2.bf16.msra.mxu0 %v10997
    %11517 = vmatprep.subr.bf16.mxu0 %v10988
    %11518 = vmatpush2.bf16.msra.mxu0 %v10987
    %11519 = vmatprep.subr.bf16.mxu0 %v10978
    %11520 = vmatpush2.bf16.msra.mxu0 %v10977
    %11521 = vmatprep.subr.bf16.mxu0 %v10968
    %11522 = vmatpush2.bf16.msra.mxu0 %v10967
    %11523 = vmatprep.subr.bf16.mxu0 %v10958
    %11524 = vmatpush2.bf16.msra.mxu0 %v10957
    %11525 = vmatprep.subr.bf16.mxu0 %v10948
    %11526 = vmatpush2.bf16.msra.mxu0 %v10947
    %11527 = vmatprep.subr.bf16.mxu0 %v10938
    %11528 = vmatpush2.bf16.msra.mxu0 %v10937
    %11529 = vmatprep.mubr.bf16.mxu0 %v1658
    %11530 = vmatmul.mubr.bf16.gmra.mxu0 %v1657
    %v11531 = vpop.f32.mrf.mxu0
    %v11532 = vadd.f32 %v10102, %v11531
    %v11533 = vpop.f32.mrf.mxu0
    %v11534 = vadd.f32 %v10106, %v11533
    %v11535 = vpop.f32.mrf.mxu0
    %v11536 = vpop.f32.mrf.mxu0
    %11537 = vdwg.mxu0
    %11538 = vmatprep.subr.bf16.mxu0 %v11088
    %11539 = vmatpush1.bf16.msra.mxu0 %v11087
    %11540 = vmatprep.subr.bf16.mxu0 %v11078
    %11541 = vmatpush1.bf16.msra.mxu0 %v11077
    %11542 = vmatprep.subr.bf16.mxu0 %v11068
    %11543 = vmatpush1.bf16.msra.mxu0 %v11067
    %11544 = vmatprep.subr.bf16.mxu0 %v11058
    %11545 = vmatpush1.bf16.msra.mxu0 %v11057
    %11546 = vmatprep.subr.bf16.mxu0 %v11048
    %11547 = vmatpush1.bf16.msra.mxu0 %v11047
    %11548 = vmatprep.subr.bf16.mxu0 %v11038
    %11549 = vmatpush1.bf16.msra.mxu0 %v11037
    %11550 = vmatprep.subr.bf16.mxu0 %v11028
    %11551 = vmatpush1.bf16.msra.mxu0 %v11027
    %11552 = vmatprep.subr.bf16.mxu0 %v11018
    %11553 = vmatpush1.bf16.msra.mxu0 %v11017
    %11554 = vmatprep.subr.bf16.mxu0 0
    %11555 = vmatpush2.bf16.msra.mxu0 0
    %11556 = vmatprep.subr.bf16.mxu0 0
    %11557 = vmatpush2.bf16.msra.mxu0 0
    %11558 = vmatprep.subr.bf16.mxu0 0
    %11559 = vmatpush2.bf16.msra.mxu0 0
    %11560 = vmatprep.subr.bf16.mxu0 0
    %11561 = vmatpush2.bf16.msra.mxu0 0
    %11562 = vmatprep.subr.bf16.mxu0 0
    %11563 = vmatpush2.bf16.msra.mxu0 0
    %11564 = vmatprep.subr.bf16.mxu0 0
    %11565 = vmatpush2.bf16.msra.mxu0 0
    %11566 = vmatprep.subr.bf16.mxu0 0
    %11567 = vmatpush2.bf16.msra.mxu0 0
    %11568 = vmatprep.subr.bf16.mxu0 0
    %11569 = vmatpush2.bf16.msra.mxu0 0
    %11570 = vmatprep.mubr.bf16.mxu0 0
    %11571 = vmatmul.mubr.bf16.gmra.mxu0 %v1659
    %v11572 = vpop.f32.mrf.mxu0
    %v11573 = vadd.f32 %v11532, %v11572
    %v11574 = vpop.f32.mrf.mxu0
    %v11575 = vadd.f32 %v11534, %v11574
    %v11576 = vpop.f32.mrf.mxu0
    %v11577 = vpop.f32.mrf.mxu0
    %11578 = vdwg.mxu0
    %11579 = vmatprep.subr.bf16.mxu0 %v10930
    %11580 = vmatpush1.bf16.msra.mxu0 %v10929
    %11581 = vmatprep.subr.bf16.mxu0 %v10920
    %11582 = vmatpush1.bf16.msra.mxu0 %v10919
    %11583 = vmatprep.subr.bf16.mxu0 %v10910
    %11584 = vmatpush1.bf16.msra.mxu0 %v10909
    %11585 = vmatprep.subr.bf16.mxu0 %v10900
    %11586 = vmatpush1.bf16.msra.mxu0 %v10899
    %11587 = vmatprep.subr.bf16.mxu0 %v10890
    %11588 = vmatpush1.bf16.msra.mxu0 %v10889
    %11589 = vmatprep.subr.bf16.mxu0 %v10880
    %11590 = vmatpush1.bf16.msra.mxu0 %v10879
    %11591 = vmatprep.subr.bf16.mxu0 %v10870
    %11592 = vmatpush1.bf16.msra.mxu0 %v10869
    %11593 = vmatprep.subr.bf16.mxu0 %v10860
    %11594 = vmatpush1.bf16.msra.mxu0 %v10859
    %11595 = vmatprep.subr.bf16.mxu0 %v11010
    %11596 = vmatpush2.bf16.msra.mxu0 %v11009
    %11597 = vmatprep.subr.bf16.mxu0 %v11000
    %11598 = vmatpush2.bf16.msra.mxu0 %v10999
    %11599 = vmatprep.subr.bf16.mxu0 %v10990
    %11600 = vmatpush2.bf16.msra.mxu0 %v10989
    %11601 = vmatprep.subr.bf16.mxu0 %v10980
    %11602 = vmatpush2.bf16.msra.mxu0 %v10979
    %11603 = vmatprep.subr.bf16.mxu0 %v10970
    %11604 = vmatpush2.bf16.msra.mxu0 %v10969
    %11605 = vmatprep.subr.bf16.mxu0 %v10960
    %11606 = vmatpush2.bf16.msra.mxu0 %v10959
    %11607 = vmatprep.subr.bf16.mxu0 %v10950
    %11608 = vmatpush2.bf16.msra.mxu0 %v10949
    %11609 = vmatprep.subr.bf16.mxu0 %v10940
    %11610 = vmatpush2.bf16.msra.mxu0 %v10939
    %11611 = vmatprep.mubr.bf16.mxu0 %v1658
    %11612 = vmatmul.mubr.bf16.gmra.mxu0 %v1657
    %v11613 = vpop.f32.mrf.mxu0
    %v11614 = vadd.f32 %v10110, %v11613
    %v11615 = vpop.f32.mrf.mxu0
    %v11616 = vadd.f32 %v10114, %v11615
    %v11617 = vpop.f32.mrf.mxu0
    %v11618 = vpop.f32.mrf.mxu0
    %11619 = vdwg.mxu0
    %11620 = vmatprep.subr.bf16.mxu0 %v11090
    %11621 = vmatpush1.bf16.msra.mxu0 %v11089
    %11622 = vmatprep.subr.bf16.mxu0 %v11080
    %11623 = vmatpush1.bf16.msra.mxu0 %v11079
    %11624 = vmatprep.subr.bf16.mxu0 %v11070
    %11625 = vmatpush1.bf16.msra.mxu0 %v11069
    %11626 = vmatprep.subr.bf16.mxu0 %v11060
    %11627 = vmatpush1.bf16.msra.mxu0 %v11059
    %11628 = vmatprep.subr.bf16.mxu0 %v11050
    %11629 = vmatpush1.bf16.msra.mxu0 %v11049
    %11630 = vmatprep.subr.bf16.mxu0 %v11040
    %11631 = vmatpush1.bf16.msra.mxu0 %v11039
    %11632 = vmatprep.subr.bf16.mxu0 %v11030
    %11633 = vmatpush1.bf16.msra.mxu0 %v11029
    %11634 = vmatprep.subr.bf16.mxu0 %v11020
    %11635 = vmatpush1.bf16.msra.mxu0 %v11019
    %11636 = vmatprep.subr.bf16.mxu0 0
    %11637 = vmatpush2.bf16.msra.mxu0 0
    %11638 = vmatprep.subr.bf16.mxu0 0
    %11639 = vmatpush2.bf16.msra.mxu0 0
    %11640 = vmatprep.subr.bf16.mxu0 0
    %11641 = vmatpush2.bf16.msra.mxu0 0
    %11642 = vmatprep.subr.bf16.mxu0 0
    %11643 = vmatpush2.bf16.msra.mxu0 0
    %11644 = vmatprep.subr.bf16.mxu0 0
    %11645 = vmatpush2.bf16.msra.mxu0 0
    %11646 = vmatprep.subr.bf16.mxu0 0
    %11647 = vmatpush2.bf16.msra.mxu0 0
    %11648 = vmatprep.subr.bf16.mxu0 0
    %11649 = vmatpush2.bf16.msra.mxu0 0
    %11650 = vmatprep.subr.bf16.mxu0 0
    %11651 = vmatpush2.bf16.msra.mxu0 0
    %11652 = vmatprep.mubr.bf16.mxu0 0
    %11653 = vmatmul.mubr.bf16.gmra.mxu0 %v1659
    %v11654 = vpop.f32.mrf.mxu0
    %v11655 = vadd.f32 %v11614, %v11654
    %v11656 = vpop.f32.mrf.mxu0
    %v11657 = vadd.f32 %v11616, %v11656
    %v11658 = vpop.f32.mrf.mxu0
    %v11659 = vpop.f32.mrf.mxu0
    %11660 = vdwg.mxu0
    %11661 = vmatprep.subr.bf16.mxu0 %v10932
    %11662 = vmatpush1.bf16.msra.mxu0 %v10931
    %11663 = vmatprep.subr.bf16.mxu0 %v10922
    %11664 = vmatpush1.bf16.msra.mxu0 %v10921
    %11665 = vmatprep.subr.bf16.mxu0 %v10912
    %11666 = vmatpush1.bf16.msra.mxu0 %v10911
    %11667 = vmatprep.subr.bf16.mxu0 %v10902
    %11668 = vmatpush1.bf16.msra.mxu0 %v10901
    %11669 = vmatprep.subr.bf16.mxu0 %v10892
    %11670 = vmatpush1.bf16.msra.mxu0 %v10891
    %11671 = vmatprep.subr.bf16.mxu0 %v10882
    %11672 = vmatpush1.bf16.msra.mxu0 %v10881
    %11673 = vmatprep.subr.bf16.mxu0 %v10872
    %11674 = vmatpush1.bf16.msra.mxu0 %v10871
    %11675 = vmatprep.subr.bf16.mxu0 %v10862
    %11676 = vmatpush1.bf16.msra.mxu0 %v10861
    %11677 = vmatprep.subr.bf16.mxu0 %v11012
    %11678 = vmatpush2.bf16.msra.mxu0 %v11011
    %11679 = vmatprep.subr.bf16.mxu0 %v11002
    %11680 = vmatpush2.bf16.msra.mxu0 %v11001
    %11681 = vmatprep.subr.bf16.mxu0 %v10992
    %11682 = vmatpush2.bf16.msra.mxu0 %v10991
    %11683 = vmatprep.subr.bf16.mxu0 %v10982
    %11684 = vmatpush2.bf16.msra.mxu0 %v10981
    %11685 = vmatprep.subr.bf16.mxu0 %v10972
    %11686 = vmatpush2.bf16.msra.mxu0 %v10971
    %11687 = vmatprep.subr.bf16.mxu0 %v10962
    %11688 = vmatpush2.bf16.msra.mxu0 %v10961
    %11689 = vmatprep.subr.bf16.mxu0 %v10952
    %11690 = vmatpush2.bf16.msra.mxu0 %v10951
    %11691 = vmatprep.subr.bf16.mxu0 %v10942
    %11692 = vmatpush2.bf16.msra.mxu0 %v10941
    %11693 = vmatprep.mubr.bf16.mxu0 %v1658
    %11694 = vmatmul.mubr.bf16.gmra.mxu0 %v1657
    %v11695 = vpop.f32.mrf.mxu0
    %v11696 = vadd.f32 %v10118, %v11695
    %v11697 = vpop.f32.mrf.mxu0
    %v11698 = vadd.f32 %v10122, %v11697
    %v11699 = vpop.f32.mrf.mxu0
    %v11700 = vpop.f32.mrf.mxu0
    %11701 = vdwg.mxu0
    %11702 = vmatprep.subr.bf16.mxu0 %v11092
    %11703 = vmatpush1.bf16.msra.mxu0 %v11091
    %11704 = vmatprep.subr.bf16.mxu0 %v11082
    %11705 = vmatpush1.bf16.msra.mxu0 %v11081
    %11706 = vmatprep.subr.bf16.mxu0 %v11072
    %11707 = vmatpush1.bf16.msra.mxu0 %v11071
    %11708 = vmatprep.subr.bf16.mxu0 %v11062
    %11709 = vmatpush1.bf16.msra.mxu0 %v11061
    %11710 = vmatprep.subr.bf16.mxu0 %v11052
    %11711 = vmatpush1.bf16.msra.mxu0 %v11051
    %11712 = vmatprep.subr.bf16.mxu0 %v11042
    %11713 = vmatpush1.bf16.msra.mxu0 %v11041
    %11714 = vmatprep.subr.bf16.mxu0 %v11032
    %11715 = vmatpush1.bf16.msra.mxu0 %v11031
    %11716 = vmatprep.subr.bf16.mxu0 %v11022
    %11717 = vmatpush1.bf16.msra.mxu0 %v11021
    %11718 = vmatprep.subr.bf16.mxu0 0
    %11719 = vmatpush2.bf16.msra.mxu0 0
    %11720 = vmatprep.subr.bf16.mxu0 0
    %11721 = vmatpush2.bf16.msra.mxu0 0
    %11722 = vmatprep.subr.bf16.mxu0 0
    %11723 = vmatpush2.bf16.msra.mxu0 0
    %11724 = vmatprep.subr.bf16.mxu0 0
    %11725 = vmatpush2.bf16.msra.mxu0 0
    %11726 = vmatprep.subr.bf16.mxu0 0
    %11727 = vmatpush2.bf16.msra.mxu0 0
    %11728 = vmatprep.subr.bf16.mxu0 0
    %11729 = vmatpush2.bf16.msra.mxu0 0
    %11730 = vmatprep.subr.bf16.mxu0 0
    %11731 = vmatpush2.bf16.msra.mxu0 0
    %11732 = vmatprep.subr.bf16.mxu0 0
    %11733 = vmatpush2.bf16.msra.mxu0 0
    %11734 = vmatprep.mubr.bf16.mxu0 0
    %11735 = vmatmul.mubr.bf16.gmra.mxu0 %v1659
    %v11736 = vpop.f32.mrf.mxu0
    %v11737 = vadd.f32 %v11696, %v11736
    %v11738 = vpop.f32.mrf.mxu0
    %v11739 = vadd.f32 %v11698, %v11738
    %v11740 = vpop.f32.mrf.mxu0
    %v11741 = vpop.f32.mrf.mxu0
    %11742 = vdwg.mxu0
    %v11743 = vmul.f32 %v11409, 0.5
    %v11744 = vmul.f32 %v11411, 0.5
    %v11745 = vmul.f32 %v11491, 0.5
    %v11746 = vmul.f32 %v11493, 0.5
    %v11747 = vmul.f32 %v11573, 0.5
    %v11748 = vmul.f32 %v11575, 0.5
    %v11749 = vmul.f32 %v11655, 0.5
    %v11750 = vmul.f32 %v11657, 0.5
    %v11751 = vmul.f32 %v11737, 0.5
    %v11752 = vmul.f32 %v11739, 0.5
    %v11753 = vmul.f32 %v11409, 0.70710677
    %v11754 = vmul.f32 %v11411, 0.70710677
    %v11755 = vmul.f32 %v11491, 0.70710677
    %v11756 = vmul.f32 %v11493, 0.70710677
    %v11757 = vmul.f32 %v11573, 0.70710677
    %v11758 = vmul.f32 %v11575, 0.70710677
    %v11759 = vmul.f32 %v11655, 0.70710677
    %v11760 = vmul.f32 %v11657, 0.70710677
    %v11761 = vmul.f32 %v11737, 0.70710677
    %v11762 = vmul.f32 %v11739, 0.70710677
    %v11763 = verf.f32.pop %v11753
    %v11764 = verf.f32.pop %v11754
    %v11765 = verf.f32.pop %v11755
    %v11766 = verf.f32.pop %v11756
    %v11767 = verf.f32.pop %v11757
    %v11768 = verf.f32.pop %v11758
    %v11769 = verf.f32.pop %v11759
    %v11770 = verf.f32.pop %v11760
    %v11771 = verf.f32.pop %v11761
    %v11772 = verf.f32.pop %v11762
    %v11773 = vadd.f32 %v11763, 1.0
    %v11774 = vadd.f32 %v11764, 1.0
    %v11775 = vadd.f32 %v11765, 1.0
    %v11776 = vadd.f32 %v11766, 1.0
    %v11777 = vadd.f32 %v11767, 1.0
    %v11778 = vadd.f32 %v11768, 1.0
    %v11779 = vadd.f32 %v11769, 1.0
    %v11780 = vadd.f32 %v11770, 1.0
    %v11781 = vadd.f32 %v11771, 1.0
    %v11782 = vadd.f32 %v11772, 1.0
    %v11783 = vmul.f32 %v11743, %v11773
    %v11784 = vmul.f32 %v11744, %v11774
    %v11785 = vmul.f32 %v11745, %v11775
    %v11786 = vmul.f32 %v11746, %v11776
    %v11787 = vmul.f32 %v11747, %v11777
    %v11788 = vmul.f32 %v11748, %v11778
    %v11789 = vmul.f32 %v11749, %v11779
    %v11790 = vmul.f32 %v11750, %v11780
    %v11791 = vmul.f32 %v11751, %v11781
    %v11792 = vmul.f32 %v11752, %v11782
    %v11793 = vpack.c.bf16 %v11783, %v11783
    %v11794 = vpack.c.bf16 %v11784, %v11784
    %v11795 = vpack.c.bf16 %v11785, %v11785
    %v11796 = vpack.c.bf16 %v11786, %v11786
    %v11797 = vpack.c.bf16 %v11787, %v11787
    %v11798 = vpack.c.bf16 %v11788, %v11788
    %v11799 = vpack.c.bf16 %v11789, %v11789
    %v11800 = vpack.c.bf16 %v11790, %v11790
    %v11801 = vpack.c.bf16 %v11791, %v11791
    %v11802 = vpack.c.bf16 %v11792, %v11792
    %v11813 = vcombine.low %v11793, %v11794
    %v11814 = vcombine.low %v11795, %v11796
    %v11815 = vcombine.low %v11797, %v11798
    %v11816 = vcombine.low %v11799, %v11800
    %v11818 = vunpack.c.l.s4 1966171168
    %v11819 = vunpack.c.0.s8 %v11818
    %v11820 = vlaneseq
    %v11821 = vshrl.u32 %v11820, 7
    %v11822 = vsub.s32 %v11819, %v11821
    %v11823 = vrot.slane %v11813, %v11822
    %v11825 = vunpack.c.l.s4 1966171168
    %v11826 = vunpack.c.0.s8 %v11825
    %v11827 = vlaneseq
    %v11828 = vshrl.u32 %v11827, 7
    %v11829 = vsub.s32 %v11826, %v11828
    %v11830 = vrot.slane %v11814, %v11829
    %v11832 = vunpack.c.l.s4 1966171168
    %v11833 = vunpack.c.0.s8 %v11832
    %v11834 = vlaneseq
    %v11835 = vshrl.u32 %v11834, 7
    %v11836 = vsub.s32 %v11833, %v11835
    %v11837 = vrot.slane %v11815, %v11836
    %v11839 = vunpack.c.l.s4 1966171168
    %v11840 = vunpack.c.0.s8 %v11839
    %v11841 = vlaneseq
    %v11842 = vshrl.u32 %v11841, 7
    %v11843 = vsub.s32 %v11840, %v11842
    %v11844 = vrot.slane %v11816, %v11843
    %v11845 = vcombine.low %v11823, %v11830
    %v11846 = vcombine.low %v11837, %v11844
    %v11848 = vunpack.c.l.s4 1966171168
    %v11849 = vunpack.c.0.s8 %v11848
    %v11850 = vlaneseq
    %v11851 = vshrl.u32 %v11850, 7
    %v11852 = vsub.s32 %v11849, %v11851
    %v11853 = vrot.slane %v11845, %v11852
    %v11855 = vunpack.c.l.s4 1966171168
    %v11856 = vunpack.c.0.s8 %v11855
    %v11857 = vlaneseq
    %v11858 = vshrl.u32 %v11857, 7
    %v11859 = vsub.s32 %v11856, %v11858
    %v11860 = vrot.slane %v11846, %v11859
    %v11861 = vcombine.low %v11853, %v11860
    %v11862 = vcombine.low %v11801, %v11802
    %v11864 = vunpack.c.l.s4 1966171168
    %v11865 = vunpack.c.0.s8 %v11864
    %v11866 = vlaneseq
    %v11867 = vshrl.u32 %v11866, 7
    %v11868 = vsub.s32 %v11865, %v11867
    %v11869 = vrot.slane %v11862, %v11868
    %v11871 = vunpack.c.l.s4 1966171168
    %v11872 = vunpack.c.0.s8 %v11871
    %v11873 = vlaneseq
    %v11874 = vshrl.u32 %v11873, 7
    %v11875 = vsub.s32 %v11872, %v11874
    %v11876 = vrot.slane %v11869, %v11875
    %s11879 = scalar_lea.vmem [#allocation17], 40
    %11880 = vst [vmem:[%s11879] sm:$0xff] %v11861
    %11881 = vst [vmem:[%s11879 + $0x8] sm:$0x3] %v11876
    %s11882 = scalar_lea.vmem [#allocation11], 9600
    %v11883 = vld [vmem:[%s11882] sm:$0xff]
    %v11884 = vld [vmem:[%s11882 + $0x8] sm:$0xff]
    %v11885 = vld [vmem:[%s11882 + $0x10] sm:$0xff]
    %v11886 = vld [vmem:[%s11882 + $0x18] sm:$0xff]
    %v11887 = vld [vmem:[%s11882 + $0x20] sm:$0xff]
    %v11888 = vld [vmem:[%s11882 + $0x28] sm:$0xff]
    %v11889 = vld [vmem:[%s11882 + $0x30] sm:$0xff]
    %v11890 = vld [vmem:[%s11882 + $0x38] sm:$0xff]
    %v11891 = vld [vmem:[%s11882 + $0x40] sm:$0xff]
    %v11892 = vld [vmem:[%s11882 + $0x48] sm:$0xff]
    %v11893 = vld [vmem:[%s11882 + $0x50] sm:$0xff]
    %v11894 = vld [vmem:[%s11882 + $0x58] sm:$0xff]
    %v11895 = vld [vmem:[%s11882 + $0x60] sm:$0xff]
    %v11896 = vld [vmem:[%s11882 + $0x68] sm:$0xff]
    %v11897 = vld [vmem:[%s11882 + $0x70] sm:$0xff]
    %v11898 = vld [vmem:[%s11882 + $0x78] sm:$0xff]
    %v11899 = vld [vmem:[%s11882 + $0x80] sm:$0xff]
    %v11900 = vld [vmem:[%s11882 + $0x88] sm:$0xff]
    %v11901 = vld [vmem:[%s11882 + $0x90] sm:$0xff]
    %v11902 = vld [vmem:[%s11882 + $0x98] sm:$0xff]
    %v11903 = vld [vmem:[%s11882 + $0xa0] sm:$0xff]
    %v11904 = vld [vmem:[%s11882 + $0xa8] sm:$0xff]
    %v11905 = vld [vmem:[%s11882 + $0xb0] sm:$0xff]
    %v11906 = vld [vmem:[%s11882 + $0xb8] sm:$0xff]
    %v11907 = vld [vmem:[%s11882 + $0xc0] sm:$0xff]
    %v11908 = vld [vmem:[%s11882 + $0xc8] sm:$0xff]
    %v11909 = vld [vmem:[%s11882 + $0xd0] sm:$0xff]
    %v11910 = vld [vmem:[%s11882 + $0xd8] sm:$0xff]
    %v11911 = vld [vmem:[%s11882 + $0xe0] sm:$0xff]
    %v11912 = vld [vmem:[%s11882 + $0xe8] sm:$0xff]
    %v11913 = vld [vmem:[%s11882 + $0xf0] sm:$0xff]
    %v11914 = vld [vmem:[%s11882 + $0xf8] sm:$0xff]
    %v11915 = vld [vmem:[%s11882 + $0x100] sm:$0xff]
    %v11916 = vld [vmem:[%s11882 + $0x108] sm:$0xff]
    %v11917 = vld [vmem:[%s11882 + $0x110] sm:$0xff]
    %v11918 = vld [vmem:[%s11882 + $0x118] sm:$0xff]
    %v11919 = vld [vmem:[%s11882 + $0x120] sm:$0xff]
    %v11920 = vld [vmem:[%s11882 + $0x128] sm:$0xff]
    %v11921 = vld [vmem:[%s11882 + $0x130] sm:$0xff]
    %v11922 = vld [vmem:[%s11882 + $0x138] sm:$0xff]
    %v11923 = vld [vmem:[%s11882 + $0x140] sm:$0xff]
    %v11924 = vld [vmem:[%s11882 + $0x148] sm:$0xff]
    %v11925 = vld [vmem:[%s11882 + $0x150] sm:$0xff]
    %v11926 = vld [vmem:[%s11882 + $0x158] sm:$0xff]
    %v11927 = vld [vmem:[%s11882 + $0x160] sm:$0xff]
    %v11928 = vld [vmem:[%s11882 + $0x168] sm:$0xff]
    %v11929 = vld [vmem:[%s11882 + $0x170] sm:$0xff]
    %v11930 = vld [vmem:[%s11882 + $0x178] sm:$0xff]
    %v11931 = vld [vmem:[%s11882 + $0x180] sm:$0xff]
    %v11932 = vld [vmem:[%s11882 + $0x188] sm:$0xff]
    %v11933 = vld [vmem:[%s11882 + $0x190] sm:$0xff]
    %v11934 = vld [vmem:[%s11882 + $0x198] sm:$0xff]
    %v11935 = vld [vmem:[%s11882 + $0x1a0] sm:$0xff]
    %v11936 = vld [vmem:[%s11882 + $0x1a8] sm:$0xff]
    %v11937 = vld [vmem:[%s11882 + $0x1b0] sm:$0xff]
    %v11938 = vld [vmem:[%s11882 + $0x1b8] sm:$0xff]
    %v11939 = vld [vmem:[%s11882 + $0x1c0] sm:$0xff]
    %v11940 = vld [vmem:[%s11882 + $0x1c8] sm:$0xff]
    %v11941 = vld [vmem:[%s11882 + $0x1d0] sm:$0xff]
    %v11942 = vld [vmem:[%s11882 + $0x1d8] sm:$0xff]
    %v11943 = vld [vmem:[%s11882 + $0x1e0] sm:$0xff]
    %v11944 = vld [vmem:[%s11882 + $0x1e8] sm:$0xff]
    %v11945 = vld [vmem:[%s11882 + $0x1f0] sm:$0xff]
    %v11946 = vld [vmem:[%s11882 + $0x1f8] sm:$0xff]
    %v11947 = vld [vmem:[%s11882 + $0x200] sm:$0xff]
    %v11948 = vld [vmem:[%s11882 + $0x208] sm:$0xff]
    %v11949 = vld [vmem:[%s11882 + $0x210] sm:$0xff]
    %v11950 = vld [vmem:[%s11882 + $0x218] sm:$0xff]
    %v11951 = vld [vmem:[%s11882 + $0x220] sm:$0xff]
    %v11952 = vld [vmem:[%s11882 + $0x228] sm:$0xff]
    %v11953 = vld [vmem:[%s11882 + $0x230] sm:$0xff]
    %v11954 = vld [vmem:[%s11882 + $0x238] sm:$0xff]
    %v11955 = vld [vmem:[%s11882 + $0x240] sm:$0xff]
    %v11956 = vld [vmem:[%s11882 + $0x248] sm:$0xff]
    %v11957 = vld [vmem:[%s11882 + $0x250] sm:$0xff]
    %v11958 = vld [vmem:[%s11882 + $0x258] sm:$0xff]
    %v11959 = vld [vmem:[%s11882 + $0x260] sm:$0xff]
    %v11960 = vld [vmem:[%s11882 + $0x268] sm:$0xff]
    %v11961 = vld [vmem:[%s11882 + $0x270] sm:$0xff]
    %v11962 = vld [vmem:[%s11882 + $0x278] sm:$0xff]
    %v11963 = vld [vmem:[%s11882 + $0x280] sm:$0xff]
    %v11964 = vld [vmem:[%s11882 + $0x288] sm:$0xff]
    %v11965 = vld [vmem:[%s11882 + $0x290] sm:$0xff]
    %v11966 = vld [vmem:[%s11882 + $0x298] sm:$0xff]
    %v11967 = vld [vmem:[%s11882 + $0x2a0] sm:$0xff]
    %v11968 = vld [vmem:[%s11882 + $0x2a8] sm:$0xff]
    %v11969 = vld [vmem:[%s11882 + $0x2b0] sm:$0xff]
    %v11970 = vld [vmem:[%s11882 + $0x2b8] sm:$0xff]
    %v11971 = vld [vmem:[%s11882 + $0x2c0] sm:$0xff]
    %v11972 = vld [vmem:[%s11882 + $0x2c8] sm:$0xff]
    %v11973 = vld [vmem:[%s11882 + $0x2d0] sm:$0xff]
    %v11974 = vld [vmem:[%s11882 + $0x2d8] sm:$0xff]
    %v11975 = vld [vmem:[%s11882 + $0x2e0] sm:$0xff]
    %v11976 = vld [vmem:[%s11882 + $0x2e8] sm:$0xff]
    %v11977 = vld [vmem:[%s11882 + $0x2f0] sm:$0xff]
    %v11978 = vld [vmem:[%s11882 + $0x2f8] sm:$0xff]
    %v11979 = vld [vmem:[%s11882 + $0x300] sm:$0xff]
    %v11980 = vld [vmem:[%s11882 + $0x308] sm:$0xff]
    %v11981 = vld [vmem:[%s11882 + $0x310] sm:$0xff]
    %v11982 = vld [vmem:[%s11882 + $0x318] sm:$0xff]
    %v11983 = vld [vmem:[%s11882 + $0x320] sm:$0xff]
    %v11984 = vld [vmem:[%s11882 + $0x328] sm:$0xff]
    %v11985 = vld [vmem:[%s11882 + $0x330] sm:$0xff]
    %v11986 = vld [vmem:[%s11882 + $0x338] sm:$0xff]
    %v11987 = vld [vmem:[%s11882 + $0x340] sm:$0xff]
    %v11988 = vld [vmem:[%s11882 + $0x348] sm:$0xff]
    %v11989 = vld [vmem:[%s11882 + $0x350] sm:$0xff]
    %v11990 = vld [vmem:[%s11882 + $0x358] sm:$0xff]
    %v11991 = vld [vmem:[%s11882 + $0x360] sm:$0xff]
    %v11992 = vld [vmem:[%s11882 + $0x368] sm:$0xff]
    %v11993 = vld [vmem:[%s11882 + $0x370] sm:$0xff]
    %v11994 = vld [vmem:[%s11882 + $0x378] sm:$0xff]
    %v11995 = vld [vmem:[%s11882 + $0x380] sm:$0xff]
    %v11996 = vld [vmem:[%s11882 + $0x388] sm:$0xff]
    %v11997 = vld [vmem:[%s11882 + $0x390] sm:$0xff]
    %v11998 = vld [vmem:[%s11882 + $0x398] sm:$0xff]
    %v11999 = vld [vmem:[%s11882 + $0x3a0] sm:$0xff]
    %v12000 = vld [vmem:[%s11882 + $0x3a8] sm:$0xff]
    %v12001 = vld [vmem:[%s11882 + $0x3b0] sm:$0xff]
    %v12002 = vld [vmem:[%s11882 + $0x3b8] sm:$0xff]
    %v12003 = vld [vmem:[%s11882 + $0x3c0] sm:$0xff]
    %v12004 = vld [vmem:[%s11882 + $0x3c8] sm:$0xff]
    %v12005 = vld [vmem:[%s11882 + $0x3d0] sm:$0xff]
    %v12006 = vld [vmem:[%s11882 + $0x3d8] sm:$0xff]
    %v12007 = vld [vmem:[%s11882 + $0x3e0] sm:$0xff]
    %v12008 = vld [vmem:[%s11882 + $0x3e8] sm:$0xff]
    %v12009 = vld [vmem:[%s11882 + $0x3f0] sm:$0xff]
    %v12010 = vld [vmem:[%s11882 + $0x3f8] sm:$0xff]
    %v12011 = vld [vmem:[%s11882 + $0x400] sm:$0xff]
    %v12012 = vld [vmem:[%s11882 + $0x408] sm:$0xff]
    %v12013 = vld [vmem:[%s11882 + $0x410] sm:$0xff]
    %v12014 = vld [vmem:[%s11882 + $0x418] sm:$0xff]
    %v12015 = vld [vmem:[%s11882 + $0x420] sm:$0xff]
    %v12016 = vld [vmem:[%s11882 + $0x428] sm:$0xff]
    %v12017 = vld [vmem:[%s11882 + $0x430] sm:$0xff]
    %v12018 = vld [vmem:[%s11882 + $0x438] sm:$0xff]
    %v12019 = vld [vmem:[%s11882 + $0x440] sm:$0xff]
    %v12020 = vld [vmem:[%s11882 + $0x448] sm:$0xff]
    %v12021 = vld [vmem:[%s11882 + $0x450] sm:$0xff]
    %v12022 = vld [vmem:[%s11882 + $0x458] sm:$0xff]
    %v12023 = vld [vmem:[%s11882 + $0x460] sm:$0xff]
    %v12024 = vld [vmem:[%s11882 + $0x468] sm:$0xff]
    %v12025 = vld [vmem:[%s11882 + $0x470] sm:$0xff]
    %v12026 = vld [vmem:[%s11882 + $0x478] sm:$0xff]
    %v12027 = vld [vmem:[%s11882 + $0x480] sm:$0xff]
    %v12028 = vld [vmem:[%s11882 + $0x488] sm:$0xff]
    %v12029 = vld [vmem:[%s11882 + $0x490] sm:$0xff]
    %v12030 = vld [vmem:[%s11882 + $0x498] sm:$0xff]
    %v12031 = vld [vmem:[%s11882 + $0x4a0] sm:$0xff]
    %v12032 = vld [vmem:[%s11882 + $0x4a8] sm:$0xff]
    %v12033 = vld [vmem:[%s11882 + $0x4b0] sm:$0xff]
    %v12034 = vld [vmem:[%s11882 + $0x4b8] sm:$0xff]
    %v12035 = vld [vmem:[%s11882 + $0x4c0] sm:$0xff]
    %v12036 = vld [vmem:[%s11882 + $0x4c8] sm:$0xff]
    %v12037 = vld [vmem:[%s11882 + $0x4d0] sm:$0xff]
    %v12038 = vld [vmem:[%s11882 + $0x4d8] sm:$0xff]
    %v12039 = vld [vmem:[%s11882 + $0x4e0] sm:$0xff]
    %v12040 = vld [vmem:[%s11882 + $0x4e8] sm:$0xff]
    %v12041 = vld [vmem:[%s11882 + $0x4f0] sm:$0xff]
    %v12042 = vld [vmem:[%s11882 + $0x4f8] sm:$0xff]
    %v12043 = vld [vmem:[%s11882 + $0x500] sm:$0xff]
    %v12044 = vld [vmem:[%s11882 + $0x508] sm:$0xff]
    %v12045 = vld [vmem:[%s11882 + $0x510] sm:$0xff]
    %v12046 = vld [vmem:[%s11882 + $0x518] sm:$0xff]
    %v12047 = vld [vmem:[%s11882 + $0x520] sm:$0xff]
    %v12048 = vld [vmem:[%s11882 + $0x528] sm:$0xff]
    %v12049 = vld [vmem:[%s11882 + $0x530] sm:$0xff]
    %v12050 = vld [vmem:[%s11882 + $0x538] sm:$0xff]
    %v12051 = vld [vmem:[%s11882 + $0x540] sm:$0xff]
    %v12052 = vld [vmem:[%s11882 + $0x548] sm:$0xff]
    %v12053 = vld [vmem:[%s11882 + $0x550] sm:$0xff]
    %v12054 = vld [vmem:[%s11882 + $0x558] sm:$0xff]
    %v12055 = vld [vmem:[%s11882 + $0x560] sm:$0xff]
    %v12056 = vld [vmem:[%s11882 + $0x568] sm:$0xff]
    %v12057 = vld [vmem:[%s11882 + $0x570] sm:$0xff]
    %v12058 = vld [vmem:[%s11882 + $0x578] sm:$0xff]
    %v12059 = vld [vmem:[%s11882 + $0x580] sm:$0xff]
    %v12060 = vld [vmem:[%s11882 + $0x588] sm:$0xff]
    %v12061 = vld [vmem:[%s11882 + $0x590] sm:$0xff]
    %v12062 = vld [vmem:[%s11882 + $0x598] sm:$0xff]
    %v12063 = vld [vmem:[%s11882 + $0x5a0] sm:$0xff]
    %v12064 = vld [vmem:[%s11882 + $0x5a8] sm:$0xff]
    %v12065 = vld [vmem:[%s11882 + $0x5b0] sm:$0xff]
    %v12066 = vld [vmem:[%s11882 + $0x5b8] sm:$0xff]
    %v12067 = vld [vmem:[%s11882 + $0x5c0] sm:$0xff]
    %v12068 = vld [vmem:[%s11882 + $0x5c8] sm:$0xff]
    %v12069 = vld [vmem:[%s11882 + $0x5d0] sm:$0xff]
    %v12070 = vld [vmem:[%s11882 + $0x5d8] sm:$0xff]
    %v12071 = vld [vmem:[%s11882 + $0x5e0] sm:$0xff]
    %v12072 = vld [vmem:[%s11882 + $0x5e8] sm:$0xff]
    %v12073 = vld [vmem:[%s11882 + $0x5f0] sm:$0xff]
    %v12074 = vld [vmem:[%s11882 + $0x5f8] sm:$0xff]
    %v12075 = vld [vmem:[%s11882 + $0x600] sm:$0xff]
    %v12076 = vld [vmem:[%s11882 + $0x608] sm:$0xff]
    %v12077 = vld [vmem:[%s11882 + $0x610] sm:$0xff]
    %v12078 = vld [vmem:[%s11882 + $0x618] sm:$0xff]
    %v12079 = vld [vmem:[%s11882 + $0x620] sm:$0xff]
    %v12080 = vld [vmem:[%s11882 + $0x628] sm:$0xff]
    %v12081 = vld [vmem:[%s11882 + $0x630] sm:$0xff]
    %v12082 = vld [vmem:[%s11882 + $0x638] sm:$0xff]
    %v12083 = vld [vmem:[%s11882 + $0x640] sm:$0xff]
    %v12084 = vld [vmem:[%s11882 + $0x648] sm:$0xff]
    %v12085 = vld [vmem:[%s11882 + $0x650] sm:$0xff]
    %v12086 = vld [vmem:[%s11882 + $0x658] sm:$0xff]
    %v12087 = vld [vmem:[%s11882 + $0x660] sm:$0xff]
    %v12088 = vld [vmem:[%s11882 + $0x668] sm:$0xff]
    %v12089 = vld [vmem:[%s11882 + $0x670] sm:$0xff]
    %v12090 = vld [vmem:[%s11882 + $0x678] sm:$0xff]
    %v12091 = vld [vmem:[%s11882 + $0x680] sm:$0xff]
    %v12092 = vld [vmem:[%s11882 + $0x688] sm:$0xff]
    %v12093 = vld [vmem:[%s11882 + $0x690] sm:$0xff]
    %v12094 = vld [vmem:[%s11882 + $0x698] sm:$0xff]
    %v12095 = vld [vmem:[%s11882 + $0x6a0] sm:$0xff]
    %v12096 = vld [vmem:[%s11882 + $0x6a8] sm:$0xff]
    %v12097 = vld [vmem:[%s11882 + $0x6b0] sm:$0xff]
    %v12098 = vld [vmem:[%s11882 + $0x6b8] sm:$0xff]
    %v12099 = vld [vmem:[%s11882 + $0x6c0] sm:$0xff]
    %v12100 = vld [vmem:[%s11882 + $0x6c8] sm:$0xff]
    %v12101 = vld [vmem:[%s11882 + $0x6d0] sm:$0xff]
    %v12102 = vld [vmem:[%s11882 + $0x6d8] sm:$0xff]
    %v12103 = vld [vmem:[%s11882 + $0x6e0] sm:$0xff]
    %v12104 = vld [vmem:[%s11882 + $0x6e8] sm:$0xff]
    %v12105 = vld [vmem:[%s11882 + $0x6f0] sm:$0xff]
    %v12106 = vld [vmem:[%s11882 + $0x6f8] sm:$0xff]
    %v12107 = vld [vmem:[%s11882 + $0x700] sm:$0xff]
    %v12108 = vld [vmem:[%s11882 + $0x708] sm:$0xff]
    %v12109 = vld [vmem:[%s11882 + $0x710] sm:$0xff]
    %v12110 = vld [vmem:[%s11882 + $0x718] sm:$0xff]
    %v12111 = vld [vmem:[%s11882 + $0x720] sm:$0xff]
    %v12112 = vld [vmem:[%s11882 + $0x728] sm:$0xff]
    %v12113 = vld [vmem:[%s11882 + $0x730] sm:$0xff]
    %v12114 = vld [vmem:[%s11882 + $0x738] sm:$0xff]
    %v12115 = vld [vmem:[%s11882 + $0x740] sm:$0xff]
    %v12116 = vld [vmem:[%s11882 + $0x748] sm:$0xff]
    %v12117 = vld [vmem:[%s11882 + $0x750] sm:$0xff]
    %v12118 = vld [vmem:[%s11882 + $0x758] sm:$0xff]
    %v12119 = vld [vmem:[%s11882 + $0x760] sm:$0xff]
    %v12120 = vld [vmem:[%s11882 + $0x768] sm:$0xff]
    %v12121 = vld [vmem:[%s11882 + $0x770] sm:$0xff]
    %v12122 = vld [vmem:[%s11882 + $0x778] sm:$0xff]
    %s12123 = scalar_lea.vmem [#allocation13], 50
    %v12124 = vld [vmem:[%s12123] sm:$0xff]
    %v12125 = vld [vmem:[%s12123 + $0x8] sm:$0x3]
    %v12128 = vlaneseq
    %v12129 = vshrl.u32 %v12128, 7
    %v12130 = vsub.s32 0, %v12129
    %v12131 = vrot.slane %v12124, %v12130
    %v12132 = vlaneseq
    %v12133 = vshrl.u32 %v12132, 7
    %v12134 = vsub.s32 1, %v12133
    %v12135 = vrot.slane %v12124, %v12134
    %v12136 = vlaneseq
    %v12137 = vshrl.u32 %v12136, 7
    %v12138 = vsub.s32 2, %v12137
    %v12139 = vrot.slane %v12124, %v12138
    %v12140 = vlaneseq
    %v12141 = vshrl.u32 %v12140, 7
    %v12142 = vsub.s32 3, %v12141
    %v12143 = vrot.slane %v12124, %v12142
    %v12144 = vlaneseq
    %v12145 = vshrl.u32 %v12144, 7
    %v12146 = vsub.s32 4, %v12145
    %v12147 = vrot.slane %v12124, %v12146
    %v12148 = vlaneseq
    %v12149 = vshrl.u32 %v12148, 7
    %v12150 = vsub.s32 5, %v12149
    %v12151 = vrot.slane %v12124, %v12150
    %v12152 = vlaneseq
    %v12153 = vshrl.u32 %v12152, 7
    %v12154 = vsub.s32 6, %v12153
    %v12155 = vrot.slane %v12124, %v12154
    %v12156 = vlaneseq
    %v12157 = vshrl.u32 %v12156, 7
    %v12158 = vsub.s32 7, %v12157
    %v12159 = vrot.slane %v12124, %v12158
    %v12160 = vlaneseq
    %v12161 = vshrl.u32 %v12160, 7
    %v12162 = vsub.s32 0, %v12161
    %v12163 = vrot.slane %v12125, %v12162
    %v12164 = vlaneseq
    %v12165 = vshrl.u32 %v12164, 7
    %v12166 = vsub.s32 1, %v12165
    %v12167 = vrot.slane %v12125, %v12166
    %v12418 = vunpack.c.l.b16 %v11883
    %v12419 = vunpack.c.h.b16 %v11883
    %v12420 = vunpack.c.l.b16 %v11884
    %v12421 = vunpack.c.h.b16 %v11884
    %v12422 = vunpack.c.l.b16 %v11885
    %v12423 = vunpack.c.h.b16 %v11885
    %v12424 = vunpack.c.l.b16 %v11886
    %v12425 = vunpack.c.h.b16 %v11886
    %v12426 = vunpack.c.l.b16 %v11887
    %v12427 = vunpack.c.h.b16 %v11887
    %v12428 = vunpack.c.l.b16 %v11888
    %v12429 = vunpack.c.h.b16 %v11888
    %v12430 = vunpack.c.l.b16 %v11889
    %v12431 = vunpack.c.h.b16 %v11889
    %v12432 = vunpack.c.l.b16 %v11890
    %v12433 = vunpack.c.h.b16 %v11890
    %v12434 = vunpack.c.l.b16 %v11891
    %v12435 = vunpack.c.h.b16 %v11891
    %v12436 = vunpack.c.l.b16 %v11892
    %v12437 = vunpack.c.h.b16 %v11892
    %v12438 = vunpack.c.l.b16 %v11893
    %v12439 = vunpack.c.h.b16 %v11893
    %v12440 = vunpack.c.l.b16 %v11894
    %v12441 = vunpack.c.h.b16 %v11894
    %v12442 = vunpack.c.l.b16 %v11895
    %v12443 = vunpack.c.h.b16 %v11895
    %v12444 = vunpack.c.l.b16 %v11896
    %v12445 = vunpack.c.h.b16 %v11896
    %v12446 = vunpack.c.l.b16 %v11897
    %v12447 = vunpack.c.h.b16 %v11897
    %v12448 = vunpack.c.l.b16 %v11898
    %v12449 = vunpack.c.h.b16 %v11898
    %v12450 = vunpack.c.l.b16 %v11899
    %v12451 = vunpack.c.h.b16 %v11899
    %v12452 = vunpack.c.l.b16 %v11900
    %v12453 = vunpack.c.h.b16 %v11900
    %v12454 = vunpack.c.l.b16 %v11901
    %v12455 = vunpack.c.h.b16 %v11901
    %v12456 = vunpack.c.l.b16 %v11902
    %v12457 = vunpack.c.h.b16 %v11902
    %v12458 = vunpack.c.l.b16 %v11903
    %v12459 = vunpack.c.h.b16 %v11903
    %v12460 = vunpack.c.l.b16 %v11904
    %v12461 = vunpack.c.h.b16 %v11904
    %v12462 = vunpack.c.l.b16 %v11905
    %v12463 = vunpack.c.h.b16 %v11905
    %v12464 = vunpack.c.l.b16 %v11906
    %v12465 = vunpack.c.h.b16 %v11906
    %v12466 = vunpack.c.l.b16 %v11907
    %v12467 = vunpack.c.h.b16 %v11907
    %v12468 = vunpack.c.l.b16 %v11908
    %v12469 = vunpack.c.h.b16 %v11908
    %v12470 = vunpack.c.l.b16 %v11909
    %v12471 = vunpack.c.h.b16 %v11909
    %v12472 = vunpack.c.l.b16 %v11910
    %v12473 = vunpack.c.h.b16 %v11910
    %v12474 = vunpack.c.l.b16 %v11911
    %v12475 = vunpack.c.h.b16 %v11911
    %v12476 = vunpack.c.l.b16 %v11912
    %v12477 = vunpack.c.h.b16 %v11912
    %v12478 = vunpack.c.l.b16 %v11913
    %v12479 = vunpack.c.h.b16 %v11913
    %v12480 = vunpack.c.l.b16 %v11914
    %v12481 = vunpack.c.h.b16 %v11914
    %v12482 = vunpack.c.l.b16 %v11915
    %v12483 = vunpack.c.h.b16 %v11915
    %v12484 = vunpack.c.l.b16 %v11916
    %v12485 = vunpack.c.h.b16 %v11916
    %v12486 = vunpack.c.l.b16 %v11917
    %v12487 = vunpack.c.h.b16 %v11917
    %v12488 = vunpack.c.l.b16 %v11918
    %v12489 = vunpack.c.h.b16 %v11918
    %v12490 = vunpack.c.l.b16 %v11919
    %v12491 = vunpack.c.h.b16 %v11919
    %v12492 = vunpack.c.l.b16 %v11920
    %v12493 = vunpack.c.h.b16 %v11920
    %v12494 = vunpack.c.l.b16 %v11921
    %v12495 = vunpack.c.h.b16 %v11921
    %v12496 = vunpack.c.l.b16 %v11922
    %v12497 = vunpack.c.h.b16 %v11922
    %v12498 = vunpack.c.l.b16 %v11923
    %v12499 = vunpack.c.h.b16 %v11923
    %v12500 = vunpack.c.l.b16 %v11924
    %v12501 = vunpack.c.h.b16 %v11924
    %v12502 = vunpack.c.l.b16 %v11925
    %v12503 = vunpack.c.h.b16 %v11925
    %v12504 = vunpack.c.l.b16 %v11926
    %v12505 = vunpack.c.h.b16 %v11926
    %v12506 = vunpack.c.l.b16 %v11927
    %v12507 = vunpack.c.h.b16 %v11927
    %v12508 = vunpack.c.l.b16 %v11928
    %v12509 = vunpack.c.h.b16 %v11928
    %v12510 = vunpack.c.l.b16 %v11929
    %v12511 = vunpack.c.h.b16 %v11929
    %v12512 = vunpack.c.l.b16 %v11930
    %v12513 = vunpack.c.h.b16 %v11930
    %v12514 = vunpack.c.l.b16 %v11931
    %v12515 = vunpack.c.h.b16 %v11931
    %v12516 = vunpack.c.l.b16 %v11932
    %v12517 = vunpack.c.h.b16 %v11932
    %v12518 = vunpack.c.l.b16 %v11933
    %v12519 = vunpack.c.h.b16 %v11933
    %v12520 = vunpack.c.l.b16 %v11934
    %v12521 = vunpack.c.h.b16 %v11934
    %v12522 = vunpack.c.l.b16 %v11935
    %v12523 = vunpack.c.h.b16 %v11935
    %v12524 = vunpack.c.l.b16 %v11936
    %v12525 = vunpack.c.h.b16 %v11936
    %v12526 = vunpack.c.l.b16 %v11937
    %v12527 = vunpack.c.h.b16 %v11937
    %v12528 = vunpack.c.l.b16 %v11938
    %v12529 = vunpack.c.h.b16 %v11938
    %v12530 = vunpack.c.l.b16 %v11939
    %v12531 = vunpack.c.h.b16 %v11939
    %v12532 = vunpack.c.l.b16 %v11940
    %v12533 = vunpack.c.h.b16 %v11940
    %v12534 = vunpack.c.l.b16 %v11941
    %v12535 = vunpack.c.h.b16 %v11941
    %v12536 = vunpack.c.l.b16 %v11942
    %v12537 = vunpack.c.h.b16 %v11942
    %v12538 = vunpack.c.l.b16 %v11943
    %v12539 = vunpack.c.h.b16 %v11943
    %v12540 = vunpack.c.l.b16 %v11944
    %v12541 = vunpack.c.h.b16 %v11944
    %v12542 = vunpack.c.l.b16 %v11945
    %v12543 = vunpack.c.h.b16 %v11945
    %v12544 = vunpack.c.l.b16 %v11946
    %v12545 = vunpack.c.h.b16 %v11946
    %v12546 = vunpack.c.l.b16 %v11947
    %v12547 = vunpack.c.h.b16 %v11947
    %v12548 = vunpack.c.l.b16 %v11948
    %v12549 = vunpack.c.h.b16 %v11948
    %v12550 = vunpack.c.l.b16 %v11949
    %v12551 = vunpack.c.h.b16 %v11949
    %v12552 = vunpack.c.l.b16 %v11950
    %v12553 = vunpack.c.h.b16 %v11950
    %v12554 = vunpack.c.l.b16 %v11951
    %v12555 = vunpack.c.h.b16 %v11951
    %v12556 = vunpack.c.l.b16 %v11952
    %v12557 = vunpack.c.h.b16 %v11952
    %v12558 = vunpack.c.l.b16 %v11953
    %v12559 = vunpack.c.h.b16 %v11953
    %v12560 = vunpack.c.l.b16 %v11954
    %v12561 = vunpack.c.h.b16 %v11954
    %v12562 = vunpack.c.l.b16 %v11955
    %v12563 = vunpack.c.h.b16 %v11955
    %v12564 = vunpack.c.l.b16 %v11956
    %v12565 = vunpack.c.h.b16 %v11956
    %v12566 = vunpack.c.l.b16 %v11957
    %v12567 = vunpack.c.h.b16 %v11957
    %v12568 = vunpack.c.l.b16 %v11958
    %v12569 = vunpack.c.h.b16 %v11958
    %v12570 = vunpack.c.l.b16 %v11959
    %v12571 = vunpack.c.h.b16 %v11959
    %v12572 = vunpack.c.l.b16 %v11960
    %v12573 = vunpack.c.h.b16 %v11960
    %v12574 = vunpack.c.l.b16 %v11961
    %v12575 = vunpack.c.h.b16 %v11961
    %v12576 = vunpack.c.l.b16 %v11962
    %v12577 = vunpack.c.h.b16 %v11962
    %v12578 = vunpack.c.l.b16 %v11963
    %v12579 = vunpack.c.h.b16 %v11963
    %v12580 = vunpack.c.l.b16 %v11964
    %v12581 = vunpack.c.h.b16 %v11964
    %v12582 = vunpack.c.l.b16 %v11965
    %v12583 = vunpack.c.h.b16 %v11965
    %v12584 = vunpack.c.l.b16 %v11966
    %v12585 = vunpack.c.h.b16 %v11966
    %v12586 = vunpack.c.l.b16 %v11967
    %v12587 = vunpack.c.h.b16 %v11967
    %v12588 = vunpack.c.l.b16 %v11968
    %v12589 = vunpack.c.h.b16 %v11968
    %v12590 = vunpack.c.l.b16 %v11969
    %v12591 = vunpack.c.h.b16 %v11969
    %v12592 = vunpack.c.l.b16 %v11970
    %v12593 = vunpack.c.h.b16 %v11970
    %v12594 = vunpack.c.l.b16 %v11971
    %v12595 = vunpack.c.h.b16 %v11971
    %v12596 = vunpack.c.l.b16 %v11972
    %v12597 = vunpack.c.h.b16 %v11972
    %v12598 = vunpack.c.l.b16 %v11973
    %v12599 = vunpack.c.h.b16 %v11973
    %v12600 = vunpack.c.l.b16 %v11974
    %v12601 = vunpack.c.h.b16 %v11974
    %v12602 = vunpack.c.l.b16 %v11975
    %v12603 = vunpack.c.h.b16 %v11975
    %v12604 = vunpack.c.l.b16 %v11976
    %v12605 = vunpack.c.h.b16 %v11976
    %v12606 = vunpack.c.l.b16 %v11977
    %v12607 = vunpack.c.h.b16 %v11977
    %v12608 = vunpack.c.l.b16 %v11978
    %v12609 = vunpack.c.h.b16 %v11978
    %v12610 = vunpack.c.l.b16 %v11979
    %v12611 = vunpack.c.h.b16 %v11979
    %v12612 = vunpack.c.l.b16 %v11980
    %v12613 = vunpack.c.h.b16 %v11980
    %v12614 = vunpack.c.l.b16 %v11981
    %v12615 = vunpack.c.h.b16 %v11981
    %v12616 = vunpack.c.l.b16 %v11982
    %v12617 = vunpack.c.h.b16 %v11982
    %v12618 = vunpack.c.l.b16 %v11983
    %v12619 = vunpack.c.h.b16 %v11983
    %v12620 = vunpack.c.l.b16 %v11984
    %v12621 = vunpack.c.h.b16 %v11984
    %v12622 = vunpack.c.l.b16 %v11985
    %v12623 = vunpack.c.h.b16 %v11985
    %v12624 = vunpack.c.l.b16 %v11986
    %v12625 = vunpack.c.h.b16 %v11986
    %v12626 = vunpack.c.l.b16 %v11987
    %v12627 = vunpack.c.h.b16 %v11987
    %v12628 = vunpack.c.l.b16 %v11988
    %v12629 = vunpack.c.h.b16 %v11988
    %v12630 = vunpack.c.l.b16 %v11989
    %v12631 = vunpack.c.h.b16 %v11989
    %v12632 = vunpack.c.l.b16 %v11990
    %v12633 = vunpack.c.h.b16 %v11990
    %v12634 = vunpack.c.l.b16 %v11991
    %v12635 = vunpack.c.h.b16 %v11991
    %v12636 = vunpack.c.l.b16 %v11992
    %v12637 = vunpack.c.h.b16 %v11992
    %v12638 = vunpack.c.l.b16 %v11993
    %v12639 = vunpack.c.h.b16 %v11993
    %v12640 = vunpack.c.l.b16 %v11994
    %v12641 = vunpack.c.h.b16 %v11994
    %v12642 = vunpack.c.l.b16 %v11995
    %v12643 = vunpack.c.h.b16 %v11995
    %v12644 = vunpack.c.l.b16 %v11996
    %v12645 = vunpack.c.h.b16 %v11996
    %v12646 = vunpack.c.l.b16 %v11997
    %v12647 = vunpack.c.h.b16 %v11997
    %v12648 = vunpack.c.l.b16 %v11998
    %v12649 = vunpack.c.h.b16 %v11998
    %v12650 = vunpack.c.l.b16 %v11999
    %v12651 = vunpack.c.h.b16 %v11999
    %v12652 = vunpack.c.l.b16 %v12000
    %v12653 = vunpack.c.h.b16 %v12000
    %v12654 = vunpack.c.l.b16 %v12001
    %v12655 = vunpack.c.h.b16 %v12001
    %v12656 = vunpack.c.l.b16 %v12002
    %v12657 = vunpack.c.h.b16 %v12002
    %v12658 = vunpack.c.l.b16 %v12003
    %v12659 = vunpack.c.h.b16 %v12003
    %v12660 = vunpack.c.l.b16 %v12004
    %v12661 = vunpack.c.h.b16 %v12004
    %v12662 = vunpack.c.l.b16 %v12005
    %v12663 = vunpack.c.h.b16 %v12005
    %v12664 = vunpack.c.l.b16 %v12006
    %v12665 = vunpack.c.h.b16 %v12006
    %v12666 = vunpack.c.l.b16 %v12007
    %v12667 = vunpack.c.h.b16 %v12007
    %v12668 = vunpack.c.l.b16 %v12008
    %v12669 = vunpack.c.h.b16 %v12008
    %v12670 = vunpack.c.l.b16 %v12009
    %v12671 = vunpack.c.h.b16 %v12009
    %v12672 = vunpack.c.l.b16 %v12010
    %v12673 = vunpack.c.h.b16 %v12010
    %v12674 = vunpack.c.l.b16 %v12011
    %v12675 = vunpack.c.h.b16 %v12011
    %v12676 = vunpack.c.l.b16 %v12012
    %v12677 = vunpack.c.h.b16 %v12012
    %v12678 = vunpack.c.l.b16 %v12013
    %v12679 = vunpack.c.h.b16 %v12013
    %v12680 = vunpack.c.l.b16 %v12014
    %v12681 = vunpack.c.h.b16 %v12014
    %v12682 = vunpack.c.l.b16 %v12015
    %v12683 = vunpack.c.h.b16 %v12015
    %v12684 = vunpack.c.l.b16 %v12016
    %v12685 = vunpack.c.h.b16 %v12016
    %v12686 = vunpack.c.l.b16 %v12017
    %v12687 = vunpack.c.h.b16 %v12017
    %v12688 = vunpack.c.l.b16 %v12018
    %v12689 = vunpack.c.h.b16 %v12018
    %v12690 = vunpack.c.l.b16 %v12019
    %v12691 = vunpack.c.h.b16 %v12019
    %v12692 = vunpack.c.l.b16 %v12020
    %v12693 = vunpack.c.h.b16 %v12020
    %v12694 = vunpack.c.l.b16 %v12021
    %v12695 = vunpack.c.h.b16 %v12021
    %v12696 = vunpack.c.l.b16 %v12022
    %v12697 = vunpack.c.h.b16 %v12022
    %v12698 = vunpack.c.l.b16 %v12023
    %v12699 = vunpack.c.h.b16 %v12023
    %v12700 = vunpack.c.l.b16 %v12024
    %v12701 = vunpack.c.h.b16 %v12024
    %v12702 = vunpack.c.l.b16 %v12025
    %v12703 = vunpack.c.h.b16 %v12025
    %v12704 = vunpack.c.l.b16 %v12026
    %v12705 = vunpack.c.h.b16 %v12026
    %v12706 = vunpack.c.l.b16 %v12027
    %v12707 = vunpack.c.h.b16 %v12027
    %v12708 = vunpack.c.l.b16 %v12028
    %v12709 = vunpack.c.h.b16 %v12028
    %v12710 = vunpack.c.l.b16 %v12029
    %v12711 = vunpack.c.h.b16 %v12029
    %v12712 = vunpack.c.l.b16 %v12030
    %v12713 = vunpack.c.h.b16 %v12030
    %v12714 = vunpack.c.l.b16 %v12031
    %v12715 = vunpack.c.h.b16 %v12031
    %v12716 = vunpack.c.l.b16 %v12032
    %v12717 = vunpack.c.h.b16 %v12032
    %v12718 = vunpack.c.l.b16 %v12033
    %v12719 = vunpack.c.h.b16 %v12033
    %v12720 = vunpack.c.l.b16 %v12034
    %v12721 = vunpack.c.h.b16 %v12034
    %v12722 = vunpack.c.l.b16 %v12035
    %v12723 = vunpack.c.h.b16 %v12035
    %v12724 = vunpack.c.l.b16 %v12036
    %v12725 = vunpack.c.h.b16 %v12036
    %v12726 = vunpack.c.l.b16 %v12037
    %v12727 = vunpack.c.h.b16 %v12037
    %v12728 = vunpack.c.l.b16 %v12038
    %v12729 = vunpack.c.h.b16 %v12038
    %v12730 = vunpack.c.l.b16 %v12039
    %v12731 = vunpack.c.h.b16 %v12039
    %v12732 = vunpack.c.l.b16 %v12040
    %v12733 = vunpack.c.h.b16 %v12040
    %v12734 = vunpack.c.l.b16 %v12041
    %v12735 = vunpack.c.h.b16 %v12041
    %v12736 = vunpack.c.l.b16 %v12042
    %v12737 = vunpack.c.h.b16 %v12042
    %v12738 = vunpack.c.l.b16 %v12043
    %v12739 = vunpack.c.h.b16 %v12043
    %v12740 = vunpack.c.l.b16 %v12044
    %v12741 = vunpack.c.h.b16 %v12044
    %v12742 = vunpack.c.l.b16 %v12045
    %v12743 = vunpack.c.h.b16 %v12045
    %v12744 = vunpack.c.l.b16 %v12046
    %v12745 = vunpack.c.h.b16 %v12046
    %v12746 = vunpack.c.l.b16 %v12047
    %v12747 = vunpack.c.h.b16 %v12047
    %v12748 = vunpack.c.l.b16 %v12048
    %v12749 = vunpack.c.h.b16 %v12048
    %v12750 = vunpack.c.l.b16 %v12049
    %v12751 = vunpack.c.h.b16 %v12049
    %v12752 = vunpack.c.l.b16 %v12050
    %v12753 = vunpack.c.h.b16 %v12050
    %v12754 = vunpack.c.l.b16 %v12051
    %v12755 = vunpack.c.h.b16 %v12051
    %v12756 = vunpack.c.l.b16 %v12052
    %v12757 = vunpack.c.h.b16 %v12052
    %v12758 = vunpack.c.l.b16 %v12053
    %v12759 = vunpack.c.h.b16 %v12053
    %v12760 = vunpack.c.l.b16 %v12054
    %v12761 = vunpack.c.h.b16 %v12054
    %v12762 = vunpack.c.l.b16 %v12055
    %v12763 = vunpack.c.h.b16 %v12055
    %v12764 = vunpack.c.l.b16 %v12056
    %v12765 = vunpack.c.h.b16 %v12056
    %v12766 = vunpack.c.l.b16 %v12057
    %v12767 = vunpack.c.h.b16 %v12057
    %v12768 = vunpack.c.l.b16 %v12058
    %v12769 = vunpack.c.h.b16 %v12058
    %v12770 = vunpack.c.l.b16 %v12059
    %v12771 = vunpack.c.h.b16 %v12059
    %v12772 = vunpack.c.l.b16 %v12060
    %v12773 = vunpack.c.h.b16 %v12060
    %v12774 = vunpack.c.l.b16 %v12061
    %v12775 = vunpack.c.h.b16 %v12061
    %v12776 = vunpack.c.l.b16 %v12062
    %v12777 = vunpack.c.h.b16 %v12062
    %v12778 = vunpack.c.l.b16 %v12063
    %v12779 = vunpack.c.h.b16 %v12063
    %v12780 = vunpack.c.l.b16 %v12064
    %v12781 = vunpack.c.h.b16 %v12064
    %v12782 = vunpack.c.l.b16 %v12065
    %v12783 = vunpack.c.h.b16 %v12065
    %v12784 = vunpack.c.l.b16 %v12066
    %v12785 = vunpack.c.h.b16 %v12066
    %v12786 = vunpack.c.l.b16 %v12067
    %v12787 = vunpack.c.h.b16 %v12067
    %v12788 = vunpack.c.l.b16 %v12068
    %v12789 = vunpack.c.h.b16 %v12068
    %v12790 = vunpack.c.l.b16 %v12069
    %v12791 = vunpack.c.h.b16 %v12069
    %v12792 = vunpack.c.l.b16 %v12070
    %v12793 = vunpack.c.h.b16 %v12070
    %v12794 = vunpack.c.l.b16 %v12071
    %v12795 = vunpack.c.h.b16 %v12071
    %v12796 = vunpack.c.l.b16 %v12072
    %v12797 = vunpack.c.h.b16 %v12072
    %v12798 = vunpack.c.l.b16 %v12073
    %v12799 = vunpack.c.h.b16 %v12073
    %v12800 = vunpack.c.l.b16 %v12074
    %v12801 = vunpack.c.h.b16 %v12074
    %v12802 = vunpack.c.l.b16 %v12075
    %v12803 = vunpack.c.h.b16 %v12075
    %v12804 = vunpack.c.l.b16 %v12076
    %v12805 = vunpack.c.h.b16 %v12076
    %v12806 = vunpack.c.l.b16 %v12077
    %v12807 = vunpack.c.h.b16 %v12077
    %v12808 = vunpack.c.l.b16 %v12078
    %v12809 = vunpack.c.h.b16 %v12078
    %v12810 = vunpack.c.l.b16 %v12079
    %v12811 = vunpack.c.h.b16 %v12079
    %v12812 = vunpack.c.l.b16 %v12080
    %v12813 = vunpack.c.h.b16 %v12080
    %v12814 = vunpack.c.l.b16 %v12081
    %v12815 = vunpack.c.h.b16 %v12081
    %v12816 = vunpack.c.l.b16 %v12082
    %v12817 = vunpack.c.h.b16 %v12082
    %v12818 = vunpack.c.l.b16 %v12083
    %v12819 = vunpack.c.h.b16 %v12083
    %v12820 = vunpack.c.l.b16 %v12084
    %v12821 = vunpack.c.h.b16 %v12084
    %v12822 = vunpack.c.l.b16 %v12085
    %v12823 = vunpack.c.h.b16 %v12085
    %v12824 = vunpack.c.l.b16 %v12086
    %v12825 = vunpack.c.h.b16 %v12086
    %v12826 = vunpack.c.l.b16 %v12087
    %v12827 = vunpack.c.h.b16 %v12087
    %v12828 = vunpack.c.l.b16 %v12088
    %v12829 = vunpack.c.h.b16 %v12088
    %v12830 = vunpack.c.l.b16 %v12089
    %v12831 = vunpack.c.h.b16 %v12089
    %v12832 = vunpack.c.l.b16 %v12090
    %v12833 = vunpack.c.h.b16 %v12090
    %v12834 = vunpack.c.l.b16 %v12091
    %v12835 = vunpack.c.h.b16 %v12091
    %v12836 = vunpack.c.l.b16 %v12092
    %v12837 = vunpack.c.h.b16 %v12092
    %v12838 = vunpack.c.l.b16 %v12093
    %v12839 = vunpack.c.h.b16 %v12093
    %v12840 = vunpack.c.l.b16 %v12094
    %v12841 = vunpack.c.h.b16 %v12094
    %v12842 = vunpack.c.l.b16 %v12095
    %v12843 = vunpack.c.h.b16 %v12095
    %v12844 = vunpack.c.l.b16 %v12096
    %v12845 = vunpack.c.h.b16 %v12096
    %v12846 = vunpack.c.l.b16 %v12097
    %v12847 = vunpack.c.h.b16 %v12097
    %v12848 = vunpack.c.l.b16 %v12098
    %v12849 = vunpack.c.h.b16 %v12098
    %v12850 = vunpack.c.l.b16 %v12099
    %v12851 = vunpack.c.h.b16 %v12099
    %v12852 = vunpack.c.l.b16 %v12100
    %v12853 = vunpack.c.h.b16 %v12100
    %v12854 = vunpack.c.l.b16 %v12101
    %v12855 = vunpack.c.h.b16 %v12101
    %v12856 = vunpack.c.l.b16 %v12102
    %v12857 = vunpack.c.h.b16 %v12102
    %v12858 = vunpack.c.l.b16 %v12103
    %v12859 = vunpack.c.h.b16 %v12103
    %v12860 = vunpack.c.l.b16 %v12104
    %v12861 = vunpack.c.h.b16 %v12104
    %v12862 = vunpack.c.l.b16 %v12105
    %v12863 = vunpack.c.h.b16 %v12105
    %v12864 = vunpack.c.l.b16 %v12106
    %v12865 = vunpack.c.h.b16 %v12106
    %v12866 = vunpack.c.l.b16 %v12107
    %v12867 = vunpack.c.h.b16 %v12107
    %v12868 = vunpack.c.l.b16 %v12108
    %v12869 = vunpack.c.h.b16 %v12108
    %v12870 = vunpack.c.l.b16 %v12109
    %v12871 = vunpack.c.h.b16 %v12109
    %v12872 = vunpack.c.l.b16 %v12110
    %v12873 = vunpack.c.h.b16 %v12110
    %v12874 = vunpack.c.l.b16 %v12111
    %v12875 = vunpack.c.h.b16 %v12111
    %v12876 = vunpack.c.l.b16 %v12112
    %v12877 = vunpack.c.h.b16 %v12112
    %v12878 = vunpack.c.l.b16 %v12113
    %v12879 = vunpack.c.h.b16 %v12113
    %v12880 = vunpack.c.l.b16 %v12114
    %v12881 = vunpack.c.h.b16 %v12114
    %v12882 = vunpack.c.l.b16 %v12115
    %v12883 = vunpack.c.h.b16 %v12115
    %v12884 = vunpack.c.l.b16 %v12116
    %v12885 = vunpack.c.h.b16 %v12116
    %v12886 = vunpack.c.l.b16 %v12117
    %v12887 = vunpack.c.h.b16 %v12117
    %v12888 = vunpack.c.l.b16 %v12118
    %v12889 = vunpack.c.h.b16 %v12118
    %v12890 = vunpack.c.l.b16 %v12119
    %v12891 = vunpack.c.h.b16 %v12119
    %v12892 = vunpack.c.l.b16 %v12120
    %v12893 = vunpack.c.h.b16 %v12120
    %v12894 = vunpack.c.l.b16 %v12121
    %v12895 = vunpack.c.h.b16 %v12121
    %v12896 = vunpack.c.l.b16 %v12122
    %v12897 = vunpack.c.h.b16 %v12122
    %v12898 = vpack.c.b16 %v12428, %v12418
    %v12899 = vpack.c.b16 %v12429, %v12419
    %v12900 = vpack.c.b16 %v12430, %v12420
    %v12901 = vpack.c.b16 %v12431, %v12421
    %v12902 = vpack.c.b16 %v12432, %v12422
    %v12903 = vpack.c.b16 %v12433, %v12423
    %v12904 = vpack.c.b16 %v12434, %v12424
    %v12905 = vpack.c.b16 %v12435, %v12425
    %v12906 = vpack.c.b16 %v12436, %v12426
    %v12907 = vpack.c.b16 %v12437, %v12427
    %v12908 = vpack.c.b16 %v12448, %v12438
    %v12909 = vpack.c.b16 %v12449, %v12439
    %v12910 = vpack.c.b16 %v12450, %v12440
    %v12911 = vpack.c.b16 %v12451, %v12441
    %v12912 = vpack.c.b16 %v12452, %v12442
    %v12913 = vpack.c.b16 %v12453, %v12443
    %v12914 = vpack.c.b16 %v12454, %v12444
    %v12915 = vpack.c.b16 %v12455, %v12445
    %v12916 = vpack.c.b16 %v12456, %v12446
    %v12917 = vpack.c.b16 %v12457, %v12447
    %v12918 = vpack.c.b16 %v12468, %v12458
    %v12919 = vpack.c.b16 %v12469, %v12459
    %v12920 = vpack.c.b16 %v12470, %v12460
    %v12921 = vpack.c.b16 %v12471, %v12461
    %v12922 = vpack.c.b16 %v12472, %v12462
    %v12923 = vpack.c.b16 %v12473, %v12463
    %v12924 = vpack.c.b16 %v12474, %v12464
    %v12925 = vpack.c.b16 %v12475, %v12465
    %v12926 = vpack.c.b16 %v12476, %v12466
    %v12927 = vpack.c.b16 %v12477, %v12467
    %v12928 = vpack.c.b16 %v12488, %v12478
    %v12929 = vpack.c.b16 %v12489, %v12479
    %v12930 = vpack.c.b16 %v12490, %v12480
    %v12931 = vpack.c.b16 %v12491, %v12481
    %v12932 = vpack.c.b16 %v12492, %v12482
    %v12933 = vpack.c.b16 %v12493, %v12483
    %v12934 = vpack.c.b16 %v12494, %v12484
    %v12935 = vpack.c.b16 %v12495, %v12485
    %v12936 = vpack.c.b16 %v12496, %v12486
    %v12937 = vpack.c.b16 %v12497, %v12487
    %v12938 = vpack.c.b16 %v12508, %v12498
    %v12939 = vpack.c.b16 %v12509, %v12499
    %v12940 = vpack.c.b16 %v12510, %v12500
    %v12941 = vpack.c.b16 %v12511, %v12501
    %v12942 = vpack.c.b16 %v12512, %v12502
    %v12943 = vpack.c.b16 %v12513, %v12503
    %v12944 = vpack.c.b16 %v12514, %v12504
    %v12945 = vpack.c.b16 %v12515, %v12505
    %v12946 = vpack.c.b16 %v12516, %v12506
    %v12947 = vpack.c.b16 %v12517, %v12507
    %v12948 = vpack.c.b16 %v12528, %v12518
    %v12949 = vpack.c.b16 %v12529, %v12519
    %v12950 = vpack.c.b16 %v12530, %v12520
    %v12951 = vpack.c.b16 %v12531, %v12521
    %v12952 = vpack.c.b16 %v12532, %v12522
    %v12953 = vpack.c.b16 %v12533, %v12523
    %v12954 = vpack.c.b16 %v12534, %v12524
    %v12955 = vpack.c.b16 %v12535, %v12525
    %v12956 = vpack.c.b16 %v12536, %v12526
    %v12957 = vpack.c.b16 %v12537, %v12527
    %v12958 = vpack.c.b16 %v12548, %v12538
    %v12959 = vpack.c.b16 %v12549, %v12539
    %v12960 = vpack.c.b16 %v12550, %v12540
    %v12961 = vpack.c.b16 %v12551, %v12541
    %v12962 = vpack.c.b16 %v12552, %v12542
    %v12963 = vpack.c.b16 %v12553, %v12543
    %v12964 = vpack.c.b16 %v12554, %v12544
    %v12965 = vpack.c.b16 %v12555, %v12545
    %v12966 = vpack.c.b16 %v12556, %v12546
    %v12967 = vpack.c.b16 %v12557, %v12547
    %v12968 = vpack.c.b16 %v12568, %v12558
    %v12969 = vpack.c.b16 %v12569, %v12559
    %v12970 = vpack.c.b16 %v12570, %v12560
    %v12971 = vpack.c.b16 %v12571, %v12561
    %v12972 = vpack.c.b16 %v12572, %v12562
    %v12973 = vpack.c.b16 %v12573, %v12563
    %v12974 = vpack.c.b16 %v12574, %v12564
    %v12975 = vpack.c.b16 %v12575, %v12565
    %v12976 = vpack.c.b16 %v12576, %v12566
    %v12977 = vpack.c.b16 %v12577, %v12567
    %v12978 = vpack.c.b16 %v12588, %v12578
    %v12979 = vpack.c.b16 %v12589, %v12579
    %v12980 = vpack.c.b16 %v12590, %v12580
    %v12981 = vpack.c.b16 %v12591, %v12581
    %v12982 = vpack.c.b16 %v12592, %v12582
    %v12983 = vpack.c.b16 %v12593, %v12583
    %v12984 = vpack.c.b16 %v12594, %v12584
    %v12985 = vpack.c.b16 %v12595, %v12585
    %v12986 = vpack.c.b16 %v12596, %v12586
    %v12987 = vpack.c.b16 %v12597, %v12587
    %v12988 = vpack.c.b16 %v12608, %v12598
    %v12989 = vpack.c.b16 %v12609, %v12599
    %v12990 = vpack.c.b16 %v12610, %v12600
    %v12991 = vpack.c.b16 %v12611, %v12601
    %v12992 = vpack.c.b16 %v12612, %v12602
    %v12993 = vpack.c.b16 %v12613, %v12603
    %v12994 = vpack.c.b16 %v12614, %v12604
    %v12995 = vpack.c.b16 %v12615, %v12605
    %v12996 = vpack.c.b16 %v12616, %v12606
    %v12997 = vpack.c.b16 %v12617, %v12607
    %v12998 = vpack.c.b16 %v12628, %v12618
    %v12999 = vpack.c.b16 %v12629, %v12619
    %v13000 = vpack.c.b16 %v12630, %v12620
    %v13001 = vpack.c.b16 %v12631, %v12621
    %v13002 = vpack.c.b16 %v12632, %v12622
    %v13003 = vpack.c.b16 %v12633, %v12623
    %v13004 = vpack.c.b16 %v12634, %v12624
    %v13005 = vpack.c.b16 %v12635, %v12625
    %v13006 = vpack.c.b16 %v12636, %v12626
    %v13007 = vpack.c.b16 %v12637, %v12627
    %v13008 = vpack.c.b16 %v12648, %v12638
    %v13009 = vpack.c.b16 %v12649, %v12639
    %v13010 = vpack.c.b16 %v12650, %v12640
    %v13011 = vpack.c.b16 %v12651, %v12641
    %v13012 = vpack.c.b16 %v12652, %v12642
    %v13013 = vpack.c.b16 %v12653, %v12643
    %v13014 = vpack.c.b16 %v12654, %v12644
    %v13015 = vpack.c.b16 %v12655, %v12645
    %v13016 = vpack.c.b16 %v12656, %v12646
    %v13017 = vpack.c.b16 %v12657, %v12647
    %v13018 = vpack.c.b16 %v12668, %v12658
    %v13019 = vpack.c.b16 %v12669, %v12659
    %v13020 = vpack.c.b16 %v12670, %v12660
    %v13021 = vpack.c.b16 %v12671, %v12661
    %v13022 = vpack.c.b16 %v12672, %v12662
    %v13023 = vpack.c.b16 %v12673, %v12663
    %v13024 = vpack.c.b16 %v12674, %v12664
    %v13025 = vpack.c.b16 %v12675, %v12665
    %v13026 = vpack.c.b16 %v12676, %v12666
    %v13027 = vpack.c.b16 %v12677, %v12667
    %v13028 = vpack.c.b16 %v12688, %v12678
    %v13029 = vpack.c.b16 %v12689, %v12679
    %v13030 = vpack.c.b16 %v12690, %v12680
    %v13031 = vpack.c.b16 %v12691, %v12681
    %v13032 = vpack.c.b16 %v12692, %v12682
    %v13033 = vpack.c.b16 %v12693, %v12683
    %v13034 = vpack.c.b16 %v12694, %v12684
    %v13035 = vpack.c.b16 %v12695, %v12685
    %v13036 = vpack.c.b16 %v12696, %v12686
    %v13037 = vpack.c.b16 %v12697, %v12687
    %v13038 = vpack.c.b16 %v12708, %v12698
    %v13039 = vpack.c.b16 %v12709, %v12699
    %v13040 = vpack.c.b16 %v12710, %v12700
    %v13041 = vpack.c.b16 %v12711, %v12701
    %v13042 = vpack.c.b16 %v12712, %v12702
    %v13043 = vpack.c.b16 %v12713, %v12703
    %v13044 = vpack.c.b16 %v12714, %v12704
    %v13045 = vpack.c.b16 %v12715, %v12705
    %v13046 = vpack.c.b16 %v12716, %v12706
    %v13047 = vpack.c.b16 %v12717, %v12707
    %v13048 = vpack.c.b16 %v12728, %v12718
    %v13049 = vpack.c.b16 %v12729, %v12719
    %v13050 = vpack.c.b16 %v12730, %v12720
    %v13051 = vpack.c.b16 %v12731, %v12721
    %v13052 = vpack.c.b16 %v12732, %v12722
    %v13053 = vpack.c.b16 %v12733, %v12723
    %v13054 = vpack.c.b16 %v12734, %v12724
    %v13055 = vpack.c.b16 %v12735, %v12725
    %v13056 = vpack.c.b16 %v12736, %v12726
    %v13057 = vpack.c.b16 %v12737, %v12727
    %v13058 = vpack.c.b16 %v12748, %v12738
    %v13059 = vpack.c.b16 %v12749, %v12739
    %v13060 = vpack.c.b16 %v12750, %v12740
    %v13061 = vpack.c.b16 %v12751, %v12741
    %v13062 = vpack.c.b16 %v12752, %v12742
    %v13063 = vpack.c.b16 %v12753, %v12743
    %v13064 = vpack.c.b16 %v12754, %v12744
    %v13065 = vpack.c.b16 %v12755, %v12745
    %v13066 = vpack.c.b16 %v12756, %v12746
    %v13067 = vpack.c.b16 %v12757, %v12747
    %v13068 = vpack.c.b16 %v12768, %v12758
    %v13069 = vpack.c.b16 %v12769, %v12759
    %v13070 = vpack.c.b16 %v12770, %v12760
    %v13071 = vpack.c.b16 %v12771, %v12761
    %v13072 = vpack.c.b16 %v12772, %v12762
    %v13073 = vpack.c.b16 %v12773, %v12763
    %v13074 = vpack.c.b16 %v12774, %v12764
    %v13075 = vpack.c.b16 %v12775, %v12765
    %v13076 = vpack.c.b16 %v12776, %v12766
    %v13077 = vpack.c.b16 %v12777, %v12767
    %v13078 = vpack.c.b16 %v12788, %v12778
    %v13079 = vpack.c.b16 %v12789, %v12779
    %v13080 = vpack.c.b16 %v12790, %v12780
    %v13081 = vpack.c.b16 %v12791, %v12781
    %v13082 = vpack.c.b16 %v12792, %v12782
    %v13083 = vpack.c.b16 %v12793, %v12783
    %v13084 = vpack.c.b16 %v12794, %v12784
    %v13085 = vpack.c.b16 %v12795, %v12785
    %v13086 = vpack.c.b16 %v12796, %v12786
    %v13087 = vpack.c.b16 %v12797, %v12787
    %v13088 = vpack.c.b16 %v12808, %v12798
    %v13089 = vpack.c.b16 %v12809, %v12799
    %v13090 = vpack.c.b16 %v12810, %v12800
    %v13091 = vpack.c.b16 %v12811, %v12801
    %v13092 = vpack.c.b16 %v12812, %v12802
    %v13093 = vpack.c.b16 %v12813, %v12803
    %v13094 = vpack.c.b16 %v12814, %v12804
    %v13095 = vpack.c.b16 %v12815, %v12805
    %v13096 = vpack.c.b16 %v12816, %v12806
    %v13097 = vpack.c.b16 %v12817, %v12807
    %v13098 = vpack.c.b16 %v12828, %v12818
    %v13099 = vpack.c.b16 %v12829, %v12819
    %v13100 = vpack.c.b16 %v12830, %v12820
    %v13101 = vpack.c.b16 %v12831, %v12821
    %v13102 = vpack.c.b16 %v12832, %v12822
    %v13103 = vpack.c.b16 %v12833, %v12823
    %v13104 = vpack.c.b16 %v12834, %v12824
    %v13105 = vpack.c.b16 %v12835, %v12825
    %v13106 = vpack.c.b16 %v12836, %v12826
    %v13107 = vpack.c.b16 %v12837, %v12827
    %v13108 = vpack.c.b16 %v12848, %v12838
    %v13109 = vpack.c.b16 %v12849, %v12839
    %v13110 = vpack.c.b16 %v12850, %v12840
    %v13111 = vpack.c.b16 %v12851, %v12841
    %v13112 = vpack.c.b16 %v12852, %v12842
    %v13113 = vpack.c.b16 %v12853, %v12843
    %v13114 = vpack.c.b16 %v12854, %v12844
    %v13115 = vpack.c.b16 %v12855, %v12845
    %v13116 = vpack.c.b16 %v12856, %v12846
    %v13117 = vpack.c.b16 %v12857, %v12847
    %v13118 = vpack.c.b16 %v12868, %v12858
    %v13119 = vpack.c.b16 %v12869, %v12859
    %v13120 = vpack.c.b16 %v12870, %v12860
    %v13121 = vpack.c.b16 %v12871, %v12861
    %v13122 = vpack.c.b16 %v12872, %v12862
    %v13123 = vpack.c.b16 %v12873, %v12863
    %v13124 = vpack.c.b16 %v12874, %v12864
    %v13125 = vpack.c.b16 %v12875, %v12865
    %v13126 = vpack.c.b16 %v12876, %v12866
    %v13127 = vpack.c.b16 %v12877, %v12867
    %v13128 = vpack.c.b16 %v12888, %v12878
    %v13129 = vpack.c.b16 %v12889, %v12879
    %v13130 = vpack.c.b16 %v12890, %v12880
    %v13131 = vpack.c.b16 %v12891, %v12881
    %v13132 = vpack.c.b16 %v12892, %v12882
    %v13133 = vpack.c.b16 %v12893, %v12883
    %v13134 = vpack.c.b16 %v12894, %v12884
    %v13135 = vpack.c.b16 %v12895, %v12885
    %v13136 = vpack.c.b16 %v12896, %v12886
    %v13137 = vpack.c.b16 %v12897, %v12887
    %13378 = vmatprep.subr.bf16.mxu0 %v12969
    %13379 = vmatpush1.bf16.msra.mxu0 %v12968
    %13380 = vmatprep.subr.bf16.mxu0 %v12959
    %13381 = vmatpush1.bf16.msra.mxu0 %v12958
    %13382 = vmatprep.subr.bf16.mxu0 %v12949
    %13383 = vmatpush1.bf16.msra.mxu0 %v12948
    %13384 = vmatprep.subr.bf16.mxu0 %v12939
    %13385 = vmatpush1.bf16.msra.mxu0 %v12938
    %13386 = vmatprep.subr.bf16.mxu0 %v12929
    %13387 = vmatpush1.bf16.msra.mxu0 %v12928
    %13388 = vmatprep.subr.bf16.mxu0 %v12919
    %13389 = vmatpush1.bf16.msra.mxu0 %v12918
    %13390 = vmatprep.subr.bf16.mxu0 %v12909
    %13391 = vmatpush1.bf16.msra.mxu0 %v12908
    %13392 = vmatprep.subr.bf16.mxu0 %v12899
    %13393 = vmatpush1.bf16.msra.mxu0 %v12898
    %13394 = vmatprep.subr.bf16.mxu0 %v13049
    %13395 = vmatpush2.bf16.msra.mxu0 %v13048
    %13396 = vmatprep.subr.bf16.mxu0 %v13039
    %13397 = vmatpush2.bf16.msra.mxu0 %v13038
    %13398 = vmatprep.subr.bf16.mxu0 %v13029
    %13399 = vmatpush2.bf16.msra.mxu0 %v13028
    %13400 = vmatprep.subr.bf16.mxu0 %v13019
    %13401 = vmatpush2.bf16.msra.mxu0 %v13018
    %13402 = vmatprep.subr.bf16.mxu0 %v13009
    %13403 = vmatpush2.bf16.msra.mxu0 %v13008
    %13404 = vmatprep.subr.bf16.mxu0 %v12999
    %13405 = vmatpush2.bf16.msra.mxu0 %v12998
    %13406 = vmatprep.subr.bf16.mxu0 %v12989
    %13407 = vmatpush2.bf16.msra.mxu0 %v12988
    %13408 = vmatprep.subr.bf16.mxu0 %v12979
    %13409 = vmatpush2.bf16.msra.mxu0 %v12978
    %13410 = vmatprep.mubr.bf16.mxu0 %v1658
    %13411 = vmatmul.mubr.bf16.gmra.mxu0 %v1657
    %v13412 = vpop.f32.mrf.mxu0
    %v13413 = vadd.f32 %v12131, %v13412
    %v13414 = vpop.f32.mrf.mxu0
    %v13415 = vadd.f32 %v12135, %v13414
    %v13416 = vpop.f32.mrf.mxu0
    %v13417 = vpop.f32.mrf.mxu0
    %13418 = vdwg.mxu0
    %13419 = vmatprep.subr.bf16.mxu0 %v13129
    %13420 = vmatpush1.bf16.msra.mxu0 %v13128
    %13421 = vmatprep.subr.bf16.mxu0 %v13119
    %13422 = vmatpush1.bf16.msra.mxu0 %v13118
    %13423 = vmatprep.subr.bf16.mxu0 %v13109
    %13424 = vmatpush1.bf16.msra.mxu0 %v13108
    %13425 = vmatprep.subr.bf16.mxu0 %v13099
    %13426 = vmatpush1.bf16.msra.mxu0 %v13098
    %13427 = vmatprep.subr.bf16.mxu0 %v13089
    %13428 = vmatpush1.bf16.msra.mxu0 %v13088
    %13429 = vmatprep.subr.bf16.mxu0 %v13079
    %13430 = vmatpush1.bf16.msra.mxu0 %v13078
    %13431 = vmatprep.subr.bf16.mxu0 %v13069
    %13432 = vmatpush1.bf16.msra.mxu0 %v13068
    %13433 = vmatprep.subr.bf16.mxu0 %v13059
    %13434 = vmatpush1.bf16.msra.mxu0 %v13058
    %13435 = vmatprep.subr.bf16.mxu0 0
    %13436 = vmatpush2.bf16.msra.mxu0 0
    %13437 = vmatprep.subr.bf16.mxu0 0
    %13438 = vmatpush2.bf16.msra.mxu0 0
    %13439 = vmatprep.subr.bf16.mxu0 0
    %13440 = vmatpush2.bf16.msra.mxu0 0
    %13441 = vmatprep.subr.bf16.mxu0 0
    %13442 = vmatpush2.bf16.msra.mxu0 0
    %13443 = vmatprep.subr.bf16.mxu0 0
    %13444 = vmatpush2.bf16.msra.mxu0 0
    %13445 = vmatprep.subr.bf16.mxu0 0
    %13446 = vmatpush2.bf16.msra.mxu0 0
    %13447 = vmatprep.subr.bf16.mxu0 0
    %13448 = vmatpush2.bf16.msra.mxu0 0
    %13449 = vmatprep.subr.bf16.mxu0 0
    %13450 = vmatpush2.bf16.msra.mxu0 0
    %13451 = vmatprep.mubr.bf16.mxu0 0
    %13452 = vmatmul.mubr.bf16.gmra.mxu0 %v1659
    %v13453 = vpop.f32.mrf.mxu0
    %v13454 = vadd.f32 %v13413, %v13453
    %v13455 = vpop.f32.mrf.mxu0
    %v13456 = vadd.f32 %v13415, %v13455
    %v13457 = vpop.f32.mrf.mxu0
    %v13458 = vpop.f32.mrf.mxu0
    %13459 = vdwg.mxu0
    %13460 = vmatprep.subr.bf16.mxu0 %v12971
    %13461 = vmatpush1.bf16.msra.mxu0 %v12970
    %13462 = vmatprep.subr.bf16.mxu0 %v12961
    %13463 = vmatpush1.bf16.msra.mxu0 %v12960
    %13464 = vmatprep.subr.bf16.mxu0 %v12951
    %13465 = vmatpush1.bf16.msra.mxu0 %v12950
    %13466 = vmatprep.subr.bf16.mxu0 %v12941
    %13467 = vmatpush1.bf16.msra.mxu0 %v12940
    %13468 = vmatprep.subr.bf16.mxu0 %v12931
    %13469 = vmatpush1.bf16.msra.mxu0 %v12930
    %13470 = vmatprep.subr.bf16.mxu0 %v12921
    %13471 = vmatpush1.bf16.msra.mxu0 %v12920
    %13472 = vmatprep.subr.bf16.mxu0 %v12911
    %13473 = vmatpush1.bf16.msra.mxu0 %v12910
    %13474 = vmatprep.subr.bf16.mxu0 %v12901
    %13475 = vmatpush1.bf16.msra.mxu0 %v12900
    %13476 = vmatprep.subr.bf16.mxu0 %v13051
    %13477 = vmatpush2.bf16.msra.mxu0 %v13050
    %13478 = vmatprep.subr.bf16.mxu0 %v13041
    %13479 = vmatpush2.bf16.msra.mxu0 %v13040
    %13480 = vmatprep.subr.bf16.mxu0 %v13031
    %13481 = vmatpush2.bf16.msra.mxu0 %v13030
    %13482 = vmatprep.subr.bf16.mxu0 %v13021
    %13483 = vmatpush2.bf16.msra.mxu0 %v13020
    %13484 = vmatprep.subr.bf16.mxu0 %v13011
    %13485 = vmatpush2.bf16.msra.mxu0 %v13010
    %13486 = vmatprep.subr.bf16.mxu0 %v13001
    %13487 = vmatpush2.bf16.msra.mxu0 %v13000
    %13488 = vmatprep.subr.bf16.mxu0 %v12991
    %13489 = vmatpush2.bf16.msra.mxu0 %v12990
    %13490 = vmatprep.subr.bf16.mxu0 %v12981
    %13491 = vmatpush2.bf16.msra.mxu0 %v12980
    %13492 = vmatprep.mubr.bf16.mxu0 %v1658
    %13493 = vmatmul.mubr.bf16.gmra.mxu0 %v1657
    %v13494 = vpop.f32.mrf.mxu0
    %v13495 = vadd.f32 %v12139, %v13494
    %v13496 = vpop.f32.mrf.mxu0
    %v13497 = vadd.f32 %v12143, %v13496
    %v13498 = vpop.f32.mrf.mxu0
    %v13499 = vpop.f32.mrf.mxu0
    %13500 = vdwg.mxu0
    %13501 = vmatprep.subr.bf16.mxu0 %v13131
    %13502 = vmatpush1.bf16.msra.mxu0 %v13130
    %13503 = vmatprep.subr.bf16.mxu0 %v13121
    %13504 = vmatpush1.bf16.msra.mxu0 %v13120
    %13505 = vmatprep.subr.bf16.mxu0 %v13111
    %13506 = vmatpush1.bf16.msra.mxu0 %v13110
    %13507 = vmatprep.subr.bf16.mxu0 %v13101
    %13508 = vmatpush1.bf16.msra.mxu0 %v13100
    %13509 = vmatprep.subr.bf16.mxu0 %v13091
    %13510 = vmatpush1.bf16.msra.mxu0 %v13090
    %13511 = vmatprep.subr.bf16.mxu0 %v13081
    %13512 = vmatpush1.bf16.msra.mxu0 %v13080
    %13513 = vmatprep.subr.bf16.mxu0 %v13071
    %13514 = vmatpush1.bf16.msra.mxu0 %v13070
    %13515 = vmatprep.subr.bf16.mxu0 %v13061
    %13516 = vmatpush1.bf16.msra.mxu0 %v13060
    %13517 = vmatprep.subr.bf16.mxu0 0
    %13518 = vmatpush2.bf16.msra.mxu0 0
    %13519 = vmatprep.subr.bf16.mxu0 0
    %13520 = vmatpush2.bf16.msra.mxu0 0
    %13521 = vmatprep.subr.bf16.mxu0 0
    %13522 = vmatpush2.bf16.msra.mxu0 0
    %13523 = vmatprep.subr.bf16.mxu0 0
    %13524 = vmatpush2.bf16.msra.mxu0 0
    %13525 = vmatprep.subr.bf16.mxu0 0
    %13526 = vmatpush2.bf16.msra.mxu0 0
    %13527 = vmatprep.subr.bf16.mxu0 0
    %13528 = vmatpush2.bf16.msra.mxu0 0
    %13529 = vmatprep.subr.bf16.mxu0 0
    %13530 = vmatpush2.bf16.msra.mxu0 0
    %13531 = vmatprep.subr.bf16.mxu0 0
    %13532 = vmatpush2.bf16.msra.mxu0 0
    %13533 = vmatprep.mubr.bf16.mxu0 0
    %13534 = vmatmul.mubr.bf16.gmra.mxu0 %v1659
    %v13535 = vpop.f32.mrf.mxu0
    %v13536 = vadd.f32 %v13495, %v13535
    %v13537 = vpop.f32.mrf.mxu0
    %v13538 = vadd.f32 %v13497, %v13537
    %v13539 = vpop.f32.mrf.mxu0
    %v13540 = vpop.f32.mrf.mxu0
    %13541 = vdwg.mxu0
    %13542 = vmatprep.subr.bf16.mxu0 %v12973
    %13543 = vmatpush1.bf16.msra.mxu0 %v12972
    %13544 = vmatprep.subr.bf16.mxu0 %v12963
    %13545 = vmatpush1.bf16.msra.mxu0 %v12962
    %13546 = vmatprep.subr.bf16.mxu0 %v12953
    %13547 = vmatpush1.bf16.msra.mxu0 %v12952
    %13548 = vmatprep.subr.bf16.mxu0 %v12943
    %13549 = vmatpush1.bf16.msra.mxu0 %v12942
    %13550 = vmatprep.subr.bf16.mxu0 %v12933
    %13551 = vmatpush1.bf16.msra.mxu0 %v12932
    %13552 = vmatprep.subr.bf16.mxu0 %v12923
    %13553 = vmatpush1.bf16.msra.mxu0 %v12922
    %13554 = vmatprep.subr.bf16.mxu0 %v12913
    %13555 = vmatpush1.bf16.msra.mxu0 %v12912
    %13556 = vmatprep.subr.bf16.mxu0 %v12903
    %13557 = vmatpush1.bf16.msra.mxu0 %v12902
    %13558 = vmatprep.subr.bf16.mxu0 %v13053
    %13559 = vmatpush2.bf16.msra.mxu0 %v13052
    %13560 = vmatprep.subr.bf16.mxu0 %v13043
    %13561 = vmatpush2.bf16.msra.mxu0 %v13042
    %13562 = vmatprep.subr.bf16.mxu0 %v13033
    %13563 = vmatpush2.bf16.msra.mxu0 %v13032
    %13564 = vmatprep.subr.bf16.mxu0 %v13023
    %13565 = vmatpush2.bf16.msra.mxu0 %v13022
    %13566 = vmatprep.subr.bf16.mxu0 %v13013
    %13567 = vmatpush2.bf16.msra.mxu0 %v13012
    %13568 = vmatprep.subr.bf16.mxu0 %v13003
    %13569 = vmatpush2.bf16.msra.mxu0 %v13002
    %13570 = vmatprep.subr.bf16.mxu0 %v12993
    %13571 = vmatpush2.bf16.msra.mxu0 %v12992
    %13572 = vmatprep.subr.bf16.mxu0 %v12983
    %13573 = vmatpush2.bf16.msra.mxu0 %v12982
    %13574 = vmatprep.mubr.bf16.mxu0 %v1658
    %13575 = vmatmul.mubr.bf16.gmra.mxu0 %v1657
    %v13576 = vpop.f32.mrf.mxu0
    %v13577 = vadd.f32 %v12147, %v13576
    %v13578 = vpop.f32.mrf.mxu0
    %v13579 = vadd.f32 %v12151, %v13578
    %v13580 = vpop.f32.mrf.mxu0
    %v13581 = vpop.f32.mrf.mxu0
    %13582 = vdwg.mxu0
    %13583 = vmatprep.subr.bf16.mxu0 %v13133
    %13584 = vmatpush1.bf16.msra.mxu0 %v13132
    %13585 = vmatprep.subr.bf16.mxu0 %v13123
    %13586 = vmatpush1.bf16.msra.mxu0 %v13122
    %13587 = vmatprep.subr.bf16.mxu0 %v13113
    %13588 = vmatpush1.bf16.msra.mxu0 %v13112
    %13589 = vmatprep.subr.bf16.mxu0 %v13103
    %13590 = vmatpush1.bf16.msra.mxu0 %v13102
    %13591 = vmatprep.subr.bf16.mxu0 %v13093
    %13592 = vmatpush1.bf16.msra.mxu0 %v13092
    %13593 = vmatprep.subr.bf16.mxu0 %v13083
    %13594 = vmatpush1.bf16.msra.mxu0 %v13082
    %13595 = vmatprep.subr.bf16.mxu0 %v13073
    %13596 = vmatpush1.bf16.msra.mxu0 %v13072
    %13597 = vmatprep.subr.bf16.mxu0 %v13063
    %13598 = vmatpush1.bf16.msra.mxu0 %v13062
    %13599 = vmatprep.subr.bf16.mxu0 0
    %13600 = vmatpush2.bf16.msra.mxu0 0
    %13601 = vmatprep.subr.bf16.mxu0 0
    %13602 = vmatpush2.bf16.msra.mxu0 0
    %13603 = vmatprep.subr.bf16.mxu0 0
    %13604 = vmatpush2.bf16.msra.mxu0 0
    %13605 = vmatprep.subr.bf16.mxu0 0
    %13606 = vmatpush2.bf16.msra.mxu0 0
    %13607 = vmatprep.subr.bf16.mxu0 0
    %13608 = vmatpush2.bf16.msra.mxu0 0
    %13609 = vmatprep.subr.bf16.mxu0 0
    %13610 = vmatpush2.bf16.msra.mxu0 0
    %13611 = vmatprep.subr.bf16.mxu0 0
    %13612 = vmatpush2.bf16.msra.mxu0 0
    %13613 = vmatprep.subr.bf16.mxu0 0
    %13614 = vmatpush2.bf16.msra.mxu0 0
    %13615 = vmatprep.mubr.bf16.mxu0 0
    %13616 = vmatmul.mubr.bf16.gmra.mxu0 %v1659
    %v13617 = vpop.f32.mrf.mxu0
    %v13618 = vadd.f32 %v13577, %v13617
    %v13619 = vpop.f32.mrf.mxu0
    %v13620 = vadd.f32 %v13579, %v13619
    %v13621 = vpop.f32.mrf.mxu0
    %v13622 = vpop.f32.mrf.mxu0
    %13623 = vdwg.mxu0
    %13624 = vmatprep.subr.bf16.mxu0 %v12975
    %13625 = vmatpush1.bf16.msra.mxu0 %v12974
    %13626 = vmatprep.subr.bf16.mxu0 %v12965
    %13627 = vmatpush1.bf16.msra.mxu0 %v12964
    %13628 = vmatprep.subr.bf16.mxu0 %v12955
    %13629 = vmatpush1.bf16.msra.mxu0 %v12954
    %13630 = vmatprep.subr.bf16.mxu0 %v12945
    %13631 = vmatpush1.bf16.msra.mxu0 %v12944
    %13632 = vmatprep.subr.bf16.mxu0 %v12935
    %13633 = vmatpush1.bf16.msra.mxu0 %v12934
    %13634 = vmatprep.subr.bf16.mxu0 %v12925
    %13635 = vmatpush1.bf16.msra.mxu0 %v12924
    %13636 = vmatprep.subr.bf16.mxu0 %v12915
    %13637 = vmatpush1.bf16.msra.mxu0 %v12914
    %13638 = vmatprep.subr.bf16.mxu0 %v12905
    %13639 = vmatpush1.bf16.msra.mxu0 %v12904
    %13640 = vmatprep.subr.bf16.mxu0 %v13055
    %13641 = vmatpush2.bf16.msra.mxu0 %v13054
    %13642 = vmatprep.subr.bf16.mxu0 %v13045
    %13643 = vmatpush2.bf16.msra.mxu0 %v13044
    %13644 = vmatprep.subr.bf16.mxu0 %v13035
    %13645 = vmatpush2.bf16.msra.mxu0 %v13034
    %13646 = vmatprep.subr.bf16.mxu0 %v13025
    %13647 = vmatpush2.bf16.msra.mxu0 %v13024
    %13648 = vmatprep.subr.bf16.mxu0 %v13015
    %13649 = vmatpush2.bf16.msra.mxu0 %v13014
    %13650 = vmatprep.subr.bf16.mxu0 %v13005
    %13651 = vmatpush2.bf16.msra.mxu0 %v13004
    %13652 = vmatprep.subr.bf16.mxu0 %v12995
    %13653 = vmatpush2.bf16.msra.mxu0 %v12994
    %13654 = vmatprep.subr.bf16.mxu0 %v12985
    %13655 = vmatpush2.bf16.msra.mxu0 %v12984
    %13656 = vmatprep.mubr.bf16.mxu0 %v1658
    %13657 = vmatmul.mubr.bf16.gmra.mxu0 %v1657
    %v13658 = vpop.f32.mrf.mxu0
    %v13659 = vadd.f32 %v12155, %v13658
    %v13660 = vpop.f32.mrf.mxu0
    %v13661 = vadd.f32 %v12159, %v13660
    %v13662 = vpop.f32.mrf.mxu0
    %v13663 = vpop.f32.mrf.mxu0
    %13664 = vdwg.mxu0
    %13665 = vmatprep.subr.bf16.mxu0 %v13135
    %13666 = vmatpush1.bf16.msra.mxu0 %v13134
    %13667 = vmatprep.subr.bf16.mxu0 %v13125
    %13668 = vmatpush1.bf16.msra.mxu0 %v13124
    %13669 = vmatprep.subr.bf16.mxu0 %v13115
    %13670 = vmatpush1.bf16.msra.mxu0 %v13114
    %13671 = vmatprep.subr.bf16.mxu0 %v13105
    %13672 = vmatpush1.bf16.msra.mxu0 %v13104
    %13673 = vmatprep.subr.bf16.mxu0 %v13095
    %13674 = vmatpush1.bf16.msra.mxu0 %v13094
    %13675 = vmatprep.subr.bf16.mxu0 %v13085
    %13676 = vmatpush1.bf16.msra.mxu0 %v13084
    %13677 = vmatprep.subr.bf16.mxu0 %v13075
    %13678 = vmatpush1.bf16.msra.mxu0 %v13074
    %13679 = vmatprep.subr.bf16.mxu0 %v13065
    %13680 = vmatpush1.bf16.msra.mxu0 %v13064
    %13681 = vmatprep.subr.bf16.mxu0 0
    %13682 = vmatpush2.bf16.msra.mxu0 0
    %13683 = vmatprep.subr.bf16.mxu0 0
    %13684 = vmatpush2.bf16.msra.mxu0 0
    %13685 = vmatprep.subr.bf16.mxu0 0
    %13686 = vmatpush2.bf16.msra.mxu0 0
    %13687 = vmatprep.subr.bf16.mxu0 0
    %13688 = vmatpush2.bf16.msra.mxu0 0
    %13689 = vmatprep.subr.bf16.mxu0 0
    %13690 = vmatpush2.bf16.msra.mxu0 0
    %13691 = vmatprep.subr.bf16.mxu0 0
    %13692 = vmatpush2.bf16.msra.mxu0 0
    %13693 = vmatprep.subr.bf16.mxu0 0
    %13694 = vmatpush2.bf16.msra.mxu0 0
    %13695 = vmatprep.subr.bf16.mxu0 0
    %13696 = vmatpush2.bf16.msra.mxu0 0
    %13697 = vmatprep.mubr.bf16.mxu0 0
    %13698 = vmatmul.mubr.bf16.gmra.mxu0 %v1659
    %v13699 = vpop.f32.mrf.mxu0
    %v13700 = vadd.f32 %v13659, %v13699
    %v13701 = vpop.f32.mrf.mxu0
    %v13702 = vadd.f32 %v13661, %v13701
    %v13703 = vpop.f32.mrf.mxu0
    %v13704 = vpop.f32.mrf.mxu0
    %13705 = vdwg.mxu0
    %13706 = vmatprep.subr.bf16.mxu0 %v12977
    %13707 = vmatpush1.bf16.msra.mxu0 %v12976
    %13708 = vmatprep.subr.bf16.mxu0 %v12967
    %13709 = vmatpush1.bf16.msra.mxu0 %v12966
    %13710 = vmatprep.subr.bf16.mxu0 %v12957
    %13711 = vmatpush1.bf16.msra.mxu0 %v12956
    %13712 = vmatprep.subr.bf16.mxu0 %v12947
    %13713 = vmatpush1.bf16.msra.mxu0 %v12946
    %13714 = vmatprep.subr.bf16.mxu0 %v12937
    %13715 = vmatpush1.bf16.msra.mxu0 %v12936
    %13716 = vmatprep.subr.bf16.mxu0 %v12927
    %13717 = vmatpush1.bf16.msra.mxu0 %v12926
    %13718 = vmatprep.subr.bf16.mxu0 %v12917
    %13719 = vmatpush1.bf16.msra.mxu0 %v12916
    %13720 = vmatprep.subr.bf16.mxu0 %v12907
    %13721 = vmatpush1.bf16.msra.mxu0 %v12906
    %13722 = vmatprep.subr.bf16.mxu0 %v13057
    %13723 = vmatpush2.bf16.msra.mxu0 %v13056
    %13724 = vmatprep.subr.bf16.mxu0 %v13047
    %13725 = vmatpush2.bf16.msra.mxu0 %v13046
    %13726 = vmatprep.subr.bf16.mxu0 %v13037
    %13727 = vmatpush2.bf16.msra.mxu0 %v13036
    %13728 = vmatprep.subr.bf16.mxu0 %v13027
    %13729 = vmatpush2.bf16.msra.mxu0 %v13026
    %13730 = vmatprep.subr.bf16.mxu0 %v13017
    %13731 = vmatpush2.bf16.msra.mxu0 %v13016
    %13732 = vmatprep.subr.bf16.mxu0 %v13007
    %13733 = vmatpush2.bf16.msra.mxu0 %v13006
    %13734 = vmatprep.subr.bf16.mxu0 %v12997
    %13735 = vmatpush2.bf16.msra.mxu0 %v12996
    %13736 = vmatprep.subr.bf16.mxu0 %v12987
    %13737 = vmatpush2.bf16.msra.mxu0 %v12986
    %13738 = vmatprep.mubr.bf16.mxu0 %v1658
    %13739 = vmatmul.mubr.bf16.gmra.mxu0 %v1657
    %v13740 = vpop.f32.mrf.mxu0
    %v13741 = vadd.f32 %v12163, %v13740
    %v13742 = vpop.f32.mrf.mxu0
    %v13743 = vadd.f32 %v12167, %v13742
    %v13744 = vpop.f32.mrf.mxu0
    %v13745 = vpop.f32.mrf.mxu0
    %13746 = vdwg.mxu0
    %13747 = vmatprep.subr.bf16.mxu0 %v13137
    %13748 = vmatpush1.bf16.msra.mxu0 %v13136
    %13749 = vmatprep.subr.bf16.mxu0 %v13127
    %13750 = vmatpush1.bf16.msra.mxu0 %v13126
    %13751 = vmatprep.subr.bf16.mxu0 %v13117
    %13752 = vmatpush1.bf16.msra.mxu0 %v13116
    %13753 = vmatprep.subr.bf16.mxu0 %v13107
    %13754 = vmatpush1.bf16.msra.mxu0 %v13106
    %13755 = vmatprep.subr.bf16.mxu0 %v13097
    %13756 = vmatpush1.bf16.msra.mxu0 %v13096
    %13757 = vmatprep.subr.bf16.mxu0 %v13087
    %13758 = vmatpush1.bf16.msra.mxu0 %v13086
    %13759 = vmatprep.subr.bf16.mxu0 %v13077
    %13760 = vmatpush1.bf16.msra.mxu0 %v13076
    %13761 = vmatprep.subr.bf16.mxu0 %v13067
    %13762 = vmatpush1.bf16.msra.mxu0 %v13066
    %13763 = vmatprep.subr.bf16.mxu0 0
    %13764 = vmatpush2.bf16.msra.mxu0 0
    %13765 = vmatprep.subr.bf16.mxu0 0
    %13766 = vmatpush2.bf16.msra.mxu0 0
    %13767 = vmatprep.subr.bf16.mxu0 0
    %13768 = vmatpush2.bf16.msra.mxu0 0
    %13769 = vmatprep.subr.bf16.mxu0 0
    %13770 = vmatpush2.bf16.msra.mxu0 0
    %13771 = vmatprep.subr.bf16.mxu0 0
    %13772 = vmatpush2.bf16.msra.mxu0 0
    %13773 = vmatprep.subr.bf16.mxu0 0
    %13774 = vmatpush2.bf16.msra.mxu0 0
    %13775 = vmatprep.subr.bf16.mxu0 0
    %13776 = vmatpush2.bf16.msra.mxu0 0
    %13777 = vmatprep.subr.bf16.mxu0 0
    %13778 = vmatpush2.bf16.msra.mxu0 0
    %13779 = vmatprep.mubr.bf16.mxu0 0
    %13780 = vmatmul.mubr.bf16.gmra.mxu0 %v1659
    %v13781 = vpop.f32.mrf.mxu0
    %v13782 = vadd.f32 %v13741, %v13781
    %v13783 = vpop.f32.mrf.mxu0
    %v13784 = vadd.f32 %v13743, %v13783
    %v13785 = vpop.f32.mrf.mxu0
    %v13786 = vpop.f32.mrf.mxu0
    %13787 = vdwg.mxu0
    %v13788 = vmul.f32 %v13454, 0.5
    %v13789 = vmul.f32 %v13456, 0.5
    %v13790 = vmul.f32 %v13536, 0.5
    %v13791 = vmul.f32 %v13538, 0.5
    %v13792 = vmul.f32 %v13618, 0.5
    %v13793 = vmul.f32 %v13620, 0.5
    %v13794 = vmul.f32 %v13700, 0.5
    %v13795 = vmul.f32 %v13702, 0.5
    %v13796 = vmul.f32 %v13782, 0.5
    %v13797 = vmul.f32 %v13784, 0.5
    %v13798 = vmul.f32 %v13454, 0.70710677
    %v13799 = vmul.f32 %v13456, 0.70710677
    %v13800 = vmul.f32 %v13536, 0.70710677
    %v13801 = vmul.f32 %v13538, 0.70710677
    %v13802 = vmul.f32 %v13618, 0.70710677
    %v13803 = vmul.f32 %v13620, 0.70710677
    %v13804 = vmul.f32 %v13700, 0.70710677
    %v13805 = vmul.f32 %v13702, 0.70710677
    %v13806 = vmul.f32 %v13782, 0.70710677
    %v13807 = vmul.f32 %v13784, 0.70710677
    %v13808 = verf.f32.pop %v13798
    %v13809 = verf.f32.pop %v13799
    %v13810 = verf.f32.pop %v13800
    %v13811 = verf.f32.pop %v13801
    %v13812 = verf.f32.pop %v13802
    %v13813 = verf.f32.pop %v13803
    %v13814 = verf.f32.pop %v13804
    %v13815 = verf.f32.pop %v13805
    %v13816 = verf.f32.pop %v13806
    %v13817 = verf.f32.pop %v13807
    %v13818 = vadd.f32 %v13808, 1.0
    %v13819 = vadd.f32 %v13809, 1.0
    %v13820 = vadd.f32 %v13810, 1.0
    %v13821 = vadd.f32 %v13811, 1.0
    %v13822 = vadd.f32 %v13812, 1.0
    %v13823 = vadd.f32 %v13813, 1.0
    %v13824 = vadd.f32 %v13814, 1.0
    %v13825 = vadd.f32 %v13815, 1.0
    %v13826 = vadd.f32 %v13816, 1.0
    %v13827 = vadd.f32 %v13817, 1.0
    %v13828 = vmul.f32 %v13788, %v13818
    %v13829 = vmul.f32 %v13789, %v13819
    %v13830 = vmul.f32 %v13790, %v13820
    %v13831 = vmul.f32 %v13791, %v13821
    %v13832 = vmul.f32 %v13792, %v13822
    %v13833 = vmul.f32 %v13793, %v13823
    %v13834 = vmul.f32 %v13794, %v13824
    %v13835 = vmul.f32 %v13795, %v13825
    %v13836 = vmul.f32 %v13796, %v13826
    %v13837 = vmul.f32 %v13797, %v13827
    %v13838 = vpack.c.bf16 %v13828, %v13828
    %v13839 = vpack.c.bf16 %v13829, %v13829
    %v13840 = vpack.c.bf16 %v13830, %v13830
    %v13841 = vpack.c.bf16 %v13831, %v13831
    %v13842 = vpack.c.bf16 %v13832, %v13832
    %v13843 = vpack.c.bf16 %v13833, %v13833
    %v13844 = vpack.c.bf16 %v13834, %v13834
    %v13845 = vpack.c.bf16 %v13835, %v13835
    %v13846 = vpack.c.bf16 %v13836, %v13836
    %v13847 = vpack.c.bf16 %v13837, %v13837
    %v13858 = vcombine.low %v13838, %v13839
    %v13859 = vcombine.low %v13840, %v13841
    %v13860 = vcombine.low %v13842, %v13843
    %v13861 = vcombine.low %v13844, %v13845
    %v13863 = vunpack.c.l.s4 1966171168
    %v13864 = vunpack.c.0.s8 %v13863
    %v13865 = vlaneseq
    %v13866 = vshrl.u32 %v13865, 7
    %v13867 = vsub.s32 %v13864, %v13866
    %v13868 = vrot.slane %v13858, %v13867
    %v13870 = vunpack.c.l.s4 1966171168
    %v13871 = vunpack.c.0.s8 %v13870
    %v13872 = vlaneseq
    %v13873 = vshrl.u32 %v13872, 7
    %v13874 = vsub.s32 %v13871, %v13873
    %v13875 = vrot.slane %v13859, %v13874
    %v13877 = vunpack.c.l.s4 1966171168
    %v13878 = vunpack.c.0.s8 %v13877
    %v13879 = vlaneseq
    %v13880 = vshrl.u32 %v13879, 7
    %v13881 = vsub.s32 %v13878, %v13880
    %v13882 = vrot.slane %v13860, %v13881
    %v13884 = vunpack.c.l.s4 1966171168
    %v13885 = vunpack.c.0.s8 %v13884
    %v13886 = vlaneseq
    %v13887 = vshrl.u32 %v13886, 7
    %v13888 = vsub.s32 %v13885, %v13887
    %v13889 = vrot.slane %v13861, %v13888
    %v13890 = vcombine.low %v13868, %v13875
    %v13891 = vcombine.low %v13882, %v13889
    %v13893 = vunpack.c.l.s4 1966171168
    %v13894 = vunpack.c.0.s8 %v13893
    %v13895 = vlaneseq
    %v13896 = vshrl.u32 %v13895, 7
    %v13897 = vsub.s32 %v13894, %v13896
    %v13898 = vrot.slane %v13890, %v13897
    %v13900 = vunpack.c.l.s4 1966171168
    %v13901 = vunpack.c.0.s8 %v13900
    %v13902 = vlaneseq
    %v13903 = vshrl.u32 %v13902, 7
    %v13904 = vsub.s32 %v13901, %v13903
    %v13905 = vrot.slane %v13891, %v13904
    %v13906 = vcombine.low %v13898, %v13905
    %v13907 = vcombine.low %v13846, %v13847
    %v13909 = vunpack.c.l.s4 1966171168
    %v13910 = vunpack.c.0.s8 %v13909
    %v13911 = vlaneseq
    %v13912 = vshrl.u32 %v13911, 7
    %v13913 = vsub.s32 %v13910, %v13912
    %v13914 = vrot.slane %v13907, %v13913
    %v13916 = vunpack.c.l.s4 1966171168
    %v13917 = vunpack.c.0.s8 %v13916
    %v13918 = vlaneseq
    %v13919 = vshrl.u32 %v13918, 7
    %v13920 = vsub.s32 %v13917, %v13919
    %v13921 = vrot.slane %v13914, %v13920
    %s13924 = scalar_lea.vmem [#allocation17], 50
    %13925 = vst [vmem:[%s13924] sm:$0xff] %v13906
    %13926 = vst [vmem:[%s13924 + $0x8] sm:$0x3] %v13921
    // Predicated region
    $region62: #{tpu_custom_call.1} parent=1 // pred_check
      _
    $region63: #{tpu_custom_call.1} parent=1 // pred_check_branch
      %13928 = sbr.rel (0) target = $region65
    $region64: #{tpu_custom_call.1} parent=1 // pred_region
      %s13930 = ssub.s32 96, 96
      %13931 = vsyncadd [#allocation4], %s13930
      %s13933 = sshll.u32 [#allocation14], 4
      %s13934 = int_to_ptr.vmem [resolvable:$true] %s13933
      %13936 = dma.vmem_to_hbm [thread:$0]  %s13934, 96, %s8, [#allocation4]
    $region65: #{tpu_custom_call.1} parent=1 // pred_fallthru
      _
    // Predicated region
    $region66: #{tpu_custom_call.1} parent=1 // pred_check
      _
    $region67: #{tpu_custom_call.1} parent=1 // pred_check_branch
      %13938 = sbr.rel (0) target = $region69
    $region68: #{tpu_custom_call.1} parent=1 // pred_region
      %s13940 = ssub.s32 96, 96
      %13941 = vsyncadd [#allocation16], %s13940
      %s13943 = sshll.u32 [#allocation15], 4
      %s13944 = int_to_ptr.vmem [resolvable:$true] %s13943
      %13946 = dma.vmem_to_hbm [thread:$0]  %s13944, 96, %s9, [#allocation16]
    $region69: #{tpu_custom_call.1} parent=1 // pred_fallthru
      _
    // Predicated region
    $region70: #{tpu_custom_call.1} parent=1 // pred_check
      _
    $region71: #{tpu_custom_call.1} parent=1 // pred_check_branch
      %13948 = sbr.rel (0) target = $region73
    $region72: #{tpu_custom_call.1} parent=1 // pred_region
      %s13950 = ssub.s32 960, 960
      %13951 = vsyncadd [#allocation16], %s13950
      %s13952 = sshll.u32 [#allocation17], 4
      %s13953 = int_to_ptr.vmem [resolvable:$true] %s13952
      %13958 = dma.vmem_to_hbm [thread:$0]  %s13953, 960, %s10, [#allocation16], 160, 160, 10
    $region73: #{tpu_custom_call.1} parent=1 // pred_fallthru
      _
    // Predicated region
    $region74: #{tpu_custom_call.1} parent=1 // pred_check
      _
    $region75: #{tpu_custom_call.1} parent=1 // pred_check_branch
      %13960 = sbr.rel (0) target = $region77
    $region76: #{tpu_custom_call.1} parent=1 // pred_region
      %13961 = dma.done [#allocation4], 96
    $region77: #{tpu_custom_call.1} parent=1 // pred_fallthru
      _
    // Predicated region
    $region78: #{tpu_custom_call.1} parent=1 // pred_check
      _
    $region79: #{tpu_custom_call.1} parent=1 // pred_check_branch
      %13963 = sbr.rel (0) target = $region81
    $region80: #{tpu_custom_call.1} parent=1 // pred_region
      %13964 = dma.done [#allocation16], 96
    $region81: #{tpu_custom_call.1} parent=1 // pred_fallthru
      _
    // Predicated region
    $region82: #{tpu_custom_call.1} parent=1 // pred_check
      _
    $region83: #{tpu_custom_call.1} parent=1 // pred_check_branch
      %13966 = sbr.rel (0) target = $region85
    $region84: #{tpu_custom_call.1} parent=1 // pred_region
      %13967 = dma.done [#allocation16], 960
    $region85: #{tpu_custom_call.1} parent=1 // pred_fallthru
      _
    %13968 = vsyncpa [#allocation3], 1
    %13969 = vsyncpa [#allocation6], 1
    %13970 = vsyncpa [#allocation9], 1
    %13971 = vsyncpa [#allocation12], 1
    %13972 = vsyncpa [#allocation4], 1
    %13973 = vsyncpa [#allocation16], 1

</llo_original>
